<compile_context>
chip_gen: v5e
topology: v5e:2x2
jax: 0.10.0
libtpu: 0.0.40
codegen_flags: <defaults>
</compile_context>

<pallas_src>
import math

import numpy as np

import jax
import jax.numpy as jnp
from jax.experimental import pallas as pl
from jax.experimental.pallas import tpu as pltpu

_VMEM = pl.BlockSpec(memory_space=pltpu.MemorySpace.VMEM)


# --------------------------- in-kernel helpers -------------------------------

def _layernorm(x, g, b, eps=1e-5):
    mean = jnp.mean(x, axis=-1, keepdims=True)
    var = jnp.mean(jnp.square(x - mean), axis=-1, keepdims=True)
    return (x - mean) * jax.lax.rsqrt(var + eps) * g + b


def _bidir_gru_layer(x_flat, s_len, bsz, h_dim,
                     wih_ref, bih_ref, whhf_ref, whhb_ref, bhhf_ref, bhhb_ref,
                     last_only=False):
    """Fused bidirectional GRU layer on time-major rows (row = t*B + b).

    The input projection for BOTH directions is hoisted into one matmul
    (gi = X @ [Wih_f | Wih_b]); the fully unrolled serial loop only does the
    h @ Whh recurrence for the two directions.
    If last_only=True, only the t = S-1 output is produced: full forward
    recurrence without per-step stores + a single backward step.
    """
    g3 = 3 * h_dim
    gi = jnp.dot(x_flat, wih_ref[...], preferred_element_type=jnp.float32) + bih_ref[...]
    whh_f = whhf_ref[...]
    whh_b = whhb_ref[...]
    bhh_f = bhhf_ref[...]
    bhh_b = bhhb_ref[...]
    zeros = jnp.zeros((bsz, h_dim), jnp.float32)

    def cell(gi_g, hprev, whh, bhh):
        gh = jnp.dot(hprev, whh, preferred_element_type=jnp.float32) + bhh
        r = jax.nn.sigmoid(gi_g[:, :h_dim] + gh[:, :h_dim])
        z = jax.nn.sigmoid(gi_g[:, h_dim:2 * h_dim] + gh[:, h_dim:2 * h_dim])
        n = jnp.tanh(gi_g[:, 2 * h_dim:] + r * gh[:, 2 * h_dim:])
        return (1.0 - z) * n + z * hprev

    if last_only:
        h_f = zeros
        for t in range(s_len):
            h_f = cell(gi[t * bsz:(t + 1) * bsz, :g3], h_f, whh_f, bhh_f)
        h_b = cell(gi[(s_len - 1) * bsz:s_len * bsz, g3:], zeros, whh_b, bhh_b)
        return jnp.concatenate([h_f, h_b], axis=1)                        # (B, 2h)

    h_f = zeros
    h_b = zeros
    fwd = [None] * s_len
    bwd = [None] * s_len
    for t in range(s_len):
        h_f = cell(gi[t * bsz:(t + 1) * bsz, :g3], h_f, whh_f, bhh_f)
        fwd[t] = h_f
        tb = s_len - 1 - t
        h_b = cell(gi[tb * bsz:(tb + 1) * bsz, g3:], h_b, whh_b, bhh_b)
        bwd[tb] = h_b
    return jnp.concatenate(
        [jnp.concatenate([fwd[t], bwd[t]], axis=1) for t in range(s_len)], axis=0)  # (S*B, 2h)


def _mha(x_flat, mask, in_w_ref, in_b_ref, out_w_ref, out_b_ref, num_heads):
    """Multi-head self-attention on time-major rows (S*B, E).

    All batches stay stacked on the row axis; `mask` adds -1e30 to cross-batch
    score entries so the joint softmax equals per-batch softmax exactly.
    Heads are an unrolled loop over static lane slices of the E axis.
    """
    _, e = x_flat.shape
    dh = e // num_heads
    scale = 1.0 / math.sqrt(dh)
    qkv = jnp.dot(x_flat, in_w_ref[...], preferred_element_type=jnp.float32) + in_b_ref[...]
    heads = []
    for hh in range(num_heads):
        qh = qkv[:, hh * dh:(hh + 1) * dh]
        kh = qkv[:, e + hh * dh:e + (hh + 1) * dh]
        vh = qkv[:, 2 * e + hh * dh:2 * e + (hh + 1) * dh]
        s = jax.lax.dot_general(qh, kh, (((1,), (1,)), ((), ())),
                                preferred_element_type=jnp.float32) * scale
        p = jax.nn.softmax(s + mask, axis=-1)
        heads.append(jnp.dot(p, vh, preferred_element_type=jnp.float32))
    o = jnp.concatenate(heads, axis=1)                                     # (S*B, E)
    return jnp.dot(o, out_w_ref[...], preferred_element_type=jnp.float32) + out_b_ref[...]


# --------------------------- fused forward kernel ----------------------------

def _make_fused_kernel(s_len, bsz, hidden, num_heads):
    h_dec = hidden // 2

    def kernel(*refs):
        (x_ref, mask_ref,
         enc0_wih, enc0_bih, enc0_whhf, enc0_whhb, enc0_bhhf, enc0_bhhb,
         enc1_wih, enc1_bih, enc1_whhf, enc1_whhb, enc1_bhhf, enc1_bhhb,
         dec0_wih, dec0_bih, dec0_whhf, dec0_whhb, dec0_bhhf, dec0_bhhb,
         dec1_wih, dec1_bih, dec1_whhf, dec1_whhb, dec1_bhhf, dec1_bhhb,
         ln1_g, ln1_b, in_w, in_b, out_w, out_b, ln2_g, ln2_b,
         fe_w1, fe_b1, fe_w2, fe_b2,
         cl_w1, cl_b1, cl_w2, cl_b2, cl_w3, cl_b3,
         out_ref) = refs

        x = x_ref[...]                                              # (S*B, Din), time-major

        # Encoder: 2-layer bidirectional GRU.
        # TODO(synk): nn.Dropout (between GRU layers, after attention, in the MLP)
        # is identity at inference and is omitted.
        h = _bidir_gru_layer(x, s_len, bsz, hidden,
                             enc0_wih, enc0_bih, enc0_whhf, enc0_whhb, enc0_bhhf, enc0_bhhb)
        h = _bidir_gru_layer(h, s_len, bsz, hidden,
                             enc1_wih, enc1_bih, enc1_whhf, enc1_whhb, enc1_bhhf, enc1_bhhb)

        # LayerNorm1 + multi-head self-attention.
        h = _layernorm(h, ln1_g[...], ln1_b[...])
        h = _mha(h, mask_ref[...], in_w, in_b, out_w, out_b, num_heads)

        # Decoder: 2-layer bidirectional GRU; only t = S-1 of the last layer is used.
        h = _bidir_gru_layer(h, s_len, bsz, h_dec,
                             dec0_wih, dec0_bih, dec0_whhf, dec0_whhb, dec0_bhhf, dec0_bhhb)
        last = _bidir_gru_layer(h, s_len, bsz, h_dec,
                                dec1_wih, dec1_bih, dec1_whhf, dec1_whhb, dec1_bhhf, dec1_bhhb,
                                last_only=True)                     # (B, H)

        # LayerNorm2 + MLP head.
        y = _layernorm(last, ln2_g[...], ln2_b[...])
        y = jnp.maximum(jnp.dot(y, fe_w1[...], preferred_element_type=jnp.float32) + fe_b1[...], 0.0)
        y = jnp.maximum(jnp.dot(y, fe_w2[...], preferred_element_type=jnp.float32) + fe_b2[...], 0.0)
        y = jnp.maximum(jnp.dot(y, cl_w1[...], preferred_element_type=jnp.float32) + cl_b1[...], 0.0)
        y = jnp.maximum(jnp.dot(y, cl_w2[...], preferred_element_type=jnp.float32) + cl_b2[...], 0.0)
        y = jax.nn.sigmoid(jnp.dot(y, cl_w3[...], preferred_element_type=jnp.float32) + cl_b3[...])
        out_ref[...] = y

    return kernel


# --------------------------- wrapper ------------------------------------------

def _flatten_params(params):
    flat = []
    for layer in params["encoder"] + params["decoder"]:
        flat.extend(layer)  # (wih, bih, whh_f, whh_b, bhh_f, bhh_b)
    flat.extend([
        params["ln1_g"], params["ln1_b"],
        params["attn"]["in_w"], params["attn"]["in_b"],
        params["attn"]["out_w"], params["attn"]["out_b"],
        params["ln2_g"], params["ln2_b"],
        params["fe_w1"], params["fe_b1"], params["fe_w2"], params["fe_b2"],
        params["cl_w1"], params["cl_b1"], params["cl_w2"], params["cl_b2"],
        params["cl_w3"], params["cl_b3"],
    ])
    return flat


def phishing_detector_forward(x, params, hidden_size, num_heads=8):
    b, s, d_in = x.shape

    # Only XLA glue: batch-first (B,S,D) -> time-major rows (S*B, D), row = t*B + b.
    x_tm = jnp.transpose(x, (1, 0, 2)).reshape(s * b, d_in)

    # Additive attention mask keeping scores within each batch element
    # (batch id of a time-major row is row % B).  Built at trace time (static).
    rows = np.arange(s * b)
    mask_np = np.where((rows[:, None] % b) == (rows[None, :] % b), 0.0, -1e30)
    mask = jnp.asarray(mask_np.astype(np.float32))

    flat_params = _flatten_params(params)
    kernel = _make_fused_kernel(s, b, hidden_size, num_heads)
    return pl.pallas_call(
        kernel,
        out_shape=jax.ShapeDtypeStruct((b, 1), jnp.float32),
        in_specs=[_VMEM] * (2 + len(flat_params)),
        out_specs=_VMEM,
    )(x_tm, mask, *flat_params)


# --------------------------- deterministic init -------------------------------

def _dense_init(key, shape, scale=0.1):
    return scale * jax.random.normal(key, shape, jnp.float32)


def init_params(key, input_size, hidden_size, num_layers=2):
    e = 2 * hidden_size
    h_dec = hidden_size // 2
    keys = iter(jax.random.split(key, 256))

    def gru_layers(in_size, h):
        layers = []
        sz = in_size
        for _ in range(num_layers):
            layers.append((
                _dense_init(next(keys), (sz, 6 * h)),   # W_ih^T packed [fwd|bwd], gates [r,z,n]
                _dense_init(next(keys), (1, 6 * h)),    # b_ih packed [fwd|bwd]
                _dense_init(next(keys), (h, 3 * h)),    # W_hh^T forward
                _dense_init(next(keys), (h, 3 * h)),    # W_hh^T backward
                _dense_init(next(keys), (1, 3 * h)),    # b_hh forward
                _dense_init(next(keys), (1, 3 * h)),    # b_hh backward
            ))
            sz = 2 * h                                  # next layer sees bidir concat
        return layers

    return {
        "encoder": gru_layers(input_size, hidden_size),
        "decoder": gru_layers(e, h_dec),
        "ln1_g": jnp.ones((1, e), jnp.float32),
        "ln1_b": jnp.zeros((1, e), jnp.float32),
        "ln2_g": jnp.ones((1, hidden_size), jnp.float32),
        "ln2_b": jnp.zeros((1, hidden_size), jnp.float32),
        "attn": {
            "in_w": _dense_init(next(keys), (e, 3 * e)),
            "in_b": _dense_init(next(keys), (1, 3 * e)),
            "out_w": _dense_init(next(keys), (e, e)),
            "out_b": _dense_init(next(keys), (1, e)),
        },
        "fe_w1": _dense_init(next(keys), (hidden_size, hidden_size // 2)),
        "fe_b1": _dense_init(next(keys), (1, hidden_size // 2)),
        "fe_w2": _dense_init(next(keys), (hidden_size // 2, hidden_size // 4)),
        "fe_b2": _dense_init(next(keys), (1, hidden_size // 4)),
        "cl_w1": _dense_init(next(keys), (hidden_size // 4, 32)),
        "cl_b1": _dense_init(next(keys), (1, 32)),
        "cl_w2": _dense_init(next(keys), (32, 16)),
        "cl_b2": _dense_init(next(keys), (1, 16)),
        "cl_w3": _dense_init(next(keys), (16, 1)),
        "cl_b3": _dense_init(next(keys), (1, 1)),
    }


# --------------------------- main ---------------------------------------------

if __name__ == "__main__":
    B, S, INPUT_SIZE, HIDDEN, HEADS = 2, 8, 16, 32, 8
    key = jax.random.PRNGKey(0)
    kx, kp = jax.random.split(key)
    x = jax.random.normal(kx, (B, S, INPUT_SIZE), jnp.float32)
    params = init_params(kp, INPUT_SIZE, HIDDEN, num_layers=2)

    fwd = jax.jit(lambda xx, pp: phishing_detector_forward(xx, pp, HIDDEN, HEADS))
    out = fwd(x, params)
    jax.block_until_ready(out)

    assert out.shape == (B, 1), out.shape
    assert bool(jnp.all((out >= 0.0) & (out <= 1.0)))
    print("KERNEL_OK")
</pallas_src>

<mosaic_0001>
module attributes {stable_mosaic.version = 11 : i64} {
  func.func @kernel(%arg0: memref<16x16xf32, #tpu.memory_space<vmem>>, %arg1: memref<16x16xf32, #tpu.memory_space<vmem>>, %arg2: memref<16x192xf32, #tpu.memory_space<vmem>>, %arg3: memref<1x192xf32, #tpu.memory_space<vmem>>, %arg4: memref<32x96xf32, #tpu.memory_space<vmem>>, %arg5: memref<32x96xf32, #tpu.memory_space<vmem>>, %arg6: memref<1x96xf32, #tpu.memory_space<vmem>>, %arg7: memref<1x96xf32, #tpu.memory_space<vmem>>, %arg8: memref<64x192xf32, #tpu.memory_space<vmem>>, %arg9: memref<1x192xf32, #tpu.memory_space<vmem>>, %arg10: memref<32x96xf32, #tpu.memory_space<vmem>>, %arg11: memref<32x96xf32, #tpu.memory_space<vmem>>, %arg12: memref<1x96xf32, #tpu.memory_space<vmem>>, %arg13: memref<1x96xf32, #tpu.memory_space<vmem>>, %arg14: memref<64x96xf32, #tpu.memory_space<vmem>>, %arg15: memref<1x96xf32, #tpu.memory_space<vmem>>, %arg16: memref<16x48xf32, #tpu.memory_space<vmem>>, %arg17: memref<16x48xf32, #tpu.memory_space<vmem>>, %arg18: memref<1x48xf32, #tpu.memory_space<vmem>>, %arg19: memref<1x48xf32, #tpu.memory_space<vmem>>, %arg20: memref<32x96xf32, #tpu.memory_space<vmem>>, %arg21: memref<1x96xf32, #tpu.memory_space<vmem>>, %arg22: memref<16x48xf32, #tpu.memory_space<vmem>>, %arg23: memref<16x48xf32, #tpu.memory_space<vmem>>, %arg24: memref<1x48xf32, #tpu.memory_space<vmem>>, %arg25: memref<1x48xf32, #tpu.memory_space<vmem>>, %arg26: memref<1x64xf32, #tpu.memory_space<vmem>>, %arg27: memref<1x64xf32, #tpu.memory_space<vmem>>, %arg28: memref<64x192xf32, #tpu.memory_space<vmem>>, %arg29: memref<1x192xf32, #tpu.memory_space<vmem>>, %arg30: memref<64x64xf32, #tpu.memory_space<vmem>>, %arg31: memref<1x64xf32, #tpu.memory_space<vmem>>, %arg32: memref<1x32xf32, #tpu.memory_space<vmem>>, %arg33: memref<1x32xf32, #tpu.memory_space<vmem>>, %arg34: memref<32x16xf32, #tpu.memory_space<vmem>>, %arg35: memref<1x16xf32, #tpu.memory_space<vmem>>, %arg36: memref<16x8xf32, #tpu.memory_space<vmem>>, %arg37: memref<1x8xf32, #tpu.memory_space<vmem>>, %arg38: memref<8x32xf32, #tpu.memory_space<vmem>>, %arg39: memref<1x32xf32, #tpu.memory_space<vmem>>, %arg40: memref<32x16xf32, #tpu.memory_space<vmem>>, %arg41: memref<1x16xf32, #tpu.memory_space<vmem>>, %arg42: memref<16x1xf32, #tpu.memory_space<vmem>>, %arg43: memref<1x1xf32, #tpu.memory_space<vmem>>, %arg44: memref<2x1xf32, #tpu.memory_space<vmem>>) attributes {dimension_semantics = [], scalar_prefetch = 0 : i64, scratch_operands = 0 : i64, tpu.core_type = #tpu.core_type<tc>} {
    %c0 = arith.constant 0 : index
    %c0_0 = arith.constant 0 : index
    %0 = vector.load %arg0[%c0, %c0_0] : memref<16x16xf32, #tpu.memory_space<vmem>>, vector<16x16xf32>
    %c0_1 = arith.constant 0 : index
    %c0_2 = arith.constant 0 : index
    %1 = vector.load %arg2[%c0_1, %c0_2] : memref<16x192xf32, #tpu.memory_space<vmem>>, vector<16x192xf32>
    %cst = arith.constant dense<0.000000e+00> : vector<16x192xf32>
    %2 = tpu.matmul %0, %1, %cst {dimension_numbers = #tpu.dot_dimension_numbers<[1], [0], [0], [1], [0, 0, 1, 1], [], []>} : vector<16x16xf32>, vector<16x192xf32>, vector<16x192xf32> -> vector<16x192xf32>
    %c0_3 = arith.constant 0 : index
    %c0_4 = arith.constant 0 : index
    %3 = vector.load %arg3[%c0_3, %c0_4] : memref<1x192xf32, #tpu.memory_space<vmem>>, vector<1x192xf32>
    %4 = vector.broadcast %3 : vector<1x192xf32> to vector<16x192xf32>
    %5 = arith.addf %2, %4 : vector<16x192xf32>
    %c0_5 = arith.constant 0 : index
    %c0_6 = arith.constant 0 : index
    %6 = vector.load %arg4[%c0_5, %c0_6] : memref<32x96xf32, #tpu.memory_space<vmem>>, vector<32x96xf32>
    %c0_7 = arith.constant 0 : index
    %c0_8 = arith.constant 0 : index
    %7 = vector.load %arg5[%c0_7, %c0_8] : memref<32x96xf32, #tpu.memory_space<vmem>>, vector<32x96xf32>
    %c0_9 = arith.constant 0 : index
    %c0_10 = arith.constant 0 : index
    %8 = vector.load %arg6[%c0_9, %c0_10] : memref<1x96xf32, #tpu.memory_space<vmem>>, vector<1x96xf32>
    %c0_11 = arith.constant 0 : index
    %c0_12 = arith.constant 0 : index
    %9 = vector.load %arg7[%c0_11, %c0_12] : memref<1x96xf32, #tpu.memory_space<vmem>>, vector<1x96xf32>
    %cst_13 = arith.constant 0.000000e+00 : f32
    %10 = vector.broadcast %cst_13 : f32 to vector<2x32xf32>
    %11 = vector.extract_strided_slice %5 {offsets = [0, 0], sizes = [2, 96], strides = [1, 1]} : vector<16x192xf32> to vector<2x96xf32>
    %cst_14 = arith.constant dense<0.000000e+00> : vector<2x96xf32>
    %12 = tpu.matmul %10, %6, %cst_14 {dimension_numbers = #tpu.dot_dimension_numbers<[1], [0], [0], [1], [0, 0, 1, 1], [], []>} : vector<2x32xf32>, vector<32x96xf32>, vector<2x96xf32> -> vector<2x96xf32>
    %13 = vector.broadcast %8 : vector<1x96xf32> to vector<2x96xf32>
    %14 = arith.addf %12, %13 : vector<2x96xf32>
    %15 = vector.extract_strided_slice %11 {offsets = [0, 0], sizes = [2, 32], strides = [1, 1]} : vector<2x96xf32> to vector<2x32xf32>
    %16 = vector.extract_strided_slice %14 {offsets = [0, 0], sizes = [2, 32], strides = [1, 1]} : vector<2x96xf32> to vector<2x32xf32>
    %17 = arith.addf %15, %16 : vector<2x32xf32>
    %18 = arith.negf %17 : vector<2x32xf32>
    %19 = math.exp %18 : vector<2x32xf32>
    %cst_15 = arith.constant 1.000000e+00 : f32
    %20 = vector.broadcast %cst_15 : f32 to vector<2x32xf32>
    %21 = arith.addf %20, %19 : vector<2x32xf32>
    %22 = arith.divf %20, %21 : vector<2x32xf32>
    %23 = vector.extract_strided_slice %11 {offsets = [0, 32], sizes = [2, 32], strides = [1, 1]} : vector<2x96xf32> to vector<2x32xf32>
    %24 = vector.extract_strided_slice %14 {offsets = [0, 32], sizes = [2, 32], strides = [1, 1]} : vector<2x96xf32> to vector<2x32xf32>
    %25 = arith.addf %23, %24 : vector<2x32xf32>
    %26 = arith.negf %25 : vector<2x32xf32>
    %27 = math.exp %26 : vector<2x32xf32>
    %cst_16 = arith.constant 1.000000e+00 : f32
    %28 = vector.broadcast %cst_16 : f32 to vector<2x32xf32>
    %29 = arith.addf %28, %27 : vector<2x32xf32>
    %30 = arith.divf %28, %29 : vector<2x32xf32>
    %31 = vector.extract_strided_slice %11 {offsets = [0, 64], sizes = [2, 32], strides = [1, 1]} : vector<2x96xf32> to vector<2x32xf32>
    %32 = vector.extract_strided_slice %14 {offsets = [0, 64], sizes = [2, 32], strides = [1, 1]} : vector<2x96xf32> to vector<2x32xf32>
    %33 = arith.mulf %22, %32 : vector<2x32xf32>
    %34 = arith.addf %31, %33 : vector<2x32xf32>
    %35 = math.tanh %34 : vector<2x32xf32>
    %cst_17 = arith.constant 1.000000e+00 : f32
    %36 = vector.broadcast %cst_17 : f32 to vector<2x32xf32>
    %37 = arith.subf %36, %30 : vector<2x32xf32>
    %38 = arith.mulf %37, %35 : vector<2x32xf32>
    %39 = arith.mulf %30, %10 : vector<2x32xf32>
    %40 = arith.addf %38, %39 : vector<2x32xf32>
    %41 = vector.extract_strided_slice %5 {offsets = [14, 96], sizes = [2, 96], strides = [1, 1]} : vector<16x192xf32> to vector<2x96xf32>
    %cst_18 = arith.constant dense<0.000000e+00> : vector<2x96xf32>
    %42 = tpu.matmul %10, %7, %cst_18 {dimension_numbers = #tpu.dot_dimension_numbers<[1], [0], [0], [1], [0, 0, 1, 1], [], []>} : vector<2x32xf32>, vector<32x96xf32>, vector<2x96xf32> -> vector<2x96xf32>
    %43 = vector.broadcast %9 : vector<1x96xf32> to vector<2x96xf32>
    %44 = arith.addf %42, %43 : vector<2x96xf32>
    %45 = vector.extract_strided_slice %41 {offsets = [0, 0], sizes = [2, 32], strides = [1, 1]} : vector<2x96xf32> to vector<2x32xf32>
    %46 = vector.extract_strided_slice %44 {offsets = [0, 0], sizes = [2, 32], strides = [1, 1]} : vector<2x96xf32> to vector<2x32xf32>
    %47 = arith.addf %45, %46 : vector<2x32xf32>
    %48 = arith.negf %47 : vector<2x32xf32>
    %49 = math.exp %48 : vector<2x32xf32>
    %cst_19 = arith.constant 1.000000e+00 : f32
    %50 = vector.broadcast %cst_19 : f32 to vector<2x32xf32>
    %51 = arith.addf %50, %49 : vector<2x32xf32>
    %52 = arith.divf %50, %51 : vector<2x32xf32>
    %53 = vector.extract_strided_slice %41 {offsets = [0, 32], sizes = [2, 32], strides = [1, 1]} : vector<2x96xf32> to vector<2x32xf32>
    %54 = vector.extract_strided_slice %44 {offsets = [0, 32], sizes = [2, 32], strides = [1, 1]} : vector<2x96xf32> to vector<2x32xf32>
    %55 = arith.addf %53, %54 : vector<2x32xf32>
    %56 = arith.negf %55 : vector<2x32xf32>
    %57 = math.exp %56 : vector<2x32xf32>
    %cst_20 = arith.constant 1.000000e+00 : f32
    %58 = vector.broadcast %cst_20 : f32 to vector<2x32xf32>
    %59 = arith.addf %58, %57 : vector<2x32xf32>
    %60 = arith.divf %58, %59 : vector<2x32xf32>
    %61 = vector.extract_strided_slice %41 {offsets = [0, 64], sizes = [2, 32], strides = [1, 1]} : vector<2x96xf32> to vector<2x32xf32>
    %62 = vector.extract_strided_slice %44 {offsets = [0, 64], sizes = [2, 32], strides = [1, 1]} : vector<2x96xf32> to vector<2x32xf32>
    %63 = arith.mulf %52, %62 : vector<2x32xf32>
    %64 = arith.addf %61, %63 : vector<2x32xf32>
    %65 = math.tanh %64 : vector<2x32xf32>
    %cst_21 = arith.constant 1.000000e+00 : f32
    %66 = vector.broadcast %cst_21 : f32 to vector<2x32xf32>
    %67 = arith.subf %66, %60 : vector<2x32xf32>
    %68 = arith.mulf %67, %65 : vector<2x32xf32>
    %69 = arith.mulf %60, %10 : vector<2x32xf32>
    %70 = arith.addf %68, %69 : vector<2x32xf32>
    %71 = vector.extract_strided_slice %5 {offsets = [2, 0], sizes = [2, 96], strides = [1, 1]} : vector<16x192xf32> to vector<2x96xf32>
    %cst_22 = arith.constant dense<0.000000e+00> : vector<2x96xf32>
    %72 = tpu.matmul %40, %6, %cst_22 {dimension_numbers = #tpu.dot_dimension_numbers<[1], [0], [0], [1], [0, 0, 1, 1], [], []>} : vector<2x32xf32>, vector<32x96xf32>, vector<2x96xf32> -> vector<2x96xf32>
    %73 = vector.broadcast %8 : vector<1x96xf32> to vector<2x96xf32>
    %74 = arith.addf %72, %73 : vector<2x96xf32>
    %75 = vector.extract_strided_slice %71 {offsets = [0, 0], sizes = [2, 32], strides = [1, 1]} : vector<2x96xf32> to vector<2x32xf32>
    %76 = vector.extract_strided_slice %74 {offsets = [0, 0], sizes = [2, 32], strides = [1, 1]} : vector<2x96xf32> to vector<2x32xf32>
    %77 = arith.addf %75, %76 : vector<2x32xf32>
    %78 = arith.negf %77 : vector<2x32xf32>
    %79 = math.exp %78 : vector<2x32xf32>
    %cst_23 = arith.constant 1.000000e+00 : f32
    %80 = vector.broadcast %cst_23 : f32 to vector<2x32xf32>
    %81 = arith.addf %80, %79 : vector<2x32xf32>
    %82 = arith.divf %80, %81 : vector<2x32xf32>
    %83 = vector.extract_strided_slice %71 {offsets = [0, 32], sizes = [2, 32], strides = [1, 1]} : vector<2x96xf32> to vector<2x32xf32>
    %84 = vector.extract_strided_slice %74 {offsets = [0, 32], sizes = [2, 32], strides = [1, 1]} : vector<2x96xf32> to vector<2x32xf32>
    %85 = arith.addf %83, %84 : vector<2x32xf32>
    %86 = arith.negf %85 : vector<2x32xf32>
    %87 = math.exp %86 : vector<2x32xf32>
    %cst_24 = arith.constant 1.000000e+00 : f32
    %88 = vector.broadcast %cst_24 : f32 to vector<2x32xf32>
    %89 = arith.addf %88, %87 : vector<2x32xf32>
    %90 = arith.divf %88, %89 : vector<2x32xf32>
    %91 = vector.extract_strided_slice %71 {offsets = [0, 64], sizes = [2, 32], strides = [1, 1]} : vector<2x96xf32> to vector<2x32xf32>
    %92 = vector.extract_strided_slice %74 {offsets = [0, 64], sizes = [2, 32], strides = [1, 1]} : vector<2x96xf32> to vector<2x32xf32>
    %93 = arith.mulf %82, %92 : vector<2x32xf32>
    %94 = arith.addf %91, %93 : vector<2x32xf32>
    %95 = math.tanh %94 : vector<2x32xf32>
    %cst_25 = arith.constant 1.000000e+00 : f32
    %96 = vector.broadcast %cst_25 : f32 to vector<2x32xf32>
    %97 = arith.subf %96, %90 : vector<2x32xf32>
    %98 = arith.mulf %97, %95 : vector<2x32xf32>
    %99 = arith.mulf %90, %40 : vector<2x32xf32>
    %100 = arith.addf %98, %99 : vector<2x32xf32>
    %101 = vector.extract_strided_slice %5 {offsets = [12, 96], sizes = [2, 96], strides = [1, 1]} : vector<16x192xf32> to vector<2x96xf32>
    %cst_26 = arith.constant dense<0.000000e+00> : vector<2x96xf32>
    %102 = tpu.matmul %70, %7, %cst_26 {dimension_numbers = #tpu.dot_dimension_numbers<[1], [0], [0], [1], [0, 0, 1, 1], [], []>} : vector<2x32xf32>, vector<32x96xf32>, vector<2x96xf32> -> vector<2x96xf32>
    %103 = vector.broadcast %9 : vector<1x96xf32> to vector<2x96xf32>
    %104 = arith.addf %102, %103 : vector<2x96xf32>
    %105 = vector.extract_strided_slice %101 {offsets = [0, 0], sizes = [2, 32], strides = [1, 1]} : vector<2x96xf32> to vector<2x32xf32>
    %106 = vector.extract_strided_slice %104 {offsets = [0, 0], sizes = [2, 32], strides = [1, 1]} : vector<2x96xf32> to vector<2x32xf32>
    %107 = arith.addf %105, %106 : vector<2x32xf32>
    %108 = arith.negf %107 : vector<2x32xf32>
    %109 = math.exp %108 : vector<2x32xf32>
    %cst_27 = arith.constant 1.000000e+00 : f32
    %110 = vector.broadcast %cst_27 : f32 to vector<2x32xf32>
    %111 = arith.addf %110, %109 : vector<2x32xf32>
    %112 = arith.divf %110, %111 : vector<2x32xf32>
    %113 = vector.extract_strided_slice %101 {offsets = [0, 32], sizes = [2, 32], strides = [1, 1]} : vector<2x96xf32> to vector<2x32xf32>
    %114 = vector.extract_strided_slice %104 {offsets = [0, 32], sizes = [2, 32], strides = [1, 1]} : vector<2x96xf32> to vector<2x32xf32>
    %115 = arith.addf %113, %114 : vector<2x32xf32>
    %116 = arith.negf %115 : vector<2x32xf32>
    %117 = math.exp %116 : vector<2x32xf32>
    %cst_28 = arith.constant 1.000000e+00 : f32
    %118 = vector.broadcast %cst_28 : f32 to vector<2x32xf32>
    %119 = arith.addf %118, %117 : vector<2x32xf32>
    %120 = arith.divf %118, %119 : vector<2x32xf32>
    %121 = vector.extract_strided_slice %101 {offsets = [0, 64], sizes = [2, 32], strides = [1, 1]} : vector<2x96xf32> to vector<2x32xf32>
    %122 = vector.extract_strided_slice %104 {offsets = [0, 64], sizes = [2, 32], strides = [1, 1]} : vector<2x96xf32> to vector<2x32xf32>
    %123 = arith.mulf %112, %122 : vector<2x32xf32>
    %124 = arith.addf %121, %123 : vector<2x32xf32>
    %125 = math.tanh %124 : vector<2x32xf32>
    %cst_29 = arith.constant 1.000000e+00 : f32
    %126 = vector.broadcast %cst_29 : f32 to vector<2x32xf32>
    %127 = arith.subf %126, %120 : vector<2x32xf32>
    %128 = arith.mulf %127, %125 : vector<2x32xf32>
    %129 = arith.mulf %120, %70 : vector<2x32xf32>
    %130 = arith.addf %128, %129 : vector<2x32xf32>
    %131 = vector.extract_strided_slice %5 {offsets = [4, 0], sizes = [2, 96], strides = [1, 1]} : vector<16x192xf32> to vector<2x96xf32>
    %cst_30 = arith.constant dense<0.000000e+00> : vector<2x96xf32>
    %132 = tpu.matmul %100, %6, %cst_30 {dimension_numbers = #tpu.dot_dimension_numbers<[1], [0], [0], [1], [0, 0, 1, 1], [], []>} : vector<2x32xf32>, vector<32x96xf32>, vector<2x96xf32> -> vector<2x96xf32>
    %133 = vector.broadcast %8 : vector<1x96xf32> to vector<2x96xf32>
    %134 = arith.addf %132, %133 : vector<2x96xf32>
    %135 = vector.extract_strided_slice %131 {offsets = [0, 0], sizes = [2, 32], strides = [1, 1]} : vector<2x96xf32> to vector<2x32xf32>
    %136 = vector.extract_strided_slice %134 {offsets = [0, 0], sizes = [2, 32], strides = [1, 1]} : vector<2x96xf32> to vector<2x32xf32>
    %137 = arith.addf %135, %136 : vector<2x32xf32>
    %138 = arith.negf %137 : vector<2x32xf32>
    %139 = math.exp %138 : vector<2x32xf32>
    %cst_31 = arith.constant 1.000000e+00 : f32
    %140 = vector.broadcast %cst_31 : f32 to vector<2x32xf32>
    %141 = arith.addf %140, %139 : vector<2x32xf32>
    %142 = arith.divf %140, %141 : vector<2x32xf32>
    %143 = vector.extract_strided_slice %131 {offsets = [0, 32], sizes = [2, 32], strides = [1, 1]} : vector<2x96xf32> to vector<2x32xf32>
    %144 = vector.extract_strided_slice %134 {offsets = [0, 32], sizes = [2, 32], strides = [1, 1]} : vector<2x96xf32> to vector<2x32xf32>
    %145 = arith.addf %143, %144 : vector<2x32xf32>
    %146 = arith.negf %145 : vector<2x32xf32>
    %147 = math.exp %146 : vector<2x32xf32>
    %cst_32 = arith.constant 1.000000e+00 : f32
    %148 = vector.broadcast %cst_32 : f32 to vector<2x32xf32>
    %149 = arith.addf %148, %147 : vector<2x32xf32>
    %150 = arith.divf %148, %149 : vector<2x32xf32>
    %151 = vector.extract_strided_slice %131 {offsets = [0, 64], sizes = [2, 32], strides = [1, 1]} : vector<2x96xf32> to vector<2x32xf32>
    %152 = vector.extract_strided_slice %134 {offsets = [0, 64], sizes = [2, 32], strides = [1, 1]} : vector<2x96xf32> to vector<2x32xf32>
    %153 = arith.mulf %142, %152 : vector<2x32xf32>
    %154 = arith.addf %151, %153 : vector<2x32xf32>
    %155 = math.tanh %154 : vector<2x32xf32>
    %cst_33 = arith.constant 1.000000e+00 : f32
    %156 = vector.broadcast %cst_33 : f32 to vector<2x32xf32>
    %157 = arith.subf %156, %150 : vector<2x32xf32>
    %158 = arith.mulf %157, %155 : vector<2x32xf32>
    %159 = arith.mulf %150, %100 : vector<2x32xf32>
    %160 = arith.addf %158, %159 : vector<2x32xf32>
    %161 = vector.extract_strided_slice %5 {offsets = [10, 96], sizes = [2, 96], strides = [1, 1]} : vector<16x192xf32> to vector<2x96xf32>
    %cst_34 = arith.constant dense<0.000000e+00> : vector<2x96xf32>
    %162 = tpu.matmul %130, %7, %cst_34 {dimension_numbers = #tpu.dot_dimension_numbers<[1], [0], [0], [1], [0, 0, 1, 1], [], []>} : vector<2x32xf32>, vector<32x96xf32>, vector<2x96xf32> -> vector<2x96xf32>
    %163 = vector.broadcast %9 : vector<1x96xf32> to vector<2x96xf32>
    %164 = arith.addf %162, %163 : vector<2x96xf32>
    %165 = vector.extract_strided_slice %161 {offsets = [0, 0], sizes = [2, 32], strides = [1, 1]} : vector<2x96xf32> to vector<2x32xf32>
    %166 = vector.extract_strided_slice %164 {offsets = [0, 0], sizes = [2, 32], strides = [1, 1]} : vector<2x96xf32> to vector<2x32xf32>
    %167 = arith.addf %165, %166 : vector<2x32xf32>
    %168 = arith.negf %167 : vector<2x32xf32>
    %169 = math.exp %168 : vector<2x32xf32>
    %cst_35 = arith.constant 1.000000e+00 : f32
    %170 = vector.broadcast %cst_35 : f32 to vector<2x32xf32>
    %171 = arith.addf %170, %169 : vector<2x32xf32>
    %172 = arith.divf %170, %171 : vector<2x32xf32>
    %173 = vector.extract_strided_slice %161 {offsets = [0, 32], sizes = [2, 32], strides = [1, 1]} : vector<2x96xf32> to vector<2x32xf32>
    %174 = vector.extract_strided_slice %164 {offsets = [0, 32], sizes = [2, 32], strides = [1, 1]} : vector<2x96xf32> to vector<2x32xf32>
    %175 = arith.addf %173, %174 : vector<2x32xf32>
    %176 = arith.negf %175 : vector<2x32xf32>
    %177 = math.exp %176 : vector<2x32xf32>
    %cst_36 = arith.constant 1.000000e+00 : f32
    %178 = vector.broadcast %cst_36 : f32 to vector<2x32xf32>
    %179 = arith.addf %178, %177 : vector<2x32xf32>
    %180 = arith.divf %178, %179 : vector<2x32xf32>
    %181 = vector.extract_strided_slice %161 {offsets = [0, 64], sizes = [2, 32], strides = [1, 1]} : vector<2x96xf32> to vector<2x32xf32>
    %182 = vector.extract_strided_slice %164 {offsets = [0, 64], sizes = [2, 32], strides = [1, 1]} : vector<2x96xf32> to vector<2x32xf32>
    %183 = arith.mulf %172, %182 : vector<2x32xf32>
    %184 = arith.addf %181, %183 : vector<2x32xf32>
    %185 = math.tanh %184 : vector<2x32xf32>
    %cst_37 = arith.constant 1.000000e+00 : f32
    %186 = vector.broadcast %cst_37 : f32 to vector<2x32xf32>
    %187 = arith.subf %186, %180 : vector<2x32xf32>
    %188 = arith.mulf %187, %185 : vector<2x32xf32>
    %189 = arith.mulf %180, %130 : vector<2x32xf32>
    %190 = arith.addf %188, %189 : vector<2x32xf32>
    %191 = vector.extract_strided_slice %5 {offsets = [6, 0], sizes = [2, 96], strides = [1, 1]} : vector<16x192xf32> to vector<2x96xf32>
    %cst_38 = arith.constant dense<0.000000e+00> : vector<2x96xf32>
    %192 = tpu.matmul %160, %6, %cst_38 {dimension_numbers = #tpu.dot_dimension_numbers<[1], [0], [0], [1], [0, 0, 1, 1], [], []>} : vector<2x32xf32>, vector<32x96xf32>, vector<2x96xf32> -> vector<2x96xf32>
    %193 = vector.broadcast %8 : vector<1x96xf32> to vector<2x96xf32>
    %194 = arith.addf %192, %193 : vector<2x96xf32>
    %195 = vector.extract_strided_slice %191 {offsets = [0, 0], sizes = [2, 32], strides = [1, 1]} : vector<2x96xf32> to vector<2x32xf32>
    %196 = vector.extract_strided_slice %194 {offsets = [0, 0], sizes = [2, 32], strides = [1, 1]} : vector<2x96xf32> to vector<2x32xf32>
    %197 = arith.addf %195, %196 : vector<2x32xf32>
    %198 = arith.negf %197 : vector<2x32xf32>
    %199 = math.exp %198 : vector<2x32xf32>
    %cst_39 = arith.constant 1.000000e+00 : f32
    %200 = vector.broadcast %cst_39 : f32 to vector<2x32xf32>
    %201 = arith.addf %200, %199 : vector<2x32xf32>
    %202 = arith.divf %200, %201 : vector<2x32xf32>
    %203 = vector.extract_strided_slice %191 {offsets = [0, 32], sizes = [2, 32], strides = [1, 1]} : vector<2x96xf32> to vector<2x32xf32>
    %204 = vector.extract_strided_slice %194 {offsets = [0, 32], sizes = [2, 32], strides = [1, 1]} : vector<2x96xf32> to vector<2x32xf32>
    %205 = arith.addf %203, %204 : vector<2x32xf32>
    %206 = arith.negf %205 : vector<2x32xf32>
    %207 = math.exp %206 : vector<2x32xf32>
    %cst_40 = arith.constant 1.000000e+00 : f32
    %208 = vector.broadcast %cst_40 : f32 to vector<2x32xf32>
    %209 = arith.addf %208, %207 : vector<2x32xf32>
    %210 = arith.divf %208, %209 : vector<2x32xf32>
    %211 = vector.extract_strided_slice %191 {offsets = [0, 64], sizes = [2, 32], strides = [1, 1]} : vector<2x96xf32> to vector<2x32xf32>
    %212 = vector.extract_strided_slice %194 {offsets = [0, 64], sizes = [2, 32], strides = [1, 1]} : vector<2x96xf32> to vector<2x32xf32>
    %213 = arith.mulf %202, %212 : vector<2x32xf32>
    %214 = arith.addf %211, %213 : vector<2x32xf32>
    %215 = math.tanh %214 : vector<2x32xf32>
    %cst_41 = arith.constant 1.000000e+00 : f32
    %216 = vector.broadcast %cst_41 : f32 to vector<2x32xf32>
    %217 = arith.subf %216, %210 : vector<2x32xf32>
    %218 = arith.mulf %217, %215 : vector<2x32xf32>
    %219 = arith.mulf %210, %160 : vector<2x32xf32>
    %220 = arith.addf %218, %219 : vector<2x32xf32>
    %221 = vector.extract_strided_slice %5 {offsets = [8, 96], sizes = [2, 96], strides = [1, 1]} : vector<16x192xf32> to vector<2x96xf32>
    %cst_42 = arith.constant dense<0.000000e+00> : vector<2x96xf32>
    %222 = tpu.matmul %190, %7, %cst_42 {dimension_numbers = #tpu.dot_dimension_numbers<[1], [0], [0], [1], [0, 0, 1, 1], [], []>} : vector<2x32xf32>, vector<32x96xf32>, vector<2x96xf32> -> vector<2x96xf32>
    %223 = vector.broadcast %9 : vector<1x96xf32> to vector<2x96xf32>
    %224 = arith.addf %222, %223 : vector<2x96xf32>
    %225 = vector.extract_strided_slice %221 {offsets = [0, 0], sizes = [2, 32], strides = [1, 1]} : vector<2x96xf32> to vector<2x32xf32>
    %226 = vector.extract_strided_slice %224 {offsets = [0, 0], sizes = [2, 32], strides = [1, 1]} : vector<2x96xf32> to vector<2x32xf32>
    %227 = arith.addf %225, %226 : vector<2x32xf32>
    %228 = arith.negf %227 : vector<2x32xf32>
    %229 = math.exp %228 : vector<2x32xf32>
    %cst_43 = arith.constant 1.000000e+00 : f32
    %230 = vector.broadcast %cst_43 : f32 to vector<2x32xf32>
    %231 = arith.addf %230, %229 : vector<2x32xf32>
    %232 = arith.divf %230, %231 : vector<2x32xf32>
    %233 = vector.extract_strided_slice %221 {offsets = [0, 32], sizes = [2, 32], strides = [1, 1]} : vector<2x96xf32> to vector<2x32xf32>
    %234 = vector.extract_strided_slice %224 {offsets = [0, 32], sizes = [2, 32], strides = [1, 1]} : vector<2x96xf32> to vector<2x32xf32>
    %235 = arith.addf %233, %234 : vector<2x32xf32>
    %236 = arith.negf %235 : vector<2x32xf32>
    %237 = math.exp %236 : vector<2x32xf32>
    %cst_44 = arith.constant 1.000000e+00 : f32
    %238 = vector.broadcast %cst_44 : f32 to vector<2x32xf32>
    %239 = arith.addf %238, %237 : vector<2x32xf32>
    %240 = arith.divf %238, %239 : vector<2x32xf32>
    %241 = vector.extract_strided_slice %221 {offsets = [0, 64], sizes = [2, 32], strides = [1, 1]} : vector<2x96xf32> to vector<2x32xf32>
    %242 = vector.extract_strided_slice %224 {offsets = [0, 64], sizes = [2, 32], strides = [1, 1]} : vector<2x96xf32> to vector<2x32xf32>
    %243 = arith.mulf %232, %242 : vector<2x32xf32>
    %244 = arith.addf %241, %243 : vector<2x32xf32>
    %245 = math.tanh %244 : vector<2x32xf32>
    %cst_45 = arith.constant 1.000000e+00 : f32
    %246 = vector.broadcast %cst_45 : f32 to vector<2x32xf32>
    %247 = arith.subf %246, %240 : vector<2x32xf32>
    %248 = arith.mulf %247, %245 : vector<2x32xf32>
    %249 = arith.mulf %240, %190 : vector<2x32xf32>
    %250 = arith.addf %248, %249 : vector<2x32xf32>
    %251 = vector.extract_strided_slice %5 {offsets = [8, 0], sizes = [2, 96], strides = [1, 1]} : vector<16x192xf32> to vector<2x96xf32>
    %cst_46 = arith.constant dense<0.000000e+00> : vector<2x96xf32>
    %252 = tpu.matmul %220, %6, %cst_46 {dimension_numbers = #tpu.dot_dimension_numbers<[1], [0], [0], [1], [0, 0, 1, 1], [], []>} : vector<2x32xf32>, vector<32x96xf32>, vector<2x96xf32> -> vector<2x96xf32>
    %253 = vector.broadcast %8 : vector<1x96xf32> to vector<2x96xf32>
    %254 = arith.addf %252, %253 : vector<2x96xf32>
    %255 = vector.extract_strided_slice %251 {offsets = [0, 0], sizes = [2, 32], strides = [1, 1]} : vector<2x96xf32> to vector<2x32xf32>
    %256 = vector.extract_strided_slice %254 {offsets = [0, 0], sizes = [2, 32], strides = [1, 1]} : vector<2x96xf32> to vector<2x32xf32>
    %257 = arith.addf %255, %256 : vector<2x32xf32>
    %258 = arith.negf %257 : vector<2x32xf32>
    %259 = math.exp %258 : vector<2x32xf32>
    %cst_47 = arith.constant 1.000000e+00 : f32
    %260 = vector.broadcast %cst_47 : f32 to vector<2x32xf32>
    %261 = arith.addf %260, %259 : vector<2x32xf32>
    %262 = arith.divf %260, %261 : vector<2x32xf32>
    %263 = vector.extract_strided_slice %251 {offsets = [0, 32], sizes = [2, 32], strides = [1, 1]} : vector<2x96xf32> to vector<2x32xf32>
    %264 = vector.extract_strided_slice %254 {offsets = [0, 32], sizes = [2, 32], strides = [1, 1]} : vector<2x96xf32> to vector<2x32xf32>
    %265 = arith.addf %263, %264 : vector<2x32xf32>
    %266 = arith.negf %265 : vector<2x32xf32>
    %267 = math.exp %266 : vector<2x32xf32>
    %cst_48 = arith.constant 1.000000e+00 : f32
    %268 = vector.broadcast %cst_48 : f32 to vector<2x32xf32>
    %269 = arith.addf %268, %267 : vector<2x32xf32>
    %270 = arith.divf %268, %269 : vector<2x32xf32>
    %271 = vector.extract_strided_slice %251 {offsets = [0, 64], sizes = [2, 32], strides = [1, 1]} : vector<2x96xf32> to vector<2x32xf32>
    %272 = vector.extract_strided_slice %254 {offsets = [0, 64], sizes = [2, 32], strides = [1, 1]} : vector<2x96xf32> to vector<2x32xf32>
    %273 = arith.mulf %262, %272 : vector<2x32xf32>
    %274 = arith.addf %271, %273 : vector<2x32xf32>
    %275 = math.tanh %274 : vector<2x32xf32>
    %cst_49 = arith.constant 1.000000e+00 : f32
    %276 = vector.broadcast %cst_49 : f32 to vector<2x32xf32>
    %277 = arith.subf %276, %270 : vector<2x32xf32>
    %278 = arith.mulf %277, %275 : vector<2x32xf32>
    %279 = arith.mulf %270, %220 : vector<2x32xf32>
    %280 = arith.addf %278, %279 : vector<2x32xf32>
    %281 = vector.extract_strided_slice %5 {offsets = [6, 96], sizes = [2, 96], strides = [1, 1]} : vector<16x192xf32> to vector<2x96xf32>
    %cst_50 = arith.constant dense<0.000000e+00> : vector<2x96xf32>
    %282 = tpu.matmul %250, %7, %cst_50 {dimension_numbers = #tpu.dot_dimension_numbers<[1], [0], [0], [1], [0, 0, 1, 1], [], []>} : vector<2x32xf32>, vector<32x96xf32>, vector<2x96xf32> -> vector<2x96xf32>
    %283 = vector.broadcast %9 : vector<1x96xf32> to vector<2x96xf32>
    %284 = arith.addf %282, %283 : vector<2x96xf32>
    %285 = vector.extract_strided_slice %281 {offsets = [0, 0], sizes = [2, 32], strides = [1, 1]} : vector<2x96xf32> to vector<2x32xf32>
    %286 = vector.extract_strided_slice %284 {offsets = [0, 0], sizes = [2, 32], strides = [1, 1]} : vector<2x96xf32> to vector<2x32xf32>
    %287 = arith.addf %285, %286 : vector<2x32xf32>
    %288 = arith.negf %287 : vector<2x32xf32>
    %289 = math.exp %288 : vector<2x32xf32>
    %cst_51 = arith.constant 1.000000e+00 : f32
    %290 = vector.broadcast %cst_51 : f32 to vector<2x32xf32>
    %291 = arith.addf %290, %289 : vector<2x32xf32>
    %292 = arith.divf %290, %291 : vector<2x32xf32>
    %293 = vector.extract_strided_slice %281 {offsets = [0, 32], sizes = [2, 32], strides = [1, 1]} : vector<2x96xf32> to vector<2x32xf32>
    %294 = vector.extract_strided_slice %284 {offsets = [0, 32], sizes = [2, 32], strides = [1, 1]} : vector<2x96xf32> to vector<2x32xf32>
    %295 = arith.addf %293, %294 : vector<2x32xf32>
    %296 = arith.negf %295 : vector<2x32xf32>
    %297 = math.exp %296 : vector<2x32xf32>
    %cst_52 = arith.constant 1.000000e+00 : f32
    %298 = vector.broadcast %cst_52 : f32 to vector<2x32xf32>
    %299 = arith.addf %298, %297 : vector<2x32xf32>
    %300 = arith.divf %298, %299 : vector<2x32xf32>
    %301 = vector.extract_strided_slice %281 {offsets = [0, 64], sizes = [2, 32], strides = [1, 1]} : vector<2x96xf32> to vector<2x32xf32>
    %302 = vector.extract_strided_slice %284 {offsets = [0, 64], sizes = [2, 32], strides = [1, 1]} : vector<2x96xf32> to vector<2x32xf32>
    %303 = arith.mulf %292, %302 : vector<2x32xf32>
    %304 = arith.addf %301, %303 : vector<2x32xf32>
    %305 = math.tanh %304 : vector<2x32xf32>
    %cst_53 = arith.constant 1.000000e+00 : f32
    %306 = vector.broadcast %cst_53 : f32 to vector<2x32xf32>
    %307 = arith.subf %306, %300 : vector<2x32xf32>
    %308 = arith.mulf %307, %305 : vector<2x32xf32>
    %309 = arith.mulf %300, %250 : vector<2x32xf32>
    %310 = arith.addf %308, %309 : vector<2x32xf32>
    %311 = vector.extract_strided_slice %5 {offsets = [10, 0], sizes = [2, 96], strides = [1, 1]} : vector<16x192xf32> to vector<2x96xf32>
    %cst_54 = arith.constant dense<0.000000e+00> : vector<2x96xf32>
    %312 = tpu.matmul %280, %6, %cst_54 {dimension_numbers = #tpu.dot_dimension_numbers<[1], [0], [0], [1], [0, 0, 1, 1], [], []>} : vector<2x32xf32>, vector<32x96xf32>, vector<2x96xf32> -> vector<2x96xf32>
    %313 = vector.broadcast %8 : vector<1x96xf32> to vector<2x96xf32>
    %314 = arith.addf %312, %313 : vector<2x96xf32>
    %315 = vector.extract_strided_slice %311 {offsets = [0, 0], sizes = [2, 32], strides = [1, 1]} : vector<2x96xf32> to vector<2x32xf32>
    %316 = vector.extract_strided_slice %314 {offsets = [0, 0], sizes = [2, 32], strides = [1, 1]} : vector<2x96xf32> to vector<2x32xf32>
    %317 = arith.addf %315, %316 : vector<2x32xf32>
    %318 = arith.negf %317 : vector<2x32xf32>
    %319 = math.exp %318 : vector<2x32xf32>
    %cst_55 = arith.constant 1.000000e+00 : f32
    %320 = vector.broadcast %cst_55 : f32 to vector<2x32xf32>
    %321 = arith.addf %320, %319 : vector<2x32xf32>
    %322 = arith.divf %320, %321 : vector<2x32xf32>
    %323 = vector.extract_strided_slice %311 {offsets = [0, 32], sizes = [2, 32], strides = [1, 1]} : vector<2x96xf32> to vector<2x32xf32>
    %324 = vector.extract_strided_slice %314 {offsets = [0, 32], sizes = [2, 32], strides = [1, 1]} : vector<2x96xf32> to vector<2x32xf32>
    %325 = arith.addf %323, %324 : vector<2x32xf32>
    %326 = arith.negf %325 : vector<2x32xf32>
    %327 = math.exp %326 : vector<2x32xf32>
    %cst_56 = arith.constant 1.000000e+00 : f32
    %328 = vector.broadcast %cst_56 : f32 to vector<2x32xf32>
    %329 = arith.addf %328, %327 : vector<2x32xf32>
    %330 = arith.divf %328, %329 : vector<2x32xf32>
    %331 = vector.extract_strided_slice %311 {offsets = [0, 64], sizes = [2, 32], strides = [1, 1]} : vector<2x96xf32> to vector<2x32xf32>
    %332 = vector.extract_strided_slice %314 {offsets = [0, 64], sizes = [2, 32], strides = [1, 1]} : vector<2x96xf32> to vector<2x32xf32>
    %333 = arith.mulf %322, %332 : vector<2x32xf32>
    %334 = arith.addf %331, %333 : vector<2x32xf32>
    %335 = math.tanh %334 : vector<2x32xf32>
    %cst_57 = arith.constant 1.000000e+00 : f32
    %336 = vector.broadcast %cst_57 : f32 to vector<2x32xf32>
    %337 = arith.subf %336, %330 : vector<2x32xf32>
    %338 = arith.mulf %337, %335 : vector<2x32xf32>
    %339 = arith.mulf %330, %280 : vector<2x32xf32>
    %340 = arith.addf %338, %339 : vector<2x32xf32>
    %341 = vector.extract_strided_slice %5 {offsets = [4, 96], sizes = [2, 96], strides = [1, 1]} : vector<16x192xf32> to vector<2x96xf32>
    %cst_58 = arith.constant dense<0.000000e+00> : vector<2x96xf32>
    %342 = tpu.matmul %310, %7, %cst_58 {dimension_numbers = #tpu.dot_dimension_numbers<[1], [0], [0], [1], [0, 0, 1, 1], [], []>} : vector<2x32xf32>, vector<32x96xf32>, vector<2x96xf32> -> vector<2x96xf32>
    %343 = vector.broadcast %9 : vector<1x96xf32> to vector<2x96xf32>
    %344 = arith.addf %342, %343 : vector<2x96xf32>
    %345 = vector.extract_strided_slice %341 {offsets = [0, 0], sizes = [2, 32], strides = [1, 1]} : vector<2x96xf32> to vector<2x32xf32>
    %346 = vector.extract_strided_slice %344 {offsets = [0, 0], sizes = [2, 32], strides = [1, 1]} : vector<2x96xf32> to vector<2x32xf32>
    %347 = arith.addf %345, %346 : vector<2x32xf32>
    %348 = arith.negf %347 : vector<2x32xf32>
    %349 = math.exp %348 : vector<2x32xf32>
    %cst_59 = arith.constant 1.000000e+00 : f32
    %350 = vector.broadcast %cst_59 : f32 to vector<2x32xf32>
    %351 = arith.addf %350, %349 : vector<2x32xf32>
    %352 = arith.divf %350, %351 : vector<2x32xf32>
    %353 = vector.extract_strided_slice %341 {offsets = [0, 32], sizes = [2, 32], strides = [1, 1]} : vector<2x96xf32> to vector<2x32xf32>
    %354 = vector.extract_strided_slice %344 {offsets = [0, 32], sizes = [2, 32], strides = [1, 1]} : vector<2x96xf32> to vector<2x32xf32>
    %355 = arith.addf %353, %354 : vector<2x32xf32>
    %356 = arith.negf %355 : vector<2x32xf32>
    %357 = math.exp %356 : vector<2x32xf32>
    %cst_60 = arith.constant 1.000000e+00 : f32
    %358 = vector.broadcast %cst_60 : f32 to vector<2x32xf32>
    %359 = arith.addf %358, %357 : vector<2x32xf32>
    %360 = arith.divf %358, %359 : vector<2x32xf32>
    %361 = vector.extract_strided_slice %341 {offsets = [0, 64], sizes = [2, 32], strides = [1, 1]} : vector<2x96xf32> to vector<2x32xf32>
    %362 = vector.extract_strided_slice %344 {offsets = [0, 64], sizes = [2, 32], strides = [1, 1]} : vector<2x96xf32> to vector<2x32xf32>
    %363 = arith.mulf %352, %362 : vector<2x32xf32>
    %364 = arith.addf %361, %363 : vector<2x32xf32>
    %365 = math.tanh %364 : vector<2x32xf32>
    %cst_61 = arith.constant 1.000000e+00 : f32
    %366 = vector.broadcast %cst_61 : f32 to vector<2x32xf32>
    %367 = arith.subf %366, %360 : vector<2x32xf32>
    %368 = arith.mulf %367, %365 : vector<2x32xf32>
    %369 = arith.mulf %360, %310 : vector<2x32xf32>
    %370 = arith.addf %368, %369 : vector<2x32xf32>
    %371 = vector.extract_strided_slice %5 {offsets = [12, 0], sizes = [2, 96], strides = [1, 1]} : vector<16x192xf32> to vector<2x96xf32>
    %cst_62 = arith.constant dense<0.000000e+00> : vector<2x96xf32>
    %372 = tpu.matmul %340, %6, %cst_62 {dimension_numbers = #tpu.dot_dimension_numbers<[1], [0], [0], [1], [0, 0, 1, 1], [], []>} : vector<2x32xf32>, vector<32x96xf32>, vector<2x96xf32> -> vector<2x96xf32>
    %373 = vector.broadcast %8 : vector<1x96xf32> to vector<2x96xf32>
    %374 = arith.addf %372, %373 : vector<2x96xf32>
    %375 = vector.extract_strided_slice %371 {offsets = [0, 0], sizes = [2, 32], strides = [1, 1]} : vector<2x96xf32> to vector<2x32xf32>
    %376 = vector.extract_strided_slice %374 {offsets = [0, 0], sizes = [2, 32], strides = [1, 1]} : vector<2x96xf32> to vector<2x32xf32>
    %377 = arith.addf %375, %376 : vector<2x32xf32>
    %378 = arith.negf %377 : vector<2x32xf32>
    %379 = math.exp %378 : vector<2x32xf32>
    %cst_63 = arith.constant 1.000000e+00 : f32
    %380 = vector.broadcast %cst_63 : f32 to vector<2x32xf32>
    %381 = arith.addf %380, %379 : vector<2x32xf32>
    %382 = arith.divf %380, %381 : vector<2x32xf32>
    %383 = vector.extract_strided_slice %371 {offsets = [0, 32], sizes = [2, 32], strides = [1, 1]} : vector<2x96xf32> to vector<2x32xf32>
    %384 = vector.extract_strided_slice %374 {offsets = [0, 32], sizes = [2, 32], strides = [1, 1]} : vector<2x96xf32> to vector<2x32xf32>
    %385 = arith.addf %383, %384 : vector<2x32xf32>
    %386 = arith.negf %385 : vector<2x32xf32>
    %387 = math.exp %386 : vector<2x32xf32>
    %cst_64 = arith.constant 1.000000e+00 : f32
    %388 = vector.broadcast %cst_64 : f32 to vector<2x32xf32>
    %389 = arith.addf %388, %387 : vector<2x32xf32>
    %390 = arith.divf %388, %389 : vector<2x32xf32>
    %391 = vector.extract_strided_slice %371 {offsets = [0, 64], sizes = [2, 32], strides = [1, 1]} : vector<2x96xf32> to vector<2x32xf32>
    %392 = vector.extract_strided_slice %374 {offsets = [0, 64], sizes = [2, 32], strides = [1, 1]} : vector<2x96xf32> to vector<2x32xf32>
    %393 = arith.mulf %382, %392 : vector<2x32xf32>
    %394 = arith.addf %391, %393 : vector<2x32xf32>
    %395 = math.tanh %394 : vector<2x32xf32>
    %cst_65 = arith.constant 1.000000e+00 : f32
    %396 = vector.broadcast %cst_65 : f32 to vector<2x32xf32>
    %397 = arith.subf %396, %390 : vector<2x32xf32>
    %398 = arith.mulf %397, %395 : vector<2x32xf32>
    %399 = arith.mulf %390, %340 : vector<2x32xf32>
    %400 = arith.addf %398, %399 : vector<2x32xf32>
    %401 = vector.extract_strided_slice %5 {offsets = [2, 96], sizes = [2, 96], strides = [1, 1]} : vector<16x192xf32> to vector<2x96xf32>
    %cst_66 = arith.constant dense<0.000000e+00> : vector<2x96xf32>
    %402 = tpu.matmul %370, %7, %cst_66 {dimension_numbers = #tpu.dot_dimension_numbers<[1], [0], [0], [1], [0, 0, 1, 1], [], []>} : vector<2x32xf32>, vector<32x96xf32>, vector<2x96xf32> -> vector<2x96xf32>
    %403 = vector.broadcast %9 : vector<1x96xf32> to vector<2x96xf32>
    %404 = arith.addf %402, %403 : vector<2x96xf32>
    %405 = vector.extract_strided_slice %401 {offsets = [0, 0], sizes = [2, 32], strides = [1, 1]} : vector<2x96xf32> to vector<2x32xf32>
    %406 = vector.extract_strided_slice %404 {offsets = [0, 0], sizes = [2, 32], strides = [1, 1]} : vector<2x96xf32> to vector<2x32xf32>
    %407 = arith.addf %405, %406 : vector<2x32xf32>
    %408 = arith.negf %407 : vector<2x32xf32>
    %409 = math.exp %408 : vector<2x32xf32>
    %cst_67 = arith.constant 1.000000e+00 : f32
    %410 = vector.broadcast %cst_67 : f32 to vector<2x32xf32>
    %411 = arith.addf %410, %409 : vector<2x32xf32>
    %412 = arith.divf %410, %411 : vector<2x32xf32>
    %413 = vector.extract_strided_slice %401 {offsets = [0, 32], sizes = [2, 32], strides = [1, 1]} : vector<2x96xf32> to vector<2x32xf32>
    %414 = vector.extract_strided_slice %404 {offsets = [0, 32], sizes = [2, 32], strides = [1, 1]} : vector<2x96xf32> to vector<2x32xf32>
    %415 = arith.addf %413, %414 : vector<2x32xf32>
    %416 = arith.negf %415 : vector<2x32xf32>
    %417 = math.exp %416 : vector<2x32xf32>
    %cst_68 = arith.constant 1.000000e+00 : f32
    %418 = vector.broadcast %cst_68 : f32 to vector<2x32xf32>
    %419 = arith.addf %418, %417 : vector<2x32xf32>
    %420 = arith.divf %418, %419 : vector<2x32xf32>
    %421 = vector.extract_strided_slice %401 {offsets = [0, 64], sizes = [2, 32], strides = [1, 1]} : vector<2x96xf32> to vector<2x32xf32>
    %422 = vector.extract_strided_slice %404 {offsets = [0, 64], sizes = [2, 32], strides = [1, 1]} : vector<2x96xf32> to vector<2x32xf32>
    %423 = arith.mulf %412, %422 : vector<2x32xf32>
    %424 = arith.addf %421, %423 : vector<2x32xf32>
    %425 = math.tanh %424 : vector<2x32xf32>
    %cst_69 = arith.constant 1.000000e+00 : f32
    %426 = vector.broadcast %cst_69 : f32 to vector<2x32xf32>
    %427 = arith.subf %426, %420 : vector<2x32xf32>
    %428 = arith.mulf %427, %425 : vector<2x32xf32>
    %429 = arith.mulf %420, %370 : vector<2x32xf32>
    %430 = arith.addf %428, %429 : vector<2x32xf32>
    %431 = vector.extract_strided_slice %5 {offsets = [14, 0], sizes = [2, 96], strides = [1, 1]} : vector<16x192xf32> to vector<2x96xf32>
    %cst_70 = arith.constant dense<0.000000e+00> : vector<2x96xf32>
    %432 = tpu.matmul %400, %6, %cst_70 {dimension_numbers = #tpu.dot_dimension_numbers<[1], [0], [0], [1], [0, 0, 1, 1], [], []>} : vector<2x32xf32>, vector<32x96xf32>, vector<2x96xf32> -> vector<2x96xf32>
    %433 = vector.broadcast %8 : vector<1x96xf32> to vector<2x96xf32>
    %434 = arith.addf %432, %433 : vector<2x96xf32>
    %435 = vector.extract_strided_slice %431 {offsets = [0, 0], sizes = [2, 32], strides = [1, 1]} : vector<2x96xf32> to vector<2x32xf32>
    %436 = vector.extract_strided_slice %434 {offsets = [0, 0], sizes = [2, 32], strides = [1, 1]} : vector<2x96xf32> to vector<2x32xf32>
    %437 = arith.addf %435, %436 : vector<2x32xf32>
    %438 = arith.negf %437 : vector<2x32xf32>
    %439 = math.exp %438 : vector<2x32xf32>
    %cst_71 = arith.constant 1.000000e+00 : f32
    %440 = vector.broadcast %cst_71 : f32 to vector<2x32xf32>
    %441 = arith.addf %440, %439 : vector<2x32xf32>
    %442 = arith.divf %440, %441 : vector<2x32xf32>
    %443 = vector.extract_strided_slice %431 {offsets = [0, 32], sizes = [2, 32], strides = [1, 1]} : vector<2x96xf32> to vector<2x32xf32>
    %444 = vector.extract_strided_slice %434 {offsets = [0, 32], sizes = [2, 32], strides = [1, 1]} : vector<2x96xf32> to vector<2x32xf32>
    %445 = arith.addf %443, %444 : vector<2x32xf32>
    %446 = arith.negf %445 : vector<2x32xf32>
    %447 = math.exp %446 : vector<2x32xf32>
    %cst_72 = arith.constant 1.000000e+00 : f32
    %448 = vector.broadcast %cst_72 : f32 to vector<2x32xf32>
    %449 = arith.addf %448, %447 : vector<2x32xf32>
    %450 = arith.divf %448, %449 : vector<2x32xf32>
    %451 = vector.extract_strided_slice %431 {offsets = [0, 64], sizes = [2, 32], strides = [1, 1]} : vector<2x96xf32> to vector<2x32xf32>
    %452 = vector.extract_strided_slice %434 {offsets = [0, 64], sizes = [2, 32], strides = [1, 1]} : vector<2x96xf32> to vector<2x32xf32>
    %453 = arith.mulf %442, %452 : vector<2x32xf32>
    %454 = arith.addf %451, %453 : vector<2x32xf32>
    %455 = math.tanh %454 : vector<2x32xf32>
    %cst_73 = arith.constant 1.000000e+00 : f32
    %456 = vector.broadcast %cst_73 : f32 to vector<2x32xf32>
    %457 = arith.subf %456, %450 : vector<2x32xf32>
    %458 = arith.mulf %457, %455 : vector<2x32xf32>
    %459 = arith.mulf %450, %400 : vector<2x32xf32>
    %460 = arith.addf %458, %459 : vector<2x32xf32>
    %461 = vector.extract_strided_slice %5 {offsets = [0, 96], sizes = [2, 96], strides = [1, 1]} : vector<16x192xf32> to vector<2x96xf32>
    %cst_74 = arith.constant dense<0.000000e+00> : vector<2x96xf32>
    %462 = tpu.matmul %430, %7, %cst_74 {dimension_numbers = #tpu.dot_dimension_numbers<[1], [0], [0], [1], [0, 0, 1, 1], [], []>} : vector<2x32xf32>, vector<32x96xf32>, vector<2x96xf32> -> vector<2x96xf32>
    %463 = vector.broadcast %9 : vector<1x96xf32> to vector<2x96xf32>
    %464 = arith.addf %462, %463 : vector<2x96xf32>
    %465 = vector.extract_strided_slice %461 {offsets = [0, 0], sizes = [2, 32], strides = [1, 1]} : vector<2x96xf32> to vector<2x32xf32>
    %466 = vector.extract_strided_slice %464 {offsets = [0, 0], sizes = [2, 32], strides = [1, 1]} : vector<2x96xf32> to vector<2x32xf32>
    %467 = arith.addf %465, %466 : vector<2x32xf32>
    %468 = arith.negf %467 : vector<2x32xf32>
    %469 = math.exp %468 : vector<2x32xf32>
    %cst_75 = arith.constant 1.000000e+00 : f32
    %470 = vector.broadcast %cst_75 : f32 to vector<2x32xf32>
    %471 = arith.addf %470, %469 : vector<2x32xf32>
    %472 = arith.divf %470, %471 : vector<2x32xf32>
    %473 = vector.extract_strided_slice %461 {offsets = [0, 32], sizes = [2, 32], strides = [1, 1]} : vector<2x96xf32> to vector<2x32xf32>
    %474 = vector.extract_strided_slice %464 {offsets = [0, 32], sizes = [2, 32], strides = [1, 1]} : vector<2x96xf32> to vector<2x32xf32>
    %475 = arith.addf %473, %474 : vector<2x32xf32>
    %476 = arith.negf %475 : vector<2x32xf32>
    %477 = math.exp %476 : vector<2x32xf32>
    %cst_76 = arith.constant 1.000000e+00 : f32
    %478 = vector.broadcast %cst_76 : f32 to vector<2x32xf32>
    %479 = arith.addf %478, %477 : vector<2x32xf32>
    %480 = arith.divf %478, %479 : vector<2x32xf32>
    %481 = vector.extract_strided_slice %461 {offsets = [0, 64], sizes = [2, 32], strides = [1, 1]} : vector<2x96xf32> to vector<2x32xf32>
    %482 = vector.extract_strided_slice %464 {offsets = [0, 64], sizes = [2, 32], strides = [1, 1]} : vector<2x96xf32> to vector<2x32xf32>
    %483 = arith.mulf %472, %482 : vector<2x32xf32>
    %484 = arith.addf %481, %483 : vector<2x32xf32>
    %485 = math.tanh %484 : vector<2x32xf32>
    %cst_77 = arith.constant 1.000000e+00 : f32
    %486 = vector.broadcast %cst_77 : f32 to vector<2x32xf32>
    %487 = arith.subf %486, %480 : vector<2x32xf32>
    %488 = arith.mulf %487, %485 : vector<2x32xf32>
    %489 = arith.mulf %480, %430 : vector<2x32xf32>
    %490 = arith.addf %488, %489 : vector<2x32xf32>
    %491 = tpu.concatenate %40, %490 in 1 : vector<2x32xf32>, vector<2x32xf32> -> vector<2x64xf32>
    %492 = tpu.concatenate %100, %430 in 1 : vector<2x32xf32>, vector<2x32xf32> -> vector<2x64xf32>
    %493 = tpu.concatenate %160, %370 in 1 : vector<2x32xf32>, vector<2x32xf32> -> vector<2x64xf32>
    %494 = tpu.concatenate %220, %310 in 1 : vector<2x32xf32>, vector<2x32xf32> -> vector<2x64xf32>
    %495 = tpu.concatenate %280, %250 in 1 : vector<2x32xf32>, vector<2x32xf32> -> vector<2x64xf32>
    %496 = tpu.concatenate %340, %190 in 1 : vector<2x32xf32>, vector<2x32xf32> -> vector<2x64xf32>
    %497 = tpu.concatenate %400, %130 in 1 : vector<2x32xf32>, vector<2x32xf32> -> vector<2x64xf32>
    %498 = tpu.concatenate %460, %70 in 1 : vector<2x32xf32>, vector<2x32xf32> -> vector<2x64xf32>
    %499 = tpu.concatenate %491, %492, %493, %494, %495, %496, %497, %498 in 0 : vector<2x64xf32>, vector<2x64xf32>, vector<2x64xf32>, vector<2x64xf32>, vector<2x64xf32>, vector<2x64xf32>, vector<2x64xf32>, vector<2x64xf32> -> vector<16x64xf32>
    %c0_78 = arith.constant 0 : index
    %c0_79 = arith.constant 0 : index
    %500 = vector.load %arg8[%c0_78, %c0_79] : memref<64x192xf32, #tpu.memory_space<vmem>>, vector<64x192xf32>
    %cst_80 = arith.constant dense<0.000000e+00> : vector<16x192xf32>
    %501 = tpu.matmul %499, %500, %cst_80 {dimension_numbers = #tpu.dot_dimension_numbers<[1], [0], [0], [1], [0, 0, 1, 1], [], []>} : vector<16x64xf32>, vector<64x192xf32>, vector<16x192xf32> -> vector<16x192xf32>
    %c0_81 = arith.constant 0 : index
    %c0_82 = arith.constant 0 : index
    %502 = vector.load %arg9[%c0_81, %c0_82] : memref<1x192xf32, #tpu.memory_space<vmem>>, vector<1x192xf32>
    %503 = vector.broadcast %502 : vector<1x192xf32> to vector<16x192xf32>
    %504 = arith.addf %501, %503 : vector<16x192xf32>
    %c0_83 = arith.constant 0 : index
    %c0_84 = arith.constant 0 : index
    %505 = vector.load %arg10[%c0_83, %c0_84] : memref<32x96xf32, #tpu.memory_space<vmem>>, vector<32x96xf32>
    %c0_85 = arith.constant 0 : index
    %c0_86 = arith.constant 0 : index
    %506 = vector.load %arg11[%c0_85, %c0_86] : memref<32x96xf32, #tpu.memory_space<vmem>>, vector<32x96xf32>
    %c0_87 = arith.constant 0 : index
    %c0_88 = arith.constant 0 : index
    %507 = vector.load %arg12[%c0_87, %c0_88] : memref<1x96xf32, #tpu.memory_space<vmem>>, vector<1x96xf32>
    %c0_89 = arith.constant 0 : index
    %c0_90 = arith.constant 0 : index
    %508 = vector.load %arg13[%c0_89, %c0_90] : memref<1x96xf32, #tpu.memory_space<vmem>>, vector<1x96xf32>
    %cst_91 = arith.constant 0.000000e+00 : f32
    %509 = vector.broadcast %cst_91 : f32 to vector<2x32xf32>
    %510 = vector.extract_strided_slice %504 {offsets = [0, 0], sizes = [2, 96], strides = [1, 1]} : vector<16x192xf32> to vector<2x96xf32>
    %cst_92 = arith.constant dense<0.000000e+00> : vector<2x96xf32>
    %511 = tpu.matmul %509, %505, %cst_92 {dimension_numbers = #tpu.dot_dimension_numbers<[1], [0], [0], [1], [0, 0, 1, 1], [], []>} : vector<2x32xf32>, vector<32x96xf32>, vector<2x96xf32> -> vector<2x96xf32>
    %512 = vector.broadcast %507 : vector<1x96xf32> to vector<2x96xf32>
    %513 = arith.addf %511, %512 : vector<2x96xf32>
    %514 = vector.extract_strided_slice %510 {offsets = [0, 0], sizes = [2, 32], strides = [1, 1]} : vector<2x96xf32> to vector<2x32xf32>
    %515 = vector.extract_strided_slice %513 {offsets = [0, 0], sizes = [2, 32], strides = [1, 1]} : vector<2x96xf32> to vector<2x32xf32>
    %516 = arith.addf %514, %515 : vector<2x32xf32>
    %517 = arith.negf %516 : vector<2x32xf32>
    %518 = math.exp %517 : vector<2x32xf32>
    %cst_93 = arith.constant 1.000000e+00 : f32
    %519 = vector.broadcast %cst_93 : f32 to vector<2x32xf32>
    %520 = arith.addf %519, %518 : vector<2x32xf32>
    %521 = arith.divf %519, %520 : vector<2x32xf32>
    %522 = vector.extract_strided_slice %510 {offsets = [0, 32], sizes = [2, 32], strides = [1, 1]} : vector<2x96xf32> to vector<2x32xf32>
    %523 = vector.extract_strided_slice %513 {offsets = [0, 32], sizes = [2, 32], strides = [1, 1]} : vector<2x96xf32> to vector<2x32xf32>
    %524 = arith.addf %522, %523 : vector<2x32xf32>
    %525 = arith.negf %524 : vector<2x32xf32>
    %526 = math.exp %525 : vector<2x32xf32>
    %cst_94 = arith.constant 1.000000e+00 : f32
    %527 = vector.broadcast %cst_94 : f32 to vector<2x32xf32>
    %528 = arith.addf %527, %526 : vector<2x32xf32>
    %529 = arith.divf %527, %528 : vector<2x32xf32>
    %530 = vector.extract_strided_slice %510 {offsets = [0, 64], sizes = [2, 32], strides = [1, 1]} : vector<2x96xf32> to vector<2x32xf32>
    %531 = vector.extract_strided_slice %513 {offsets = [0, 64], sizes = [2, 32], strides = [1, 1]} : vector<2x96xf32> to vector<2x32xf32>
    %532 = arith.mulf %521, %531 : vector<2x32xf32>
    %533 = arith.addf %530, %532 : vector<2x32xf32>
    %534 = math.tanh %533 : vector<2x32xf32>
    %cst_95 = arith.constant 1.000000e+00 : f32
    %535 = vector.broadcast %cst_95 : f32 to vector<2x32xf32>
    %536 = arith.subf %535, %529 : vector<2x32xf32>
    %537 = arith.mulf %536, %534 : vector<2x32xf32>
    %538 = arith.mulf %529, %509 : vector<2x32xf32>
    %539 = arith.addf %537, %538 : vector<2x32xf32>
    %540 = vector.extract_strided_slice %504 {offsets = [14, 96], sizes = [2, 96], strides = [1, 1]} : vector<16x192xf32> to vector<2x96xf32>
    %cst_96 = arith.constant dense<0.000000e+00> : vector<2x96xf32>
    %541 = tpu.matmul %509, %506, %cst_96 {dimension_numbers = #tpu.dot_dimension_numbers<[1], [0], [0], [1], [0, 0, 1, 1], [], []>} : vector<2x32xf32>, vector<32x96xf32>, vector<2x96xf32> -> vector<2x96xf32>
    %542 = vector.broadcast %508 : vector<1x96xf32> to vector<2x96xf32>
    %543 = arith.addf %541, %542 : vector<2x96xf32>
    %544 = vector.extract_strided_slice %540 {offsets = [0, 0], sizes = [2, 32], strides = [1, 1]} : vector<2x96xf32> to vector<2x32xf32>
    %545 = vector.extract_strided_slice %543 {offsets = [0, 0], sizes = [2, 32], strides = [1, 1]} : vector<2x96xf32> to vector<2x32xf32>
    %546 = arith.addf %544, %545 : vector<2x32xf32>
    %547 = arith.negf %546 : vector<2x32xf32>
    %548 = math.exp %547 : vector<2x32xf32>
    %cst_97 = arith.constant 1.000000e+00 : f32
    %549 = vector.broadcast %cst_97 : f32 to vector<2x32xf32>
    %550 = arith.addf %549, %548 : vector<2x32xf32>
    %551 = arith.divf %549, %550 : vector<2x32xf32>
    %552 = vector.extract_strided_slice %540 {offsets = [0, 32], sizes = [2, 32], strides = [1, 1]} : vector<2x96xf32> to vector<2x32xf32>
    %553 = vector.extract_strided_slice %543 {offsets = [0, 32], sizes = [2, 32], strides = [1, 1]} : vector<2x96xf32> to vector<2x32xf32>
    %554 = arith.addf %552, %553 : vector<2x32xf32>
    %555 = arith.negf %554 : vector<2x32xf32>
    %556 = math.exp %555 : vector<2x32xf32>
    %cst_98 = arith.constant 1.000000e+00 : f32
    %557 = vector.broadcast %cst_98 : f32 to vector<2x32xf32>
    %558 = arith.addf %557, %556 : vector<2x32xf32>
    %559 = arith.divf %557, %558 : vector<2x32xf32>
    %560 = vector.extract_strided_slice %540 {offsets = [0, 64], sizes = [2, 32], strides = [1, 1]} : vector<2x96xf32> to vector<2x32xf32>
    %561 = vector.extract_strided_slice %543 {offsets = [0, 64], sizes = [2, 32], strides = [1, 1]} : vector<2x96xf32> to vector<2x32xf32>
    %562 = arith.mulf %551, %561 : vector<2x32xf32>
    %563 = arith.addf %560, %562 : vector<2x32xf32>
    %564 = math.tanh %563 : vector<2x32xf32>
    %cst_99 = arith.constant 1.000000e+00 : f32
    %565 = vector.broadcast %cst_99 : f32 to vector<2x32xf32>
    %566 = arith.subf %565, %559 : vector<2x32xf32>
    %567 = arith.mulf %566, %564 : vector<2x32xf32>
    %568 = arith.mulf %559, %509 : vector<2x32xf32>
    %569 = arith.addf %567, %568 : vector<2x32xf32>
    %570 = vector.extract_strided_slice %504 {offsets = [2, 0], sizes = [2, 96], strides = [1, 1]} : vector<16x192xf32> to vector<2x96xf32>
    %cst_100 = arith.constant dense<0.000000e+00> : vector<2x96xf32>
    %571 = tpu.matmul %539, %505, %cst_100 {dimension_numbers = #tpu.dot_dimension_numbers<[1], [0], [0], [1], [0, 0, 1, 1], [], []>} : vector<2x32xf32>, vector<32x96xf32>, vector<2x96xf32> -> vector<2x96xf32>
    %572 = vector.broadcast %507 : vector<1x96xf32> to vector<2x96xf32>
    %573 = arith.addf %571, %572 : vector<2x96xf32>
    %574 = vector.extract_strided_slice %570 {offsets = [0, 0], sizes = [2, 32], strides = [1, 1]} : vector<2x96xf32> to vector<2x32xf32>
    %575 = vector.extract_strided_slice %573 {offsets = [0, 0], sizes = [2, 32], strides = [1, 1]} : vector<2x96xf32> to vector<2x32xf32>
    %576 = arith.addf %574, %575 : vector<2x32xf32>
    %577 = arith.negf %576 : vector<2x32xf32>
    %578 = math.exp %577 : vector<2x32xf32>
    %cst_101 = arith.constant 1.000000e+00 : f32
    %579 = vector.broadcast %cst_101 : f32 to vector<2x32xf32>
    %580 = arith.addf %579, %578 : vector<2x32xf32>
    %581 = arith.divf %579, %580 : vector<2x32xf32>
    %582 = vector.extract_strided_slice %570 {offsets = [0, 32], sizes = [2, 32], strides = [1, 1]} : vector<2x96xf32> to vector<2x32xf32>
    %583 = vector.extract_strided_slice %573 {offsets = [0, 32], sizes = [2, 32], strides = [1, 1]} : vector<2x96xf32> to vector<2x32xf32>
    %584 = arith.addf %582, %583 : vector<2x32xf32>
    %585 = arith.negf %584 : vector<2x32xf32>
    %586 = math.exp %585 : vector<2x32xf32>
    %cst_102 = arith.constant 1.000000e+00 : f32
    %587 = vector.broadcast %cst_102 : f32 to vector<2x32xf32>
    %588 = arith.addf %587, %586 : vector<2x32xf32>
    %589 = arith.divf %587, %588 : vector<2x32xf32>
    %590 = vector.extract_strided_slice %570 {offsets = [0, 64], sizes = [2, 32], strides = [1, 1]} : vector<2x96xf32> to vector<2x32xf32>
    %591 = vector.extract_strided_slice %573 {offsets = [0, 64], sizes = [2, 32], strides = [1, 1]} : vector<2x96xf32> to vector<2x32xf32>
    %592 = arith.mulf %581, %591 : vector<2x32xf32>
    %593 = arith.addf %590, %592 : vector<2x32xf32>
    %594 = math.tanh %593 : vector<2x32xf32>
    %cst_103 = arith.constant 1.000000e+00 : f32
    %595 = vector.broadcast %cst_103 : f32 to vector<2x32xf32>
    %596 = arith.subf %595, %589 : vector<2x32xf32>
    %597 = arith.mulf %596, %594 : vector<2x32xf32>
    %598 = arith.mulf %589, %539 : vector<2x32xf32>
    %599 = arith.addf %597, %598 : vector<2x32xf32>
    %600 = vector.extract_strided_slice %504 {offsets = [12, 96], sizes = [2, 96], strides = [1, 1]} : vector<16x192xf32> to vector<2x96xf32>
    %cst_104 = arith.constant dense<0.000000e+00> : vector<2x96xf32>
    %601 = tpu.matmul %569, %506, %cst_104 {dimension_numbers = #tpu.dot_dimension_numbers<[1], [0], [0], [1], [0, 0, 1, 1], [], []>} : vector<2x32xf32>, vector<32x96xf32>, vector<2x96xf32> -> vector<2x96xf32>
    %602 = vector.broadcast %508 : vector<1x96xf32> to vector<2x96xf32>
    %603 = arith.addf %601, %602 : vector<2x96xf32>
    %604 = vector.extract_strided_slice %600 {offsets = [0, 0], sizes = [2, 32], strides = [1, 1]} : vector<2x96xf32> to vector<2x32xf32>
    %605 = vector.extract_strided_slice %603 {offsets = [0, 0], sizes = [2, 32], strides = [1, 1]} : vector<2x96xf32> to vector<2x32xf32>
    %606 = arith.addf %604, %605 : vector<2x32xf32>
    %607 = arith.negf %606 : vector<2x32xf32>
    %608 = math.exp %607 : vector<2x32xf32>
    %cst_105 = arith.constant 1.000000e+00 : f32
    %609 = vector.broadcast %cst_105 : f32 to vector<2x32xf32>
    %610 = arith.addf %609, %608 : vector<2x32xf32>
    %611 = arith.divf %609, %610 : vector<2x32xf32>
    %612 = vector.extract_strided_slice %600 {offsets = [0, 32], sizes = [2, 32], strides = [1, 1]} : vector<2x96xf32> to vector<2x32xf32>
    %613 = vector.extract_strided_slice %603 {offsets = [0, 32], sizes = [2, 32], strides = [1, 1]} : vector<2x96xf32> to vector<2x32xf32>
    %614 = arith.addf %612, %613 : vector<2x32xf32>
    %615 = arith.negf %614 : vector<2x32xf32>
    %616 = math.exp %615 : vector<2x32xf32>
    %cst_106 = arith.constant 1.000000e+00 : f32
    %617 = vector.broadcast %cst_106 : f32 to vector<2x32xf32>
    %618 = arith.addf %617, %616 : vector<2x32xf32>
    %619 = arith.divf %617, %618 : vector<2x32xf32>
    %620 = vector.extract_strided_slice %600 {offsets = [0, 64], sizes = [2, 32], strides = [1, 1]} : vector<2x96xf32> to vector<2x32xf32>
    %621 = vector.extract_strided_slice %603 {offsets = [0, 64], sizes = [2, 32], strides = [1, 1]} : vector<2x96xf32> to vector<2x32xf32>
    %622 = arith.mulf %611, %621 : vector<2x32xf32>
    %623 = arith.addf %620, %622 : vector<2x32xf32>
    %624 = math.tanh %623 : vector<2x32xf32>
    %cst_107 = arith.constant 1.000000e+00 : f32
    %625 = vector.broadcast %cst_107 : f32 to vector<2x32xf32>
    %626 = arith.subf %625, %619 : vector<2x32xf32>
    %627 = arith.mulf %626, %624 : vector<2x32xf32>
    %628 = arith.mulf %619, %569 : vector<2x32xf32>
    %629 = arith.addf %627, %628 : vector<2x32xf32>
    %630 = vector.extract_strided_slice %504 {offsets = [4, 0], sizes = [2, 96], strides = [1, 1]} : vector<16x192xf32> to vector<2x96xf32>
    %cst_108 = arith.constant dense<0.000000e+00> : vector<2x96xf32>
    %631 = tpu.matmul %599, %505, %cst_108 {dimension_numbers = #tpu.dot_dimension_numbers<[1], [0], [0], [1], [0, 0, 1, 1], [], []>} : vector<2x32xf32>, vector<32x96xf32>, vector<2x96xf32> -> vector<2x96xf32>
    %632 = vector.broadcast %507 : vector<1x96xf32> to vector<2x96xf32>
    %633 = arith.addf %631, %632 : vector<2x96xf32>
    %634 = vector.extract_strided_slice %630 {offsets = [0, 0], sizes = [2, 32], strides = [1, 1]} : vector<2x96xf32> to vector<2x32xf32>
    %635 = vector.extract_strided_slice %633 {offsets = [0, 0], sizes = [2, 32], strides = [1, 1]} : vector<2x96xf32> to vector<2x32xf32>
    %636 = arith.addf %634, %635 : vector<2x32xf32>
    %637 = arith.negf %636 : vector<2x32xf32>
    %638 = math.exp %637 : vector<2x32xf32>
    %cst_109 = arith.constant 1.000000e+00 : f32
    %639 = vector.broadcast %cst_109 : f32 to vector<2x32xf32>
    %640 = arith.addf %639, %638 : vector<2x32xf32>
    %641 = arith.divf %639, %640 : vector<2x32xf32>
    %642 = vector.extract_strided_slice %630 {offsets = [0, 32], sizes = [2, 32], strides = [1, 1]} : vector<2x96xf32> to vector<2x32xf32>
    %643 = vector.extract_strided_slice %633 {offsets = [0, 32], sizes = [2, 32], strides = [1, 1]} : vector<2x96xf32> to vector<2x32xf32>
    %644 = arith.addf %642, %643 : vector<2x32xf32>
    %645 = arith.negf %644 : vector<2x32xf32>
    %646 = math.exp %645 : vector<2x32xf32>
    %cst_110 = arith.constant 1.000000e+00 : f32
    %647 = vector.broadcast %cst_110 : f32 to vector<2x32xf32>
    %648 = arith.addf %647, %646 : vector<2x32xf32>
    %649 = arith.divf %647, %648 : vector<2x32xf32>
    %650 = vector.extract_strided_slice %630 {offsets = [0, 64], sizes = [2, 32], strides = [1, 1]} : vector<2x96xf32> to vector<2x32xf32>
    %651 = vector.extract_strided_slice %633 {offsets = [0, 64], sizes = [2, 32], strides = [1, 1]} : vector<2x96xf32> to vector<2x32xf32>
    %652 = arith.mulf %641, %651 : vector<2x32xf32>
    %653 = arith.addf %650, %652 : vector<2x32xf32>
    %654 = math.tanh %653 : vector<2x32xf32>
    %cst_111 = arith.constant 1.000000e+00 : f32
    %655 = vector.broadcast %cst_111 : f32 to vector<2x32xf32>
    %656 = arith.subf %655, %649 : vector<2x32xf32>
    %657 = arith.mulf %656, %654 : vector<2x32xf32>
    %658 = arith.mulf %649, %599 : vector<2x32xf32>
    %659 = arith.addf %657, %658 : vector<2x32xf32>
    %660 = vector.extract_strided_slice %504 {offsets = [10, 96], sizes = [2, 96], strides = [1, 1]} : vector<16x192xf32> to vector<2x96xf32>
    %cst_112 = arith.constant dense<0.000000e+00> : vector<2x96xf32>
    %661 = tpu.matmul %629, %506, %cst_112 {dimension_numbers = #tpu.dot_dimension_numbers<[1], [0], [0], [1], [0, 0, 1, 1], [], []>} : vector<2x32xf32>, vector<32x96xf32>, vector<2x96xf32> -> vector<2x96xf32>
    %662 = vector.broadcast %508 : vector<1x96xf32> to vector<2x96xf32>
    %663 = arith.addf %661, %662 : vector<2x96xf32>
    %664 = vector.extract_strided_slice %660 {offsets = [0, 0], sizes = [2, 32], strides = [1, 1]} : vector<2x96xf32> to vector<2x32xf32>
    %665 = vector.extract_strided_slice %663 {offsets = [0, 0], sizes = [2, 32], strides = [1, 1]} : vector<2x96xf32> to vector<2x32xf32>
    %666 = arith.addf %664, %665 : vector<2x32xf32>
    %667 = arith.negf %666 : vector<2x32xf32>
    %668 = math.exp %667 : vector<2x32xf32>
    %cst_113 = arith.constant 1.000000e+00 : f32
    %669 = vector.broadcast %cst_113 : f32 to vector<2x32xf32>
    %670 = arith.addf %669, %668 : vector<2x32xf32>
    %671 = arith.divf %669, %670 : vector<2x32xf32>
    %672 = vector.extract_strided_slice %660 {offsets = [0, 32], sizes = [2, 32], strides = [1, 1]} : vector<2x96xf32> to vector<2x32xf32>
    %673 = vector.extract_strided_slice %663 {offsets = [0, 32], sizes = [2, 32], strides = [1, 1]} : vector<2x96xf32> to vector<2x32xf32>
    %674 = arith.addf %672, %673 : vector<2x32xf32>
    %675 = arith.negf %674 : vector<2x32xf32>
    %676 = math.exp %675 : vector<2x32xf32>
    %cst_114 = arith.constant 1.000000e+00 : f32
    %677 = vector.broadcast %cst_114 : f32 to vector<2x32xf32>
    %678 = arith.addf %677, %676 : vector<2x32xf32>
    %679 = arith.divf %677, %678 : vector<2x32xf32>
    %680 = vector.extract_strided_slice %660 {offsets = [0, 64], sizes = [2, 32], strides = [1, 1]} : vector<2x96xf32> to vector<2x32xf32>
    %681 = vector.extract_strided_slice %663 {offsets = [0, 64], sizes = [2, 32], strides = [1, 1]} : vector<2x96xf32> to vector<2x32xf32>
    %682 = arith.mulf %671, %681 : vector<2x32xf32>
    %683 = arith.addf %680, %682 : vector<2x32xf32>
    %684 = math.tanh %683 : vector<2x32xf32>
    %cst_115 = arith.constant 1.000000e+00 : f32
    %685 = vector.broadcast %cst_115 : f32 to vector<2x32xf32>
    %686 = arith.subf %685, %679 : vector<2x32xf32>
    %687 = arith.mulf %686, %684 : vector<2x32xf32>
    %688 = arith.mulf %679, %629 : vector<2x32xf32>
    %689 = arith.addf %687, %688 : vector<2x32xf32>
    %690 = vector.extract_strided_slice %504 {offsets = [6, 0], sizes = [2, 96], strides = [1, 1]} : vector<16x192xf32> to vector<2x96xf32>
    %cst_116 = arith.constant dense<0.000000e+00> : vector<2x96xf32>
    %691 = tpu.matmul %659, %505, %cst_116 {dimension_numbers = #tpu.dot_dimension_numbers<[1], [0], [0], [1], [0, 0, 1, 1], [], []>} : vector<2x32xf32>, vector<32x96xf32>, vector<2x96xf32> -> vector<2x96xf32>
    %692 = vector.broadcast %507 : vector<1x96xf32> to vector<2x96xf32>
    %693 = arith.addf %691, %692 : vector<2x96xf32>
    %694 = vector.extract_strided_slice %690 {offsets = [0, 0], sizes = [2, 32], strides = [1, 1]} : vector<2x96xf32> to vector<2x32xf32>
    %695 = vector.extract_strided_slice %693 {offsets = [0, 0], sizes = [2, 32], strides = [1, 1]} : vector<2x96xf32> to vector<2x32xf32>
    %696 = arith.addf %694, %695 : vector<2x32xf32>
    %697 = arith.negf %696 : vector<2x32xf32>
    %698 = math.exp %697 : vector<2x32xf32>
    %cst_117 = arith.constant 1.000000e+00 : f32
    %699 = vector.broadcast %cst_117 : f32 to vector<2x32xf32>
    %700 = arith.addf %699, %698 : vector<2x32xf32>
    %701 = arith.divf %699, %700 : vector<2x32xf32>
    %702 = vector.extract_strided_slice %690 {offsets = [0, 32], sizes = [2, 32], strides = [1, 1]} : vector<2x96xf32> to vector<2x32xf32>
    %703 = vector.extract_strided_slice %693 {offsets = [0, 32], sizes = [2, 32], strides = [1, 1]} : vector<2x96xf32> to vector<2x32xf32>
    %704 = arith.addf %702, %703 : vector<2x32xf32>
    %705 = arith.negf %704 : vector<2x32xf32>
    %706 = math.exp %705 : vector<2x32xf32>
    %cst_118 = arith.constant 1.000000e+00 : f32
    %707 = vector.broadcast %cst_118 : f32 to vector<2x32xf32>
    %708 = arith.addf %707, %706 : vector<2x32xf32>
    %709 = arith.divf %707, %708 : vector<2x32xf32>
    %710 = vector.extract_strided_slice %690 {offsets = [0, 64], sizes = [2, 32], strides = [1, 1]} : vector<2x96xf32> to vector<2x32xf32>
    %711 = vector.extract_strided_slice %693 {offsets = [0, 64], sizes = [2, 32], strides = [1, 1]} : vector<2x96xf32> to vector<2x32xf32>
    %712 = arith.mulf %701, %711 : vector<2x32xf32>
    %713 = arith.addf %710, %712 : vector<2x32xf32>
    %714 = math.tanh %713 : vector<2x32xf32>
    %cst_119 = arith.constant 1.000000e+00 : f32
    %715 = vector.broadcast %cst_119 : f32 to vector<2x32xf32>
    %716 = arith.subf %715, %709 : vector<2x32xf32>
    %717 = arith.mulf %716, %714 : vector<2x32xf32>
    %718 = arith.mulf %709, %659 : vector<2x32xf32>
    %719 = arith.addf %717, %718 : vector<2x32xf32>
    %720 = vector.extract_strided_slice %504 {offsets = [8, 96], sizes = [2, 96], strides = [1, 1]} : vector<16x192xf32> to vector<2x96xf32>
    %cst_120 = arith.constant dense<0.000000e+00> : vector<2x96xf32>
    %721 = tpu.matmul %689, %506, %cst_120 {dimension_numbers = #tpu.dot_dimension_numbers<[1], [0], [0], [1], [0, 0, 1, 1], [], []>} : vector<2x32xf32>, vector<32x96xf32>, vector<2x96xf32> -> vector<2x96xf32>
    %722 = vector.broadcast %508 : vector<1x96xf32> to vector<2x96xf32>
    %723 = arith.addf %721, %722 : vector<2x96xf32>
    %724 = vector.extract_strided_slice %720 {offsets = [0, 0], sizes = [2, 32], strides = [1, 1]} : vector<2x96xf32> to vector<2x32xf32>
    %725 = vector.extract_strided_slice %723 {offsets = [0, 0], sizes = [2, 32], strides = [1, 1]} : vector<2x96xf32> to vector<2x32xf32>
    %726 = arith.addf %724, %725 : vector<2x32xf32>
    %727 = arith.negf %726 : vector<2x32xf32>
    %728 = math.exp %727 : vector<2x32xf32>
    %cst_121 = arith.constant 1.000000e+00 : f32
    %729 = vector.broadcast %cst_121 : f32 to vector<2x32xf32>
    %730 = arith.addf %729, %728 : vector<2x32xf32>
    %731 = arith.divf %729, %730 : vector<2x32xf32>
    %732 = vector.extract_strided_slice %720 {offsets = [0, 32], sizes = [2, 32], strides = [1, 1]} : vector<2x96xf32> to vector<2x32xf32>
    %733 = vector.extract_strided_slice %723 {offsets = [0, 32], sizes = [2, 32], strides = [1, 1]} : vector<2x96xf32> to vector<2x32xf32>
    %734 = arith.addf %732, %733 : vector<2x32xf32>
    %735 = arith.negf %734 : vector<2x32xf32>
    %736 = math.exp %735 : vector<2x32xf32>
    %cst_122 = arith.constant 1.000000e+00 : f32
    %737 = vector.broadcast %cst_122 : f32 to vector<2x32xf32>
    %738 = arith.addf %737, %736 : vector<2x32xf32>
    %739 = arith.divf %737, %738 : vector<2x32xf32>
    %740 = vector.extract_strided_slice %720 {offsets = [0, 64], sizes = [2, 32], strides = [1, 1]} : vector<2x96xf32> to vector<2x32xf32>
    %741 = vector.extract_strided_slice %723 {offsets = [0, 64], sizes = [2, 32], strides = [1, 1]} : vector<2x96xf32> to vector<2x32xf32>
    %742 = arith.mulf %731, %741 : vector<2x32xf32>
    %743 = arith.addf %740, %742 : vector<2x32xf32>
    %744 = math.tanh %743 : vector<2x32xf32>
    %cst_123 = arith.constant 1.000000e+00 : f32
    %745 = vector.broadcast %cst_123 : f32 to vector<2x32xf32>
    %746 = arith.subf %745, %739 : vector<2x32xf32>
    %747 = arith.mulf %746, %744 : vector<2x32xf32>
    %748 = arith.mulf %739, %689 : vector<2x32xf32>
    %749 = arith.addf %747, %748 : vector<2x32xf32>
    %750 = vector.extract_strided_slice %504 {offsets = [8, 0], sizes = [2, 96], strides = [1, 1]} : vector<16x192xf32> to vector<2x96xf32>
    %cst_124 = arith.constant dense<0.000000e+00> : vector<2x96xf32>
    %751 = tpu.matmul %719, %505, %cst_124 {dimension_numbers = #tpu.dot_dimension_numbers<[1], [0], [0], [1], [0, 0, 1, 1], [], []>} : vector<2x32xf32>, vector<32x96xf32>, vector<2x96xf32> -> vector<2x96xf32>
    %752 = vector.broadcast %507 : vector<1x96xf32> to vector<2x96xf32>
    %753 = arith.addf %751, %752 : vector<2x96xf32>
    %754 = vector.extract_strided_slice %750 {offsets = [0, 0], sizes = [2, 32], strides = [1, 1]} : vector<2x96xf32> to vector<2x32xf32>
    %755 = vector.extract_strided_slice %753 {offsets = [0, 0], sizes = [2, 32], strides = [1, 1]} : vector<2x96xf32> to vector<2x32xf32>
    %756 = arith.addf %754, %755 : vector<2x32xf32>
    %757 = arith.negf %756 : vector<2x32xf32>
    %758 = math.exp %757 : vector<2x32xf32>
    %cst_125 = arith.constant 1.000000e+00 : f32
    %759 = vector.broadcast %cst_125 : f32 to vector<2x32xf32>
    %760 = arith.addf %759, %758 : vector<2x32xf32>
    %761 = arith.divf %759, %760 : vector<2x32xf32>
    %762 = vector.extract_strided_slice %750 {offsets = [0, 32], sizes = [2, 32], strides = [1, 1]} : vector<2x96xf32> to vector<2x32xf32>
    %763 = vector.extract_strided_slice %753 {offsets = [0, 32], sizes = [2, 32], strides = [1, 1]} : vector<2x96xf32> to vector<2x32xf32>
    %764 = arith.addf %762, %763 : vector<2x32xf32>
    %765 = arith.negf %764 : vector<2x32xf32>
    %766 = math.exp %765 : vector<2x32xf32>
    %cst_126 = arith.constant 1.000000e+00 : f32
    %767 = vector.broadcast %cst_126 : f32 to vector<2x32xf32>
    %768 = arith.addf %767, %766 : vector<2x32xf32>
    %769 = arith.divf %767, %768 : vector<2x32xf32>
    %770 = vector.extract_strided_slice %750 {offsets = [0, 64], sizes = [2, 32], strides = [1, 1]} : vector<2x96xf32> to vector<2x32xf32>
    %771 = vector.extract_strided_slice %753 {offsets = [0, 64], sizes = [2, 32], strides = [1, 1]} : vector<2x96xf32> to vector<2x32xf32>
    %772 = arith.mulf %761, %771 : vector<2x32xf32>
    %773 = arith.addf %770, %772 : vector<2x32xf32>
    %774 = math.tanh %773 : vector<2x32xf32>
    %cst_127 = arith.constant 1.000000e+00 : f32
    %775 = vector.broadcast %cst_127 : f32 to vector<2x32xf32>
    %776 = arith.subf %775, %769 : vector<2x32xf32>
    %777 = arith.mulf %776, %774 : vector<2x32xf32>
    %778 = arith.mulf %769, %719 : vector<2x32xf32>
    %779 = arith.addf %777, %778 : vector<2x32xf32>
    %780 = vector.extract_strided_slice %504 {offsets = [6, 96], sizes = [2, 96], strides = [1, 1]} : vector<16x192xf32> to vector<2x96xf32>
    %cst_128 = arith.constant dense<0.000000e+00> : vector<2x96xf32>
    %781 = tpu.matmul %749, %506, %cst_128 {dimension_numbers = #tpu.dot_dimension_numbers<[1], [0], [0], [1], [0, 0, 1, 1], [], []>} : vector<2x32xf32>, vector<32x96xf32>, vector<2x96xf32> -> vector<2x96xf32>
    %782 = vector.broadcast %508 : vector<1x96xf32> to vector<2x96xf32>
    %783 = arith.addf %781, %782 : vector<2x96xf32>
    %784 = vector.extract_strided_slice %780 {offsets = [0, 0], sizes = [2, 32], strides = [1, 1]} : vector<2x96xf32> to vector<2x32xf32>
    %785 = vector.extract_strided_slice %783 {offsets = [0, 0], sizes = [2, 32], strides = [1, 1]} : vector<2x96xf32> to vector<2x32xf32>
    %786 = arith.addf %784, %785 : vector<2x32xf32>
    %787 = arith.negf %786 : vector<2x32xf32>
    %788 = math.exp %787 : vector<2x32xf32>
    %cst_129 = arith.constant 1.000000e+00 : f32
    %789 = vector.broadcast %cst_129 : f32 to vector<2x32xf32>
    %790 = arith.addf %789, %788 : vector<2x32xf32>
    %791 = arith.divf %789, %790 : vector<2x32xf32>
    %792 = vector.extract_strided_slice %780 {offsets = [0, 32], sizes = [2, 32], strides = [1, 1]} : vector<2x96xf32> to vector<2x32xf32>
    %793 = vector.extract_strided_slice %783 {offsets = [0, 32], sizes = [2, 32], strides = [1, 1]} : vector<2x96xf32> to vector<2x32xf32>
    %794 = arith.addf %792, %793 : vector<2x32xf32>
    %795 = arith.negf %794 : vector<2x32xf32>
    %796 = math.exp %795 : vector<2x32xf32>
    %cst_130 = arith.constant 1.000000e+00 : f32
    %797 = vector.broadcast %cst_130 : f32 to vector<2x32xf32>
    %798 = arith.addf %797, %796 : vector<2x32xf32>
    %799 = arith.divf %797, %798 : vector<2x32xf32>
    %800 = vector.extract_strided_slice %780 {offsets = [0, 64], sizes = [2, 32], strides = [1, 1]} : vector<2x96xf32> to vector<2x32xf32>
    %801 = vector.extract_strided_slice %783 {offsets = [0, 64], sizes = [2, 32], strides = [1, 1]} : vector<2x96xf32> to vector<2x32xf32>
    %802 = arith.mulf %791, %801 : vector<2x32xf32>
    %803 = arith.addf %800, %802 : vector<2x32xf32>
    %804 = math.tanh %803 : vector<2x32xf32>
    %cst_131 = arith.constant 1.000000e+00 : f32
    %805 = vector.broadcast %cst_131 : f32 to vector<2x32xf32>
    %806 = arith.subf %805, %799 : vector<2x32xf32>
    %807 = arith.mulf %806, %804 : vector<2x32xf32>
    %808 = arith.mulf %799, %749 : vector<2x32xf32>
    %809 = arith.addf %807, %808 : vector<2x32xf32>
    %810 = vector.extract_strided_slice %504 {offsets = [10, 0], sizes = [2, 96], strides = [1, 1]} : vector<16x192xf32> to vector<2x96xf32>
    %cst_132 = arith.constant dense<0.000000e+00> : vector<2x96xf32>
    %811 = tpu.matmul %779, %505, %cst_132 {dimension_numbers = #tpu.dot_dimension_numbers<[1], [0], [0], [1], [0, 0, 1, 1], [], []>} : vector<2x32xf32>, vector<32x96xf32>, vector<2x96xf32> -> vector<2x96xf32>
    %812 = vector.broadcast %507 : vector<1x96xf32> to vector<2x96xf32>
    %813 = arith.addf %811, %812 : vector<2x96xf32>
    %814 = vector.extract_strided_slice %810 {offsets = [0, 0], sizes = [2, 32], strides = [1, 1]} : vector<2x96xf32> to vector<2x32xf32>
    %815 = vector.extract_strided_slice %813 {offsets = [0, 0], sizes = [2, 32], strides = [1, 1]} : vector<2x96xf32> to vector<2x32xf32>
    %816 = arith.addf %814, %815 : vector<2x32xf32>
    %817 = arith.negf %816 : vector<2x32xf32>
    %818 = math.exp %817 : vector<2x32xf32>
    %cst_133 = arith.constant 1.000000e+00 : f32
    %819 = vector.broadcast %cst_133 : f32 to vector<2x32xf32>
    %820 = arith.addf %819, %818 : vector<2x32xf32>
    %821 = arith.divf %819, %820 : vector<2x32xf32>
    %822 = vector.extract_strided_slice %810 {offsets = [0, 32], sizes = [2, 32], strides = [1, 1]} : vector<2x96xf32> to vector<2x32xf32>
    %823 = vector.extract_strided_slice %813 {offsets = [0, 32], sizes = [2, 32], strides = [1, 1]} : vector<2x96xf32> to vector<2x32xf32>
    %824 = arith.addf %822, %823 : vector<2x32xf32>
    %825 = arith.negf %824 : vector<2x32xf32>
    %826 = math.exp %825 : vector<2x32xf32>
    %cst_134 = arith.constant 1.000000e+00 : f32
    %827 = vector.broadcast %cst_134 : f32 to vector<2x32xf32>
    %828 = arith.addf %827, %826 : vector<2x32xf32>
    %829 = arith.divf %827, %828 : vector<2x32xf32>
    %830 = vector.extract_strided_slice %810 {offsets = [0, 64], sizes = [2, 32], strides = [1, 1]} : vector<2x96xf32> to vector<2x32xf32>
    %831 = vector.extract_strided_slice %813 {offsets = [0, 64], sizes = [2, 32], strides = [1, 1]} : vector<2x96xf32> to vector<2x32xf32>
    %832 = arith.mulf %821, %831 : vector<2x32xf32>
    %833 = arith.addf %830, %832 : vector<2x32xf32>
    %834 = math.tanh %833 : vector<2x32xf32>
    %cst_135 = arith.constant 1.000000e+00 : f32
    %835 = vector.broadcast %cst_135 : f32 to vector<2x32xf32>
    %836 = arith.subf %835, %829 : vector<2x32xf32>
    %837 = arith.mulf %836, %834 : vector<2x32xf32>
    %838 = arith.mulf %829, %779 : vector<2x32xf32>
    %839 = arith.addf %837, %838 : vector<2x32xf32>
    %840 = vector.extract_strided_slice %504 {offsets = [4, 96], sizes = [2, 96], strides = [1, 1]} : vector<16x192xf32> to vector<2x96xf32>
    %cst_136 = arith.constant dense<0.000000e+00> : vector<2x96xf32>
    %841 = tpu.matmul %809, %506, %cst_136 {dimension_numbers = #tpu.dot_dimension_numbers<[1], [0], [0], [1], [0, 0, 1, 1], [], []>} : vector<2x32xf32>, vector<32x96xf32>, vector<2x96xf32> -> vector<2x96xf32>
    %842 = vector.broadcast %508 : vector<1x96xf32> to vector<2x96xf32>
    %843 = arith.addf %841, %842 : vector<2x96xf32>
    %844 = vector.extract_strided_slice %840 {offsets = [0, 0], sizes = [2, 32], strides = [1, 1]} : vector<2x96xf32> to vector<2x32xf32>
    %845 = vector.extract_strided_slice %843 {offsets = [0, 0], sizes = [2, 32], strides = [1, 1]} : vector<2x96xf32> to vector<2x32xf32>
    %846 = arith.addf %844, %845 : vector<2x32xf32>
    %847 = arith.negf %846 : vector<2x32xf32>
    %848 = math.exp %847 : vector<2x32xf32>
    %cst_137 = arith.constant 1.000000e+00 : f32
    %849 = vector.broadcast %cst_137 : f32 to vector<2x32xf32>
    %850 = arith.addf %849, %848 : vector<2x32xf32>
    %851 = arith.divf %849, %850 : vector<2x32xf32>
    %852 = vector.extract_strided_slice %840 {offsets = [0, 32], sizes = [2, 32], strides = [1, 1]} : vector<2x96xf32> to vector<2x32xf32>
    %853 = vector.extract_strided_slice %843 {offsets = [0, 32], sizes = [2, 32], strides = [1, 1]} : vector<2x96xf32> to vector<2x32xf32>
    %854 = arith.addf %852, %853 : vector<2x32xf32>
    %855 = arith.negf %854 : vector<2x32xf32>
    %856 = math.exp %855 : vector<2x32xf32>
    %cst_138 = arith.constant 1.000000e+00 : f32
    %857 = vector.broadcast %cst_138 : f32 to vector<2x32xf32>
    %858 = arith.addf %857, %856 : vector<2x32xf32>
    %859 = arith.divf %857, %858 : vector<2x32xf32>
    %860 = vector.extract_strided_slice %840 {offsets = [0, 64], sizes = [2, 32], strides = [1, 1]} : vector<2x96xf32> to vector<2x32xf32>
    %861 = vector.extract_strided_slice %843 {offsets = [0, 64], sizes = [2, 32], strides = [1, 1]} : vector<2x96xf32> to vector<2x32xf32>
    %862 = arith.mulf %851, %861 : vector<2x32xf32>
    %863 = arith.addf %860, %862 : vector<2x32xf32>
    %864 = math.tanh %863 : vector<2x32xf32>
    %cst_139 = arith.constant 1.000000e+00 : f32
    %865 = vector.broadcast %cst_139 : f32 to vector<2x32xf32>
    %866 = arith.subf %865, %859 : vector<2x32xf32>
    %867 = arith.mulf %866, %864 : vector<2x32xf32>
    %868 = arith.mulf %859, %809 : vector<2x32xf32>
    %869 = arith.addf %867, %868 : vector<2x32xf32>
    %870 = vector.extract_strided_slice %504 {offsets = [12, 0], sizes = [2, 96], strides = [1, 1]} : vector<16x192xf32> to vector<2x96xf32>
    %cst_140 = arith.constant dense<0.000000e+00> : vector<2x96xf32>
    %871 = tpu.matmul %839, %505, %cst_140 {dimension_numbers = #tpu.dot_dimension_numbers<[1], [0], [0], [1], [0, 0, 1, 1], [], []>} : vector<2x32xf32>, vector<32x96xf32>, vector<2x96xf32> -> vector<2x96xf32>
    %872 = vector.broadcast %507 : vector<1x96xf32> to vector<2x96xf32>
    %873 = arith.addf %871, %872 : vector<2x96xf32>
    %874 = vector.extract_strided_slice %870 {offsets = [0, 0], sizes = [2, 32], strides = [1, 1]} : vector<2x96xf32> to vector<2x32xf32>
    %875 = vector.extract_strided_slice %873 {offsets = [0, 0], sizes = [2, 32], strides = [1, 1]} : vector<2x96xf32> to vector<2x32xf32>
    %876 = arith.addf %874, %875 : vector<2x32xf32>
    %877 = arith.negf %876 : vector<2x32xf32>
    %878 = math.exp %877 : vector<2x32xf32>
    %cst_141 = arith.constant 1.000000e+00 : f32
    %879 = vector.broadcast %cst_141 : f32 to vector<2x32xf32>
    %880 = arith.addf %879, %878 : vector<2x32xf32>
    %881 = arith.divf %879, %880 : vector<2x32xf32>
    %882 = vector.extract_strided_slice %870 {offsets = [0, 32], sizes = [2, 32], strides = [1, 1]} : vector<2x96xf32> to vector<2x32xf32>
    %883 = vector.extract_strided_slice %873 {offsets = [0, 32], sizes = [2, 32], strides = [1, 1]} : vector<2x96xf32> to vector<2x32xf32>
    %884 = arith.addf %882, %883 : vector<2x32xf32>
    %885 = arith.negf %884 : vector<2x32xf32>
    %886 = math.exp %885 : vector<2x32xf32>
    %cst_142 = arith.constant 1.000000e+00 : f32
    %887 = vector.broadcast %cst_142 : f32 to vector<2x32xf32>
    %888 = arith.addf %887, %886 : vector<2x32xf32>
    %889 = arith.divf %887, %888 : vector<2x32xf32>
    %890 = vector.extract_strided_slice %870 {offsets = [0, 64], sizes = [2, 32], strides = [1, 1]} : vector<2x96xf32> to vector<2x32xf32>
    %891 = vector.extract_strided_slice %873 {offsets = [0, 64], sizes = [2, 32], strides = [1, 1]} : vector<2x96xf32> to vector<2x32xf32>
    %892 = arith.mulf %881, %891 : vector<2x32xf32>
    %893 = arith.addf %890, %892 : vector<2x32xf32>
    %894 = math.tanh %893 : vector<2x32xf32>
    %cst_143 = arith.constant 1.000000e+00 : f32
    %895 = vector.broadcast %cst_143 : f32 to vector<2x32xf32>
    %896 = arith.subf %895, %889 : vector<2x32xf32>
    %897 = arith.mulf %896, %894 : vector<2x32xf32>
    %898 = arith.mulf %889, %839 : vector<2x32xf32>
    %899 = arith.addf %897, %898 : vector<2x32xf32>
    %900 = vector.extract_strided_slice %504 {offsets = [2, 96], sizes = [2, 96], strides = [1, 1]} : vector<16x192xf32> to vector<2x96xf32>
    %cst_144 = arith.constant dense<0.000000e+00> : vector<2x96xf32>
    %901 = tpu.matmul %869, %506, %cst_144 {dimension_numbers = #tpu.dot_dimension_numbers<[1], [0], [0], [1], [0, 0, 1, 1], [], []>} : vector<2x32xf32>, vector<32x96xf32>, vector<2x96xf32> -> vector<2x96xf32>
    %902 = vector.broadcast %508 : vector<1x96xf32> to vector<2x96xf32>
    %903 = arith.addf %901, %902 : vector<2x96xf32>
    %904 = vector.extract_strided_slice %900 {offsets = [0, 0], sizes = [2, 32], strides = [1, 1]} : vector<2x96xf32> to vector<2x32xf32>
    %905 = vector.extract_strided_slice %903 {offsets = [0, 0], sizes = [2, 32], strides = [1, 1]} : vector<2x96xf32> to vector<2x32xf32>
    %906 = arith.addf %904, %905 : vector<2x32xf32>
    %907 = arith.negf %906 : vector<2x32xf32>
    %908 = math.exp %907 : vector<2x32xf32>
    %cst_145 = arith.constant 1.000000e+00 : f32
    %909 = vector.broadcast %cst_145 : f32 to vector<2x32xf32>
    %910 = arith.addf %909, %908 : vector<2x32xf32>
    %911 = arith.divf %909, %910 : vector<2x32xf32>
    %912 = vector.extract_strided_slice %900 {offsets = [0, 32], sizes = [2, 32], strides = [1, 1]} : vector<2x96xf32> to vector<2x32xf32>
    %913 = vector.extract_strided_slice %903 {offsets = [0, 32], sizes = [2, 32], strides = [1, 1]} : vector<2x96xf32> to vector<2x32xf32>
    %914 = arith.addf %912, %913 : vector<2x32xf32>
    %915 = arith.negf %914 : vector<2x32xf32>
    %916 = math.exp %915 : vector<2x32xf32>
    %cst_146 = arith.constant 1.000000e+00 : f32
    %917 = vector.broadcast %cst_146 : f32 to vector<2x32xf32>
    %918 = arith.addf %917, %916 : vector<2x32xf32>
    %919 = arith.divf %917, %918 : vector<2x32xf32>
    %920 = vector.extract_strided_slice %900 {offsets = [0, 64], sizes = [2, 32], strides = [1, 1]} : vector<2x96xf32> to vector<2x32xf32>
    %921 = vector.extract_strided_slice %903 {offsets = [0, 64], sizes = [2, 32], strides = [1, 1]} : vector<2x96xf32> to vector<2x32xf32>
    %922 = arith.mulf %911, %921 : vector<2x32xf32>
    %923 = arith.addf %920, %922 : vector<2x32xf32>
    %924 = math.tanh %923 : vector<2x32xf32>
    %cst_147 = arith.constant 1.000000e+00 : f32
    %925 = vector.broadcast %cst_147 : f32 to vector<2x32xf32>
    %926 = arith.subf %925, %919 : vector<2x32xf32>
    %927 = arith.mulf %926, %924 : vector<2x32xf32>
    %928 = arith.mulf %919, %869 : vector<2x32xf32>
    %929 = arith.addf %927, %928 : vector<2x32xf32>
    %930 = vector.extract_strided_slice %504 {offsets = [14, 0], sizes = [2, 96], strides = [1, 1]} : vector<16x192xf32> to vector<2x96xf32>
    %cst_148 = arith.constant dense<0.000000e+00> : vector<2x96xf32>
    %931 = tpu.matmul %899, %505, %cst_148 {dimension_numbers = #tpu.dot_dimension_numbers<[1], [0], [0], [1], [0, 0, 1, 1], [], []>} : vector<2x32xf32>, vector<32x96xf32>, vector<2x96xf32> -> vector<2x96xf32>
    %932 = vector.broadcast %507 : vector<1x96xf32> to vector<2x96xf32>
    %933 = arith.addf %931, %932 : vector<2x96xf32>
    %934 = vector.extract_strided_slice %930 {offsets = [0, 0], sizes = [2, 32], strides = [1, 1]} : vector<2x96xf32> to vector<2x32xf32>
    %935 = vector.extract_strided_slice %933 {offsets = [0, 0], sizes = [2, 32], strides = [1, 1]} : vector<2x96xf32> to vector<2x32xf32>
    %936 = arith.addf %934, %935 : vector<2x32xf32>
    %937 = arith.negf %936 : vector<2x32xf32>
    %938 = math.exp %937 : vector<2x32xf32>
    %cst_149 = arith.constant 1.000000e+00 : f32
    %939 = vector.broadcast %cst_149 : f32 to vector<2x32xf32>
    %940 = arith.addf %939, %938 : vector<2x32xf32>
    %941 = arith.divf %939, %940 : vector<2x32xf32>
    %942 = vector.extract_strided_slice %930 {offsets = [0, 32], sizes = [2, 32], strides = [1, 1]} : vector<2x96xf32> to vector<2x32xf32>
    %943 = vector.extract_strided_slice %933 {offsets = [0, 32], sizes = [2, 32], strides = [1, 1]} : vector<2x96xf32> to vector<2x32xf32>
    %944 = arith.addf %942, %943 : vector<2x32xf32>
    %945 = arith.negf %944 : vector<2x32xf32>
    %946 = math.exp %945 : vector<2x32xf32>
    %cst_150 = arith.constant 1.000000e+00 : f32
    %947 = vector.broadcast %cst_150 : f32 to vector<2x32xf32>
    %948 = arith.addf %947, %946 : vector<2x32xf32>
    %949 = arith.divf %947, %948 : vector<2x32xf32>
    %950 = vector.extract_strided_slice %930 {offsets = [0, 64], sizes = [2, 32], strides = [1, 1]} : vector<2x96xf32> to vector<2x32xf32>
    %951 = vector.extract_strided_slice %933 {offsets = [0, 64], sizes = [2, 32], strides = [1, 1]} : vector<2x96xf32> to vector<2x32xf32>
    %952 = arith.mulf %941, %951 : vector<2x32xf32>
    %953 = arith.addf %950, %952 : vector<2x32xf32>
    %954 = math.tanh %953 : vector<2x32xf32>
    %cst_151 = arith.constant 1.000000e+00 : f32
    %955 = vector.broadcast %cst_151 : f32 to vector<2x32xf32>
    %956 = arith.subf %955, %949 : vector<2x32xf32>
    %957 = arith.mulf %956, %954 : vector<2x32xf32>
    %958 = arith.mulf %949, %899 : vector<2x32xf32>
    %959 = arith.addf %957, %958 : vector<2x32xf32>
    %960 = vector.extract_strided_slice %504 {offsets = [0, 96], sizes = [2, 96], strides = [1, 1]} : vector<16x192xf32> to vector<2x96xf32>
    %cst_152 = arith.constant dense<0.000000e+00> : vector<2x96xf32>
    %961 = tpu.matmul %929, %506, %cst_152 {dimension_numbers = #tpu.dot_dimension_numbers<[1], [0], [0], [1], [0, 0, 1, 1], [], []>} : vector<2x32xf32>, vector<32x96xf32>, vector<2x96xf32> -> vector<2x96xf32>
    %962 = vector.broadcast %508 : vector<1x96xf32> to vector<2x96xf32>
    %963 = arith.addf %961, %962 : vector<2x96xf32>
    %964 = vector.extract_strided_slice %960 {offsets = [0, 0], sizes = [2, 32], strides = [1, 1]} : vector<2x96xf32> to vector<2x32xf32>
    %965 = vector.extract_strided_slice %963 {offsets = [0, 0], sizes = [2, 32], strides = [1, 1]} : vector<2x96xf32> to vector<2x32xf32>
    %966 = arith.addf %964, %965 : vector<2x32xf32>
    %967 = arith.negf %966 : vector<2x32xf32>
    %968 = math.exp %967 : vector<2x32xf32>
    %cst_153 = arith.constant 1.000000e+00 : f32
    %969 = vector.broadcast %cst_153 : f32 to vector<2x32xf32>
    %970 = arith.addf %969, %968 : vector<2x32xf32>
    %971 = arith.divf %969, %970 : vector<2x32xf32>
    %972 = vector.extract_strided_slice %960 {offsets = [0, 32], sizes = [2, 32], strides = [1, 1]} : vector<2x96xf32> to vector<2x32xf32>
    %973 = vector.extract_strided_slice %963 {offsets = [0, 32], sizes = [2, 32], strides = [1, 1]} : vector<2x96xf32> to vector<2x32xf32>
    %974 = arith.addf %972, %973 : vector<2x32xf32>
    %975 = arith.negf %974 : vector<2x32xf32>
    %976 = math.exp %975 : vector<2x32xf32>
    %cst_154 = arith.constant 1.000000e+00 : f32
    %977 = vector.broadcast %cst_154 : f32 to vector<2x32xf32>
    %978 = arith.addf %977, %976 : vector<2x32xf32>
    %979 = arith.divf %977, %978 : vector<2x32xf32>
    %980 = vector.extract_strided_slice %960 {offsets = [0, 64], sizes = [2, 32], strides = [1, 1]} : vector<2x96xf32> to vector<2x32xf32>
    %981 = vector.extract_strided_slice %963 {offsets = [0, 64], sizes = [2, 32], strides = [1, 1]} : vector<2x96xf32> to vector<2x32xf32>
    %982 = arith.mulf %971, %981 : vector<2x32xf32>
    %983 = arith.addf %980, %982 : vector<2x32xf32>
    %984 = math.tanh %983 : vector<2x32xf32>
    %cst_155 = arith.constant 1.000000e+00 : f32
    %985 = vector.broadcast %cst_155 : f32 to vector<2x32xf32>
    %986 = arith.subf %985, %979 : vector<2x32xf32>
    %987 = arith.mulf %986, %984 : vector<2x32xf32>
    %988 = arith.mulf %979, %929 : vector<2x32xf32>
    %989 = arith.addf %987, %988 : vector<2x32xf32>
    %990 = tpu.concatenate %539, %989 in 1 : vector<2x32xf32>, vector<2x32xf32> -> vector<2x64xf32>
    %991 = tpu.concatenate %599, %929 in 1 : vector<2x32xf32>, vector<2x32xf32> -> vector<2x64xf32>
    %992 = tpu.concatenate %659, %869 in 1 : vector<2x32xf32>, vector<2x32xf32> -> vector<2x64xf32>
    %993 = tpu.concatenate %719, %809 in 1 : vector<2x32xf32>, vector<2x32xf32> -> vector<2x64xf32>
    %994 = tpu.concatenate %779, %749 in 1 : vector<2x32xf32>, vector<2x32xf32> -> vector<2x64xf32>
    %995 = tpu.concatenate %839, %689 in 1 : vector<2x32xf32>, vector<2x32xf32> -> vector<2x64xf32>
    %996 = tpu.concatenate %899, %629 in 1 : vector<2x32xf32>, vector<2x32xf32> -> vector<2x64xf32>
    %997 = tpu.concatenate %959, %569 in 1 : vector<2x32xf32>, vector<2x32xf32> -> vector<2x64xf32>
    %998 = tpu.concatenate %990, %991, %992, %993, %994, %995, %996, %997 in 0 : vector<2x64xf32>, vector<2x64xf32>, vector<2x64xf32>, vector<2x64xf32>, vector<2x64xf32>, vector<2x64xf32>, vector<2x64xf32>, vector<2x64xf32> -> vector<16x64xf32>
    %c0_156 = arith.constant 0 : index
    %c0_157 = arith.constant 0 : index
    %999 = vector.load %arg26[%c0_156, %c0_157] : memref<1x64xf32, #tpu.memory_space<vmem>>, vector<1x64xf32>
    %c0_158 = arith.constant 0 : index
    %c0_159 = arith.constant 0 : index
    %1000 = vector.load %arg27[%c0_158, %c0_159] : memref<1x64xf32, #tpu.memory_space<vmem>>, vector<1x64xf32>
    %cst_160 = arith.constant dense<0.000000e+00> : vector<16xf32>
    %1001 = vector.multi_reduction <add>, %998, %cst_160 [1] : vector<16x64xf32> to vector<16xf32>
    %1002 = vector.shape_cast %1001 : vector<16xf32> to vector<16x1xf32>
    %cst_161 = arith.constant 6.400000e+01 : f32
    %1003 = vector.broadcast %cst_161 : f32 to vector<16x1xf32>
    %1004 = arith.divf %1002, %1003 : vector<16x1xf32>
    %1005 = vector.broadcast %1004 : vector<16x1xf32> to vector<16x64xf32>
    %1006 = arith.subf %998, %1005 : vector<16x64xf32>
    %1007 = arith.mulf %1006, %1006 : vector<16x64xf32>
    %cst_162 = arith.constant dense<0.000000e+00> : vector<16xf32>
    %1008 = vector.multi_reduction <add>, %1007, %cst_162 [1] : vector<16x64xf32> to vector<16xf32>
    %1009 = vector.shape_cast %1008 : vector<16xf32> to vector<16x1xf32>
    %cst_163 = arith.constant 6.400000e+01 : f32
    %1010 = vector.broadcast %cst_163 : f32 to vector<16x1xf32>
    %1011 = arith.divf %1009, %1010 : vector<16x1xf32>
    %1012 = vector.broadcast %1004 : vector<16x1xf32> to vector<16x64xf32>
    %1013 = arith.subf %998, %1012 : vector<16x64xf32>
    %cst_164 = arith.constant 9.99999974E-6 : f32
    %1014 = vector.broadcast %cst_164 : f32 to vector<16x1xf32>
    %1015 = arith.addf %1011, %1014 : vector<16x1xf32>
    %1016 = math.rsqrt %1015 : vector<16x1xf32>
    %1017 = vector.broadcast %1016 : vector<16x1xf32> to vector<16x64xf32>
    %1018 = arith.mulf %1013, %1017 : vector<16x64xf32>
    %1019 = vector.broadcast %999 : vector<1x64xf32> to vector<16x64xf32>
    %1020 = arith.mulf %1018, %1019 : vector<16x64xf32>
    %1021 = vector.broadcast %1000 : vector<1x64xf32> to vector<16x64xf32>
    %1022 = arith.addf %1020, %1021 : vector<16x64xf32>
    %c0_165 = arith.constant 0 : index
    %c0_166 = arith.constant 0 : index
    %1023 = vector.load %arg1[%c0_165, %c0_166] : memref<16x16xf32, #tpu.memory_space<vmem>>, vector<16x16xf32>
    %c0_167 = arith.constant 0 : index
    %c0_168 = arith.constant 0 : index
    %1024 = vector.load %arg28[%c0_167, %c0_168] : memref<64x192xf32, #tpu.memory_space<vmem>>, vector<64x192xf32>
    %cst_169 = arith.constant dense<0.000000e+00> : vector<16x192xf32>
    %1025 = tpu.matmul %1022, %1024, %cst_169 {dimension_numbers = #tpu.dot_dimension_numbers<[1], [0], [0], [1], [0, 0, 1, 1], [], []>} : vector<16x64xf32>, vector<64x192xf32>, vector<16x192xf32> -> vector<16x192xf32>
    %c0_170 = arith.constant 0 : index
    %c0_171 = arith.constant 0 : index
    %1026 = vector.load %arg29[%c0_170, %c0_171] : memref<1x192xf32, #tpu.memory_space<vmem>>, vector<1x192xf32>
    %1027 = vector.broadcast %1026 : vector<1x192xf32> to vector<16x192xf32>
    %1028 = arith.addf %1025, %1027 : vector<16x192xf32>
    %1029 = vector.extract_strided_slice %1028 {offsets = [0, 0], sizes = [16, 8], strides = [1, 1]} : vector<16x192xf32> to vector<16x8xf32>
    %1030 = vector.extract_strided_slice %1028 {offsets = [0, 64], sizes = [16, 8], strides = [1, 1]} : vector<16x192xf32> to vector<16x8xf32>
    %1031 = vector.extract_strided_slice %1028 {offsets = [0, 128], sizes = [16, 8], strides = [1, 1]} : vector<16x192xf32> to vector<16x8xf32>
    %cst_172 = arith.constant dense<0.000000e+00> : vector<16x16xf32>
    %1032 = tpu.matmul %1029, %1030, %cst_172 {dimension_numbers = #tpu.dot_dimension_numbers<[1], [1], [0], [0], [0, 0, 1, 0], [], []>} : vector<16x8xf32>, vector<16x8xf32>, vector<16x16xf32> -> vector<16x16xf32>
    %cst_173 = arith.constant 0.353553385 : f32
    %1033 = vector.broadcast %cst_173 : f32 to vector<16x16xf32>
    %1034 = arith.mulf %1032, %1033 : vector<16x16xf32>
    %1035 = arith.addf %1034, %1023 : vector<16x16xf32>
    %cst_174 = arith.constant dense<0xFF800000> : vector<16xf32>
    %1036 = vector.multi_reduction <maximumf>, %1035, %cst_174 [1] : vector<16x16xf32> to vector<16xf32>
    %cst_175 = arith.constant 0xFF800000 : f32
    %1037 = vector.broadcast %cst_175 : f32 to vector<16xf32>
    %1038 = arith.maximumf %1037, %1036 : vector<16xf32>
    %1039 = vector.shape_cast %1038 : vector<16xf32> to vector<16x1xf32>
    %1040 = vector.broadcast %1039 : vector<16x1xf32> to vector<16x16xf32>
    %1041 = arith.subf %1035, %1040 : vector<16x16xf32>
    %1042 = math.exp %1041 : vector<16x16xf32>
    %cst_176 = arith.constant dense<0.000000e+00> : vector<16xf32>
    %1043 = vector.multi_reduction <add>, %1042, %cst_176 [1] : vector<16x16xf32> to vector<16xf32>
    %1044 = vector.shape_cast %1043 : vector<16xf32> to vector<16x1xf32>
    %1045 = vector.broadcast %1044 : vector<16x1xf32> to vector<16x16xf32>
    %1046 = arith.divf %1042, %1045 : vector<16x16xf32>
    %cst_177 = arith.constant dense<0.000000e+00> : vector<16x8xf32>
    %1047 = tpu.matmul %1046, %1031, %cst_177 {dimension_numbers = #tpu.dot_dimension_numbers<[1], [0], [0], [1], [0, 0, 1, 1], [], []>} : vector<16x16xf32>, vector<16x8xf32>, vector<16x8xf32> -> vector<16x8xf32>
    %1048 = vector.extract_strided_slice %1028 {offsets = [0, 8], sizes = [16, 8], strides = [1, 1]} : vector<16x192xf32> to vector<16x8xf32>
    %1049 = vector.extract_strided_slice %1028 {offsets = [0, 72], sizes = [16, 8], strides = [1, 1]} : vector<16x192xf32> to vector<16x8xf32>
    %1050 = vector.extract_strided_slice %1028 {offsets = [0, 136], sizes = [16, 8], strides = [1, 1]} : vector<16x192xf32> to vector<16x8xf32>
    %cst_178 = arith.constant dense<0.000000e+00> : vector<16x16xf32>
    %1051 = tpu.matmul %1048, %1049, %cst_178 {dimension_numbers = #tpu.dot_dimension_numbers<[1], [1], [0], [0], [0, 0, 1, 0], [], []>} : vector<16x8xf32>, vector<16x8xf32>, vector<16x16xf32> -> vector<16x16xf32>
    %cst_179 = arith.constant 0.353553385 : f32
    %1052 = vector.broadcast %cst_179 : f32 to vector<16x16xf32>
    %1053 = arith.mulf %1051, %1052 : vector<16x16xf32>
    %1054 = arith.addf %1053, %1023 : vector<16x16xf32>
    %cst_180 = arith.constant dense<0xFF800000> : vector<16xf32>
    %1055 = vector.multi_reduction <maximumf>, %1054, %cst_180 [1] : vector<16x16xf32> to vector<16xf32>
    %cst_181 = arith.constant 0xFF800000 : f32
    %1056 = vector.broadcast %cst_181 : f32 to vector<16xf32>
    %1057 = arith.maximumf %1056, %1055 : vector<16xf32>
    %1058 = vector.shape_cast %1057 : vector<16xf32> to vector<16x1xf32>
    %1059 = vector.broadcast %1058 : vector<16x1xf32> to vector<16x16xf32>
    %1060 = arith.subf %1054, %1059 : vector<16x16xf32>
    %1061 = math.exp %1060 : vector<16x16xf32>
    %cst_182 = arith.constant dense<0.000000e+00> : vector<16xf32>
    %1062 = vector.multi_reduction <add>, %1061, %cst_182 [1] : vector<16x16xf32> to vector<16xf32>
    %1063 = vector.shape_cast %1062 : vector<16xf32> to vector<16x1xf32>
    %1064 = vector.broadcast %1063 : vector<16x1xf32> to vector<16x16xf32>
    %1065 = arith.divf %1061, %1064 : vector<16x16xf32>
    %cst_183 = arith.constant dense<0.000000e+00> : vector<16x8xf32>
    %1066 = tpu.matmul %1065, %1050, %cst_183 {dimension_numbers = #tpu.dot_dimension_numbers<[1], [0], [0], [1], [0, 0, 1, 1], [], []>} : vector<16x16xf32>, vector<16x8xf32>, vector<16x8xf32> -> vector<16x8xf32>
    %1067 = vector.extract_strided_slice %1028 {offsets = [0, 16], sizes = [16, 8], strides = [1, 1]} : vector<16x192xf32> to vector<16x8xf32>
    %1068 = vector.extract_strided_slice %1028 {offsets = [0, 80], sizes = [16, 8], strides = [1, 1]} : vector<16x192xf32> to vector<16x8xf32>
    %1069 = vector.extract_strided_slice %1028 {offsets = [0, 144], sizes = [16, 8], strides = [1, 1]} : vector<16x192xf32> to vector<16x8xf32>
    %cst_184 = arith.constant dense<0.000000e+00> : vector<16x16xf32>
    %1070 = tpu.matmul %1067, %1068, %cst_184 {dimension_numbers = #tpu.dot_dimension_numbers<[1], [1], [0], [0], [0, 0, 1, 0], [], []>} : vector<16x8xf32>, vector<16x8xf32>, vector<16x16xf32> -> vector<16x16xf32>
    %cst_185 = arith.constant 0.353553385 : f32
    %1071 = vector.broadcast %cst_185 : f32 to vector<16x16xf32>
    %1072 = arith.mulf %1070, %1071 : vector<16x16xf32>
    %1073 = arith.addf %1072, %1023 : vector<16x16xf32>
    %cst_186 = arith.constant dense<0xFF800000> : vector<16xf32>
    %1074 = vector.multi_reduction <maximumf>, %1073, %cst_186 [1] : vector<16x16xf32> to vector<16xf32>
    %cst_187 = arith.constant 0xFF800000 : f32
    %1075 = vector.broadcast %cst_187 : f32 to vector<16xf32>
    %1076 = arith.maximumf %1075, %1074 : vector<16xf32>
    %1077 = vector.shape_cast %1076 : vector<16xf32> to vector<16x1xf32>
    %1078 = vector.broadcast %1077 : vector<16x1xf32> to vector<16x16xf32>
    %1079 = arith.subf %1073, %1078 : vector<16x16xf32>
    %1080 = math.exp %1079 : vector<16x16xf32>
    %cst_188 = arith.constant dense<0.000000e+00> : vector<16xf32>
    %1081 = vector.multi_reduction <add>, %1080, %cst_188 [1] : vector<16x16xf32> to vector<16xf32>
    %1082 = vector.shape_cast %1081 : vector<16xf32> to vector<16x1xf32>
    %1083 = vector.broadcast %1082 : vector<16x1xf32> to vector<16x16xf32>
    %1084 = arith.divf %1080, %1083 : vector<16x16xf32>
    %cst_189 = arith.constant dense<0.000000e+00> : vector<16x8xf32>
    %1085 = tpu.matmul %1084, %1069, %cst_189 {dimension_numbers = #tpu.dot_dimension_numbers<[1], [0], [0], [1], [0, 0, 1, 1], [], []>} : vector<16x16xf32>, vector<16x8xf32>, vector<16x8xf32> -> vector<16x8xf32>
    %1086 = vector.extract_strided_slice %1028 {offsets = [0, 24], sizes = [16, 8], strides = [1, 1]} : vector<16x192xf32> to vector<16x8xf32>
    %1087 = vector.extract_strided_slice %1028 {offsets = [0, 88], sizes = [16, 8], strides = [1, 1]} : vector<16x192xf32> to vector<16x8xf32>
    %1088 = vector.extract_strided_slice %1028 {offsets = [0, 152], sizes = [16, 8], strides = [1, 1]} : vector<16x192xf32> to vector<16x8xf32>
    %cst_190 = arith.constant dense<0.000000e+00> : vector<16x16xf32>
    %1089 = tpu.matmul %1086, %1087, %cst_190 {dimension_numbers = #tpu.dot_dimension_numbers<[1], [1], [0], [0], [0, 0, 1, 0], [], []>} : vector<16x8xf32>, vector<16x8xf32>, vector<16x16xf32> -> vector<16x16xf32>
    %cst_191 = arith.constant 0.353553385 : f32
    %1090 = vector.broadcast %cst_191 : f32 to vector<16x16xf32>
    %1091 = arith.mulf %1089, %1090 : vector<16x16xf32>
    %1092 = arith.addf %1091, %1023 : vector<16x16xf32>
    %cst_192 = arith.constant dense<0xFF800000> : vector<16xf32>
    %1093 = vector.multi_reduction <maximumf>, %1092, %cst_192 [1] : vector<16x16xf32> to vector<16xf32>
    %cst_193 = arith.constant 0xFF800000 : f32
    %1094 = vector.broadcast %cst_193 : f32 to vector<16xf32>
    %1095 = arith.maximumf %1094, %1093 : vector<16xf32>
    %1096 = vector.shape_cast %1095 : vector<16xf32> to vector<16x1xf32>
    %1097 = vector.broadcast %1096 : vector<16x1xf32> to vector<16x16xf32>
    %1098 = arith.subf %1092, %1097 : vector<16x16xf32>
    %1099 = math.exp %1098 : vector<16x16xf32>
    %cst_194 = arith.constant dense<0.000000e+00> : vector<16xf32>
    %1100 = vector.multi_reduction <add>, %1099, %cst_194 [1] : vector<16x16xf32> to vector<16xf32>
    %1101 = vector.shape_cast %1100 : vector<16xf32> to vector<16x1xf32>
    %1102 = vector.broadcast %1101 : vector<16x1xf32> to vector<16x16xf32>
    %1103 = arith.divf %1099, %1102 : vector<16x16xf32>
    %cst_195 = arith.constant dense<0.000000e+00> : vector<16x8xf32>
    %1104 = tpu.matmul %1103, %1088, %cst_195 {dimension_numbers = #tpu.dot_dimension_numbers<[1], [0], [0], [1], [0, 0, 1, 1], [], []>} : vector<16x16xf32>, vector<16x8xf32>, vector<16x8xf32> -> vector<16x8xf32>
    %1105 = vector.extract_strided_slice %1028 {offsets = [0, 32], sizes = [16, 8], strides = [1, 1]} : vector<16x192xf32> to vector<16x8xf32>
    %1106 = vector.extract_strided_slice %1028 {offsets = [0, 96], sizes = [16, 8], strides = [1, 1]} : vector<16x192xf32> to vector<16x8xf32>
    %1107 = vector.extract_strided_slice %1028 {offsets = [0, 160], sizes = [16, 8], strides = [1, 1]} : vector<16x192xf32> to vector<16x8xf32>
    %cst_196 = arith.constant dense<0.000000e+00> : vector<16x16xf32>
    %1108 = tpu.matmul %1105, %1106, %cst_196 {dimension_numbers = #tpu.dot_dimension_numbers<[1], [1], [0], [0], [0, 0, 1, 0], [], []>} : vector<16x8xf32>, vector<16x8xf32>, vector<16x16xf32> -> vector<16x16xf32>
    %cst_197 = arith.constant 0.353553385 : f32
    %1109 = vector.broadcast %cst_197 : f32 to vector<16x16xf32>
    %1110 = arith.mulf %1108, %1109 : vector<16x16xf32>
    %1111 = arith.addf %1110, %1023 : vector<16x16xf32>
    %cst_198 = arith.constant dense<0xFF800000> : vector<16xf32>
    %1112 = vector.multi_reduction <maximumf>, %1111, %cst_198 [1] : vector<16x16xf32> to vector<16xf32>
    %cst_199 = arith.constant 0xFF800000 : f32
    %1113 = vector.broadcast %cst_199 : f32 to vector<16xf32>
    %1114 = arith.maximumf %1113, %1112 : vector<16xf32>
    %1115 = vector.shape_cast %1114 : vector<16xf32> to vector<16x1xf32>
    %1116 = vector.broadcast %1115 : vector<16x1xf32> to vector<16x16xf32>
    %1117 = arith.subf %1111, %1116 : vector<16x16xf32>
    %1118 = math.exp %1117 : vector<16x16xf32>
    %cst_200 = arith.constant dense<0.000000e+00> : vector<16xf32>
    %1119 = vector.multi_reduction <add>, %1118, %cst_200 [1] : vector<16x16xf32> to vector<16xf32>
    %1120 = vector.shape_cast %1119 : vector<16xf32> to vector<16x1xf32>
    %1121 = vector.broadcast %1120 : vector<16x1xf32> to vector<16x16xf32>
    %1122 = arith.divf %1118, %1121 : vector<16x16xf32>
    %cst_201 = arith.constant dense<0.000000e+00> : vector<16x8xf32>
    %1123 = tpu.matmul %1122, %1107, %cst_201 {dimension_numbers = #tpu.dot_dimension_numbers<[1], [0], [0], [1], [0, 0, 1, 1], [], []>} : vector<16x16xf32>, vector<16x8xf32>, vector<16x8xf32> -> vector<16x8xf32>
    %1124 = vector.extract_strided_slice %1028 {offsets = [0, 40], sizes = [16, 8], strides = [1, 1]} : vector<16x192xf32> to vector<16x8xf32>
    %1125 = vector.extract_strided_slice %1028 {offsets = [0, 104], sizes = [16, 8], strides = [1, 1]} : vector<16x192xf32> to vector<16x8xf32>
    %1126 = vector.extract_strided_slice %1028 {offsets = [0, 168], sizes = [16, 8], strides = [1, 1]} : vector<16x192xf32> to vector<16x8xf32>
    %cst_202 = arith.constant dense<0.000000e+00> : vector<16x16xf32>
    %1127 = tpu.matmul %1124, %1125, %cst_202 {dimension_numbers = #tpu.dot_dimension_numbers<[1], [1], [0], [0], [0, 0, 1, 0], [], []>} : vector<16x8xf32>, vector<16x8xf32>, vector<16x16xf32> -> vector<16x16xf32>
    %cst_203 = arith.constant 0.353553385 : f32
    %1128 = vector.broadcast %cst_203 : f32 to vector<16x16xf32>
    %1129 = arith.mulf %1127, %1128 : vector<16x16xf32>
    %1130 = arith.addf %1129, %1023 : vector<16x16xf32>
    %cst_204 = arith.constant dense<0xFF800000> : vector<16xf32>
    %1131 = vector.multi_reduction <maximumf>, %1130, %cst_204 [1] : vector<16x16xf32> to vector<16xf32>
    %cst_205 = arith.constant 0xFF800000 : f32
    %1132 = vector.broadcast %cst_205 : f32 to vector<16xf32>
    %1133 = arith.maximumf %1132, %1131 : vector<16xf32>
    %1134 = vector.shape_cast %1133 : vector<16xf32> to vector<16x1xf32>
    %1135 = vector.broadcast %1134 : vector<16x1xf32> to vector<16x16xf32>
    %1136 = arith.subf %1130, %1135 : vector<16x16xf32>
    %1137 = math.exp %1136 : vector<16x16xf32>
    %cst_206 = arith.constant dense<0.000000e+00> : vector<16xf32>
    %1138 = vector.multi_reduction <add>, %1137, %cst_206 [1] : vector<16x16xf32> to vector<16xf32>
    %1139 = vector.shape_cast %1138 : vector<16xf32> to vector<16x1xf32>
    %1140 = vector.broadcast %1139 : vector<16x1xf32> to vector<16x16xf32>
    %1141 = arith.divf %1137, %1140 : vector<16x16xf32>
    %cst_207 = arith.constant dense<0.000000e+00> : vector<16x8xf32>
    %1142 = tpu.matmul %1141, %1126, %cst_207 {dimension_numbers = #tpu.dot_dimension_numbers<[1], [0], [0], [1], [0, 0, 1, 1], [], []>} : vector<16x16xf32>, vector<16x8xf32>, vector<16x8xf32> -> vector<16x8xf32>
    %1143 = vector.extract_strided_slice %1028 {offsets = [0, 48], sizes = [16, 8], strides = [1, 1]} : vector<16x192xf32> to vector<16x8xf32>
    %1144 = vector.extract_strided_slice %1028 {offsets = [0, 112], sizes = [16, 8], strides = [1, 1]} : vector<16x192xf32> to vector<16x8xf32>
    %1145 = vector.extract_strided_slice %1028 {offsets = [0, 176], sizes = [16, 8], strides = [1, 1]} : vector<16x192xf32> to vector<16x8xf32>
    %cst_208 = arith.constant dense<0.000000e+00> : vector<16x16xf32>
    %1146 = tpu.matmul %1143, %1144, %cst_208 {dimension_numbers = #tpu.dot_dimension_numbers<[1], [1], [0], [0], [0, 0, 1, 0], [], []>} : vector<16x8xf32>, vector<16x8xf32>, vector<16x16xf32> -> vector<16x16xf32>
    %cst_209 = arith.constant 0.353553385 : f32
    %1147 = vector.broadcast %cst_209 : f32 to vector<16x16xf32>
    %1148 = arith.mulf %1146, %1147 : vector<16x16xf32>
    %1149 = arith.addf %1148, %1023 : vector<16x16xf32>
    %cst_210 = arith.constant dense<0xFF800000> : vector<16xf32>
    %1150 = vector.multi_reduction <maximumf>, %1149, %cst_210 [1] : vector<16x16xf32> to vector<16xf32>
    %cst_211 = arith.constant 0xFF800000 : f32
    %1151 = vector.broadcast %cst_211 : f32 to vector<16xf32>
    %1152 = arith.maximumf %1151, %1150 : vector<16xf32>
    %1153 = vector.shape_cast %1152 : vector<16xf32> to vector<16x1xf32>
    %1154 = vector.broadcast %1153 : vector<16x1xf32> to vector<16x16xf32>
    %1155 = arith.subf %1149, %1154 : vector<16x16xf32>
    %1156 = math.exp %1155 : vector<16x16xf32>
    %cst_212 = arith.constant dense<0.000000e+00> : vector<16xf32>
    %1157 = vector.multi_reduction <add>, %1156, %cst_212 [1] : vector<16x16xf32> to vector<16xf32>
    %1158 = vector.shape_cast %1157 : vector<16xf32> to vector<16x1xf32>
    %1159 = vector.broadcast %1158 : vector<16x1xf32> to vector<16x16xf32>
    %1160 = arith.divf %1156, %1159 : vector<16x16xf32>
    %cst_213 = arith.constant dense<0.000000e+00> : vector<16x8xf32>
    %1161 = tpu.matmul %1160, %1145, %cst_213 {dimension_numbers = #tpu.dot_dimension_numbers<[1], [0], [0], [1], [0, 0, 1, 1], [], []>} : vector<16x16xf32>, vector<16x8xf32>, vector<16x8xf32> -> vector<16x8xf32>
    %1162 = vector.extract_strided_slice %1028 {offsets = [0, 56], sizes = [16, 8], strides = [1, 1]} : vector<16x192xf32> to vector<16x8xf32>
    %1163 = vector.extract_strided_slice %1028 {offsets = [0, 120], sizes = [16, 8], strides = [1, 1]} : vector<16x192xf32> to vector<16x8xf32>
    %1164 = vector.extract_strided_slice %1028 {offsets = [0, 184], sizes = [16, 8], strides = [1, 1]} : vector<16x192xf32> to vector<16x8xf32>
    %cst_214 = arith.constant dense<0.000000e+00> : vector<16x16xf32>
    %1165 = tpu.matmul %1162, %1163, %cst_214 {dimension_numbers = #tpu.dot_dimension_numbers<[1], [1], [0], [0], [0, 0, 1, 0], [], []>} : vector<16x8xf32>, vector<16x8xf32>, vector<16x16xf32> -> vector<16x16xf32>
    %cst_215 = arith.constant 0.353553385 : f32
    %1166 = vector.broadcast %cst_215 : f32 to vector<16x16xf32>
    %1167 = arith.mulf %1165, %1166 : vector<16x16xf32>
    %1168 = arith.addf %1167, %1023 : vector<16x16xf32>
    %cst_216 = arith.constant dense<0xFF800000> : vector<16xf32>
    %1169 = vector.multi_reduction <maximumf>, %1168, %cst_216 [1] : vector<16x16xf32> to vector<16xf32>
    %cst_217 = arith.constant 0xFF800000 : f32
    %1170 = vector.broadcast %cst_217 : f32 to vector<16xf32>
    %1171 = arith.maximumf %1170, %1169 : vector<16xf32>
    %1172 = vector.shape_cast %1171 : vector<16xf32> to vector<16x1xf32>
    %1173 = vector.broadcast %1172 : vector<16x1xf32> to vector<16x16xf32>
    %1174 = arith.subf %1168, %1173 : vector<16x16xf32>
    %1175 = math.exp %1174 : vector<16x16xf32>
    %cst_218 = arith.constant dense<0.000000e+00> : vector<16xf32>
    %1176 = vector.multi_reduction <add>, %1175, %cst_218 [1] : vector<16x16xf32> to vector<16xf32>
    %1177 = vector.shape_cast %1176 : vector<16xf32> to vector<16x1xf32>
    %1178 = vector.broadcast %1177 : vector<16x1xf32> to vector<16x16xf32>
    %1179 = arith.divf %1175, %1178 : vector<16x16xf32>
    %cst_219 = arith.constant dense<0.000000e+00> : vector<16x8xf32>
    %1180 = tpu.matmul %1179, %1164, %cst_219 {dimension_numbers = #tpu.dot_dimension_numbers<[1], [0], [0], [1], [0, 0, 1, 1], [], []>} : vector<16x16xf32>, vector<16x8xf32>, vector<16x8xf32> -> vector<16x8xf32>
    %1181 = tpu.concatenate %1047, %1066, %1085, %1104, %1123, %1142, %1161, %1180 in 1 : vector<16x8xf32>, vector<16x8xf32>, vector<16x8xf32>, vector<16x8xf32>, vector<16x8xf32>, vector<16x8xf32>, vector<16x8xf32>, vector<16x8xf32> -> vector<16x64xf32>
    %c0_220 = arith.constant 0 : index
    %c0_221 = arith.constant 0 : index
    %1182 = vector.load %arg30[%c0_220, %c0_221] : memref<64x64xf32, #tpu.memory_space<vmem>>, vector<64x64xf32>
    %cst_222 = arith.constant dense<0.000000e+00> : vector<16x64xf32>
    %1183 = tpu.matmul %1181, %1182, %cst_222 {dimension_numbers = #tpu.dot_dimension_numbers<[1], [0], [0], [1], [0, 0, 1, 1], [], []>} : vector<16x64xf32>, vector<64x64xf32>, vector<16x64xf32> -> vector<16x64xf32>
    %c0_223 = arith.constant 0 : index
    %c0_224 = arith.constant 0 : index
    %1184 = vector.load %arg31[%c0_223, %c0_224] : memref<1x64xf32, #tpu.memory_space<vmem>>, vector<1x64xf32>
    %1185 = vector.broadcast %1184 : vector<1x64xf32> to vector<16x64xf32>
    %1186 = arith.addf %1183, %1185 : vector<16x64xf32>
    %c0_225 = arith.constant 0 : index
    %c0_226 = arith.constant 0 : index
    %1187 = vector.load %arg14[%c0_225, %c0_226] : memref<64x96xf32, #tpu.memory_space<vmem>>, vector<64x96xf32>
    %cst_227 = arith.constant dense<0.000000e+00> : vector<16x96xf32>
    %1188 = tpu.matmul %1186, %1187, %cst_227 {dimension_numbers = #tpu.dot_dimension_numbers<[1], [0], [0], [1], [0, 0, 1, 1], [], []>} : vector<16x64xf32>, vector<64x96xf32>, vector<16x96xf32> -> vector<16x96xf32>
    %c0_228 = arith.constant 0 : index
    %c0_229 = arith.constant 0 : index
    %1189 = vector.load %arg15[%c0_228, %c0_229] : memref<1x96xf32, #tpu.memory_space<vmem>>, vector<1x96xf32>
    %1190 = vector.broadcast %1189 : vector<1x96xf32> to vector<16x96xf32>
    %1191 = arith.addf %1188, %1190 : vector<16x96xf32>
    %c0_230 = arith.constant 0 : index
    %c0_231 = arith.constant 0 : index
    %1192 = vector.load %arg16[%c0_230, %c0_231] : memref<16x48xf32, #tpu.memory_space<vmem>>, vector<16x48xf32>
    %c0_232 = arith.constant 0 : index
    %c0_233 = arith.constant 0 : index
    %1193 = vector.load %arg17[%c0_232, %c0_233] : memref<16x48xf32, #tpu.memory_space<vmem>>, vector<16x48xf32>
    %c0_234 = arith.constant 0 : index
    %c0_235 = arith.constant 0 : index
    %1194 = vector.load %arg18[%c0_234, %c0_235] : memref<1x48xf32, #tpu.memory_space<vmem>>, vector<1x48xf32>
    %c0_236 = arith.constant 0 : index
    %c0_237 = arith.constant 0 : index
    %1195 = vector.load %arg19[%c0_236, %c0_237] : memref<1x48xf32, #tpu.memory_space<vmem>>, vector<1x48xf32>
    %cst_238 = arith.constant 0.000000e+00 : f32
    %1196 = vector.broadcast %cst_238 : f32 to vector<2x16xf32>
    %1197 = vector.extract_strided_slice %1191 {offsets = [0, 0], sizes = [2, 48], strides = [1, 1]} : vector<16x96xf32> to vector<2x48xf32>
    %cst_239 = arith.constant dense<0.000000e+00> : vector<2x48xf32>
    %1198 = tpu.matmul %1196, %1192, %cst_239 {dimension_numbers = #tpu.dot_dimension_numbers<[1], [0], [0], [1], [0, 0, 1, 1], [], []>} : vector<2x16xf32>, vector<16x48xf32>, vector<2x48xf32> -> vector<2x48xf32>
    %1199 = vector.broadcast %1194 : vector<1x48xf32> to vector<2x48xf32>
    %1200 = arith.addf %1198, %1199 : vector<2x48xf32>
    %1201 = vector.extract_strided_slice %1197 {offsets = [0, 0], sizes = [2, 16], strides = [1, 1]} : vector<2x48xf32> to vector<2x16xf32>
    %1202 = vector.extract_strided_slice %1200 {offsets = [0, 0], sizes = [2, 16], strides = [1, 1]} : vector<2x48xf32> to vector<2x16xf32>
    %1203 = arith.addf %1201, %1202 : vector<2x16xf32>
    %1204 = arith.negf %1203 : vector<2x16xf32>
    %1205 = math.exp %1204 : vector<2x16xf32>
    %cst_240 = arith.constant 1.000000e+00 : f32
    %1206 = vector.broadcast %cst_240 : f32 to vector<2x16xf32>
    %1207 = arith.addf %1206, %1205 : vector<2x16xf32>
    %1208 = arith.divf %1206, %1207 : vector<2x16xf32>
    %1209 = vector.extract_strided_slice %1197 {offsets = [0, 16], sizes = [2, 16], strides = [1, 1]} : vector<2x48xf32> to vector<2x16xf32>
    %1210 = vector.extract_strided_slice %1200 {offsets = [0, 16], sizes = [2, 16], strides = [1, 1]} : vector<2x48xf32> to vector<2x16xf32>
    %1211 = arith.addf %1209, %1210 : vector<2x16xf32>
    %1212 = arith.negf %1211 : vector<2x16xf32>
    %1213 = math.exp %1212 : vector<2x16xf32>
    %cst_241 = arith.constant 1.000000e+00 : f32
    %1214 = vector.broadcast %cst_241 : f32 to vector<2x16xf32>
    %1215 = arith.addf %1214, %1213 : vector<2x16xf32>
    %1216 = arith.divf %1214, %1215 : vector<2x16xf32>
    %1217 = vector.extract_strided_slice %1197 {offsets = [0, 32], sizes = [2, 16], strides = [1, 1]} : vector<2x48xf32> to vector<2x16xf32>
    %1218 = vector.extract_strided_slice %1200 {offsets = [0, 32], sizes = [2, 16], strides = [1, 1]} : vector<2x48xf32> to vector<2x16xf32>
    %1219 = arith.mulf %1208, %1218 : vector<2x16xf32>
    %1220 = arith.addf %1217, %1219 : vector<2x16xf32>
    %1221 = math.tanh %1220 : vector<2x16xf32>
    %cst_242 = arith.constant 1.000000e+00 : f32
    %1222 = vector.broadcast %cst_242 : f32 to vector<2x16xf32>
    %1223 = arith.subf %1222, %1216 : vector<2x16xf32>
    %1224 = arith.mulf %1223, %1221 : vector<2x16xf32>
    %1225 = arith.mulf %1216, %1196 : vector<2x16xf32>
    %1226 = arith.addf %1224, %1225 : vector<2x16xf32>
    %1227 = vector.extract_strided_slice %1191 {offsets = [14, 48], sizes = [2, 48], strides = [1, 1]} : vector<16x96xf32> to vector<2x48xf32>
    %cst_243 = arith.constant dense<0.000000e+00> : vector<2x48xf32>
    %1228 = tpu.matmul %1196, %1193, %cst_243 {dimension_numbers = #tpu.dot_dimension_numbers<[1], [0], [0], [1], [0, 0, 1, 1], [], []>} : vector<2x16xf32>, vector<16x48xf32>, vector<2x48xf32> -> vector<2x48xf32>
    %1229 = vector.broadcast %1195 : vector<1x48xf32> to vector<2x48xf32>
    %1230 = arith.addf %1228, %1229 : vector<2x48xf32>
    %1231 = vector.extract_strided_slice %1227 {offsets = [0, 0], sizes = [2, 16], strides = [1, 1]} : vector<2x48xf32> to vector<2x16xf32>
    %1232 = vector.extract_strided_slice %1230 {offsets = [0, 0], sizes = [2, 16], strides = [1, 1]} : vector<2x48xf32> to vector<2x16xf32>
    %1233 = arith.addf %1231, %1232 : vector<2x16xf32>
    %1234 = arith.negf %1233 : vector<2x16xf32>
    %1235 = math.exp %1234 : vector<2x16xf32>
    %cst_244 = arith.constant 1.000000e+00 : f32
    %1236 = vector.broadcast %cst_244 : f32 to vector<2x16xf32>
    %1237 = arith.addf %1236, %1235 : vector<2x16xf32>
    %1238 = arith.divf %1236, %1237 : vector<2x16xf32>
    %1239 = vector.extract_strided_slice %1227 {offsets = [0, 16], sizes = [2, 16], strides = [1, 1]} : vector<2x48xf32> to vector<2x16xf32>
    %1240 = vector.extract_strided_slice %1230 {offsets = [0, 16], sizes = [2, 16], strides = [1, 1]} : vector<2x48xf32> to vector<2x16xf32>
    %1241 = arith.addf %1239, %1240 : vector<2x16xf32>
    %1242 = arith.negf %1241 : vector<2x16xf32>
    %1243 = math.exp %1242 : vector<2x16xf32>
    %cst_245 = arith.constant 1.000000e+00 : f32
    %1244 = vector.broadcast %cst_245 : f32 to vector<2x16xf32>
    %1245 = arith.addf %1244, %1243 : vector<2x16xf32>
    %1246 = arith.divf %1244, %1245 : vector<2x16xf32>
    %1247 = vector.extract_strided_slice %1227 {offsets = [0, 32], sizes = [2, 16], strides = [1, 1]} : vector<2x48xf32> to vector<2x16xf32>
    %1248 = vector.extract_strided_slice %1230 {offsets = [0, 32], sizes = [2, 16], strides = [1, 1]} : vector<2x48xf32> to vector<2x16xf32>
    %1249 = arith.mulf %1238, %1248 : vector<2x16xf32>
    %1250 = arith.addf %1247, %1249 : vector<2x16xf32>
    %1251 = math.tanh %1250 : vector<2x16xf32>
    %cst_246 = arith.constant 1.000000e+00 : f32
    %1252 = vector.broadcast %cst_246 : f32 to vector<2x16xf32>
    %1253 = arith.subf %1252, %1246 : vector<2x16xf32>
    %1254 = arith.mulf %1253, %1251 : vector<2x16xf32>
    %1255 = arith.mulf %1246, %1196 : vector<2x16xf32>
    %1256 = arith.addf %1254, %1255 : vector<2x16xf32>
    %1257 = vector.extract_strided_slice %1191 {offsets = [2, 0], sizes = [2, 48], strides = [1, 1]} : vector<16x96xf32> to vector<2x48xf32>
    %cst_247 = arith.constant dense<0.000000e+00> : vector<2x48xf32>
    %1258 = tpu.matmul %1226, %1192, %cst_247 {dimension_numbers = #tpu.dot_dimension_numbers<[1], [0], [0], [1], [0, 0, 1, 1], [], []>} : vector<2x16xf32>, vector<16x48xf32>, vector<2x48xf32> -> vector<2x48xf32>
    %1259 = vector.broadcast %1194 : vector<1x48xf32> to vector<2x48xf32>
    %1260 = arith.addf %1258, %1259 : vector<2x48xf32>
    %1261 = vector.extract_strided_slice %1257 {offsets = [0, 0], sizes = [2, 16], strides = [1, 1]} : vector<2x48xf32> to vector<2x16xf32>
    %1262 = vector.extract_strided_slice %1260 {offsets = [0, 0], sizes = [2, 16], strides = [1, 1]} : vector<2x48xf32> to vector<2x16xf32>
    %1263 = arith.addf %1261, %1262 : vector<2x16xf32>
    %1264 = arith.negf %1263 : vector<2x16xf32>
    %1265 = math.exp %1264 : vector<2x16xf32>
    %cst_248 = arith.constant 1.000000e+00 : f32
    %1266 = vector.broadcast %cst_248 : f32 to vector<2x16xf32>
    %1267 = arith.addf %1266, %1265 : vector<2x16xf32>
    %1268 = arith.divf %1266, %1267 : vector<2x16xf32>
    %1269 = vector.extract_strided_slice %1257 {offsets = [0, 16], sizes = [2, 16], strides = [1, 1]} : vector<2x48xf32> to vector<2x16xf32>
    %1270 = vector.extract_strided_slice %1260 {offsets = [0, 16], sizes = [2, 16], strides = [1, 1]} : vector<2x48xf32> to vector<2x16xf32>
    %1271 = arith.addf %1269, %1270 : vector<2x16xf32>
    %1272 = arith.negf %1271 : vector<2x16xf32>
    %1273 = math.exp %1272 : vector<2x16xf32>
    %cst_249 = arith.constant 1.000000e+00 : f32
    %1274 = vector.broadcast %cst_249 : f32 to vector<2x16xf32>
    %1275 = arith.addf %1274, %1273 : vector<2x16xf32>
    %1276 = arith.divf %1274, %1275 : vector<2x16xf32>
    %1277 = vector.extract_strided_slice %1257 {offsets = [0, 32], sizes = [2, 16], strides = [1, 1]} : vector<2x48xf32> to vector<2x16xf32>
    %1278 = vector.extract_strided_slice %1260 {offsets = [0, 32], sizes = [2, 16], strides = [1, 1]} : vector<2x48xf32> to vector<2x16xf32>
    %1279 = arith.mulf %1268, %1278 : vector<2x16xf32>
    %1280 = arith.addf %1277, %1279 : vector<2x16xf32>
    %1281 = math.tanh %1280 : vector<2x16xf32>
    %cst_250 = arith.constant 1.000000e+00 : f32
    %1282 = vector.broadcast %cst_250 : f32 to vector<2x16xf32>
    %1283 = arith.subf %1282, %1276 : vector<2x16xf32>
    %1284 = arith.mulf %1283, %1281 : vector<2x16xf32>
    %1285 = arith.mulf %1276, %1226 : vector<2x16xf32>
    %1286 = arith.addf %1284, %1285 : vector<2x16xf32>
    %1287 = vector.extract_strided_slice %1191 {offsets = [12, 48], sizes = [2, 48], strides = [1, 1]} : vector<16x96xf32> to vector<2x48xf32>
    %cst_251 = arith.constant dense<0.000000e+00> : vector<2x48xf32>
    %1288 = tpu.matmul %1256, %1193, %cst_251 {dimension_numbers = #tpu.dot_dimension_numbers<[1], [0], [0], [1], [0, 0, 1, 1], [], []>} : vector<2x16xf32>, vector<16x48xf32>, vector<2x48xf32> -> vector<2x48xf32>
    %1289 = vector.broadcast %1195 : vector<1x48xf32> to vector<2x48xf32>
    %1290 = arith.addf %1288, %1289 : vector<2x48xf32>
    %1291 = vector.extract_strided_slice %1287 {offsets = [0, 0], sizes = [2, 16], strides = [1, 1]} : vector<2x48xf32> to vector<2x16xf32>
    %1292 = vector.extract_strided_slice %1290 {offsets = [0, 0], sizes = [2, 16], strides = [1, 1]} : vector<2x48xf32> to vector<2x16xf32>
    %1293 = arith.addf %1291, %1292 : vector<2x16xf32>
    %1294 = arith.negf %1293 : vector<2x16xf32>
    %1295 = math.exp %1294 : vector<2x16xf32>
    %cst_252 = arith.constant 1.000000e+00 : f32
    %1296 = vector.broadcast %cst_252 : f32 to vector<2x16xf32>
    %1297 = arith.addf %1296, %1295 : vector<2x16xf32>
    %1298 = arith.divf %1296, %1297 : vector<2x16xf32>
    %1299 = vector.extract_strided_slice %1287 {offsets = [0, 16], sizes = [2, 16], strides = [1, 1]} : vector<2x48xf32> to vector<2x16xf32>
    %1300 = vector.extract_strided_slice %1290 {offsets = [0, 16], sizes = [2, 16], strides = [1, 1]} : vector<2x48xf32> to vector<2x16xf32>
    %1301 = arith.addf %1299, %1300 : vector<2x16xf32>
    %1302 = arith.negf %1301 : vector<2x16xf32>
    %1303 = math.exp %1302 : vector<2x16xf32>
    %cst_253 = arith.constant 1.000000e+00 : f32
    %1304 = vector.broadcast %cst_253 : f32 to vector<2x16xf32>
    %1305 = arith.addf %1304, %1303 : vector<2x16xf32>
    %1306 = arith.divf %1304, %1305 : vector<2x16xf32>
    %1307 = vector.extract_strided_slice %1287 {offsets = [0, 32], sizes = [2, 16], strides = [1, 1]} : vector<2x48xf32> to vector<2x16xf32>
    %1308 = vector.extract_strided_slice %1290 {offsets = [0, 32], sizes = [2, 16], strides = [1, 1]} : vector<2x48xf32> to vector<2x16xf32>
    %1309 = arith.mulf %1298, %1308 : vector<2x16xf32>
    %1310 = arith.addf %1307, %1309 : vector<2x16xf32>
    %1311 = math.tanh %1310 : vector<2x16xf32>
    %cst_254 = arith.constant 1.000000e+00 : f32
    %1312 = vector.broadcast %cst_254 : f32 to vector<2x16xf32>
    %1313 = arith.subf %1312, %1306 : vector<2x16xf32>
    %1314 = arith.mulf %1313, %1311 : vector<2x16xf32>
    %1315 = arith.mulf %1306, %1256 : vector<2x16xf32>
    %1316 = arith.addf %1314, %1315 : vector<2x16xf32>
    %1317 = vector.extract_strided_slice %1191 {offsets = [4, 0], sizes = [2, 48], strides = [1, 1]} : vector<16x96xf32> to vector<2x48xf32>
    %cst_255 = arith.constant dense<0.000000e+00> : vector<2x48xf32>
    %1318 = tpu.matmul %1286, %1192, %cst_255 {dimension_numbers = #tpu.dot_dimension_numbers<[1], [0], [0], [1], [0, 0, 1, 1], [], []>} : vector<2x16xf32>, vector<16x48xf32>, vector<2x48xf32> -> vector<2x48xf32>
    %1319 = vector.broadcast %1194 : vector<1x48xf32> to vector<2x48xf32>
    %1320 = arith.addf %1318, %1319 : vector<2x48xf32>
    %1321 = vector.extract_strided_slice %1317 {offsets = [0, 0], sizes = [2, 16], strides = [1, 1]} : vector<2x48xf32> to vector<2x16xf32>
    %1322 = vector.extract_strided_slice %1320 {offsets = [0, 0], sizes = [2, 16], strides = [1, 1]} : vector<2x48xf32> to vector<2x16xf32>
    %1323 = arith.addf %1321, %1322 : vector<2x16xf32>
    %1324 = arith.negf %1323 : vector<2x16xf32>
    %1325 = math.exp %1324 : vector<2x16xf32>
    %cst_256 = arith.constant 1.000000e+00 : f32
    %1326 = vector.broadcast %cst_256 : f32 to vector<2x16xf32>
    %1327 = arith.addf %1326, %1325 : vector<2x16xf32>
    %1328 = arith.divf %1326, %1327 : vector<2x16xf32>
    %1329 = vector.extract_strided_slice %1317 {offsets = [0, 16], sizes = [2, 16], strides = [1, 1]} : vector<2x48xf32> to vector<2x16xf32>
    %1330 = vector.extract_strided_slice %1320 {offsets = [0, 16], sizes = [2, 16], strides = [1, 1]} : vector<2x48xf32> to vector<2x16xf32>
    %1331 = arith.addf %1329, %1330 : vector<2x16xf32>
    %1332 = arith.negf %1331 : vector<2x16xf32>
    %1333 = math.exp %1332 : vector<2x16xf32>
    %cst_257 = arith.constant 1.000000e+00 : f32
    %1334 = vector.broadcast %cst_257 : f32 to vector<2x16xf32>
    %1335 = arith.addf %1334, %1333 : vector<2x16xf32>
    %1336 = arith.divf %1334, %1335 : vector<2x16xf32>
    %1337 = vector.extract_strided_slice %1317 {offsets = [0, 32], sizes = [2, 16], strides = [1, 1]} : vector<2x48xf32> to vector<2x16xf32>
    %1338 = vector.extract_strided_slice %1320 {offsets = [0, 32], sizes = [2, 16], strides = [1, 1]} : vector<2x48xf32> to vector<2x16xf32>
    %1339 = arith.mulf %1328, %1338 : vector<2x16xf32>
    %1340 = arith.addf %1337, %1339 : vector<2x16xf32>
    %1341 = math.tanh %1340 : vector<2x16xf32>
    %cst_258 = arith.constant 1.000000e+00 : f32
    %1342 = vector.broadcast %cst_258 : f32 to vector<2x16xf32>
    %1343 = arith.subf %1342, %1336 : vector<2x16xf32>
    %1344 = arith.mulf %1343, %1341 : vector<2x16xf32>
    %1345 = arith.mulf %1336, %1286 : vector<2x16xf32>
    %1346 = arith.addf %1344, %1345 : vector<2x16xf32>
    %1347 = vector.extract_strided_slice %1191 {offsets = [10, 48], sizes = [2, 48], strides = [1, 1]} : vector<16x96xf32> to vector<2x48xf32>
    %cst_259 = arith.constant dense<0.000000e+00> : vector<2x48xf32>
    %1348 = tpu.matmul %1316, %1193, %cst_259 {dimension_numbers = #tpu.dot_dimension_numbers<[1], [0], [0], [1], [0, 0, 1, 1], [], []>} : vector<2x16xf32>, vector<16x48xf32>, vector<2x48xf32> -> vector<2x48xf32>
    %1349 = vector.broadcast %1195 : vector<1x48xf32> to vector<2x48xf32>
    %1350 = arith.addf %1348, %1349 : vector<2x48xf32>
    %1351 = vector.extract_strided_slice %1347 {offsets = [0, 0], sizes = [2, 16], strides = [1, 1]} : vector<2x48xf32> to vector<2x16xf32>
    %1352 = vector.extract_strided_slice %1350 {offsets = [0, 0], sizes = [2, 16], strides = [1, 1]} : vector<2x48xf32> to vector<2x16xf32>
    %1353 = arith.addf %1351, %1352 : vector<2x16xf32>
    %1354 = arith.negf %1353 : vector<2x16xf32>
    %1355 = math.exp %1354 : vector<2x16xf32>
    %cst_260 = arith.constant 1.000000e+00 : f32
    %1356 = vector.broadcast %cst_260 : f32 to vector<2x16xf32>
    %1357 = arith.addf %1356, %1355 : vector<2x16xf32>
    %1358 = arith.divf %1356, %1357 : vector<2x16xf32>
    %1359 = vector.extract_strided_slice %1347 {offsets = [0, 16], sizes = [2, 16], strides = [1, 1]} : vector<2x48xf32> to vector<2x16xf32>
    %1360 = vector.extract_strided_slice %1350 {offsets = [0, 16], sizes = [2, 16], strides = [1, 1]} : vector<2x48xf32> to vector<2x16xf32>
    %1361 = arith.addf %1359, %1360 : vector<2x16xf32>
    %1362 = arith.negf %1361 : vector<2x16xf32>
    %1363 = math.exp %1362 : vector<2x16xf32>
    %cst_261 = arith.constant 1.000000e+00 : f32
    %1364 = vector.broadcast %cst_261 : f32 to vector<2x16xf32>
    %1365 = arith.addf %1364, %1363 : vector<2x16xf32>
    %1366 = arith.divf %1364, %1365 : vector<2x16xf32>
    %1367 = vector.extract_strided_slice %1347 {offsets = [0, 32], sizes = [2, 16], strides = [1, 1]} : vector<2x48xf32> to vector<2x16xf32>
    %1368 = vector.extract_strided_slice %1350 {offsets = [0, 32], sizes = [2, 16], strides = [1, 1]} : vector<2x48xf32> to vector<2x16xf32>
    %1369 = arith.mulf %1358, %1368 : vector<2x16xf32>
    %1370 = arith.addf %1367, %1369 : vector<2x16xf32>
    %1371 = math.tanh %1370 : vector<2x16xf32>
    %cst_262 = arith.constant 1.000000e+00 : f32
    %1372 = vector.broadcast %cst_262 : f32 to vector<2x16xf32>
    %1373 = arith.subf %1372, %1366 : vector<2x16xf32>
    %1374 = arith.mulf %1373, %1371 : vector<2x16xf32>
    %1375 = arith.mulf %1366, %1316 : vector<2x16xf32>
    %1376 = arith.addf %1374, %1375 : vector<2x16xf32>
    %1377 = vector.extract_strided_slice %1191 {offsets = [6, 0], sizes = [2, 48], strides = [1, 1]} : vector<16x96xf32> to vector<2x48xf32>
    %cst_263 = arith.constant dense<0.000000e+00> : vector<2x48xf32>
    %1378 = tpu.matmul %1346, %1192, %cst_263 {dimension_numbers = #tpu.dot_dimension_numbers<[1], [0], [0], [1], [0, 0, 1, 1], [], []>} : vector<2x16xf32>, vector<16x48xf32>, vector<2x48xf32> -> vector<2x48xf32>
    %1379 = vector.broadcast %1194 : vector<1x48xf32> to vector<2x48xf32>
    %1380 = arith.addf %1378, %1379 : vector<2x48xf32>
    %1381 = vector.extract_strided_slice %1377 {offsets = [0, 0], sizes = [2, 16], strides = [1, 1]} : vector<2x48xf32> to vector<2x16xf32>
    %1382 = vector.extract_strided_slice %1380 {offsets = [0, 0], sizes = [2, 16], strides = [1, 1]} : vector<2x48xf32> to vector<2x16xf32>
    %1383 = arith.addf %1381, %1382 : vector<2x16xf32>
    %1384 = arith.negf %1383 : vector<2x16xf32>
    %1385 = math.exp %1384 : vector<2x16xf32>
    %cst_264 = arith.constant 1.000000e+00 : f32
    %1386 = vector.broadcast %cst_264 : f32 to vector<2x16xf32>
    %1387 = arith.addf %1386, %1385 : vector<2x16xf32>
    %1388 = arith.divf %1386, %1387 : vector<2x16xf32>
    %1389 = vector.extract_strided_slice %1377 {offsets = [0, 16], sizes = [2, 16], strides = [1, 1]} : vector<2x48xf32> to vector<2x16xf32>
    %1390 = vector.extract_strided_slice %1380 {offsets = [0, 16], sizes = [2, 16], strides = [1, 1]} : vector<2x48xf32> to vector<2x16xf32>
    %1391 = arith.addf %1389, %1390 : vector<2x16xf32>
    %1392 = arith.negf %1391 : vector<2x16xf32>
    %1393 = math.exp %1392 : vector<2x16xf32>
    %cst_265 = arith.constant 1.000000e+00 : f32
    %1394 = vector.broadcast %cst_265 : f32 to vector<2x16xf32>
    %1395 = arith.addf %1394, %1393 : vector<2x16xf32>
    %1396 = arith.divf %1394, %1395 : vector<2x16xf32>
    %1397 = vector.extract_strided_slice %1377 {offsets = [0, 32], sizes = [2, 16], strides = [1, 1]} : vector<2x48xf32> to vector<2x16xf32>
    %1398 = vector.extract_strided_slice %1380 {offsets = [0, 32], sizes = [2, 16], strides = [1, 1]} : vector<2x48xf32> to vector<2x16xf32>
    %1399 = arith.mulf %1388, %1398 : vector<2x16xf32>
    %1400 = arith.addf %1397, %1399 : vector<2x16xf32>
    %1401 = math.tanh %1400 : vector<2x16xf32>
    %cst_266 = arith.constant 1.000000e+00 : f32
    %1402 = vector.broadcast %cst_266 : f32 to vector<2x16xf32>
    %1403 = arith.subf %1402, %1396 : vector<2x16xf32>
    %1404 = arith.mulf %1403, %1401 : vector<2x16xf32>
    %1405 = arith.mulf %1396, %1346 : vector<2x16xf32>
    %1406 = arith.addf %1404, %1405 : vector<2x16xf32>
    %1407 = vector.extract_strided_slice %1191 {offsets = [8, 48], sizes = [2, 48], strides = [1, 1]} : vector<16x96xf32> to vector<2x48xf32>
    %cst_267 = arith.constant dense<0.000000e+00> : vector<2x48xf32>
    %1408 = tpu.matmul %1376, %1193, %cst_267 {dimension_numbers = #tpu.dot_dimension_numbers<[1], [0], [0], [1], [0, 0, 1, 1], [], []>} : vector<2x16xf32>, vector<16x48xf32>, vector<2x48xf32> -> vector<2x48xf32>
    %1409 = vector.broadcast %1195 : vector<1x48xf32> to vector<2x48xf32>
    %1410 = arith.addf %1408, %1409 : vector<2x48xf32>
    %1411 = vector.extract_strided_slice %1407 {offsets = [0, 0], sizes = [2, 16], strides = [1, 1]} : vector<2x48xf32> to vector<2x16xf32>
    %1412 = vector.extract_strided_slice %1410 {offsets = [0, 0], sizes = [2, 16], strides = [1, 1]} : vector<2x48xf32> to vector<2x16xf32>
    %1413 = arith.addf %1411, %1412 : vector<2x16xf32>
    %1414 = arith.negf %1413 : vector<2x16xf32>
    %1415 = math.exp %1414 : vector<2x16xf32>
    %cst_268 = arith.constant 1.000000e+00 : f32
    %1416 = vector.broadcast %cst_268 : f32 to vector<2x16xf32>
    %1417 = arith.addf %1416, %1415 : vector<2x16xf32>
    %1418 = arith.divf %1416, %1417 : vector<2x16xf32>
    %1419 = vector.extract_strided_slice %1407 {offsets = [0, 16], sizes = [2, 16], strides = [1, 1]} : vector<2x48xf32> to vector<2x16xf32>
    %1420 = vector.extract_strided_slice %1410 {offsets = [0, 16], sizes = [2, 16], strides = [1, 1]} : vector<2x48xf32> to vector<2x16xf32>
    %1421 = arith.addf %1419, %1420 : vector<2x16xf32>
    %1422 = arith.negf %1421 : vector<2x16xf32>
    %1423 = math.exp %1422 : vector<2x16xf32>
    %cst_269 = arith.constant 1.000000e+00 : f32
    %1424 = vector.broadcast %cst_269 : f32 to vector<2x16xf32>
    %1425 = arith.addf %1424, %1423 : vector<2x16xf32>
    %1426 = arith.divf %1424, %1425 : vector<2x16xf32>
    %1427 = vector.extract_strided_slice %1407 {offsets = [0, 32], sizes = [2, 16], strides = [1, 1]} : vector<2x48xf32> to vector<2x16xf32>
    %1428 = vector.extract_strided_slice %1410 {offsets = [0, 32], sizes = [2, 16], strides = [1, 1]} : vector<2x48xf32> to vector<2x16xf32>
    %1429 = arith.mulf %1418, %1428 : vector<2x16xf32>
    %1430 = arith.addf %1427, %1429 : vector<2x16xf32>
    %1431 = math.tanh %1430 : vector<2x16xf32>
    %cst_270 = arith.constant 1.000000e+00 : f32
    %1432 = vector.broadcast %cst_270 : f32 to vector<2x16xf32>
    %1433 = arith.subf %1432, %1426 : vector<2x16xf32>
    %1434 = arith.mulf %1433, %1431 : vector<2x16xf32>
    %1435 = arith.mulf %1426, %1376 : vector<2x16xf32>
    %1436 = arith.addf %1434, %1435 : vector<2x16xf32>
    %1437 = vector.extract_strided_slice %1191 {offsets = [8, 0], sizes = [2, 48], strides = [1, 1]} : vector<16x96xf32> to vector<2x48xf32>
    %cst_271 = arith.constant dense<0.000000e+00> : vector<2x48xf32>
    %1438 = tpu.matmul %1406, %1192, %cst_271 {dimension_numbers = #tpu.dot_dimension_numbers<[1], [0], [0], [1], [0, 0, 1, 1], [], []>} : vector<2x16xf32>, vector<16x48xf32>, vector<2x48xf32> -> vector<2x48xf32>
    %1439 = vector.broadcast %1194 : vector<1x48xf32> to vector<2x48xf32>
    %1440 = arith.addf %1438, %1439 : vector<2x48xf32>
    %1441 = vector.extract_strided_slice %1437 {offsets = [0, 0], sizes = [2, 16], strides = [1, 1]} : vector<2x48xf32> to vector<2x16xf32>
    %1442 = vector.extract_strided_slice %1440 {offsets = [0, 0], sizes = [2, 16], strides = [1, 1]} : vector<2x48xf32> to vector<2x16xf32>
    %1443 = arith.addf %1441, %1442 : vector<2x16xf32>
    %1444 = arith.negf %1443 : vector<2x16xf32>
    %1445 = math.exp %1444 : vector<2x16xf32>
    %cst_272 = arith.constant 1.000000e+00 : f32
    %1446 = vector.broadcast %cst_272 : f32 to vector<2x16xf32>
    %1447 = arith.addf %1446, %1445 : vector<2x16xf32>
    %1448 = arith.divf %1446, %1447 : vector<2x16xf32>
    %1449 = vector.extract_strided_slice %1437 {offsets = [0, 16], sizes = [2, 16], strides = [1, 1]} : vector<2x48xf32> to vector<2x16xf32>
    %1450 = vector.extract_strided_slice %1440 {offsets = [0, 16], sizes = [2, 16], strides = [1, 1]} : vector<2x48xf32> to vector<2x16xf32>
    %1451 = arith.addf %1449, %1450 : vector<2x16xf32>
    %1452 = arith.negf %1451 : vector<2x16xf32>
    %1453 = math.exp %1452 : vector<2x16xf32>
    %cst_273 = arith.constant 1.000000e+00 : f32
    %1454 = vector.broadcast %cst_273 : f32 to vector<2x16xf32>
    %1455 = arith.addf %1454, %1453 : vector<2x16xf32>
    %1456 = arith.divf %1454, %1455 : vector<2x16xf32>
    %1457 = vector.extract_strided_slice %1437 {offsets = [0, 32], sizes = [2, 16], strides = [1, 1]} : vector<2x48xf32> to vector<2x16xf32>
    %1458 = vector.extract_strided_slice %1440 {offsets = [0, 32], sizes = [2, 16], strides = [1, 1]} : vector<2x48xf32> to vector<2x16xf32>
    %1459 = arith.mulf %1448, %1458 : vector<2x16xf32>
    %1460 = arith.addf %1457, %1459 : vector<2x16xf32>
    %1461 = math.tanh %1460 : vector<2x16xf32>
    %cst_274 = arith.constant 1.000000e+00 : f32
    %1462 = vector.broadcast %cst_274 : f32 to vector<2x16xf32>
    %1463 = arith.subf %1462, %1456 : vector<2x16xf32>
    %1464 = arith.mulf %1463, %1461 : vector<2x16xf32>
    %1465 = arith.mulf %1456, %1406 : vector<2x16xf32>
    %1466 = arith.addf %1464, %1465 : vector<2x16xf32>
    %1467 = vector.extract_strided_slice %1191 {offsets = [6, 48], sizes = [2, 48], strides = [1, 1]} : vector<16x96xf32> to vector<2x48xf32>
    %cst_275 = arith.constant dense<0.000000e+00> : vector<2x48xf32>
    %1468 = tpu.matmul %1436, %1193, %cst_275 {dimension_numbers = #tpu.dot_dimension_numbers<[1], [0], [0], [1], [0, 0, 1, 1], [], []>} : vector<2x16xf32>, vector<16x48xf32>, vector<2x48xf32> -> vector<2x48xf32>
    %1469 = vector.broadcast %1195 : vector<1x48xf32> to vector<2x48xf32>
    %1470 = arith.addf %1468, %1469 : vector<2x48xf32>
    %1471 = vector.extract_strided_slice %1467 {offsets = [0, 0], sizes = [2, 16], strides = [1, 1]} : vector<2x48xf32> to vector<2x16xf32>
    %1472 = vector.extract_strided_slice %1470 {offsets = [0, 0], sizes = [2, 16], strides = [1, 1]} : vector<2x48xf32> to vector<2x16xf32>
    %1473 = arith.addf %1471, %1472 : vector<2x16xf32>
    %1474 = arith.negf %1473 : vector<2x16xf32>
    %1475 = math.exp %1474 : vector<2x16xf32>
    %cst_276 = arith.constant 1.000000e+00 : f32
    %1476 = vector.broadcast %cst_276 : f32 to vector<2x16xf32>
    %1477 = arith.addf %1476, %1475 : vector<2x16xf32>
    %1478 = arith.divf %1476, %1477 : vector<2x16xf32>
    %1479 = vector.extract_strided_slice %1467 {offsets = [0, 16], sizes = [2, 16], strides = [1, 1]} : vector<2x48xf32> to vector<2x16xf32>
    %1480 = vector.extract_strided_slice %1470 {offsets = [0, 16], sizes = [2, 16], strides = [1, 1]} : vector<2x48xf32> to vector<2x16xf32>
    %1481 = arith.addf %1479, %1480 : vector<2x16xf32>
    %1482 = arith.negf %1481 : vector<2x16xf32>
    %1483 = math.exp %1482 : vector<2x16xf32>
    %cst_277 = arith.constant 1.000000e+00 : f32
    %1484 = vector.broadcast %cst_277 : f32 to vector<2x16xf32>
    %1485 = arith.addf %1484, %1483 : vector<2x16xf32>
    %1486 = arith.divf %1484, %1485 : vector<2x16xf32>
    %1487 = vector.extract_strided_slice %1467 {offsets = [0, 32], sizes = [2, 16], strides = [1, 1]} : vector<2x48xf32> to vector<2x16xf32>
    %1488 = vector.extract_strided_slice %1470 {offsets = [0, 32], sizes = [2, 16], strides = [1, 1]} : vector<2x48xf32> to vector<2x16xf32>
    %1489 = arith.mulf %1478, %1488 : vector<2x16xf32>
    %1490 = arith.addf %1487, %1489 : vector<2x16xf32>
    %1491 = math.tanh %1490 : vector<2x16xf32>
    %cst_278 = arith.constant 1.000000e+00 : f32
    %1492 = vector.broadcast %cst_278 : f32 to vector<2x16xf32>
    %1493 = arith.subf %1492, %1486 : vector<2x16xf32>
    %1494 = arith.mulf %1493, %1491 : vector<2x16xf32>
    %1495 = arith.mulf %1486, %1436 : vector<2x16xf32>
    %1496 = arith.addf %1494, %1495 : vector<2x16xf32>
    %1497 = vector.extract_strided_slice %1191 {offsets = [10, 0], sizes = [2, 48], strides = [1, 1]} : vector<16x96xf32> to vector<2x48xf32>
    %cst_279 = arith.constant dense<0.000000e+00> : vector<2x48xf32>
    %1498 = tpu.matmul %1466, %1192, %cst_279 {dimension_numbers = #tpu.dot_dimension_numbers<[1], [0], [0], [1], [0, 0, 1, 1], [], []>} : vector<2x16xf32>, vector<16x48xf32>, vector<2x48xf32> -> vector<2x48xf32>
    %1499 = vector.broadcast %1194 : vector<1x48xf32> to vector<2x48xf32>
    %1500 = arith.addf %1498, %1499 : vector<2x48xf32>
    %1501 = vector.extract_strided_slice %1497 {offsets = [0, 0], sizes = [2, 16], strides = [1, 1]} : vector<2x48xf32> to vector<2x16xf32>
    %1502 = vector.extract_strided_slice %1500 {offsets = [0, 0], sizes = [2, 16], strides = [1, 1]} : vector<2x48xf32> to vector<2x16xf32>
    %1503 = arith.addf %1501, %1502 : vector<2x16xf32>
    %1504 = arith.negf %1503 : vector<2x16xf32>
    %1505 = math.exp %1504 : vector<2x16xf32>
    %cst_280 = arith.constant 1.000000e+00 : f32
    %1506 = vector.broadcast %cst_280 : f32 to vector<2x16xf32>
    %1507 = arith.addf %1506, %1505 : vector<2x16xf32>
    %1508 = arith.divf %1506, %1507 : vector<2x16xf32>
    %1509 = vector.extract_strided_slice %1497 {offsets = [0, 16], sizes = [2, 16], strides = [1, 1]} : vector<2x48xf32> to vector<2x16xf32>
    %1510 = vector.extract_strided_slice %1500 {offsets = [0, 16], sizes = [2, 16], strides = [1, 1]} : vector<2x48xf32> to vector<2x16xf32>
    %1511 = arith.addf %1509, %1510 : vector<2x16xf32>
    %1512 = arith.negf %1511 : vector<2x16xf32>
    %1513 = math.exp %1512 : vector<2x16xf32>
    %cst_281 = arith.constant 1.000000e+00 : f32
    %1514 = vector.broadcast %cst_281 : f32 to vector<2x16xf32>
    %1515 = arith.addf %1514, %1513 : vector<2x16xf32>
    %1516 = arith.divf %1514, %1515 : vector<2x16xf32>
    %1517 = vector.extract_strided_slice %1497 {offsets = [0, 32], sizes = [2, 16], strides = [1, 1]} : vector<2x48xf32> to vector<2x16xf32>
    %1518 = vector.extract_strided_slice %1500 {offsets = [0, 32], sizes = [2, 16], strides = [1, 1]} : vector<2x48xf32> to vector<2x16xf32>
    %1519 = arith.mulf %1508, %1518 : vector<2x16xf32>
    %1520 = arith.addf %1517, %1519 : vector<2x16xf32>
    %1521 = math.tanh %1520 : vector<2x16xf32>
    %cst_282 = arith.constant 1.000000e+00 : f32
    %1522 = vector.broadcast %cst_282 : f32 to vector<2x16xf32>
    %1523 = arith.subf %1522, %1516 : vector<2x16xf32>
    %1524 = arith.mulf %1523, %1521 : vector<2x16xf32>
    %1525 = arith.mulf %1516, %1466 : vector<2x16xf32>
    %1526 = arith.addf %1524, %1525 : vector<2x16xf32>
    %1527 = vector.extract_strided_slice %1191 {offsets = [4, 48], sizes = [2, 48], strides = [1, 1]} : vector<16x96xf32> to vector<2x48xf32>
    %cst_283 = arith.constant dense<0.000000e+00> : vector<2x48xf32>
    %1528 = tpu.matmul %1496, %1193, %cst_283 {dimension_numbers = #tpu.dot_dimension_numbers<[1], [0], [0], [1], [0, 0, 1, 1], [], []>} : vector<2x16xf32>, vector<16x48xf32>, vector<2x48xf32> -> vector<2x48xf32>
    %1529 = vector.broadcast %1195 : vector<1x48xf32> to vector<2x48xf32>
    %1530 = arith.addf %1528, %1529 : vector<2x48xf32>
    %1531 = vector.extract_strided_slice %1527 {offsets = [0, 0], sizes = [2, 16], strides = [1, 1]} : vector<2x48xf32> to vector<2x16xf32>
    %1532 = vector.extract_strided_slice %1530 {offsets = [0, 0], sizes = [2, 16], strides = [1, 1]} : vector<2x48xf32> to vector<2x16xf32>
    %1533 = arith.addf %1531, %1532 : vector<2x16xf32>
    %1534 = arith.negf %1533 : vector<2x16xf32>
    %1535 = math.exp %1534 : vector<2x16xf32>
    %cst_284 = arith.constant 1.000000e+00 : f32
    %1536 = vector.broadcast %cst_284 : f32 to vector<2x16xf32>
    %1537 = arith.addf %1536, %1535 : vector<2x16xf32>
    %1538 = arith.divf %1536, %1537 : vector<2x16xf32>
    %1539 = vector.extract_strided_slice %1527 {offsets = [0, 16], sizes = [2, 16], strides = [1, 1]} : vector<2x48xf32> to vector<2x16xf32>
    %1540 = vector.extract_strided_slice %1530 {offsets = [0, 16], sizes = [2, 16], strides = [1, 1]} : vector<2x48xf32> to vector<2x16xf32>
    %1541 = arith.addf %1539, %1540 : vector<2x16xf32>
    %1542 = arith.negf %1541 : vector<2x16xf32>
    %1543 = math.exp %1542 : vector<2x16xf32>
    %cst_285 = arith.constant 1.000000e+00 : f32
    %1544 = vector.broadcast %cst_285 : f32 to vector<2x16xf32>
    %1545 = arith.addf %1544, %1543 : vector<2x16xf32>
    %1546 = arith.divf %1544, %1545 : vector<2x16xf32>
    %1547 = vector.extract_strided_slice %1527 {offsets = [0, 32], sizes = [2, 16], strides = [1, 1]} : vector<2x48xf32> to vector<2x16xf32>
    %1548 = vector.extract_strided_slice %1530 {offsets = [0, 32], sizes = [2, 16], strides = [1, 1]} : vector<2x48xf32> to vector<2x16xf32>
    %1549 = arith.mulf %1538, %1548 : vector<2x16xf32>
    %1550 = arith.addf %1547, %1549 : vector<2x16xf32>
    %1551 = math.tanh %1550 : vector<2x16xf32>
    %cst_286 = arith.constant 1.000000e+00 : f32
    %1552 = vector.broadcast %cst_286 : f32 to vector<2x16xf32>
    %1553 = arith.subf %1552, %1546 : vector<2x16xf32>
    %1554 = arith.mulf %1553, %1551 : vector<2x16xf32>
    %1555 = arith.mulf %1546, %1496 : vector<2x16xf32>
    %1556 = arith.addf %1554, %1555 : vector<2x16xf32>
    %1557 = vector.extract_strided_slice %1191 {offsets = [12, 0], sizes = [2, 48], strides = [1, 1]} : vector<16x96xf32> to vector<2x48xf32>
    %cst_287 = arith.constant dense<0.000000e+00> : vector<2x48xf32>
    %1558 = tpu.matmul %1526, %1192, %cst_287 {dimension_numbers = #tpu.dot_dimension_numbers<[1], [0], [0], [1], [0, 0, 1, 1], [], []>} : vector<2x16xf32>, vector<16x48xf32>, vector<2x48xf32> -> vector<2x48xf32>
    %1559 = vector.broadcast %1194 : vector<1x48xf32> to vector<2x48xf32>
    %1560 = arith.addf %1558, %1559 : vector<2x48xf32>
    %1561 = vector.extract_strided_slice %1557 {offsets = [0, 0], sizes = [2, 16], strides = [1, 1]} : vector<2x48xf32> to vector<2x16xf32>
    %1562 = vector.extract_strided_slice %1560 {offsets = [0, 0], sizes = [2, 16], strides = [1, 1]} : vector<2x48xf32> to vector<2x16xf32>
    %1563 = arith.addf %1561, %1562 : vector<2x16xf32>
    %1564 = arith.negf %1563 : vector<2x16xf32>
    %1565 = math.exp %1564 : vector<2x16xf32>
    %cst_288 = arith.constant 1.000000e+00 : f32
    %1566 = vector.broadcast %cst_288 : f32 to vector<2x16xf32>
    %1567 = arith.addf %1566, %1565 : vector<2x16xf32>
    %1568 = arith.divf %1566, %1567 : vector<2x16xf32>
    %1569 = vector.extract_strided_slice %1557 {offsets = [0, 16], sizes = [2, 16], strides = [1, 1]} : vector<2x48xf32> to vector<2x16xf32>
    %1570 = vector.extract_strided_slice %1560 {offsets = [0, 16], sizes = [2, 16], strides = [1, 1]} : vector<2x48xf32> to vector<2x16xf32>
    %1571 = arith.addf %1569, %1570 : vector<2x16xf32>
    %1572 = arith.negf %1571 : vector<2x16xf32>
    %1573 = math.exp %1572 : vector<2x16xf32>
    %cst_289 = arith.constant 1.000000e+00 : f32
    %1574 = vector.broadcast %cst_289 : f32 to vector<2x16xf32>
    %1575 = arith.addf %1574, %1573 : vector<2x16xf32>
    %1576 = arith.divf %1574, %1575 : vector<2x16xf32>
    %1577 = vector.extract_strided_slice %1557 {offsets = [0, 32], sizes = [2, 16], strides = [1, 1]} : vector<2x48xf32> to vector<2x16xf32>
    %1578 = vector.extract_strided_slice %1560 {offsets = [0, 32], sizes = [2, 16], strides = [1, 1]} : vector<2x48xf32> to vector<2x16xf32>
    %1579 = arith.mulf %1568, %1578 : vector<2x16xf32>
    %1580 = arith.addf %1577, %1579 : vector<2x16xf32>
    %1581 = math.tanh %1580 : vector<2x16xf32>
    %cst_290 = arith.constant 1.000000e+00 : f32
    %1582 = vector.broadcast %cst_290 : f32 to vector<2x16xf32>
    %1583 = arith.subf %1582, %1576 : vector<2x16xf32>
    %1584 = arith.mulf %1583, %1581 : vector<2x16xf32>
    %1585 = arith.mulf %1576, %1526 : vector<2x16xf32>
    %1586 = arith.addf %1584, %1585 : vector<2x16xf32>
    %1587 = vector.extract_strided_slice %1191 {offsets = [2, 48], sizes = [2, 48], strides = [1, 1]} : vector<16x96xf32> to vector<2x48xf32>
    %cst_291 = arith.constant dense<0.000000e+00> : vector<2x48xf32>
    %1588 = tpu.matmul %1556, %1193, %cst_291 {dimension_numbers = #tpu.dot_dimension_numbers<[1], [0], [0], [1], [0, 0, 1, 1], [], []>} : vector<2x16xf32>, vector<16x48xf32>, vector<2x48xf32> -> vector<2x48xf32>
    %1589 = vector.broadcast %1195 : vector<1x48xf32> to vector<2x48xf32>
    %1590 = arith.addf %1588, %1589 : vector<2x48xf32>
    %1591 = vector.extract_strided_slice %1587 {offsets = [0, 0], sizes = [2, 16], strides = [1, 1]} : vector<2x48xf32> to vector<2x16xf32>
    %1592 = vector.extract_strided_slice %1590 {offsets = [0, 0], sizes = [2, 16], strides = [1, 1]} : vector<2x48xf32> to vector<2x16xf32>
    %1593 = arith.addf %1591, %1592 : vector<2x16xf32>
    %1594 = arith.negf %1593 : vector<2x16xf32>
    %1595 = math.exp %1594 : vector<2x16xf32>
    %cst_292 = arith.constant 1.000000e+00 : f32
    %1596 = vector.broadcast %cst_292 : f32 to vector<2x16xf32>
    %1597 = arith.addf %1596, %1595 : vector<2x16xf32>
    %1598 = arith.divf %1596, %1597 : vector<2x16xf32>
    %1599 = vector.extract_strided_slice %1587 {offsets = [0, 16], sizes = [2, 16], strides = [1, 1]} : vector<2x48xf32> to vector<2x16xf32>
    %1600 = vector.extract_strided_slice %1590 {offsets = [0, 16], sizes = [2, 16], strides = [1, 1]} : vector<2x48xf32> to vector<2x16xf32>
    %1601 = arith.addf %1599, %1600 : vector<2x16xf32>
    %1602 = arith.negf %1601 : vector<2x16xf32>
    %1603 = math.exp %1602 : vector<2x16xf32>
    %cst_293 = arith.constant 1.000000e+00 : f32
    %1604 = vector.broadcast %cst_293 : f32 to vector<2x16xf32>
    %1605 = arith.addf %1604, %1603 : vector<2x16xf32>
    %1606 = arith.divf %1604, %1605 : vector<2x16xf32>
    %1607 = vector.extract_strided_slice %1587 {offsets = [0, 32], sizes = [2, 16], strides = [1, 1]} : vector<2x48xf32> to vector<2x16xf32>
    %1608 = vector.extract_strided_slice %1590 {offsets = [0, 32], sizes = [2, 16], strides = [1, 1]} : vector<2x48xf32> to vector<2x16xf32>
    %1609 = arith.mulf %1598, %1608 : vector<2x16xf32>
    %1610 = arith.addf %1607, %1609 : vector<2x16xf32>
    %1611 = math.tanh %1610 : vector<2x16xf32>
    %cst_294 = arith.constant 1.000000e+00 : f32
    %1612 = vector.broadcast %cst_294 : f32 to vector<2x16xf32>
    %1613 = arith.subf %1612, %1606 : vector<2x16xf32>
    %1614 = arith.mulf %1613, %1611 : vector<2x16xf32>
    %1615 = arith.mulf %1606, %1556 : vector<2x16xf32>
    %1616 = arith.addf %1614, %1615 : vector<2x16xf32>
    %1617 = vector.extract_strided_slice %1191 {offsets = [14, 0], sizes = [2, 48], strides = [1, 1]} : vector<16x96xf32> to vector<2x48xf32>
    %cst_295 = arith.constant dense<0.000000e+00> : vector<2x48xf32>
    %1618 = tpu.matmul %1586, %1192, %cst_295 {dimension_numbers = #tpu.dot_dimension_numbers<[1], [0], [0], [1], [0, 0, 1, 1], [], []>} : vector<2x16xf32>, vector<16x48xf32>, vector<2x48xf32> -> vector<2x48xf32>
    %1619 = vector.broadcast %1194 : vector<1x48xf32> to vector<2x48xf32>
    %1620 = arith.addf %1618, %1619 : vector<2x48xf32>
    %1621 = vector.extract_strided_slice %1617 {offsets = [0, 0], sizes = [2, 16], strides = [1, 1]} : vector<2x48xf32> to vector<2x16xf32>
    %1622 = vector.extract_strided_slice %1620 {offsets = [0, 0], sizes = [2, 16], strides = [1, 1]} : vector<2x48xf32> to vector<2x16xf32>
    %1623 = arith.addf %1621, %1622 : vector<2x16xf32>
    %1624 = arith.negf %1623 : vector<2x16xf32>
    %1625 = math.exp %1624 : vector<2x16xf32>
    %cst_296 = arith.constant 1.000000e+00 : f32
    %1626 = vector.broadcast %cst_296 : f32 to vector<2x16xf32>
    %1627 = arith.addf %1626, %1625 : vector<2x16xf32>
    %1628 = arith.divf %1626, %1627 : vector<2x16xf32>
    %1629 = vector.extract_strided_slice %1617 {offsets = [0, 16], sizes = [2, 16], strides = [1, 1]} : vector<2x48xf32> to vector<2x16xf32>
    %1630 = vector.extract_strided_slice %1620 {offsets = [0, 16], sizes = [2, 16], strides = [1, 1]} : vector<2x48xf32> to vector<2x16xf32>
    %1631 = arith.addf %1629, %1630 : vector<2x16xf32>
    %1632 = arith.negf %1631 : vector<2x16xf32>
    %1633 = math.exp %1632 : vector<2x16xf32>
    %cst_297 = arith.constant 1.000000e+00 : f32
    %1634 = vector.broadcast %cst_297 : f32 to vector<2x16xf32>
    %1635 = arith.addf %1634, %1633 : vector<2x16xf32>
    %1636 = arith.divf %1634, %1635 : vector<2x16xf32>
    %1637 = vector.extract_strided_slice %1617 {offsets = [0, 32], sizes = [2, 16], strides = [1, 1]} : vector<2x48xf32> to vector<2x16xf32>
    %1638 = vector.extract_strided_slice %1620 {offsets = [0, 32], sizes = [2, 16], strides = [1, 1]} : vector<2x48xf32> to vector<2x16xf32>
    %1639 = arith.mulf %1628, %1638 : vector<2x16xf32>
    %1640 = arith.addf %1637, %1639 : vector<2x16xf32>
    %1641 = math.tanh %1640 : vector<2x16xf32>
    %cst_298 = arith.constant 1.000000e+00 : f32
    %1642 = vector.broadcast %cst_298 : f32 to vector<2x16xf32>
    %1643 = arith.subf %1642, %1636 : vector<2x16xf32>
    %1644 = arith.mulf %1643, %1641 : vector<2x16xf32>
    %1645 = arith.mulf %1636, %1586 : vector<2x16xf32>
    %1646 = arith.addf %1644, %1645 : vector<2x16xf32>
    %1647 = vector.extract_strided_slice %1191 {offsets = [0, 48], sizes = [2, 48], strides = [1, 1]} : vector<16x96xf32> to vector<2x48xf32>
    %cst_299 = arith.constant dense<0.000000e+00> : vector<2x48xf32>
    %1648 = tpu.matmul %1616, %1193, %cst_299 {dimension_numbers = #tpu.dot_dimension_numbers<[1], [0], [0], [1], [0, 0, 1, 1], [], []>} : vector<2x16xf32>, vector<16x48xf32>, vector<2x48xf32> -> vector<2x48xf32>
    %1649 = vector.broadcast %1195 : vector<1x48xf32> to vector<2x48xf32>
    %1650 = arith.addf %1648, %1649 : vector<2x48xf32>
    %1651 = vector.extract_strided_slice %1647 {offsets = [0, 0], sizes = [2, 16], strides = [1, 1]} : vector<2x48xf32> to vector<2x16xf32>
    %1652 = vector.extract_strided_slice %1650 {offsets = [0, 0], sizes = [2, 16], strides = [1, 1]} : vector<2x48xf32> to vector<2x16xf32>
    %1653 = arith.addf %1651, %1652 : vector<2x16xf32>
    %1654 = arith.negf %1653 : vector<2x16xf32>
    %1655 = math.exp %1654 : vector<2x16xf32>
    %cst_300 = arith.constant 1.000000e+00 : f32
    %1656 = vector.broadcast %cst_300 : f32 to vector<2x16xf32>
    %1657 = arith.addf %1656, %1655 : vector<2x16xf32>
    %1658 = arith.divf %1656, %1657 : vector<2x16xf32>
    %1659 = vector.extract_strided_slice %1647 {offsets = [0, 16], sizes = [2, 16], strides = [1, 1]} : vector<2x48xf32> to vector<2x16xf32>
    %1660 = vector.extract_strided_slice %1650 {offsets = [0, 16], sizes = [2, 16], strides = [1, 1]} : vector<2x48xf32> to vector<2x16xf32>
    %1661 = arith.addf %1659, %1660 : vector<2x16xf32>
    %1662 = arith.negf %1661 : vector<2x16xf32>
    %1663 = math.exp %1662 : vector<2x16xf32>
    %cst_301 = arith.constant 1.000000e+00 : f32
    %1664 = vector.broadcast %cst_301 : f32 to vector<2x16xf32>
    %1665 = arith.addf %1664, %1663 : vector<2x16xf32>
    %1666 = arith.divf %1664, %1665 : vector<2x16xf32>
    %1667 = vector.extract_strided_slice %1647 {offsets = [0, 32], sizes = [2, 16], strides = [1, 1]} : vector<2x48xf32> to vector<2x16xf32>
    %1668 = vector.extract_strided_slice %1650 {offsets = [0, 32], sizes = [2, 16], strides = [1, 1]} : vector<2x48xf32> to vector<2x16xf32>
    %1669 = arith.mulf %1658, %1668 : vector<2x16xf32>
    %1670 = arith.addf %1667, %1669 : vector<2x16xf32>
    %1671 = math.tanh %1670 : vector<2x16xf32>
    %cst_302 = arith.constant 1.000000e+00 : f32
    %1672 = vector.broadcast %cst_302 : f32 to vector<2x16xf32>
    %1673 = arith.subf %1672, %1666 : vector<2x16xf32>
    %1674 = arith.mulf %1673, %1671 : vector<2x16xf32>
    %1675 = arith.mulf %1666, %1616 : vector<2x16xf32>
    %1676 = arith.addf %1674, %1675 : vector<2x16xf32>
    %1677 = tpu.concatenate %1226, %1676 in 1 : vector<2x16xf32>, vector<2x16xf32> -> vector<2x32xf32>
    %1678 = tpu.concatenate %1286, %1616 in 1 : vector<2x16xf32>, vector<2x16xf32> -> vector<2x32xf32>
    %1679 = tpu.concatenate %1346, %1556 in 1 : vector<2x16xf32>, vector<2x16xf32> -> vector<2x32xf32>
    %1680 = tpu.concatenate %1406, %1496 in 1 : vector<2x16xf32>, vector<2x16xf32> -> vector<2x32xf32>
    %1681 = tpu.concatenate %1466, %1436 in 1 : vector<2x16xf32>, vector<2x16xf32> -> vector<2x32xf32>
    %1682 = tpu.concatenate %1526, %1376 in 1 : vector<2x16xf32>, vector<2x16xf32> -> vector<2x32xf32>
    %1683 = tpu.concatenate %1586, %1316 in 1 : vector<2x16xf32>, vector<2x16xf32> -> vector<2x32xf32>
    %1684 = tpu.concatenate %1646, %1256 in 1 : vector<2x16xf32>, vector<2x16xf32> -> vector<2x32xf32>
    %1685 = tpu.concatenate %1677, %1678, %1679, %1680, %1681, %1682, %1683, %1684 in 0 : vector<2x32xf32>, vector<2x32xf32>, vector<2x32xf32>, vector<2x32xf32>, vector<2x32xf32>, vector<2x32xf32>, vector<2x32xf32>, vector<2x32xf32> -> vector<16x32xf32>
    %c0_303 = arith.constant 0 : index
    %c0_304 = arith.constant 0 : index
    %1686 = vector.load %arg20[%c0_303, %c0_304] : memref<32x96xf32, #tpu.memory_space<vmem>>, vector<32x96xf32>
    %cst_305 = arith.constant dense<0.000000e+00> : vector<16x96xf32>
    %1687 = tpu.matmul %1685, %1686, %cst_305 {dimension_numbers = #tpu.dot_dimension_numbers<[1], [0], [0], [1], [0, 0, 1, 1], [], []>} : vector<16x32xf32>, vector<32x96xf32>, vector<16x96xf32> -> vector<16x96xf32>
    %c0_306 = arith.constant 0 : index
    %c0_307 = arith.constant 0 : index
    %1688 = vector.load %arg21[%c0_306, %c0_307] : memref<1x96xf32, #tpu.memory_space<vmem>>, vector<1x96xf32>
    %1689 = vector.broadcast %1688 : vector<1x96xf32> to vector<16x96xf32>
    %1690 = arith.addf %1687, %1689 : vector<16x96xf32>
    %c0_308 = arith.constant 0 : index
    %c0_309 = arith.constant 0 : index
    %1691 = vector.load %arg22[%c0_308, %c0_309] : memref<16x48xf32, #tpu.memory_space<vmem>>, vector<16x48xf32>
    %c0_310 = arith.constant 0 : index
    %c0_311 = arith.constant 0 : index
    %1692 = vector.load %arg23[%c0_310, %c0_311] : memref<16x48xf32, #tpu.memory_space<vmem>>, vector<16x48xf32>
    %c0_312 = arith.constant 0 : index
    %c0_313 = arith.constant 0 : index
    %1693 = vector.load %arg24[%c0_312, %c0_313] : memref<1x48xf32, #tpu.memory_space<vmem>>, vector<1x48xf32>
    %c0_314 = arith.constant 0 : index
    %c0_315 = arith.constant 0 : index
    %1694 = vector.load %arg25[%c0_314, %c0_315] : memref<1x48xf32, #tpu.memory_space<vmem>>, vector<1x48xf32>
    %cst_316 = arith.constant 0.000000e+00 : f32
    %1695 = vector.broadcast %cst_316 : f32 to vector<2x16xf32>
    %1696 = vector.extract_strided_slice %1690 {offsets = [0, 0], sizes = [2, 48], strides = [1, 1]} : vector<16x96xf32> to vector<2x48xf32>
    %cst_317 = arith.constant dense<0.000000e+00> : vector<2x48xf32>
    %1697 = tpu.matmul %1695, %1691, %cst_317 {dimension_numbers = #tpu.dot_dimension_numbers<[1], [0], [0], [1], [0, 0, 1, 1], [], []>} : vector<2x16xf32>, vector<16x48xf32>, vector<2x48xf32> -> vector<2x48xf32>
    %1698 = vector.broadcast %1693 : vector<1x48xf32> to vector<2x48xf32>
    %1699 = arith.addf %1697, %1698 : vector<2x48xf32>
    %1700 = vector.extract_strided_slice %1696 {offsets = [0, 0], sizes = [2, 16], strides = [1, 1]} : vector<2x48xf32> to vector<2x16xf32>
    %1701 = vector.extract_strided_slice %1699 {offsets = [0, 0], sizes = [2, 16], strides = [1, 1]} : vector<2x48xf32> to vector<2x16xf32>
    %1702 = arith.addf %1700, %1701 : vector<2x16xf32>
    %1703 = arith.negf %1702 : vector<2x16xf32>
    %1704 = math.exp %1703 : vector<2x16xf32>
    %cst_318 = arith.constant 1.000000e+00 : f32
    %1705 = vector.broadcast %cst_318 : f32 to vector<2x16xf32>
    %1706 = arith.addf %1705, %1704 : vector<2x16xf32>
    %1707 = arith.divf %1705, %1706 : vector<2x16xf32>
    %1708 = vector.extract_strided_slice %1696 {offsets = [0, 16], sizes = [2, 16], strides = [1, 1]} : vector<2x48xf32> to vector<2x16xf32>
    %1709 = vector.extract_strided_slice %1699 {offsets = [0, 16], sizes = [2, 16], strides = [1, 1]} : vector<2x48xf32> to vector<2x16xf32>
    %1710 = arith.addf %1708, %1709 : vector<2x16xf32>
    %1711 = arith.negf %1710 : vector<2x16xf32>
    %1712 = math.exp %1711 : vector<2x16xf32>
    %cst_319 = arith.constant 1.000000e+00 : f32
    %1713 = vector.broadcast %cst_319 : f32 to vector<2x16xf32>
    %1714 = arith.addf %1713, %1712 : vector<2x16xf32>
    %1715 = arith.divf %1713, %1714 : vector<2x16xf32>
    %1716 = vector.extract_strided_slice %1696 {offsets = [0, 32], sizes = [2, 16], strides = [1, 1]} : vector<2x48xf32> to vector<2x16xf32>
    %1717 = vector.extract_strided_slice %1699 {offsets = [0, 32], sizes = [2, 16], strides = [1, 1]} : vector<2x48xf32> to vector<2x16xf32>
    %1718 = arith.mulf %1707, %1717 : vector<2x16xf32>
    %1719 = arith.addf %1716, %1718 : vector<2x16xf32>
    %1720 = math.tanh %1719 : vector<2x16xf32>
    %cst_320 = arith.constant 1.000000e+00 : f32
    %1721 = vector.broadcast %cst_320 : f32 to vector<2x16xf32>
    %1722 = arith.subf %1721, %1715 : vector<2x16xf32>
    %1723 = arith.mulf %1722, %1720 : vector<2x16xf32>
    %1724 = arith.mulf %1715, %1695 : vector<2x16xf32>
    %1725 = arith.addf %1723, %1724 : vector<2x16xf32>
    %1726 = vector.extract_strided_slice %1690 {offsets = [2, 0], sizes = [2, 48], strides = [1, 1]} : vector<16x96xf32> to vector<2x48xf32>
    %cst_321 = arith.constant dense<0.000000e+00> : vector<2x48xf32>
    %1727 = tpu.matmul %1725, %1691, %cst_321 {dimension_numbers = #tpu.dot_dimension_numbers<[1], [0], [0], [1], [0, 0, 1, 1], [], []>} : vector<2x16xf32>, vector<16x48xf32>, vector<2x48xf32> -> vector<2x48xf32>
    %1728 = vector.broadcast %1693 : vector<1x48xf32> to vector<2x48xf32>
    %1729 = arith.addf %1727, %1728 : vector<2x48xf32>
    %1730 = vector.extract_strided_slice %1726 {offsets = [0, 0], sizes = [2, 16], strides = [1, 1]} : vector<2x48xf32> to vector<2x16xf32>
    %1731 = vector.extract_strided_slice %1729 {offsets = [0, 0], sizes = [2, 16], strides = [1, 1]} : vector<2x48xf32> to vector<2x16xf32>
    %1732 = arith.addf %1730, %1731 : vector<2x16xf32>
    %1733 = arith.negf %1732 : vector<2x16xf32>
    %1734 = math.exp %1733 : vector<2x16xf32>
    %cst_322 = arith.constant 1.000000e+00 : f32
    %1735 = vector.broadcast %cst_322 : f32 to vector<2x16xf32>
    %1736 = arith.addf %1735, %1734 : vector<2x16xf32>
    %1737 = arith.divf %1735, %1736 : vector<2x16xf32>
    %1738 = vector.extract_strided_slice %1726 {offsets = [0, 16], sizes = [2, 16], strides = [1, 1]} : vector<2x48xf32> to vector<2x16xf32>
    %1739 = vector.extract_strided_slice %1729 {offsets = [0, 16], sizes = [2, 16], strides = [1, 1]} : vector<2x48xf32> to vector<2x16xf32>
    %1740 = arith.addf %1738, %1739 : vector<2x16xf32>
    %1741 = arith.negf %1740 : vector<2x16xf32>
    %1742 = math.exp %1741 : vector<2x16xf32>
    %cst_323 = arith.constant 1.000000e+00 : f32
    %1743 = vector.broadcast %cst_323 : f32 to vector<2x16xf32>
    %1744 = arith.addf %1743, %1742 : vector<2x16xf32>
    %1745 = arith.divf %1743, %1744 : vector<2x16xf32>
    %1746 = vector.extract_strided_slice %1726 {offsets = [0, 32], sizes = [2, 16], strides = [1, 1]} : vector<2x48xf32> to vector<2x16xf32>
    %1747 = vector.extract_strided_slice %1729 {offsets = [0, 32], sizes = [2, 16], strides = [1, 1]} : vector<2x48xf32> to vector<2x16xf32>
    %1748 = arith.mulf %1737, %1747 : vector<2x16xf32>
    %1749 = arith.addf %1746, %1748 : vector<2x16xf32>
    %1750 = math.tanh %1749 : vector<2x16xf32>
    %cst_324 = arith.constant 1.000000e+00 : f32
    %1751 = vector.broadcast %cst_324 : f32 to vector<2x16xf32>
    %1752 = arith.subf %1751, %1745 : vector<2x16xf32>
    %1753 = arith.mulf %1752, %1750 : vector<2x16xf32>
    %1754 = arith.mulf %1745, %1725 : vector<2x16xf32>
    %1755 = arith.addf %1753, %1754 : vector<2x16xf32>
    %1756 = vector.extract_strided_slice %1690 {offsets = [4, 0], sizes = [2, 48], strides = [1, 1]} : vector<16x96xf32> to vector<2x48xf32>
    %cst_325 = arith.constant dense<0.000000e+00> : vector<2x48xf32>
    %1757 = tpu.matmul %1755, %1691, %cst_325 {dimension_numbers = #tpu.dot_dimension_numbers<[1], [0], [0], [1], [0, 0, 1, 1], [], []>} : vector<2x16xf32>, vector<16x48xf32>, vector<2x48xf32> -> vector<2x48xf32>
    %1758 = vector.broadcast %1693 : vector<1x48xf32> to vector<2x48xf32>
    %1759 = arith.addf %1757, %1758 : vector<2x48xf32>
    %1760 = vector.extract_strided_slice %1756 {offsets = [0, 0], sizes = [2, 16], strides = [1, 1]} : vector<2x48xf32> to vector<2x16xf32>
    %1761 = vector.extract_strided_slice %1759 {offsets = [0, 0], sizes = [2, 16], strides = [1, 1]} : vector<2x48xf32> to vector<2x16xf32>
    %1762 = arith.addf %1760, %1761 : vector<2x16xf32>
    %1763 = arith.negf %1762 : vector<2x16xf32>
    %1764 = math.exp %1763 : vector<2x16xf32>
    %cst_326 = arith.constant 1.000000e+00 : f32
    %1765 = vector.broadcast %cst_326 : f32 to vector<2x16xf32>
    %1766 = arith.addf %1765, %1764 : vector<2x16xf32>
    %1767 = arith.divf %1765, %1766 : vector<2x16xf32>
    %1768 = vector.extract_strided_slice %1756 {offsets = [0, 16], sizes = [2, 16], strides = [1, 1]} : vector<2x48xf32> to vector<2x16xf32>
    %1769 = vector.extract_strided_slice %1759 {offsets = [0, 16], sizes = [2, 16], strides = [1, 1]} : vector<2x48xf32> to vector<2x16xf32>
    %1770 = arith.addf %1768, %1769 : vector<2x16xf32>
    %1771 = arith.negf %1770 : vector<2x16xf32>
    %1772 = math.exp %1771 : vector<2x16xf32>
    %cst_327 = arith.constant 1.000000e+00 : f32
    %1773 = vector.broadcast %cst_327 : f32 to vector<2x16xf32>
    %1774 = arith.addf %1773, %1772 : vector<2x16xf32>
    %1775 = arith.divf %1773, %1774 : vector<2x16xf32>
    %1776 = vector.extract_strided_slice %1756 {offsets = [0, 32], sizes = [2, 16], strides = [1, 1]} : vector<2x48xf32> to vector<2x16xf32>
    %1777 = vector.extract_strided_slice %1759 {offsets = [0, 32], sizes = [2, 16], strides = [1, 1]} : vector<2x48xf32> to vector<2x16xf32>
    %1778 = arith.mulf %1767, %1777 : vector<2x16xf32>
    %1779 = arith.addf %1776, %1778 : vector<2x16xf32>
    %1780 = math.tanh %1779 : vector<2x16xf32>
    %cst_328 = arith.constant 1.000000e+00 : f32
    %1781 = vector.broadcast %cst_328 : f32 to vector<2x16xf32>
    %1782 = arith.subf %1781, %1775 : vector<2x16xf32>
    %1783 = arith.mulf %1782, %1780 : vector<2x16xf32>
    %1784 = arith.mulf %1775, %1755 : vector<2x16xf32>
    %1785 = arith.addf %1783, %1784 : vector<2x16xf32>
    %1786 = vector.extract_strided_slice %1690 {offsets = [6, 0], sizes = [2, 48], strides = [1, 1]} : vector<16x96xf32> to vector<2x48xf32>
    %cst_329 = arith.constant dense<0.000000e+00> : vector<2x48xf32>
    %1787 = tpu.matmul %1785, %1691, %cst_329 {dimension_numbers = #tpu.dot_dimension_numbers<[1], [0], [0], [1], [0, 0, 1, 1], [], []>} : vector<2x16xf32>, vector<16x48xf32>, vector<2x48xf32> -> vector<2x48xf32>
    %1788 = vector.broadcast %1693 : vector<1x48xf32> to vector<2x48xf32>
    %1789 = arith.addf %1787, %1788 : vector<2x48xf32>
    %1790 = vector.extract_strided_slice %1786 {offsets = [0, 0], sizes = [2, 16], strides = [1, 1]} : vector<2x48xf32> to vector<2x16xf32>
    %1791 = vector.extract_strided_slice %1789 {offsets = [0, 0], sizes = [2, 16], strides = [1, 1]} : vector<2x48xf32> to vector<2x16xf32>
    %1792 = arith.addf %1790, %1791 : vector<2x16xf32>
    %1793 = arith.negf %1792 : vector<2x16xf32>
    %1794 = math.exp %1793 : vector<2x16xf32>
    %cst_330 = arith.constant 1.000000e+00 : f32
    %1795 = vector.broadcast %cst_330 : f32 to vector<2x16xf32>
    %1796 = arith.addf %1795, %1794 : vector<2x16xf32>
    %1797 = arith.divf %1795, %1796 : vector<2x16xf32>
    %1798 = vector.extract_strided_slice %1786 {offsets = [0, 16], sizes = [2, 16], strides = [1, 1]} : vector<2x48xf32> to vector<2x16xf32>
    %1799 = vector.extract_strided_slice %1789 {offsets = [0, 16], sizes = [2, 16], strides = [1, 1]} : vector<2x48xf32> to vector<2x16xf32>
    %1800 = arith.addf %1798, %1799 : vector<2x16xf32>
    %1801 = arith.negf %1800 : vector<2x16xf32>
    %1802 = math.exp %1801 : vector<2x16xf32>
    %cst_331 = arith.constant 1.000000e+00 : f32
    %1803 = vector.broadcast %cst_331 : f32 to vector<2x16xf32>
    %1804 = arith.addf %1803, %1802 : vector<2x16xf32>
    %1805 = arith.divf %1803, %1804 : vector<2x16xf32>
    %1806 = vector.extract_strided_slice %1786 {offsets = [0, 32], sizes = [2, 16], strides = [1, 1]} : vector<2x48xf32> to vector<2x16xf32>
    %1807 = vector.extract_strided_slice %1789 {offsets = [0, 32], sizes = [2, 16], strides = [1, 1]} : vector<2x48xf32> to vector<2x16xf32>
    %1808 = arith.mulf %1797, %1807 : vector<2x16xf32>
    %1809 = arith.addf %1806, %1808 : vector<2x16xf32>
    %1810 = math.tanh %1809 : vector<2x16xf32>
    %cst_332 = arith.constant 1.000000e+00 : f32
    %1811 = vector.broadcast %cst_332 : f32 to vector<2x16xf32>
    %1812 = arith.subf %1811, %1805 : vector<2x16xf32>
    %1813 = arith.mulf %1812, %1810 : vector<2x16xf32>
    %1814 = arith.mulf %1805, %1785 : vector<2x16xf32>
    %1815 = arith.addf %1813, %1814 : vector<2x16xf32>
    %1816 = vector.extract_strided_slice %1690 {offsets = [8, 0], sizes = [2, 48], strides = [1, 1]} : vector<16x96xf32> to vector<2x48xf32>
    %cst_333 = arith.constant dense<0.000000e+00> : vector<2x48xf32>
    %1817 = tpu.matmul %1815, %1691, %cst_333 {dimension_numbers = #tpu.dot_dimension_numbers<[1], [0], [0], [1], [0, 0, 1, 1], [], []>} : vector<2x16xf32>, vector<16x48xf32>, vector<2x48xf32> -> vector<2x48xf32>
    %1818 = vector.broadcast %1693 : vector<1x48xf32> to vector<2x48xf32>
    %1819 = arith.addf %1817, %1818 : vector<2x48xf32>
    %1820 = vector.extract_strided_slice %1816 {offsets = [0, 0], sizes = [2, 16], strides = [1, 1]} : vector<2x48xf32> to vector<2x16xf32>
    %1821 = vector.extract_strided_slice %1819 {offsets = [0, 0], sizes = [2, 16], strides = [1, 1]} : vector<2x48xf32> to vector<2x16xf32>
    %1822 = arith.addf %1820, %1821 : vector<2x16xf32>
    %1823 = arith.negf %1822 : vector<2x16xf32>
    %1824 = math.exp %1823 : vector<2x16xf32>
    %cst_334 = arith.constant 1.000000e+00 : f32
    %1825 = vector.broadcast %cst_334 : f32 to vector<2x16xf32>
    %1826 = arith.addf %1825, %1824 : vector<2x16xf32>
    %1827 = arith.divf %1825, %1826 : vector<2x16xf32>
    %1828 = vector.extract_strided_slice %1816 {offsets = [0, 16], sizes = [2, 16], strides = [1, 1]} : vector<2x48xf32> to vector<2x16xf32>
    %1829 = vector.extract_strided_slice %1819 {offsets = [0, 16], sizes = [2, 16], strides = [1, 1]} : vector<2x48xf32> to vector<2x16xf32>
    %1830 = arith.addf %1828, %1829 : vector<2x16xf32>
    %1831 = arith.negf %1830 : vector<2x16xf32>
    %1832 = math.exp %1831 : vector<2x16xf32>
    %cst_335 = arith.constant 1.000000e+00 : f32
    %1833 = vector.broadcast %cst_335 : f32 to vector<2x16xf32>
    %1834 = arith.addf %1833, %1832 : vector<2x16xf32>
    %1835 = arith.divf %1833, %1834 : vector<2x16xf32>
    %1836 = vector.extract_strided_slice %1816 {offsets = [0, 32], sizes = [2, 16], strides = [1, 1]} : vector<2x48xf32> to vector<2x16xf32>
    %1837 = vector.extract_strided_slice %1819 {offsets = [0, 32], sizes = [2, 16], strides = [1, 1]} : vector<2x48xf32> to vector<2x16xf32>
    %1838 = arith.mulf %1827, %1837 : vector<2x16xf32>
    %1839 = arith.addf %1836, %1838 : vector<2x16xf32>
    %1840 = math.tanh %1839 : vector<2x16xf32>
    %cst_336 = arith.constant 1.000000e+00 : f32
    %1841 = vector.broadcast %cst_336 : f32 to vector<2x16xf32>
    %1842 = arith.subf %1841, %1835 : vector<2x16xf32>
    %1843 = arith.mulf %1842, %1840 : vector<2x16xf32>
    %1844 = arith.mulf %1835, %1815 : vector<2x16xf32>
    %1845 = arith.addf %1843, %1844 : vector<2x16xf32>
    %1846 = vector.extract_strided_slice %1690 {offsets = [10, 0], sizes = [2, 48], strides = [1, 1]} : vector<16x96xf32> to vector<2x48xf32>
    %cst_337 = arith.constant dense<0.000000e+00> : vector<2x48xf32>
    %1847 = tpu.matmul %1845, %1691, %cst_337 {dimension_numbers = #tpu.dot_dimension_numbers<[1], [0], [0], [1], [0, 0, 1, 1], [], []>} : vector<2x16xf32>, vector<16x48xf32>, vector<2x48xf32> -> vector<2x48xf32>
    %1848 = vector.broadcast %1693 : vector<1x48xf32> to vector<2x48xf32>
    %1849 = arith.addf %1847, %1848 : vector<2x48xf32>
    %1850 = vector.extract_strided_slice %1846 {offsets = [0, 0], sizes = [2, 16], strides = [1, 1]} : vector<2x48xf32> to vector<2x16xf32>
    %1851 = vector.extract_strided_slice %1849 {offsets = [0, 0], sizes = [2, 16], strides = [1, 1]} : vector<2x48xf32> to vector<2x16xf32>
    %1852 = arith.addf %1850, %1851 : vector<2x16xf32>
    %1853 = arith.negf %1852 : vector<2x16xf32>
    %1854 = math.exp %1853 : vector<2x16xf32>
    %cst_338 = arith.constant 1.000000e+00 : f32
    %1855 = vector.broadcast %cst_338 : f32 to vector<2x16xf32>
    %1856 = arith.addf %1855, %1854 : vector<2x16xf32>
    %1857 = arith.divf %1855, %1856 : vector<2x16xf32>
    %1858 = vector.extract_strided_slice %1846 {offsets = [0, 16], sizes = [2, 16], strides = [1, 1]} : vector<2x48xf32> to vector<2x16xf32>
    %1859 = vector.extract_strided_slice %1849 {offsets = [0, 16], sizes = [2, 16], strides = [1, 1]} : vector<2x48xf32> to vector<2x16xf32>
    %1860 = arith.addf %1858, %1859 : vector<2x16xf32>
    %1861 = arith.negf %1860 : vector<2x16xf32>
    %1862 = math.exp %1861 : vector<2x16xf32>
    %cst_339 = arith.constant 1.000000e+00 : f32
    %1863 = vector.broadcast %cst_339 : f32 to vector<2x16xf32>
    %1864 = arith.addf %1863, %1862 : vector<2x16xf32>
    %1865 = arith.divf %1863, %1864 : vector<2x16xf32>
    %1866 = vector.extract_strided_slice %1846 {offsets = [0, 32], sizes = [2, 16], strides = [1, 1]} : vector<2x48xf32> to vector<2x16xf32>
    %1867 = vector.extract_strided_slice %1849 {offsets = [0, 32], sizes = [2, 16], strides = [1, 1]} : vector<2x48xf32> to vector<2x16xf32>
    %1868 = arith.mulf %1857, %1867 : vector<2x16xf32>
    %1869 = arith.addf %1866, %1868 : vector<2x16xf32>
    %1870 = math.tanh %1869 : vector<2x16xf32>
    %cst_340 = arith.constant 1.000000e+00 : f32
    %1871 = vector.broadcast %cst_340 : f32 to vector<2x16xf32>
    %1872 = arith.subf %1871, %1865 : vector<2x16xf32>
    %1873 = arith.mulf %1872, %1870 : vector<2x16xf32>
    %1874 = arith.mulf %1865, %1845 : vector<2x16xf32>
    %1875 = arith.addf %1873, %1874 : vector<2x16xf32>
    %1876 = vector.extract_strided_slice %1690 {offsets = [12, 0], sizes = [2, 48], strides = [1, 1]} : vector<16x96xf32> to vector<2x48xf32>
    %cst_341 = arith.constant dense<0.000000e+00> : vector<2x48xf32>
    %1877 = tpu.matmul %1875, %1691, %cst_341 {dimension_numbers = #tpu.dot_dimension_numbers<[1], [0], [0], [1], [0, 0, 1, 1], [], []>} : vector<2x16xf32>, vector<16x48xf32>, vector<2x48xf32> -> vector<2x48xf32>
    %1878 = vector.broadcast %1693 : vector<1x48xf32> to vector<2x48xf32>
    %1879 = arith.addf %1877, %1878 : vector<2x48xf32>
    %1880 = vector.extract_strided_slice %1876 {offsets = [0, 0], sizes = [2, 16], strides = [1, 1]} : vector<2x48xf32> to vector<2x16xf32>
    %1881 = vector.extract_strided_slice %1879 {offsets = [0, 0], sizes = [2, 16], strides = [1, 1]} : vector<2x48xf32> to vector<2x16xf32>
    %1882 = arith.addf %1880, %1881 : vector<2x16xf32>
    %1883 = arith.negf %1882 : vector<2x16xf32>
    %1884 = math.exp %1883 : vector<2x16xf32>
    %cst_342 = arith.constant 1.000000e+00 : f32
    %1885 = vector.broadcast %cst_342 : f32 to vector<2x16xf32>
    %1886 = arith.addf %1885, %1884 : vector<2x16xf32>
    %1887 = arith.divf %1885, %1886 : vector<2x16xf32>
    %1888 = vector.extract_strided_slice %1876 {offsets = [0, 16], sizes = [2, 16], strides = [1, 1]} : vector<2x48xf32> to vector<2x16xf32>
    %1889 = vector.extract_strided_slice %1879 {offsets = [0, 16], sizes = [2, 16], strides = [1, 1]} : vector<2x48xf32> to vector<2x16xf32>
    %1890 = arith.addf %1888, %1889 : vector<2x16xf32>
    %1891 = arith.negf %1890 : vector<2x16xf32>
    %1892 = math.exp %1891 : vector<2x16xf32>
    %cst_343 = arith.constant 1.000000e+00 : f32
    %1893 = vector.broadcast %cst_343 : f32 to vector<2x16xf32>
    %1894 = arith.addf %1893, %1892 : vector<2x16xf32>
    %1895 = arith.divf %1893, %1894 : vector<2x16xf32>
    %1896 = vector.extract_strided_slice %1876 {offsets = [0, 32], sizes = [2, 16], strides = [1, 1]} : vector<2x48xf32> to vector<2x16xf32>
    %1897 = vector.extract_strided_slice %1879 {offsets = [0, 32], sizes = [2, 16], strides = [1, 1]} : vector<2x48xf32> to vector<2x16xf32>
    %1898 = arith.mulf %1887, %1897 : vector<2x16xf32>
    %1899 = arith.addf %1896, %1898 : vector<2x16xf32>
    %1900 = math.tanh %1899 : vector<2x16xf32>
    %cst_344 = arith.constant 1.000000e+00 : f32
    %1901 = vector.broadcast %cst_344 : f32 to vector<2x16xf32>
    %1902 = arith.subf %1901, %1895 : vector<2x16xf32>
    %1903 = arith.mulf %1902, %1900 : vector<2x16xf32>
    %1904 = arith.mulf %1895, %1875 : vector<2x16xf32>
    %1905 = arith.addf %1903, %1904 : vector<2x16xf32>
    %1906 = vector.extract_strided_slice %1690 {offsets = [14, 0], sizes = [2, 48], strides = [1, 1]} : vector<16x96xf32> to vector<2x48xf32>
    %cst_345 = arith.constant dense<0.000000e+00> : vector<2x48xf32>
    %1907 = tpu.matmul %1905, %1691, %cst_345 {dimension_numbers = #tpu.dot_dimension_numbers<[1], [0], [0], [1], [0, 0, 1, 1], [], []>} : vector<2x16xf32>, vector<16x48xf32>, vector<2x48xf32> -> vector<2x48xf32>
    %1908 = vector.broadcast %1693 : vector<1x48xf32> to vector<2x48xf32>
    %1909 = arith.addf %1907, %1908 : vector<2x48xf32>
    %1910 = vector.extract_strided_slice %1906 {offsets = [0, 0], sizes = [2, 16], strides = [1, 1]} : vector<2x48xf32> to vector<2x16xf32>
    %1911 = vector.extract_strided_slice %1909 {offsets = [0, 0], sizes = [2, 16], strides = [1, 1]} : vector<2x48xf32> to vector<2x16xf32>
    %1912 = arith.addf %1910, %1911 : vector<2x16xf32>
    %1913 = arith.negf %1912 : vector<2x16xf32>
    %1914 = math.exp %1913 : vector<2x16xf32>
    %cst_346 = arith.constant 1.000000e+00 : f32
    %1915 = vector.broadcast %cst_346 : f32 to vector<2x16xf32>
    %1916 = arith.addf %1915, %1914 : vector<2x16xf32>
    %1917 = arith.divf %1915, %1916 : vector<2x16xf32>
    %1918 = vector.extract_strided_slice %1906 {offsets = [0, 16], sizes = [2, 16], strides = [1, 1]} : vector<2x48xf32> to vector<2x16xf32>
    %1919 = vector.extract_strided_slice %1909 {offsets = [0, 16], sizes = [2, 16], strides = [1, 1]} : vector<2x48xf32> to vector<2x16xf32>
    %1920 = arith.addf %1918, %1919 : vector<2x16xf32>
    %1921 = arith.negf %1920 : vector<2x16xf32>
    %1922 = math.exp %1921 : vector<2x16xf32>
    %cst_347 = arith.constant 1.000000e+00 : f32
    %1923 = vector.broadcast %cst_347 : f32 to vector<2x16xf32>
    %1924 = arith.addf %1923, %1922 : vector<2x16xf32>
    %1925 = arith.divf %1923, %1924 : vector<2x16xf32>
    %1926 = vector.extract_strided_slice %1906 {offsets = [0, 32], sizes = [2, 16], strides = [1, 1]} : vector<2x48xf32> to vector<2x16xf32>
    %1927 = vector.extract_strided_slice %1909 {offsets = [0, 32], sizes = [2, 16], strides = [1, 1]} : vector<2x48xf32> to vector<2x16xf32>
    %1928 = arith.mulf %1917, %1927 : vector<2x16xf32>
    %1929 = arith.addf %1926, %1928 : vector<2x16xf32>
    %1930 = math.tanh %1929 : vector<2x16xf32>
    %cst_348 = arith.constant 1.000000e+00 : f32
    %1931 = vector.broadcast %cst_348 : f32 to vector<2x16xf32>
    %1932 = arith.subf %1931, %1925 : vector<2x16xf32>
    %1933 = arith.mulf %1932, %1930 : vector<2x16xf32>
    %1934 = arith.mulf %1925, %1905 : vector<2x16xf32>
    %1935 = arith.addf %1933, %1934 : vector<2x16xf32>
    %1936 = vector.extract_strided_slice %1690 {offsets = [14, 48], sizes = [2, 48], strides = [1, 1]} : vector<16x96xf32> to vector<2x48xf32>
    %cst_349 = arith.constant dense<0.000000e+00> : vector<2x48xf32>
    %1937 = tpu.matmul %1695, %1692, %cst_349 {dimension_numbers = #tpu.dot_dimension_numbers<[1], [0], [0], [1], [0, 0, 1, 1], [], []>} : vector<2x16xf32>, vector<16x48xf32>, vector<2x48xf32> -> vector<2x48xf32>
    %1938 = vector.broadcast %1694 : vector<1x48xf32> to vector<2x48xf32>
    %1939 = arith.addf %1937, %1938 : vector<2x48xf32>
    %1940 = vector.extract_strided_slice %1936 {offsets = [0, 0], sizes = [2, 16], strides = [1, 1]} : vector<2x48xf32> to vector<2x16xf32>
    %1941 = vector.extract_strided_slice %1939 {offsets = [0, 0], sizes = [2, 16], strides = [1, 1]} : vector<2x48xf32> to vector<2x16xf32>
    %1942 = arith.addf %1940, %1941 : vector<2x16xf32>
    %1943 = arith.negf %1942 : vector<2x16xf32>
    %1944 = math.exp %1943 : vector<2x16xf32>
    %cst_350 = arith.constant 1.000000e+00 : f32
    %1945 = vector.broadcast %cst_350 : f32 to vector<2x16xf32>
    %1946 = arith.addf %1945, %1944 : vector<2x16xf32>
    %1947 = arith.divf %1945, %1946 : vector<2x16xf32>
    %1948 = vector.extract_strided_slice %1936 {offsets = [0, 16], sizes = [2, 16], strides = [1, 1]} : vector<2x48xf32> to vector<2x16xf32>
    %1949 = vector.extract_strided_slice %1939 {offsets = [0, 16], sizes = [2, 16], strides = [1, 1]} : vector<2x48xf32> to vector<2x16xf32>
    %1950 = arith.addf %1948, %1949 : vector<2x16xf32>
    %1951 = arith.negf %1950 : vector<2x16xf32>
    %1952 = math.exp %1951 : vector<2x16xf32>
    %cst_351 = arith.constant 1.000000e+00 : f32
    %1953 = vector.broadcast %cst_351 : f32 to vector<2x16xf32>
    %1954 = arith.addf %1953, %1952 : vector<2x16xf32>
    %1955 = arith.divf %1953, %1954 : vector<2x16xf32>
    %1956 = vector.extract_strided_slice %1936 {offsets = [0, 32], sizes = [2, 16], strides = [1, 1]} : vector<2x48xf32> to vector<2x16xf32>
    %1957 = vector.extract_strided_slice %1939 {offsets = [0, 32], sizes = [2, 16], strides = [1, 1]} : vector<2x48xf32> to vector<2x16xf32>
    %1958 = arith.mulf %1947, %1957 : vector<2x16xf32>
    %1959 = arith.addf %1956, %1958 : vector<2x16xf32>
    %1960 = math.tanh %1959 : vector<2x16xf32>
    %cst_352 = arith.constant 1.000000e+00 : f32
    %1961 = vector.broadcast %cst_352 : f32 to vector<2x16xf32>
    %1962 = arith.subf %1961, %1955 : vector<2x16xf32>
    %1963 = arith.mulf %1962, %1960 : vector<2x16xf32>
    %1964 = arith.mulf %1955, %1695 : vector<2x16xf32>
    %1965 = arith.addf %1963, %1964 : vector<2x16xf32>
    %1966 = tpu.concatenate %1935, %1965 in 1 : vector<2x16xf32>, vector<2x16xf32> -> vector<2x32xf32>
    %c0_353 = arith.constant 0 : index
    %c0_354 = arith.constant 0 : index
    %1967 = vector.load %arg32[%c0_353, %c0_354] : memref<1x32xf32, #tpu.memory_space<vmem>>, vector<1x32xf32>
    %c0_355 = arith.constant 0 : index
    %c0_356 = arith.constant 0 : index
    %1968 = vector.load %arg33[%c0_355, %c0_356] : memref<1x32xf32, #tpu.memory_space<vmem>>, vector<1x32xf32>
    %cst_357 = arith.constant dense<0.000000e+00> : vector<2xf32>
    %1969 = vector.multi_reduction <add>, %1966, %cst_357 [1] : vector<2x32xf32> to vector<2xf32>
    %1970 = vector.shape_cast %1969 : vector<2xf32> to vector<2x1xf32>
    %cst_358 = arith.constant 3.200000e+01 : f32
    %1971 = vector.broadcast %cst_358 : f32 to vector<2x1xf32>
    %1972 = arith.divf %1970, %1971 : vector<2x1xf32>
    %1973 = vector.broadcast %1972 : vector<2x1xf32> to vector<2x32xf32>
    %1974 = arith.subf %1966, %1973 : vector<2x32xf32>
    %1975 = arith.mulf %1974, %1974 : vector<2x32xf32>
    %cst_359 = arith.constant dense<0.000000e+00> : vector<2xf32>
    %1976 = vector.multi_reduction <add>, %1975, %cst_359 [1] : vector<2x32xf32> to vector<2xf32>
    %1977 = vector.shape_cast %1976 : vector<2xf32> to vector<2x1xf32>
    %cst_360 = arith.constant 3.200000e+01 : f32
    %1978 = vector.broadcast %cst_360 : f32 to vector<2x1xf32>
    %1979 = arith.divf %1977, %1978 : vector<2x1xf32>
    %1980 = vector.broadcast %1972 : vector<2x1xf32> to vector<2x32xf32>
    %1981 = arith.subf %1966, %1980 : vector<2x32xf32>
    %cst_361 = arith.constant 9.99999974E-6 : f32
    %1982 = vector.broadcast %cst_361 : f32 to vector<2x1xf32>
    %1983 = arith.addf %1979, %1982 : vector<2x1xf32>
    %1984 = math.rsqrt %1983 : vector<2x1xf32>
    %1985 = vector.broadcast %1984 : vector<2x1xf32> to vector<2x32xf32>
    %1986 = arith.mulf %1981, %1985 : vector<2x32xf32>
    %1987 = vector.broadcast %1967 : vector<1x32xf32> to vector<2x32xf32>
    %1988 = arith.mulf %1986, %1987 : vector<2x32xf32>
    %1989 = vector.broadcast %1968 : vector<1x32xf32> to vector<2x32xf32>
    %1990 = arith.addf %1988, %1989 : vector<2x32xf32>
    %c0_362 = arith.constant 0 : index
    %c0_363 = arith.constant 0 : index
    %1991 = vector.load %arg34[%c0_362, %c0_363] : memref<32x16xf32, #tpu.memory_space<vmem>>, vector<32x16xf32>
    %cst_364 = arith.constant dense<0.000000e+00> : vector<2x16xf32>
    %1992 = tpu.matmul %1990, %1991, %cst_364 {dimension_numbers = #tpu.dot_dimension_numbers<[1], [0], [0], [1], [0, 0, 1, 1], [], []>} : vector<2x32xf32>, vector<32x16xf32>, vector<2x16xf32> -> vector<2x16xf32>
    %c0_365 = arith.constant 0 : index
    %c0_366 = arith.constant 0 : index
    %1993 = vector.load %arg35[%c0_365, %c0_366] : memref<1x16xf32, #tpu.memory_space<vmem>>, vector<1x16xf32>
    %1994 = vector.broadcast %1993 : vector<1x16xf32> to vector<2x16xf32>
    %1995 = arith.addf %1992, %1994 : vector<2x16xf32>
    %cst_367 = arith.constant 0.000000e+00 : f32
    %1996 = vector.broadcast %cst_367 : f32 to vector<2x16xf32>
    %1997 = arith.maximumf %1995, %1996 : vector<2x16xf32>
    %c0_368 = arith.constant 0 : index
    %c0_369 = arith.constant 0 : index
    %1998 = vector.load %arg36[%c0_368, %c0_369] : memref<16x8xf32, #tpu.memory_space<vmem>>, vector<16x8xf32>
    %cst_370 = arith.constant dense<0.000000e+00> : vector<2x8xf32>
    %1999 = tpu.matmul %1997, %1998, %cst_370 {dimension_numbers = #tpu.dot_dimension_numbers<[1], [0], [0], [1], [0, 0, 1, 1], [], []>} : vector<2x16xf32>, vector<16x8xf32>, vector<2x8xf32> -> vector<2x8xf32>
    %c0_371 = arith.constant 0 : index
    %c0_372 = arith.constant 0 : index
    %2000 = vector.load %arg37[%c0_371, %c0_372] : memref<1x8xf32, #tpu.memory_space<vmem>>, vector<1x8xf32>
    %2001 = vector.broadcast %2000 : vector<1x8xf32> to vector<2x8xf32>
    %2002 = arith.addf %1999, %2001 : vector<2x8xf32>
    %cst_373 = arith.constant 0.000000e+00 : f32
    %2003 = vector.broadcast %cst_373 : f32 to vector<2x8xf32>
    %2004 = arith.maximumf %2002, %2003 : vector<2x8xf32>
    %c0_374 = arith.constant 0 : index
    %c0_375 = arith.constant 0 : index
    %2005 = vector.load %arg38[%c0_374, %c0_375] : memref<8x32xf32, #tpu.memory_space<vmem>>, vector<8x32xf32>
    %cst_376 = arith.constant dense<0.000000e+00> : vector<2x32xf32>
    %2006 = tpu.matmul %2004, %2005, %cst_376 {dimension_numbers = #tpu.dot_dimension_numbers<[1], [0], [0], [1], [0, 0, 1, 1], [], []>} : vector<2x8xf32>, vector<8x32xf32>, vector<2x32xf32> -> vector<2x32xf32>
    %c0_377 = arith.constant 0 : index
    %c0_378 = arith.constant 0 : index
    %2007 = vector.load %arg39[%c0_377, %c0_378] : memref<1x32xf32, #tpu.memory_space<vmem>>, vector<1x32xf32>
    %2008 = vector.broadcast %2007 : vector<1x32xf32> to vector<2x32xf32>
    %2009 = arith.addf %2006, %2008 : vector<2x32xf32>
    %cst_379 = arith.constant 0.000000e+00 : f32
    %2010 = vector.broadcast %cst_379 : f32 to vector<2x32xf32>
    %2011 = arith.maximumf %2009, %2010 : vector<2x32xf32>
    %c0_380 = arith.constant 0 : index
    %c0_381 = arith.constant 0 : index
    %2012 = vector.load %arg40[%c0_380, %c0_381] : memref<32x16xf32, #tpu.memory_space<vmem>>, vector<32x16xf32>
    %cst_382 = arith.constant dense<0.000000e+00> : vector<2x16xf32>
    %2013 = tpu.matmul %2011, %2012, %cst_382 {dimension_numbers = #tpu.dot_dimension_numbers<[1], [0], [0], [1], [0, 0, 1, 1], [], []>} : vector<2x32xf32>, vector<32x16xf32>, vector<2x16xf32> -> vector<2x16xf32>
    %c0_383 = arith.constant 0 : index
    %c0_384 = arith.constant 0 : index
    %2014 = vector.load %arg41[%c0_383, %c0_384] : memref<1x16xf32, #tpu.memory_space<vmem>>, vector<1x16xf32>
    %2015 = vector.broadcast %2014 : vector<1x16xf32> to vector<2x16xf32>
    %2016 = arith.addf %2013, %2015 : vector<2x16xf32>
    %cst_385 = arith.constant 0.000000e+00 : f32
    %2017 = vector.broadcast %cst_385 : f32 to vector<2x16xf32>
    %2018 = arith.maximumf %2016, %2017 : vector<2x16xf32>
    %c0_386 = arith.constant 0 : index
    %c0_387 = arith.constant 0 : index
    %2019 = vector.load %arg42[%c0_386, %c0_387] : memref<16x1xf32, #tpu.memory_space<vmem>>, vector<16x1xf32>
    %cst_388 = arith.constant dense<0.000000e+00> : vector<2x1xf32>
    %2020 = tpu.matmul %2018, %2019, %cst_388 {dimension_numbers = #tpu.dot_dimension_numbers<[1], [0], [0], [1], [0, 0, 1, 1], [], []>} : vector<2x16xf32>, vector<16x1xf32>, vector<2x1xf32> -> vector<2x1xf32>
    %c0_389 = arith.constant 0 : index
    %c0_390 = arith.constant 0 : index
    %2021 = vector.load %arg43[%c0_389, %c0_390] : memref<1x1xf32, #tpu.memory_space<vmem>>, vector<1x1xf32>
    %2022 = vector.broadcast %2021 : vector<1x1xf32> to vector<2x1xf32>
    %2023 = arith.addf %2020, %2022 : vector<2x1xf32>
    %2024 = arith.negf %2023 : vector<2x1xf32>
    %2025 = math.exp %2024 : vector<2x1xf32>
    %cst_391 = arith.constant 1.000000e+00 : f32
    %2026 = vector.broadcast %cst_391 : f32 to vector<2x1xf32>
    %2027 = arith.addf %2026, %2025 : vector<2x1xf32>
    %2028 = arith.divf %2026, %2027 : vector<2x1xf32>
    %c0_392 = arith.constant 0 : index
    %c0_393 = arith.constant 0 : index
    %2029 = vector.load %arg44[%c0_392, %c0_393] : memref<2x1xf32, #tpu.memory_space<vmem>>, vector<2x1xf32>
    tpu.vector_store %arg44[%c0_392, %c0_393], %2028 {strides = array<i32>} : memref<2x1xf32, #tpu.memory_space<vmem>>, vector<2x1xf32>,
    return
  }
}

</mosaic_0001>

<llo_original>
// kernel: _lambda_.1
$region0: #{_lambda_.1}
  #allocation0 [shape = 'u32[]', space=smem, size = 0x4, offset = 0x4, fixed_abs, tag = 'smem constant byte address 0x4 - core index']
  #allocation1 [shape = 'u32[72,128]{1,0:T(1,128)}', space=vmem, size = 0x9000, scoped, tag = 'internal scratch']
  #allocation2 [shape = 'f32[1,1]{1,0:T(1,128)S(1)}', space=vmem, size = 0x200, scoped, tag = 'scoped memory for _lambda_.1']
  %s0 = inlined_call_operand.smem [shape: u32[45], index: -1, kind: input, shape index: {}]
  %s1 = sld [smem:[%s0]]
  %s2 = scalar_lea.smem %s0, 1
  %s3 = sld [smem:[%s2]]
  %s4 = scalar_lea.smem %s0, 2
  %s5 = sld [smem:[%s4]]
  %s6 = scalar_lea.smem %s0, 3
  %s7 = sld [smem:[%s6]]
  %s8 = scalar_lea.smem %s0, 4
  %s9 = sld [smem:[%s8]]
  %s10 = scalar_lea.smem %s0, 5
  %s11 = sld [smem:[%s10]]
  %s12 = scalar_lea.smem %s0, 6
  %s13 = sld [smem:[%s12]]
  %s14 = scalar_lea.smem %s0, 7
  %s15 = sld [smem:[%s14]]
  %s16 = scalar_lea.smem %s0, 8
  %s17 = sld [smem:[%s16]]
  %s18 = scalar_lea.smem %s0, 9
  %s19 = sld [smem:[%s18]]
  %s20 = scalar_lea.smem %s0, 10
  %s21 = sld [smem:[%s20]]
  %s22 = scalar_lea.smem %s0, 11
  %s23 = sld [smem:[%s22]]
  %s24 = scalar_lea.smem %s0, 12
  %s25 = sld [smem:[%s24]]
  %s26 = scalar_lea.smem %s0, 13
  %s27 = sld [smem:[%s26]]
  %s28 = scalar_lea.smem %s0, 14
  %s29 = sld [smem:[%s28]]
  %s30 = scalar_lea.smem %s0, 15
  %s31 = sld [smem:[%s30]]
  %s32 = scalar_lea.smem %s0, 16
  %s33 = sld [smem:[%s32]]
  %s34 = scalar_lea.smem %s0, 17
  %s35 = sld [smem:[%s34]]
  %s36 = scalar_lea.smem %s0, 18
  %s37 = sld [smem:[%s36]]
  %s38 = scalar_lea.smem %s0, 19
  %s39 = sld [smem:[%s38]]
  %s40 = scalar_lea.smem %s0, 20
  %s41 = sld [smem:[%s40]]
  %s42 = scalar_lea.smem %s0, 21
  %s43 = sld [smem:[%s42]]
  %s44 = scalar_lea.smem %s0, 22
  %s45 = sld [smem:[%s44]]
  %s46 = scalar_lea.smem %s0, 23
  %s47 = sld [smem:[%s46]]
  %s48 = scalar_lea.smem %s0, 24
  %s49 = sld [smem:[%s48]]
  %s50 = scalar_lea.smem %s0, 25
  %s51 = sld [smem:[%s50]]
  %s52 = scalar_lea.smem %s0, 26
  %s53 = sld [smem:[%s52]]
  %s54 = scalar_lea.smem %s0, 27
  %s55 = sld [smem:[%s54]]
  %s56 = scalar_lea.smem %s0, 28
  %s57 = sld [smem:[%s56]]
  %s58 = scalar_lea.smem %s0, 29
  %s59 = sld [smem:[%s58]]
  %s60 = scalar_lea.smem %s0, 30
  %s61 = sld [smem:[%s60]]
  %s62 = scalar_lea.smem %s0, 31
  %s63 = sld [smem:[%s62]]
  %s64 = scalar_lea.smem %s0, 32
  %s65 = sld [smem:[%s64]]
  %s66 = scalar_lea.smem %s0, 33
  %s67 = sld [smem:[%s66]]
  %s68 = scalar_lea.smem %s0, 34
  %s69 = sld [smem:[%s68]]
  %s70 = scalar_lea.smem %s0, 35
  %s71 = sld [smem:[%s70]]
  %s72 = scalar_lea.smem %s0, 36
  %s73 = sld [smem:[%s72]]
  %s74 = scalar_lea.smem %s0, 37
  %s75 = sld [smem:[%s74]]
  %s76 = scalar_lea.smem %s0, 38
  %s77 = sld [smem:[%s76]]
  %s78 = scalar_lea.smem %s0, 39
  %s79 = sld [smem:[%s78]]
  %s80 = scalar_lea.smem %s0, 40
  %s81 = sld [smem:[%s80]]
  %s82 = scalar_lea.smem %s0, 41
  %s83 = sld [smem:[%s82]]
  %s84 = scalar_lea.smem %s0, 42
  %s85 = sld [smem:[%s84]]
  %s86 = scalar_lea.smem %s0, 43
  %s87 = sld [smem:[%s86]]
  %s88 = scalar_lea.smem %s0, 44
  %s89 = sld [smem:[%s88]]
  %s90 = sld [smem:[#allocation0]]
  $region310: #{_lambda_.1} parent=0
    _
  %s92 = ssub.s32 1, %s90
  %s93 = scalar_select 0, %s92, %s90
  %v94 = vstv %s87
  %95 = vst [vmem:[#allocation2] sm:$0x1] %v94
  $region1: #{_lambda_.1} parent=0
    #allocation3 [shape = 'u8[1024]{0}', space=vmem, size = 0x400, scoped, tag = 'input window, operand 3, single buffered']
    #allocation4 [shape = 's32[1]{0}', space=sflag, size = 0x4, scoped, tag = 'scoped memory for _lambda_.1']
    #allocation5 [shape = 'u8[16384]{0}', space=vmem, size = 0x4000, scoped, tag = 'input window, operand 5, single buffered']
    #allocation6 [shape = 's32[1]{0}', space=sflag, size = 0x4, scoped, tag = 'scoped memory for _lambda_.1']
    #allocation7 [shape = 'u8[512]{0}', space=vmem, size = 0x400, scoped, tag = 'input window, operand 7, single buffered']
    #allocation8 [shape = 'u8[65536]{0}', space=vmem, size = 0x10000, scoped, tag = 'input window, operand 8, single buffered']
    #allocation9 [shape = 's32[1]{0}', space=sflag, size = 0x4, scoped, tag = 'scoped memory for _lambda_.1']
    #allocation10 [shape = 'u8[1024]{0}', space=vmem, size = 0x400, scoped, tag = 'input window, operand 9, single buffered']
    #allocation11 [shape = 'u8[16384]{0}', space=vmem, size = 0x4000, scoped, tag = 'input window, operand 10, single buffered']
    #allocation12 [shape = 's32[1]{0}', space=sflag, size = 0x4, scoped, tag = 'scoped memory for _lambda_.1']
    #allocation13 [shape = 'u8[16384]{0}', space=vmem, size = 0x4000, scoped, tag = 'input window, operand 11, single buffered']
    #allocation14 [shape = 'u8[512]{0}', space=vmem, size = 0x400, scoped, tag = 'input window, operand 12, single buffered']
    #allocation15 [shape = 's32[1]{0}', space=sflag, size = 0x4, scoped, tag = 'scoped memory for _lambda_.1']
    #allocation16 [shape = 'u8[512]{0}', space=vmem, size = 0x400, scoped, tag = 'input window, operand 13, single buffered']
    #allocation17 [shape = 'u8[512]{0}', space=vmem, size = 0x400, scoped, tag = 'input window, operand 15, single buffered']
    #allocation18 [shape = 's32[1]{0}', space=sflag, size = 0x4, scoped, tag = 'scoped memory for _lambda_.1']
    #allocation19 [shape = 'u8[8192]{0}', space=vmem, size = 0x2000, scoped, tag = 'input window, operand 17, single buffered']
    #allocation20 [shape = 'u8[512]{0}', space=vmem, size = 0x400, scoped, tag = 'input window, operand 18, single buffered']
    #allocation21 [shape = 's32[1]{0}', space=sflag, size = 0x4, scoped, tag = 'scoped memory for _lambda_.1']
    #allocation22 [shape = 'u8[512]{0}', space=vmem, size = 0x400, scoped, tag = 'input window, operand 19, single buffered']
    #allocation23 [shape = 'u8[16384]{0}', space=vmem, size = 0x4000, scoped, tag = 'input window, operand 20, single buffered']
    #allocation24 [shape = 's32[1]{0}', space=sflag, size = 0x4, scoped, tag = 'scoped memory for _lambda_.1']
    #allocation25 [shape = 'u8[512]{0}', space=vmem, size = 0x400, scoped, tag = 'input window, operand 21, single buffered']
    #allocation26 [shape = 'u8[8192]{0}', space=vmem, size = 0x2000, scoped, tag = 'input window, operand 22, single buffered']
    #allocation27 [shape = 's32[1]{0}', space=sflag, size = 0x4, scoped, tag = 'scoped memory for _lambda_.1']
    #allocation28 [shape = 'u8[8192]{0}', space=vmem, size = 0x2000, scoped, tag = 'input window, operand 23, single buffered']
    #allocation29 [shape = 'u8[512]{0}', space=vmem, size = 0x400, scoped, tag = 'input window, operand 24, single buffered']
    #allocation30 [shape = 's32[1]{0}', space=sflag, size = 0x4, scoped, tag = 'scoped memory for _lambda_.1']
    #allocation31 [shape = 'u8[512]{0}', space=vmem, size = 0x400, scoped, tag = 'input window, operand 25, single buffered']
    #allocation32 [shape = 'u8[512]{0}', space=vmem, size = 0x400, scoped, tag = 'input window, operand 26, single buffered']
    #allocation33 [shape = 's32[1]{0}', space=sflag, size = 0x4, scoped, tag = 'scoped memory for _lambda_.1']
    #allocation34 [shape = 'u8[512]{0}', space=vmem, size = 0x400, scoped, tag = 'input window, operand 27, single buffered']
    #allocation35 [shape = 'u8[65536]{0}', space=vmem, size = 0x10000, scoped, tag = 'input window, operand 28, single buffered']
    #allocation36 [shape = 's32[1]{0}', space=sflag, size = 0x4, scoped, tag = 'scoped memory for _lambda_.1']
    #allocation37 [shape = 'u8[1024]{0}', space=vmem, size = 0x400, scoped, tag = 'input window, operand 29, single buffered']
    #allocation38 [shape = 'u8[32768]{0}', space=vmem, size = 0x8000, scoped, tag = 'input window, operand 30, single buffered']
    #allocation39 [shape = 's32[1]{0}', space=sflag, size = 0x4, scoped, tag = 'scoped memory for _lambda_.1']
    #allocation40 [shape = 'u8[512]{0}', space=vmem, size = 0x400, scoped, tag = 'input window, operand 31, single buffered']
    #allocation41 [shape = 'u8[512]{0}', space=vmem, size = 0x400, scoped, tag = 'input window, operand 32, single buffered']
    #allocation42 [shape = 's32[1]{0}', space=sflag, size = 0x4, scoped, tag = 'scoped memory for _lambda_.1']
    #allocation43 [shape = 'u8[512]{0}', space=vmem, size = 0x400, scoped, tag = 'input window, operand 33, single buffered']
    #allocation44 [shape = 'u8[512]{0}', space=vmem, size = 0x400, scoped, tag = 'input window, operand 35, single buffered']
    #allocation45 [shape = 's32[1]{0}', space=sflag, size = 0x4, scoped, tag = 'scoped memory for _lambda_.1']
    #allocation46 [shape = 'u8[512]{0}', space=vmem, size = 0x400, scoped, tag = 'input window, operand 37, single buffered']
    #allocation47 [shape = 'u8[512]{0}', space=vmem, size = 0x400, scoped, tag = 'input window, operand 39, single buffered']
    #allocation48 [shape = 's32[1]{0}', space=sflag, size = 0x4, scoped, tag = 'scoped memory for _lambda_.1']
    #allocation49 [shape = 'u8[512]{0}', space=vmem, size = 0x400, scoped, tag = 'input window, operand 41, single buffered']
    %96 = vsyncpa [#allocation4], 0
    %97 = vsyncpa [#allocation6], 0
    %98 = vsyncpa [#allocation9], 0
    %99 = vsyncpa [#allocation12], 0
    %100 = vsyncpa [#allocation15], 0
    %101 = vsyncpa [#allocation18], 0
    %102 = vsyncpa [#allocation21], 0
    %103 = vsyncpa [#allocation24], 0
    %104 = vsyncpa [#allocation27], 0
    %105 = vsyncpa [#allocation30], 0
    %106 = vsyncpa [#allocation33], 0
    %107 = vsyncpa [#allocation36], 0
    %108 = vsyncpa [#allocation39], 0
    %109 = vsyncpa [#allocation42], 0
    %110 = vsyncpa [#allocation45], 0
    %111 = vsyncpa [#allocation48], 0
    // Predicated region
    $region2: #{_lambda_.1} parent=1 // pred_check
      _
    $region3: #{_lambda_.1} parent=1 // pred_check_branch
      %113 = sbr.rel (0) target = $region5
    $region4: #{_lambda_.1} parent=1 // pred_region
      _
    $region5: #{_lambda_.1} parent=1 // pred_fallthru
      _
    // Predicated region
    $region6: #{_lambda_.1} parent=1 // pred_check
      _
    $region7: #{_lambda_.1} parent=1 // pred_check_branch
      %115 = sbr.rel (0) target = $region9
    $region8: #{_lambda_.1} parent=1 // pred_region
      _
    $region9: #{_lambda_.1} parent=1 // pred_fallthru
      _
    // Predicated region
    $region10: #{_lambda_.1} parent=1 // pred_check
      _
    $region11: #{_lambda_.1} parent=1 // pred_check_branch
      %117 = sbr.rel (0) target = $region13
    $region12: #{_lambda_.1} parent=1 // pred_region
      _
    $region13: #{_lambda_.1} parent=1 // pred_fallthru
      _
    // Predicated region
    $region14: #{_lambda_.1} parent=1 // pred_check
      _
    $region15: #{_lambda_.1} parent=1 // pred_check_branch
      %119 = sbr.rel (0) target = $region17
    $region16: #{_lambda_.1} parent=1 // pred_region
      %121 = vsyncadd [#allocation4], 0
      %s123 = sshll.u32 %s7, 4
      %s124 = int_to_ptr.hbm [resolvable:$true] %s123
      %s125 = sshll.u32 [#allocation3], 4
      %s126 = int_to_ptr.vmem [resolvable:$true] %s125
      %128 = dma.hbm_to_vmem [thread:$0]  %s124, 32, %s126, [#allocation4]
    $region17: #{_lambda_.1} parent=1 // pred_fallthru
      _
    // Predicated region
    $region18: #{_lambda_.1} parent=1 // pred_check
      _
    $region19: #{_lambda_.1} parent=1 // pred_check_branch
      %130 = sbr.rel (0) target = $region21
    $region20: #{_lambda_.1} parent=1 // pred_region
      _
    $region21: #{_lambda_.1} parent=1 // pred_fallthru
      _
    // Predicated region
    $region22: #{_lambda_.1} parent=1 // pred_check
      _
    $region23: #{_lambda_.1} parent=1 // pred_check_branch
      %132 = sbr.rel (0) target = $region25
    $region24: #{_lambda_.1} parent=1 // pred_region
      %134 = vsyncadd [#allocation6], 0
      %s135 = sshll.u32 %s11, 4
      %s136 = int_to_ptr.hbm [resolvable:$true] %s135
      %s137 = sshll.u32 [#allocation5], 4
      %s138 = int_to_ptr.vmem [resolvable:$true] %s137
      %143 = dma.hbm_to_vmem [thread:$0]  %s136, 512, %s138, [#allocation6], 128, 128, 8
    $region25: #{_lambda_.1} parent=1 // pred_fallthru
      _
    // Predicated region
    $region26: #{_lambda_.1} parent=1 // pred_check
      _
    $region27: #{_lambda_.1} parent=1 // pred_check_branch
      %145 = sbr.rel (0) target = $region29
    $region28: #{_lambda_.1} parent=1 // pred_region
      _
    $region29: #{_lambda_.1} parent=1 // pred_fallthru
      _
    // Predicated region
    $region30: #{_lambda_.1} parent=1 // pred_check
      _
    $region31: #{_lambda_.1} parent=1 // pred_check_branch
      %147 = sbr.rel (0) target = $region33
    $region32: #{_lambda_.1} parent=1 // pred_region
      %149 = vsyncadd [#allocation6], 0
      %s151 = sshll.u32 %s15, 4
      %s152 = int_to_ptr.hbm [resolvable:$true] %s151
      %s153 = sshll.u32 [#allocation7], 4
      %s154 = int_to_ptr.vmem [resolvable:$true] %s153
      %156 = dma.hbm_to_vmem [thread:$0]  %s152, 16, %s154, [#allocation6]
    $region33: #{_lambda_.1} parent=1 // pred_fallthru
      _
    // Predicated region
    $region34: #{_lambda_.1} parent=1 // pred_check
      _
    $region35: #{_lambda_.1} parent=1 // pred_check_branch
      %158 = sbr.rel (0) target = $region37
    $region36: #{_lambda_.1} parent=1 // pred_region
      %160 = vsyncadd [#allocation9], 0
      %s161 = sshll.u32 %s17, 4
      %s162 = int_to_ptr.hbm [resolvable:$true] %s161
      %s163 = sshll.u32 [#allocation8], 4
      %s164 = int_to_ptr.vmem [resolvable:$true] %s163
      %169 = dma.hbm_to_vmem [thread:$0]  %s162, 2048, %s164, [#allocation9], 256, 256, 16
    $region37: #{_lambda_.1} parent=1 // pred_fallthru
      _
    // Predicated region
    $region38: #{_lambda_.1} parent=1 // pred_check
      _
    $region39: #{_lambda_.1} parent=1 // pred_check_branch
      %171 = sbr.rel (0) target = $region41
    $region40: #{_lambda_.1} parent=1 // pred_region
      %173 = vsyncadd [#allocation9], 0
      %s175 = sshll.u32 %s19, 4
      %s176 = int_to_ptr.hbm [resolvable:$true] %s175
      %s177 = sshll.u32 [#allocation10], 4
      %s178 = int_to_ptr.vmem [resolvable:$true] %s177
      %180 = dma.hbm_to_vmem [thread:$0]  %s176, 32, %s178, [#allocation9]
    $region41: #{_lambda_.1} parent=1 // pred_fallthru
      _
    // Predicated region
    $region42: #{_lambda_.1} parent=1 // pred_check
      _
    $region43: #{_lambda_.1} parent=1 // pred_check_branch
      %182 = sbr.rel (0) target = $region45
    $region44: #{_lambda_.1} parent=1 // pred_region
      %184 = vsyncadd [#allocation12], 0
      %s185 = sshll.u32 %s21, 4
      %s186 = int_to_ptr.hbm [resolvable:$true] %s185
      %s187 = sshll.u32 [#allocation11], 4
      %s188 = int_to_ptr.vmem [resolvable:$true] %s187
      %193 = dma.hbm_to_vmem [thread:$0]  %s186, 512, %s188, [#allocation12], 128, 128, 8
    $region45: #{_lambda_.1} parent=1 // pred_fallthru
      _
    // Predicated region
    $region46: #{_lambda_.1} parent=1 // pred_check
      _
    $region47: #{_lambda_.1} parent=1 // pred_check_branch
      %195 = sbr.rel (0) target = $region49
    $region48: #{_lambda_.1} parent=1 // pred_region
      %197 = vsyncadd [#allocation12], 0
      %s198 = sshll.u32 %s23, 4
      %s199 = int_to_ptr.hbm [resolvable:$true] %s198
      %s200 = sshll.u32 [#allocation13], 4
      %s201 = int_to_ptr.vmem [resolvable:$true] %s200
      %206 = dma.hbm_to_vmem [thread:$0]  %s199, 512, %s201, [#allocation12], 128, 128, 8
    $region49: #{_lambda_.1} parent=1 // pred_fallthru
      _
    // Predicated region
    $region50: #{_lambda_.1} parent=1 // pred_check
      _
    $region51: #{_lambda_.1} parent=1 // pred_check_branch
      %208 = sbr.rel (0) target = $region53
    $region52: #{_lambda_.1} parent=1 // pred_region
      %210 = vsyncadd [#allocation15], 0
      %s212 = sshll.u32 %s25, 4
      %s213 = int_to_ptr.hbm [resolvable:$true] %s212
      %s214 = sshll.u32 [#allocation14], 4
      %s215 = int_to_ptr.vmem [resolvable:$true] %s214
      %217 = dma.hbm_to_vmem [thread:$0]  %s213, 16, %s215, [#allocation15]
    $region53: #{_lambda_.1} parent=1 // pred_fallthru
      _
    // Predicated region
    $region54: #{_lambda_.1} parent=1 // pred_check
      _
    $region55: #{_lambda_.1} parent=1 // pred_check_branch
      %219 = sbr.rel (0) target = $region57
    $region56: #{_lambda_.1} parent=1 // pred_region
      %221 = vsyncadd [#allocation15], 0
      %s223 = sshll.u32 %s27, 4
      %s224 = int_to_ptr.hbm [resolvable:$true] %s223
      %s225 = sshll.u32 [#allocation16], 4
      %s226 = int_to_ptr.vmem [resolvable:$true] %s225
      %228 = dma.hbm_to_vmem [thread:$0]  %s224, 16, %s226, [#allocation15]
    $region57: #{_lambda_.1} parent=1 // pred_fallthru
      _
    // Predicated region
    $region58: #{_lambda_.1} parent=1 // pred_check
      _
    $region59: #{_lambda_.1} parent=1 // pred_check_branch
      %230 = sbr.rel (0) target = $region61
    $region60: #{_lambda_.1} parent=1 // pred_region
      _
    $region61: #{_lambda_.1} parent=1 // pred_fallthru
      _
    // Predicated region
    $region62: #{_lambda_.1} parent=1 // pred_check
      _
    $region63: #{_lambda_.1} parent=1 // pred_check_branch
      %232 = sbr.rel (0) target = $region65
    $region64: #{_lambda_.1} parent=1 // pred_region
      %234 = vsyncadd [#allocation18], 0
      %s236 = sshll.u32 %s31, 4
      %s237 = int_to_ptr.hbm [resolvable:$true] %s236
      %s238 = sshll.u32 [#allocation17], 4
      %s239 = int_to_ptr.vmem [resolvable:$true] %s238
      %241 = dma.hbm_to_vmem [thread:$0]  %s237, 16, %s239, [#allocation18]
    $region65: #{_lambda_.1} parent=1 // pred_fallthru
      _
    // Predicated region
    $region66: #{_lambda_.1} parent=1 // pred_check
      _
    $region67: #{_lambda_.1} parent=1 // pred_check_branch
      %243 = sbr.rel (0) target = $region69
    $region68: #{_lambda_.1} parent=1 // pred_region
      _
    $region69: #{_lambda_.1} parent=1 // pred_fallthru
      _
    // Predicated region
    $region70: #{_lambda_.1} parent=1 // pred_check
      _
    $region71: #{_lambda_.1} parent=1 // pred_check_branch
      %245 = sbr.rel (0) target = $region73
    $region72: #{_lambda_.1} parent=1 // pred_region
      %247 = vsyncadd [#allocation18], 0
      %s248 = sshll.u32 %s35, 4
      %s249 = int_to_ptr.hbm [resolvable:$true] %s248
      %s250 = sshll.u32 [#allocation19], 4
      %s251 = int_to_ptr.vmem [resolvable:$true] %s250
      %256 = dma.hbm_to_vmem [thread:$0]  %s249, 256, %s251, [#allocation18], 128, 128, 8
    $region73: #{_lambda_.1} parent=1 // pred_fallthru
      _
    // Predicated region
    $region74: #{_lambda_.1} parent=1 // pred_check
      _
    $region75: #{_lambda_.1} parent=1 // pred_check_branch
      %258 = sbr.rel (0) target = $region77
    $region76: #{_lambda_.1} parent=1 // pred_region
      %260 = vsyncadd [#allocation21], 0
      %s262 = sshll.u32 %s37, 4
      %s263 = int_to_ptr.hbm [resolvable:$true] %s262
      %s264 = sshll.u32 [#allocation20], 4
      %s265 = int_to_ptr.vmem [resolvable:$true] %s264
      %267 = dma.hbm_to_vmem [thread:$0]  %s263, 16, %s265, [#allocation21]
    $region77: #{_lambda_.1} parent=1 // pred_fallthru
      _
    // Predicated region
    $region78: #{_lambda_.1} parent=1 // pred_check
      _
    $region79: #{_lambda_.1} parent=1 // pred_check_branch
      %269 = sbr.rel (0) target = $region81
    $region80: #{_lambda_.1} parent=1 // pred_region
      %271 = vsyncadd [#allocation21], 0
      %s273 = sshll.u32 %s39, 4
      %s274 = int_to_ptr.hbm [resolvable:$true] %s273
      %s275 = sshll.u32 [#allocation22], 4
      %s276 = int_to_ptr.vmem [resolvable:$true] %s275
      %278 = dma.hbm_to_vmem [thread:$0]  %s274, 16, %s276, [#allocation21]
    $region81: #{_lambda_.1} parent=1 // pred_fallthru
      _
    // Predicated region
    $region82: #{_lambda_.1} parent=1 // pred_check
      _
    $region83: #{_lambda_.1} parent=1 // pred_check_branch
      %280 = sbr.rel (0) target = $region85
    $region84: #{_lambda_.1} parent=1 // pred_region
      %282 = vsyncadd [#allocation24], 0
      %s283 = sshll.u32 %s41, 4
      %s284 = int_to_ptr.hbm [resolvable:$true] %s283
      %s285 = sshll.u32 [#allocation23], 4
      %s286 = int_to_ptr.vmem [resolvable:$true] %s285
      %291 = dma.hbm_to_vmem [thread:$0]  %s284, 512, %s286, [#allocation24], 128, 128, 8
    $region85: #{_lambda_.1} parent=1 // pred_fallthru
      _
    // Predicated region
    $region86: #{_lambda_.1} parent=1 // pred_check
      _
    $region87: #{_lambda_.1} parent=1 // pred_check_branch
      %293 = sbr.rel (0) target = $region89
    $region88: #{_lambda_.1} parent=1 // pred_region
      %295 = vsyncadd [#allocation24], 0
      %s297 = sshll.u32 %s43, 4
      %s298 = int_to_ptr.hbm [resolvable:$true] %s297
      %s299 = sshll.u32 [#allocation25], 4
      %s300 = int_to_ptr.vmem [resolvable:$true] %s299
      %302 = dma.hbm_to_vmem [thread:$0]  %s298, 16, %s300, [#allocation24]
    $region89: #{_lambda_.1} parent=1 // pred_fallthru
      _
    // Predicated region
    $region90: #{_lambda_.1} parent=1 // pred_check
      _
    $region91: #{_lambda_.1} parent=1 // pred_check_branch
      %304 = sbr.rel (0) target = $region93
    $region92: #{_lambda_.1} parent=1 // pred_region
      %306 = vsyncadd [#allocation27], 0
      %s307 = sshll.u32 %s45, 4
      %s308 = int_to_ptr.hbm [resolvable:$true] %s307
      %s309 = sshll.u32 [#allocation26], 4
      %s310 = int_to_ptr.vmem [resolvable:$true] %s309
      %315 = dma.hbm_to_vmem [thread:$0]  %s308, 256, %s310, [#allocation27], 128, 128, 8
    $region93: #{_lambda_.1} parent=1 // pred_fallthru
      _
    // Predicated region
    $region94: #{_lambda_.1} parent=1 // pred_check
      _
    $region95: #{_lambda_.1} parent=1 // pred_check_branch
      %317 = sbr.rel (0) target = $region97
    $region96: #{_lambda_.1} parent=1 // pred_region
      %319 = vsyncadd [#allocation27], 0
      %s320 = sshll.u32 %s47, 4
      %s321 = int_to_ptr.hbm [resolvable:$true] %s320
      %s322 = sshll.u32 [#allocation28], 4
      %s323 = int_to_ptr.vmem [resolvable:$true] %s322
      %328 = dma.hbm_to_vmem [thread:$0]  %s321, 256, %s323, [#allocation27], 128, 128, 8
    $region97: #{_lambda_.1} parent=1 // pred_fallthru
      _
    // Predicated region
    $region98: #{_lambda_.1} parent=1 // pred_check
      _
    $region99: #{_lambda_.1} parent=1 // pred_check_branch
      %330 = sbr.rel (0) target = $region101
    $region100: #{_lambda_.1} parent=1 // pred_region
      %332 = vsyncadd [#allocation30], 0
      %s334 = sshll.u32 %s49, 4
      %s335 = int_to_ptr.hbm [resolvable:$true] %s334
      %s336 = sshll.u32 [#allocation29], 4
      %s337 = int_to_ptr.vmem [resolvable:$true] %s336
      %339 = dma.hbm_to_vmem [thread:$0]  %s335, 16, %s337, [#allocation30]
    $region101: #{_lambda_.1} parent=1 // pred_fallthru
      _
    // Predicated region
    $region102: #{_lambda_.1} parent=1 // pred_check
      _
    $region103: #{_lambda_.1} parent=1 // pred_check_branch
      %341 = sbr.rel (0) target = $region105
    $region104: #{_lambda_.1} parent=1 // pred_region
      %343 = vsyncadd [#allocation30], 0
      %s345 = sshll.u32 %s51, 4
      %s346 = int_to_ptr.hbm [resolvable:$true] %s345
      %s347 = sshll.u32 [#allocation31], 4
      %s348 = int_to_ptr.vmem [resolvable:$true] %s347
      %350 = dma.hbm_to_vmem [thread:$0]  %s346, 16, %s348, [#allocation30]
    $region105: #{_lambda_.1} parent=1 // pred_fallthru
      _
    // Predicated region
    $region106: #{_lambda_.1} parent=1 // pred_check
      _
    $region107: #{_lambda_.1} parent=1 // pred_check_branch
      %352 = sbr.rel (0) target = $region109
    $region108: #{_lambda_.1} parent=1 // pred_region
      %354 = vsyncadd [#allocation33], 0
      %s356 = sshll.u32 %s53, 4
      %s357 = int_to_ptr.hbm [resolvable:$true] %s356
      %s358 = sshll.u32 [#allocation32], 4
      %s359 = int_to_ptr.vmem [resolvable:$true] %s358
      %361 = dma.hbm_to_vmem [thread:$0]  %s357, 16, %s359, [#allocation33]
    $region109: #{_lambda_.1} parent=1 // pred_fallthru
      _
    // Predicated region
    $region110: #{_lambda_.1} parent=1 // pred_check
      _
    $region111: #{_lambda_.1} parent=1 // pred_check_branch
      %363 = sbr.rel (0) target = $region113
    $region112: #{_lambda_.1} parent=1 // pred_region
      %365 = vsyncadd [#allocation33], 0
      %s367 = sshll.u32 %s55, 4
      %s368 = int_to_ptr.hbm [resolvable:$true] %s367
      %s369 = sshll.u32 [#allocation34], 4
      %s370 = int_to_ptr.vmem [resolvable:$true] %s369
      %372 = dma.hbm_to_vmem [thread:$0]  %s368, 16, %s370, [#allocation33]
    $region113: #{_lambda_.1} parent=1 // pred_fallthru
      _
    // Predicated region
    $region114: #{_lambda_.1} parent=1 // pred_check
      _
    $region115: #{_lambda_.1} parent=1 // pred_check_branch
      %374 = sbr.rel (0) target = $region117
    $region116: #{_lambda_.1} parent=1 // pred_region
      %376 = vsyncadd [#allocation36], 0
      %s377 = sshll.u32 %s57, 4
      %s378 = int_to_ptr.hbm [resolvable:$true] %s377
      %s379 = sshll.u32 [#allocation35], 4
      %s380 = int_to_ptr.vmem [resolvable:$true] %s379
      %385 = dma.hbm_to_vmem [thread:$0]  %s378, 2048, %s380, [#allocation36], 256, 256, 16
    $region117: #{_lambda_.1} parent=1 // pred_fallthru
      _
    // Predicated region
    $region118: #{_lambda_.1} parent=1 // pred_check
      _
    $region119: #{_lambda_.1} parent=1 // pred_check_branch
      %387 = sbr.rel (0) target = $region121
    $region120: #{_lambda_.1} parent=1 // pred_region
      %389 = vsyncadd [#allocation36], 0
      %s391 = sshll.u32 %s59, 4
      %s392 = int_to_ptr.hbm [resolvable:$true] %s391
      %s393 = sshll.u32 [#allocation37], 4
      %s394 = int_to_ptr.vmem [resolvable:$true] %s393
      %396 = dma.hbm_to_vmem [thread:$0]  %s392, 32, %s394, [#allocation36]
    $region121: #{_lambda_.1} parent=1 // pred_fallthru
      _
    // Predicated region
    $region122: #{_lambda_.1} parent=1 // pred_check
      _
    $region123: #{_lambda_.1} parent=1 // pred_check_branch
      %398 = sbr.rel (0) target = $region125
    $region124: #{_lambda_.1} parent=1 // pred_region
      %400 = vsyncadd [#allocation39], 0
      %s401 = sshll.u32 %s61, 4
      %s402 = int_to_ptr.hbm [resolvable:$true] %s401
      %s403 = sshll.u32 [#allocation38], 4
      %s404 = int_to_ptr.vmem [resolvable:$true] %s403
      %409 = dma.hbm_to_vmem [thread:$0]  %s402, 1024, %s404, [#allocation39], 128, 128, 8
    $region125: #{_lambda_.1} parent=1 // pred_fallthru
      _
    // Predicated region
    $region126: #{_lambda_.1} parent=1 // pred_check
      _
    $region127: #{_lambda_.1} parent=1 // pred_check_branch
      %411 = sbr.rel (0) target = $region129
    $region128: #{_lambda_.1} parent=1 // pred_region
      %413 = vsyncadd [#allocation39], 0
      %s415 = sshll.u32 %s63, 4
      %s416 = int_to_ptr.hbm [resolvable:$true] %s415
      %s417 = sshll.u32 [#allocation40], 4
      %s418 = int_to_ptr.vmem [resolvable:$true] %s417
      %420 = dma.hbm_to_vmem [thread:$0]  %s416, 16, %s418, [#allocation39]
    $region129: #{_lambda_.1} parent=1 // pred_fallthru
      _
    // Predicated region
    $region130: #{_lambda_.1} parent=1 // pred_check
      _
    $region131: #{_lambda_.1} parent=1 // pred_check_branch
      %422 = sbr.rel (0) target = $region133
    $region132: #{_lambda_.1} parent=1 // pred_region
      %424 = vsyncadd [#allocation42], 0
      %s426 = sshll.u32 %s65, 4
      %s427 = int_to_ptr.hbm [resolvable:$true] %s426
      %s428 = sshll.u32 [#allocation41], 4
      %s429 = int_to_ptr.vmem [resolvable:$true] %s428
      %431 = dma.hbm_to_vmem [thread:$0]  %s427, 16, %s429, [#allocation42]
    $region133: #{_lambda_.1} parent=1 // pred_fallthru
      _
    // Predicated region
    $region134: #{_lambda_.1} parent=1 // pred_check
      _
    $region135: #{_lambda_.1} parent=1 // pred_check_branch
      %433 = sbr.rel (0) target = $region137
    $region136: #{_lambda_.1} parent=1 // pred_region
      %435 = vsyncadd [#allocation42], 0
      %s437 = sshll.u32 %s67, 4
      %s438 = int_to_ptr.hbm [resolvable:$true] %s437
      %s439 = sshll.u32 [#allocation43], 4
      %s440 = int_to_ptr.vmem [resolvable:$true] %s439
      %442 = dma.hbm_to_vmem [thread:$0]  %s438, 16, %s440, [#allocation42]
    $region137: #{_lambda_.1} parent=1 // pred_fallthru
      _
    // Predicated region
    $region138: #{_lambda_.1} parent=1 // pred_check
      _
    $region139: #{_lambda_.1} parent=1 // pred_check_branch
      %444 = sbr.rel (0) target = $region141
    $region140: #{_lambda_.1} parent=1 // pred_region
      _
    $region141: #{_lambda_.1} parent=1 // pred_fallthru
      _
    // Predicated region
    $region142: #{_lambda_.1} parent=1 // pred_check
      _
    $region143: #{_lambda_.1} parent=1 // pred_check_branch
      %446 = sbr.rel (0) target = $region145
    $region144: #{_lambda_.1} parent=1 // pred_region
      %448 = vsyncadd [#allocation45], 0
      %s450 = sshll.u32 %s71, 4
      %s451 = int_to_ptr.hbm [resolvable:$true] %s450
      %s452 = sshll.u32 [#allocation44], 4
      %s453 = int_to_ptr.vmem [resolvable:$true] %s452
      %455 = dma.hbm_to_vmem [thread:$0]  %s451, 16, %s453, [#allocation45]
    $region145: #{_lambda_.1} parent=1 // pred_fallthru
      _
    // Predicated region
    $region146: #{_lambda_.1} parent=1 // pred_check
      _
    $region147: #{_lambda_.1} parent=1 // pred_check_branch
      %457 = sbr.rel (0) target = $region149
    $region148: #{_lambda_.1} parent=1 // pred_region
      _
    $region149: #{_lambda_.1} parent=1 // pred_fallthru
      _
    // Predicated region
    $region150: #{_lambda_.1} parent=1 // pred_check
      _
    $region151: #{_lambda_.1} parent=1 // pred_check_branch
      %459 = sbr.rel (0) target = $region153
    $region152: #{_lambda_.1} parent=1 // pred_region
      %461 = vsyncadd [#allocation45], 0
      %s463 = sshll.u32 %s75, 4
      %s464 = int_to_ptr.hbm [resolvable:$true] %s463
      %s465 = sshll.u32 [#allocation46], 4
      %s466 = int_to_ptr.vmem [resolvable:$true] %s465
      %468 = dma.hbm_to_vmem [thread:$0]  %s464, 16, %s466, [#allocation45]
    $region153: #{_lambda_.1} parent=1 // pred_fallthru
      _
    // Predicated region
    $region154: #{_lambda_.1} parent=1 // pred_check
      _
    $region155: #{_lambda_.1} parent=1 // pred_check_branch
      %470 = sbr.rel (0) target = $region157
    $region156: #{_lambda_.1} parent=1 // pred_region
      _
    $region157: #{_lambda_.1} parent=1 // pred_fallthru
      _
    // Predicated region
    $region158: #{_lambda_.1} parent=1 // pred_check
      _
    $region159: #{_lambda_.1} parent=1 // pred_check_branch
      %472 = sbr.rel (0) target = $region161
    $region160: #{_lambda_.1} parent=1 // pred_region
      %474 = vsyncadd [#allocation48], 0
      %s476 = sshll.u32 %s79, 4
      %s477 = int_to_ptr.hbm [resolvable:$true] %s476
      %s478 = sshll.u32 [#allocation47], 4
      %s479 = int_to_ptr.vmem [resolvable:$true] %s478
      %481 = dma.hbm_to_vmem [thread:$0]  %s477, 16, %s479, [#allocation48]
    $region161: #{_lambda_.1} parent=1 // pred_fallthru
      _
    // Predicated region
    $region162: #{_lambda_.1} parent=1 // pred_check
      _
    $region163: #{_lambda_.1} parent=1 // pred_check_branch
      %483 = sbr.rel (0) target = $region165
    $region164: #{_lambda_.1} parent=1 // pred_region
      _
    $region165: #{_lambda_.1} parent=1 // pred_fallthru
      _
    // Predicated region
    $region166: #{_lambda_.1} parent=1 // pred_check
      _
    $region167: #{_lambda_.1} parent=1 // pred_check_branch
      %485 = sbr.rel (0) target = $region169
    $region168: #{_lambda_.1} parent=1 // pred_region
      %487 = vsyncadd [#allocation48], 0
      %s489 = sshll.u32 %s83, 4
      %s490 = int_to_ptr.hbm [resolvable:$true] %s489
      %s491 = sshll.u32 [#allocation49], 4
      %s492 = int_to_ptr.vmem [resolvable:$true] %s491
      %494 = dma.hbm_to_vmem [thread:$0]  %s490, 16, %s492, [#allocation48]
    $region169: #{_lambda_.1} parent=1 // pred_fallthru
      _
    // Predicated region
    $region170: #{_lambda_.1} parent=1 // pred_check
      _
    $region171: #{_lambda_.1} parent=1 // pred_check_branch
      %496 = sbr.rel (0) target = $region173
    $region172: #{_lambda_.1} parent=1 // pred_region
      _
    $region173: #{_lambda_.1} parent=1 // pred_fallthru
      _
    // Predicated region
    $region174: #{_lambda_.1} parent=1 // pred_check
      _
    $region175: #{_lambda_.1} parent=1 // pred_check_branch
      %498 = sbr.rel (0) target = $region177
    $region176: #{_lambda_.1} parent=1 // pred_region
      _
    $region177: #{_lambda_.1} parent=1 // pred_fallthru
      _
    // Predicated region
    $region178: #{_lambda_.1} parent=1 // pred_check
      _
    $region179: #{_lambda_.1} parent=1 // pred_check_branch
      %500 = sbr.rel (0) target = $region181
    $region180: #{_lambda_.1} parent=1 // pred_region
      %502 = dma.done [#allocation4], 32
    $region181: #{_lambda_.1} parent=1 // pred_fallthru
      _
    // Predicated region
    $region182: #{_lambda_.1} parent=1 // pred_check
      _
    $region183: #{_lambda_.1} parent=1 // pred_check_branch
      %504 = sbr.rel (0) target = $region185
    $region184: #{_lambda_.1} parent=1 // pred_region
      %506 = dma.done [#allocation6], 512
    $region185: #{_lambda_.1} parent=1 // pred_fallthru
      _
    // Predicated region
    $region186: #{_lambda_.1} parent=1 // pred_check
      _
    $region187: #{_lambda_.1} parent=1 // pred_check_branch
      %508 = sbr.rel (0) target = $region189
    $region188: #{_lambda_.1} parent=1 // pred_region
      %510 = dma.done [#allocation6], 16
    $region189: #{_lambda_.1} parent=1 // pred_fallthru
      _
    // Predicated region
    $region190: #{_lambda_.1} parent=1 // pred_check
      _
    $region191: #{_lambda_.1} parent=1 // pred_check_branch
      %512 = sbr.rel (0) target = $region193
    $region192: #{_lambda_.1} parent=1 // pred_region
      %514 = dma.done [#allocation9], 2048
    $region193: #{_lambda_.1} parent=1 // pred_fallthru
      _
    // Predicated region
    $region194: #{_lambda_.1} parent=1 // pred_check
      _
    $region195: #{_lambda_.1} parent=1 // pred_check_branch
      %516 = sbr.rel (0) target = $region197
    $region196: #{_lambda_.1} parent=1 // pred_region
      %518 = dma.done [#allocation9], 32
    $region197: #{_lambda_.1} parent=1 // pred_fallthru
      _
    // Predicated region
    $region198: #{_lambda_.1} parent=1 // pred_check
      _
    $region199: #{_lambda_.1} parent=1 // pred_check_branch
      %520 = sbr.rel (0) target = $region201
    $region200: #{_lambda_.1} parent=1 // pred_region
      %522 = dma.done [#allocation12], 512
    $region201: #{_lambda_.1} parent=1 // pred_fallthru
      _
    // Predicated region
    $region202: #{_lambda_.1} parent=1 // pred_check
      _
    $region203: #{_lambda_.1} parent=1 // pred_check_branch
      %524 = sbr.rel (0) target = $region205
    $region204: #{_lambda_.1} parent=1 // pred_region
      %526 = dma.done [#allocation12], 512
    $region205: #{_lambda_.1} parent=1 // pred_fallthru
      _
    // Predicated region
    $region206: #{_lambda_.1} parent=1 // pred_check
      _
    $region207: #{_lambda_.1} parent=1 // pred_check_branch
      %528 = sbr.rel (0) target = $region209
    $region208: #{_lambda_.1} parent=1 // pred_region
      %530 = dma.done [#allocation15], 16
    $region209: #{_lambda_.1} parent=1 // pred_fallthru
      _
    // Predicated region
    $region210: #{_lambda_.1} parent=1 // pred_check
      _
    $region211: #{_lambda_.1} parent=1 // pred_check_branch
      %532 = sbr.rel (0) target = $region213
    $region212: #{_lambda_.1} parent=1 // pred_region
      %534 = dma.done [#allocation15], 16
    $region213: #{_lambda_.1} parent=1 // pred_fallthru
      _
    // Predicated region
    $region214: #{_lambda_.1} parent=1 // pred_check
      _
    $region215: #{_lambda_.1} parent=1 // pred_check_branch
      %536 = sbr.rel (0) target = $region217
    $region216: #{_lambda_.1} parent=1 // pred_region
      %538 = dma.done [#allocation18], 16
    $region217: #{_lambda_.1} parent=1 // pred_fallthru
      _
    // Predicated region
    $region218: #{_lambda_.1} parent=1 // pred_check
      _
    $region219: #{_lambda_.1} parent=1 // pred_check_branch
      %540 = sbr.rel (0) target = $region221
    $region220: #{_lambda_.1} parent=1 // pred_region
      %542 = dma.done [#allocation18], 256
    $region221: #{_lambda_.1} parent=1 // pred_fallthru
      _
    // Predicated region
    $region222: #{_lambda_.1} parent=1 // pred_check
      _
    $region223: #{_lambda_.1} parent=1 // pred_check_branch
      %544 = sbr.rel (0) target = $region225
    $region224: #{_lambda_.1} parent=1 // pred_region
      %546 = dma.done [#allocation21], 16
    $region225: #{_lambda_.1} parent=1 // pred_fallthru
      _
    // Predicated region
    $region226: #{_lambda_.1} parent=1 // pred_check
      _
    $region227: #{_lambda_.1} parent=1 // pred_check_branch
      %548 = sbr.rel (0) target = $region229
    $region228: #{_lambda_.1} parent=1 // pred_region
      %550 = dma.done [#allocation21], 16
    $region229: #{_lambda_.1} parent=1 // pred_fallthru
      _
    // Predicated region
    $region230: #{_lambda_.1} parent=1 // pred_check
      _
    $region231: #{_lambda_.1} parent=1 // pred_check_branch
      %552 = sbr.rel (0) target = $region233
    $region232: #{_lambda_.1} parent=1 // pred_region
      %554 = dma.done [#allocation24], 512
    $region233: #{_lambda_.1} parent=1 // pred_fallthru
      _
    // Predicated region
    $region234: #{_lambda_.1} parent=1 // pred_check
      _
    $region235: #{_lambda_.1} parent=1 // pred_check_branch
      %556 = sbr.rel (0) target = $region237
    $region236: #{_lambda_.1} parent=1 // pred_region
      %558 = dma.done [#allocation24], 16
    $region237: #{_lambda_.1} parent=1 // pred_fallthru
      _
    // Predicated region
    $region238: #{_lambda_.1} parent=1 // pred_check
      _
    $region239: #{_lambda_.1} parent=1 // pred_check_branch
      %560 = sbr.rel (0) target = $region241
    $region240: #{_lambda_.1} parent=1 // pred_region
      %562 = dma.done [#allocation27], 256
    $region241: #{_lambda_.1} parent=1 // pred_fallthru
      _
    // Predicated region
    $region242: #{_lambda_.1} parent=1 // pred_check
      _
    $region243: #{_lambda_.1} parent=1 // pred_check_branch
      %564 = sbr.rel (0) target = $region245
    $region244: #{_lambda_.1} parent=1 // pred_region
      %566 = dma.done [#allocation27], 256
    $region245: #{_lambda_.1} parent=1 // pred_fallthru
      _
    // Predicated region
    $region246: #{_lambda_.1} parent=1 // pred_check
      _
    $region247: #{_lambda_.1} parent=1 // pred_check_branch
      %568 = sbr.rel (0) target = $region249
    $region248: #{_lambda_.1} parent=1 // pred_region
      %570 = dma.done [#allocation30], 16
    $region249: #{_lambda_.1} parent=1 // pred_fallthru
      _
    // Predicated region
    $region250: #{_lambda_.1} parent=1 // pred_check
      _
    $region251: #{_lambda_.1} parent=1 // pred_check_branch
      %572 = sbr.rel (0) target = $region253
    $region252: #{_lambda_.1} parent=1 // pred_region
      %574 = dma.done [#allocation30], 16
    $region253: #{_lambda_.1} parent=1 // pred_fallthru
      _
    // Predicated region
    $region254: #{_lambda_.1} parent=1 // pred_check
      _
    $region255: #{_lambda_.1} parent=1 // pred_check_branch
      %576 = sbr.rel (0) target = $region257
    $region256: #{_lambda_.1} parent=1 // pred_region
      %578 = dma.done [#allocation33], 16
    $region257: #{_lambda_.1} parent=1 // pred_fallthru
      _
    // Predicated region
    $region258: #{_lambda_.1} parent=1 // pred_check
      _
    $region259: #{_lambda_.1} parent=1 // pred_check_branch
      %580 = sbr.rel (0) target = $region261
    $region260: #{_lambda_.1} parent=1 // pred_region
      %582 = dma.done [#allocation33], 16
    $region261: #{_lambda_.1} parent=1 // pred_fallthru
      _
    // Predicated region
    $region262: #{_lambda_.1} parent=1 // pred_check
      _
    $region263: #{_lambda_.1} parent=1 // pred_check_branch
      %584 = sbr.rel (0) target = $region265
    $region264: #{_lambda_.1} parent=1 // pred_region
      %586 = dma.done [#allocation36], 2048
    $region265: #{_lambda_.1} parent=1 // pred_fallthru
      _
    // Predicated region
    $region266: #{_lambda_.1} parent=1 // pred_check
      _
    $region267: #{_lambda_.1} parent=1 // pred_check_branch
      %588 = sbr.rel (0) target = $region269
    $region268: #{_lambda_.1} parent=1 // pred_region
      %590 = dma.done [#allocation36], 32
    $region269: #{_lambda_.1} parent=1 // pred_fallthru
      _
    // Predicated region
    $region270: #{_lambda_.1} parent=1 // pred_check
      _
    $region271: #{_lambda_.1} parent=1 // pred_check_branch
      %592 = sbr.rel (0) target = $region273
    $region272: #{_lambda_.1} parent=1 // pred_region
      %594 = dma.done [#allocation39], 1024
    $region273: #{_lambda_.1} parent=1 // pred_fallthru
      _
    // Predicated region
    $region274: #{_lambda_.1} parent=1 // pred_check
      _
    $region275: #{_lambda_.1} parent=1 // pred_check_branch
      %596 = sbr.rel (0) target = $region277
    $region276: #{_lambda_.1} parent=1 // pred_region
      %598 = dma.done [#allocation39], 16
    $region277: #{_lambda_.1} parent=1 // pred_fallthru
      _
    // Predicated region
    $region278: #{_lambda_.1} parent=1 // pred_check
      _
    $region279: #{_lambda_.1} parent=1 // pred_check_branch
      %600 = sbr.rel (0) target = $region281
    $region280: #{_lambda_.1} parent=1 // pred_region
      %602 = dma.done [#allocation42], 16
    $region281: #{_lambda_.1} parent=1 // pred_fallthru
      _
    // Predicated region
    $region282: #{_lambda_.1} parent=1 // pred_check
      _
    $region283: #{_lambda_.1} parent=1 // pred_check_branch
      %604 = sbr.rel (0) target = $region285
    $region284: #{_lambda_.1} parent=1 // pred_region
      %606 = dma.done [#allocation42], 16
    $region285: #{_lambda_.1} parent=1 // pred_fallthru
      _
    // Predicated region
    $region286: #{_lambda_.1} parent=1 // pred_check
      _
    $region287: #{_lambda_.1} parent=1 // pred_check_branch
      %608 = sbr.rel (0) target = $region289
    $region288: #{_lambda_.1} parent=1 // pred_region
      %610 = dma.done [#allocation45], 16
    $region289: #{_lambda_.1} parent=1 // pred_fallthru
      _
    // Predicated region
    $region290: #{_lambda_.1} parent=1 // pred_check
      _
    $region291: #{_lambda_.1} parent=1 // pred_check_branch
      %612 = sbr.rel (0) target = $region293
    $region292: #{_lambda_.1} parent=1 // pred_region
      %614 = dma.done [#allocation45], 16
    $region293: #{_lambda_.1} parent=1 // pred_fallthru
      _
    // Predicated region
    $region294: #{_lambda_.1} parent=1 // pred_check
      _
    $region295: #{_lambda_.1} parent=1 // pred_check_branch
      %616 = sbr.rel (0) target = $region297
    $region296: #{_lambda_.1} parent=1 // pred_region
      %618 = dma.done [#allocation48], 16
    $region297: #{_lambda_.1} parent=1 // pred_fallthru
      _
    // Predicated region
    $region298: #{_lambda_.1} parent=1 // pred_check
      _
    $region299: #{_lambda_.1} parent=1 // pred_check_branch
      %620 = sbr.rel (0) target = $region301
    $region300: #{_lambda_.1} parent=1 // pred_region
      %622 = dma.done [#allocation48], 16
    $region301: #{_lambda_.1} parent=1 // pred_fallthru
      _
    %v623 = vld [vmem:[%s1] sm:$0xff]
    %v624 = vld [vmem:[%s1 + $0x8] sm:$0xff]
    %v625 = vld [vmem:[%s5] sm:$0xff]
    %v626 = vld [vmem:[%s5 + $0x8] sm:$0xff]
    %v627 = vld [vmem:[%s5 + $0x10] sm:$0xff]
    %v628 = vld [vmem:[%s5 + $0x18] sm:$0xff]
    %v629 = vld [vmem:[#allocation3] sm:$0x3]
    %v631 = vperm.slane %v629, 0
    %v632 = vperm.slane %v629, 1
    %vm635 = vcmask 130048
    %v637 = vsel %vm635, %v623, 0
    %v640 = vsel %vm635, %v624, 0
    %642 = vmatpush.msra.mxu0 0.0
    %643 = vmatpush.msra.mxu0 0.0
    %644 = vmatpush.msra.mxu0 0.0
    %645 = vmatpush.msra.mxu0 0.0
    %646 = vmatpush.msra.mxu0 0.0
    %647 = vmatpush.msra.mxu0 0.0
    %648 = vmatpush.msra.mxu0 0.0
    %649 = vmatpush.msra.mxu0 0.0
    %650 = vmatpush.msra.mxu0 0.0
    %651 = vmatpush.msra.mxu0 0.0
    %652 = vmatpush.msra.mxu0 0.0
    %653 = vmatpush.msra.mxu0 0.0
    %654 = vmatpush.msra.mxu0 0.0
    %655 = vmatpush.msra.mxu0 0.0
    %656 = vmatpush.msra.mxu0 %v627
    %657 = vmatpush.msra.mxu0 %v625
    %658 = vmatmul.f32.gmra.mxu0 %v637
    %v659 = vpop.f32.mrf.mxu0
    %v660 = vadd.f32 %v631, %v659
    %661 = vmatmul.f32.gmra.mxu0 %v640
    %v662 = vpop.f32.mrf.mxu0
    %v663 = vadd.f32 %v631, %v662
    %664 = vdwg.mxu0
    %665 = vmatpush.msra.mxu0 0.0
    %666 = vmatpush.msra.mxu0 0.0
    %667 = vmatpush.msra.mxu0 0.0
    %668 = vmatpush.msra.mxu0 0.0
    %669 = vmatpush.msra.mxu0 0.0
    %670 = vmatpush.msra.mxu0 0.0
    %671 = vmatpush.msra.mxu0 0.0
    %672 = vmatpush.msra.mxu0 0.0
    %673 = vmatpush.msra.mxu0 0.0
    %674 = vmatpush.msra.mxu0 0.0
    %675 = vmatpush.msra.mxu0 0.0
    %676 = vmatpush.msra.mxu0 0.0
    %677 = vmatpush.msra.mxu0 0.0
    %678 = vmatpush.msra.mxu0 0.0
    %679 = vmatpush.msra.mxu0 %v628
    %680 = vmatpush.msra.mxu0 %v626
    %681 = vmatmul.f32.gmra.mxu0 %v637
    %v682 = vpop.f32.mrf.mxu0
    %v683 = vadd.f32 %v632, %v682
    %684 = vmatmul.f32.gmra.mxu0 %v640
    %v685 = vpop.f32.mrf.mxu0
    %v686 = vadd.f32 %v632, %v685
    %687 = vdwg.mxu0
    %v688 = vld [vmem:[%s9] sm:$0xff]
    %v689 = vld [vmem:[%s9 + $0x8] sm:$0xff]
    %v690 = vld [vmem:[%s9 + $0x10] sm:$0xff]
    %v691 = vld [vmem:[%s9 + $0x18] sm:$0xff]
    %v692 = vld [vmem:[#allocation5] sm:$0xff]
    %v693 = vld [vmem:[#allocation5 + $0x8] sm:$0xff]
    %v694 = vld [vmem:[#allocation5 + $0x10] sm:$0xff]
    %v695 = vld [vmem:[#allocation5 + $0x18] sm:$0xff]
    %v696 = vld [vmem:[%s13] sm:$0x1]
    %v697 = vld [vmem:[#allocation7] sm:$0x1]
    %v699 = vperm.slane %v696, 0
    %vm701 = vcmask 261120
    %v703 = vsel %vm701, 0.0, 0
    %705 = vmatpush.msra.mxu0 0.0
    %706 = vmatpush.msra.mxu0 0.0
    %707 = vmatpush.msra.mxu0 0.0
    %708 = vmatpush.msra.mxu0 0.0
    %709 = vmatpush.msra.mxu0 0.0
    %710 = vmatpush.msra.mxu0 0.0
    %711 = vmatpush.msra.mxu0 0.0
    %712 = vmatpush.msra.mxu0 0.0
    %713 = vmatpush.msra.mxu0 0.0
    %714 = vmatpush.msra.mxu0 0.0
    %715 = vmatpush.msra.mxu0 0.0
    %716 = vmatpush.msra.mxu0 0.0
    %717 = vmatpush.msra.mxu0 %v691
    %718 = vmatpush.msra.mxu0 %v690
    %719 = vmatpush.msra.mxu0 %v689
    %720 = vmatpush.msra.mxu0 %v688
    %721 = vmatmul.f32.gmra.mxu0 %v703
    %v722 = vpop.f32.mrf.mxu0
    %v723 = vadd.f32 %v699, %v722
    %724 = vdwg.mxu0
    %v725 = vadd.f32 %v660, %v723
    %v726 = vxor.u32 %v725, 2147483648
    %v727 = vmul.f32 %v726, 1.442695
    %v728 = vpow.pop %v727
    %v729 = vadd.f32 %v728, 1.0
    %v730 = vrcp.pop %v729
    %v731 = vmul.f32 %v729, %v730
    %v732 = vsub.f32 1.0, %v731
    %v733 = vmul.f32 %v730, %v732
    %v734 = vadd.f32 %v730, %v733
    %vm735 = vweird.f32 %v729
    %vm736 = vweird.f32 %v730
    %vm737 = vmor %vm735, %vm736
    %v738 = vsel %vm737, %v730, %v734
    %v739 = vand.u32 2147483647, %v729
    %vm740 = vcmp.eq.f32.partialorder %v739, 8.507059e+37
    %v741 = vand.u32 %v729, 2147483648
    %v742 = vor.u32 1.1754944e-38, %v741
    %v743 = vsel %vm740, %v742, %v738
    %v744 = vmul.f32 1.0, %v743
    %746 = vrot.lane.b32.xlu0 %v723, 64
    %v747 = vpop.permute.xlu0 %746
    %v749 = vmul.f32 %v744, %v747
    %751 = vrot.lane.b32.xlu0 %v749, 64
    %v752 = vpop.permute.xlu0 %751
    %v754 = vadd.f32 %v660, %v752
    %v755 = vtanh.pop %v754
    %v756 = vsub.f32 1.0, %v744
    %758 = vrot.lane.b32.xlu0 %v755, 96
    %v759 = vpop.permute.xlu0 %758
    %v761 = vmul.f32 %v756, %v759
    %v762 = vmul.f32 %v744, 0.0
    %v763 = vadd.f32 %v761, %v762
    %v765 = vperm.slane %v697, 0
    %767 = vmatpush.msra.mxu0 0.0
    %768 = vmatpush.msra.mxu0 0.0
    %769 = vmatpush.msra.mxu0 0.0
    %770 = vmatpush.msra.mxu0 0.0
    %771 = vmatpush.msra.mxu0 0.0
    %772 = vmatpush.msra.mxu0 0.0
    %773 = vmatpush.msra.mxu0 0.0
    %774 = vmatpush.msra.mxu0 0.0
    %775 = vmatpush.msra.mxu0 0.0
    %776 = vmatpush.msra.mxu0 0.0
    %777 = vmatpush.msra.mxu0 0.0
    %778 = vmatpush.msra.mxu0 0.0
    %779 = vmatpush.msra.mxu0 %v695
    %780 = vmatpush.msra.mxu0 %v694
    %781 = vmatpush.msra.mxu0 %v693
    %782 = vmatpush.msra.mxu0 %v692
    %783 = vmatmul.f32.gmra.mxu0 %v703
    %v784 = vpop.f32.mrf.mxu0
    %v785 = vadd.f32 %v765, %v784
    %786 = vdwg.mxu0
    %v788 = vrot.slane %v785, 2
    %789 = vrot.lane.b32.xlu0 %v788, 96
    %v790 = vpop.permute.xlu0 %789
    %v792 = vadd.f32 %v663, %v790
    %v793 = vxor.u32 %v792, 2147483648
    %v794 = vmul.f32 %v793, 1.442695
    %v795 = vpow.pop %v794
    %v796 = vadd.f32 %v795, 1.0
    %v797 = vrcp.pop %v796
    %v798 = vmul.f32 %v796, %v797
    %v799 = vsub.f32 1.0, %v798
    %v800 = vmul.f32 %v797, %v799
    %v801 = vadd.f32 %v797, %v800
    %vm802 = vweird.f32 %v796
    %vm803 = vweird.f32 %v797
    %vm804 = vmor %vm802, %vm803
    %v805 = vsel %vm804, %v797, %v801
    %v806 = vand.u32 2147483647, %v796
    %vm807 = vcmp.eq.f32.partialorder %v806, 8.507059e+37
    %v808 = vand.u32 %v796, 2147483648
    %v809 = vor.u32 1.1754944e-38, %v808
    %v810 = vsel %vm807, %v809, %v805
    %v811 = vmul.f32 1.0, %v810
    %v812 = vadd.f32 %v686, %v790
    %v813 = vxor.u32 %v812, 2147483648
    %v814 = vmul.f32 %v813, 1.442695
    %v815 = vpow.pop %v814
    %v816 = vadd.f32 %v815, 1.0
    %v817 = vrcp.pop %v816
    %v818 = vmul.f32 %v816, %v817
    %v819 = vsub.f32 1.0, %v818
    %v820 = vmul.f32 %v817, %v819
    %v821 = vadd.f32 %v817, %v820
    %vm822 = vweird.f32 %v816
    %vm823 = vweird.f32 %v817
    %vm824 = vmor %vm822, %vm823
    %v825 = vsel %vm824, %v817, %v821
    %v826 = vand.u32 2147483647, %v816
    %vm827 = vcmp.eq.f32.partialorder %v826, 8.507059e+37
    %v828 = vand.u32 %v816, 2147483648
    %v829 = vor.u32 1.1754944e-38, %v828
    %v830 = vsel %vm827, %v829, %v825
    %v831 = vmul.f32 1.0, %v830
    %832 = vrot.lane.b32.xlu0 %v788, 32
    %v833 = vpop.permute.xlu0 %832
    %v835 = vmul.f32 %v811, %v833
    %837 = vrot.lane.b32.xlu0 %v835, 64
    %v838 = vpop.permute.xlu0 %837
    %v840 = vadd.f32 %v686, %v838
    %v841 = vtanh.pop %v840
    %v842 = vsub.f32 1.0, %v831
    %844 = vrot.lane.b32.xlu0 %v841, 96
    %v845 = vpop.permute.xlu0 %844
    %v847 = vmul.f32 %v842, %v845
    %v848 = vmul.f32 %v831, 0.0
    %v849 = vadd.f32 %v847, %v848
    %851 = vrot.lane.b32.xlu0 %v763, 96
    %v852 = vpop.permute.xlu0 %851
    %v853 = vsel %vm701, %v852, 0
    %855 = vmatpush.msra.mxu0 0.0
    %856 = vmatpush.msra.mxu0 0.0
    %857 = vmatpush.msra.mxu0 0.0
    %858 = vmatpush.msra.mxu0 0.0
    %859 = vmatpush.msra.mxu0 0.0
    %860 = vmatpush.msra.mxu0 0.0
    %861 = vmatpush.msra.mxu0 0.0
    %862 = vmatpush.msra.mxu0 0.0
    %863 = vmatpush.msra.mxu0 0.0
    %864 = vmatpush.msra.mxu0 0.0
    %865 = vmatpush.msra.mxu0 0.0
    %866 = vmatpush.msra.mxu0 0.0
    %867 = vmatpush.msra.mxu0 %v691
    %868 = vmatpush.msra.mxu0 %v690
    %869 = vmatpush.msra.mxu0 %v689
    %870 = vmatpush.msra.mxu0 %v688
    %871 = vmatmul.f32.gmra.mxu0 %v853
    %v872 = vpop.f32.mrf.mxu0
    %v873 = vadd.f32 %v699, %v872
    %874 = vdwg.mxu0
    %v876 = vrot.slane %v873, 6
    %v878 = vadd.f32 %v660, %v876
    %v879 = vxor.u32 %v878, 2147483648
    %v880 = vmul.f32 %v879, 1.442695
    %v881 = vpow.pop %v880
    %v882 = vadd.f32 %v881, 1.0
    %v883 = vrcp.pop %v882
    %v884 = vmul.f32 %v882, %v883
    %v885 = vsub.f32 1.0, %v884
    %v886 = vmul.f32 %v883, %v885
    %v887 = vadd.f32 %v883, %v886
    %vm888 = vweird.f32 %v882
    %vm889 = vweird.f32 %v883
    %vm890 = vmor %vm888, %vm889
    %v891 = vsel %vm890, %v883, %v887
    %v892 = vand.u32 2147483647, %v882
    %vm893 = vcmp.eq.f32.partialorder %v892, 8.507059e+37
    %v894 = vand.u32 %v882, 2147483648
    %v895 = vor.u32 1.1754944e-38, %v894
    %v896 = vsel %vm893, %v895, %v891
    %v897 = vmul.f32 1.0, %v896
    %898 = vrot.lane.b32.xlu0 %v876, 64
    %v899 = vpop.permute.xlu0 %898
    %v901 = vmul.f32 %v897, %v899
    %903 = vrot.lane.b32.xlu0 %v901, 64
    %v904 = vpop.permute.xlu0 %903
    %v906 = vadd.f32 %v660, %v904
    %v907 = vtanh.pop %v906
    %v908 = vsub.f32 1.0, %v897
    %910 = vrot.lane.b32.xlu0 %v907, 96
    %v911 = vpop.permute.xlu0 %910
    %v913 = vmul.f32 %v908, %v911
    %v914 = vrot.slane %v763, 6
    %v916 = vmul.f32 %v897, %v914
    %v917 = vadd.f32 %v913, %v916
    %v919 = vrot.slane %v849, 6
    %v920 = vsel %vm701, %v919, 0
    %922 = vmatpush.msra.mxu0 0.0
    %923 = vmatpush.msra.mxu0 0.0
    %924 = vmatpush.msra.mxu0 0.0
    %925 = vmatpush.msra.mxu0 0.0
    %926 = vmatpush.msra.mxu0 0.0
    %927 = vmatpush.msra.mxu0 0.0
    %928 = vmatpush.msra.mxu0 0.0
    %929 = vmatpush.msra.mxu0 0.0
    %930 = vmatpush.msra.mxu0 0.0
    %931 = vmatpush.msra.mxu0 0.0
    %932 = vmatpush.msra.mxu0 0.0
    %933 = vmatpush.msra.mxu0 0.0
    %934 = vmatpush.msra.mxu0 %v695
    %935 = vmatpush.msra.mxu0 %v694
    %936 = vmatpush.msra.mxu0 %v693
    %937 = vmatpush.msra.mxu0 %v692
    %938 = vmatmul.f32.gmra.mxu0 %v920
    %v939 = vpop.f32.mrf.mxu0
    %v940 = vadd.f32 %v765, %v939
    %941 = vdwg.mxu0
    %v943 = vrot.slane %v940, 4
    %944 = vrot.lane.b32.xlu0 %v943, 96
    %v945 = vpop.permute.xlu0 %944
    %v947 = vadd.f32 %v663, %v945
    %v948 = vxor.u32 %v947, 2147483648
    %v949 = vmul.f32 %v948, 1.442695
    %v950 = vpow.pop %v949
    %v951 = vadd.f32 %v950, 1.0
    %v952 = vrcp.pop %v951
    %v953 = vmul.f32 %v951, %v952
    %v954 = vsub.f32 1.0, %v953
    %v955 = vmul.f32 %v952, %v954
    %v956 = vadd.f32 %v952, %v955
    %vm957 = vweird.f32 %v951
    %vm958 = vweird.f32 %v952
    %vm959 = vmor %vm957, %vm958
    %v960 = vsel %vm959, %v952, %v956
    %v961 = vand.u32 2147483647, %v951
    %vm962 = vcmp.eq.f32.partialorder %v961, 8.507059e+37
    %v963 = vand.u32 %v951, 2147483648
    %v964 = vor.u32 1.1754944e-38, %v963
    %v965 = vsel %vm962, %v964, %v960
    %v966 = vmul.f32 1.0, %v965
    %v967 = vadd.f32 %v686, %v945
    %v968 = vxor.u32 %v967, 2147483648
    %v969 = vmul.f32 %v968, 1.442695
    %v970 = vpow.pop %v969
    %v971 = vadd.f32 %v970, 1.0
    %v972 = vrcp.pop %v971
    %v973 = vmul.f32 %v971, %v972
    %v974 = vsub.f32 1.0, %v973
    %v975 = vmul.f32 %v972, %v974
    %v976 = vadd.f32 %v972, %v975
    %vm977 = vweird.f32 %v971
    %vm978 = vweird.f32 %v972
    %vm979 = vmor %vm977, %vm978
    %v980 = vsel %vm979, %v972, %v976
    %v981 = vand.u32 2147483647, %v971
    %vm982 = vcmp.eq.f32.partialorder %v981, 8.507059e+37
    %v983 = vand.u32 %v971, 2147483648
    %v984 = vor.u32 1.1754944e-38, %v983
    %v985 = vsel %vm982, %v984, %v980
    %v986 = vmul.f32 1.0, %v985
    %987 = vrot.lane.b32.xlu0 %v943, 32
    %v988 = vpop.permute.xlu0 %987
    %v990 = vmul.f32 %v966, %v988
    %992 = vrot.lane.b32.xlu0 %v990, 64
    %v993 = vpop.permute.xlu0 %992
    %v995 = vadd.f32 %v686, %v993
    %v996 = vtanh.pop %v995
    %v997 = vsub.f32 1.0, %v986
    %999 = vrot.lane.b32.xlu0 %v996, 96
    %v1000 = vpop.permute.xlu0 %999
    %v1002 = vmul.f32 %v997, %v1000
    %v1003 = vrot.slane %v849, 2
    %v1005 = vmul.f32 %v986, %v1003
    %v1006 = vadd.f32 %v1002, %v1005
    %v1008 = vrot.slane %v917, 2
    %1009 = vrot.lane.b32.xlu0 %v1008, 96
    %v1010 = vpop.permute.xlu0 %1009
    %v1011 = vsel %vm701, %v1010, 0
    %1013 = vmatpush.msra.mxu0 0.0
    %1014 = vmatpush.msra.mxu0 0.0
    %1015 = vmatpush.msra.mxu0 0.0
    %1016 = vmatpush.msra.mxu0 0.0
    %1017 = vmatpush.msra.mxu0 0.0
    %1018 = vmatpush.msra.mxu0 0.0
    %1019 = vmatpush.msra.mxu0 0.0
    %1020 = vmatpush.msra.mxu0 0.0
    %1021 = vmatpush.msra.mxu0 0.0
    %1022 = vmatpush.msra.mxu0 0.0
    %1023 = vmatpush.msra.mxu0 0.0
    %1024 = vmatpush.msra.mxu0 0.0
    %1025 = vmatpush.msra.mxu0 %v691
    %1026 = vmatpush.msra.mxu0 %v690
    %1027 = vmatpush.msra.mxu0 %v689
    %1028 = vmatpush.msra.mxu0 %v688
    %1029 = vmatmul.f32.gmra.mxu0 %v1011
    %v1030 = vpop.f32.mrf.mxu0
    %v1031 = vadd.f32 %v699, %v1030
    %1032 = vdwg.mxu0
    %v1034 = vrot.slane %v1031, 4
    %v1036 = vadd.f32 %v660, %v1034
    %v1037 = vxor.u32 %v1036, 2147483648
    %v1038 = vmul.f32 %v1037, 1.442695
    %v1039 = vpow.pop %v1038
    %v1040 = vadd.f32 %v1039, 1.0
    %v1041 = vrcp.pop %v1040
    %v1042 = vmul.f32 %v1040, %v1041
    %v1043 = vsub.f32 1.0, %v1042
    %v1044 = vmul.f32 %v1041, %v1043
    %v1045 = vadd.f32 %v1041, %v1044
    %vm1046 = vweird.f32 %v1040
    %vm1047 = vweird.f32 %v1041
    %vm1048 = vmor %vm1046, %vm1047
    %v1049 = vsel %vm1048, %v1041, %v1045
    %v1050 = vand.u32 2147483647, %v1040
    %vm1051 = vcmp.eq.f32.partialorder %v1050, 8.507059e+37
    %v1052 = vand.u32 %v1040, 2147483648
    %v1053 = vor.u32 1.1754944e-38, %v1052
    %v1054 = vsel %vm1051, %v1053, %v1049
    %v1055 = vmul.f32 1.0, %v1054
    %1056 = vrot.lane.b32.xlu0 %v1034, 64
    %v1057 = vpop.permute.xlu0 %1056
    %v1059 = vmul.f32 %v1055, %v1057
    %1061 = vrot.lane.b32.xlu0 %v1059, 64
    %v1062 = vpop.permute.xlu0 %1061
    %v1064 = vadd.f32 %v660, %v1062
    %v1065 = vtanh.pop %v1064
    %v1066 = vsub.f32 1.0, %v1055
    %1068 = vrot.lane.b32.xlu0 %v1065, 96
    %v1069 = vpop.permute.xlu0 %1068
    %v1071 = vmul.f32 %v1066, %v1069
    %v1072 = vrot.slane %v917, 6
    %v1074 = vmul.f32 %v1055, %v1072
    %v1075 = vadd.f32 %v1071, %v1074
    %v1077 = vrot.slane %v1006, 4
    %v1078 = vsel %vm701, %v1077, 0
    %1080 = vmatpush.msra.mxu0 0.0
    %1081 = vmatpush.msra.mxu0 0.0
    %1082 = vmatpush.msra.mxu0 0.0
    %1083 = vmatpush.msra.mxu0 0.0
    %1084 = vmatpush.msra.mxu0 0.0
    %1085 = vmatpush.msra.mxu0 0.0
    %1086 = vmatpush.msra.mxu0 0.0
    %1087 = vmatpush.msra.mxu0 0.0
    %1088 = vmatpush.msra.mxu0 0.0
    %1089 = vmatpush.msra.mxu0 0.0
    %1090 = vmatpush.msra.mxu0 0.0
    %1091 = vmatpush.msra.mxu0 0.0
    %1092 = vmatpush.msra.mxu0 %v695
    %1093 = vmatpush.msra.mxu0 %v694
    %1094 = vmatpush.msra.mxu0 %v693
    %1095 = vmatpush.msra.mxu0 %v692
    %1096 = vmatmul.f32.gmra.mxu0 %v1078
    %v1097 = vpop.f32.mrf.mxu0
    %v1098 = vadd.f32 %v765, %v1097
    %1099 = vdwg.mxu0
    %v1101 = vrot.slane %v1098, 6
    %1102 = vrot.lane.b32.xlu0 %v1101, 96
    %v1103 = vpop.permute.xlu0 %1102
    %v1105 = vadd.f32 %v663, %v1103
    %v1106 = vxor.u32 %v1105, 2147483648
    %v1107 = vmul.f32 %v1106, 1.442695
    %v1108 = vpow.pop %v1107
    %v1109 = vadd.f32 %v1108, 1.0
    %v1110 = vrcp.pop %v1109
    %v1111 = vmul.f32 %v1109, %v1110
    %v1112 = vsub.f32 1.0, %v1111
    %v1113 = vmul.f32 %v1110, %v1112
    %v1114 = vadd.f32 %v1110, %v1113
    %vm1115 = vweird.f32 %v1109
    %vm1116 = vweird.f32 %v1110
    %vm1117 = vmor %vm1115, %vm1116
    %v1118 = vsel %vm1117, %v1110, %v1114
    %v1119 = vand.u32 2147483647, %v1109
    %vm1120 = vcmp.eq.f32.partialorder %v1119, 8.507059e+37
    %v1121 = vand.u32 %v1109, 2147483648
    %v1122 = vor.u32 1.1754944e-38, %v1121
    %v1123 = vsel %vm1120, %v1122, %v1118
    %v1124 = vmul.f32 1.0, %v1123
    %v1125 = vadd.f32 %v686, %v1103
    %v1126 = vxor.u32 %v1125, 2147483648
    %v1127 = vmul.f32 %v1126, 1.442695
    %v1128 = vpow.pop %v1127
    %v1129 = vadd.f32 %v1128, 1.0
    %v1130 = vrcp.pop %v1129
    %v1131 = vmul.f32 %v1129, %v1130
    %v1132 = vsub.f32 1.0, %v1131
    %v1133 = vmul.f32 %v1130, %v1132
    %v1134 = vadd.f32 %v1130, %v1133
    %vm1135 = vweird.f32 %v1129
    %vm1136 = vweird.f32 %v1130
    %vm1137 = vmor %vm1135, %vm1136
    %v1138 = vsel %vm1137, %v1130, %v1134
    %v1139 = vand.u32 2147483647, %v1129
    %vm1140 = vcmp.eq.f32.partialorder %v1139, 8.507059e+37
    %v1141 = vand.u32 %v1129, 2147483648
    %v1142 = vor.u32 1.1754944e-38, %v1141
    %v1143 = vsel %vm1140, %v1142, %v1138
    %v1144 = vmul.f32 1.0, %v1143
    %1145 = vrot.lane.b32.xlu0 %v1101, 32
    %v1146 = vpop.permute.xlu0 %1145
    %v1148 = vmul.f32 %v1124, %v1146
    %1150 = vrot.lane.b32.xlu0 %v1148, 64
    %v1151 = vpop.permute.xlu0 %1150
    %v1153 = vadd.f32 %v686, %v1151
    %v1154 = vtanh.pop %v1153
    %v1155 = vsub.f32 1.0, %v1144
    %1157 = vrot.lane.b32.xlu0 %v1154, 96
    %v1158 = vpop.permute.xlu0 %1157
    %v1160 = vmul.f32 %v1155, %v1158
    %v1161 = vrot.slane %v1006, 2
    %v1163 = vmul.f32 %v1144, %v1161
    %v1164 = vadd.f32 %v1160, %v1163
    %v1166 = vrot.slane %v1075, 4
    %1167 = vrot.lane.b32.xlu0 %v1166, 96
    %v1168 = vpop.permute.xlu0 %1167
    %v1169 = vsel %vm701, %v1168, 0
    %1171 = vmatpush.msra.mxu0 0.0
    %1172 = vmatpush.msra.mxu0 0.0
    %1173 = vmatpush.msra.mxu0 0.0
    %1174 = vmatpush.msra.mxu0 0.0
    %1175 = vmatpush.msra.mxu0 0.0
    %1176 = vmatpush.msra.mxu0 0.0
    %1177 = vmatpush.msra.mxu0 0.0
    %1178 = vmatpush.msra.mxu0 0.0
    %1179 = vmatpush.msra.mxu0 0.0
    %1180 = vmatpush.msra.mxu0 0.0
    %1181 = vmatpush.msra.mxu0 0.0
    %1182 = vmatpush.msra.mxu0 0.0
    %1183 = vmatpush.msra.mxu0 %v691
    %1184 = vmatpush.msra.mxu0 %v690
    %1185 = vmatpush.msra.mxu0 %v689
    %1186 = vmatpush.msra.mxu0 %v688
    %1187 = vmatmul.f32.gmra.mxu0 %v1169
    %v1188 = vpop.f32.mrf.mxu0
    %v1189 = vadd.f32 %v699, %v1188
    %1190 = vdwg.mxu0
    %v1192 = vrot.slane %v1189, 2
    %v1194 = vadd.f32 %v660, %v1192
    %v1195 = vxor.u32 %v1194, 2147483648
    %v1196 = vmul.f32 %v1195, 1.442695
    %v1197 = vpow.pop %v1196
    %v1198 = vadd.f32 %v1197, 1.0
    %v1199 = vrcp.pop %v1198
    %v1200 = vmul.f32 %v1198, %v1199
    %v1201 = vsub.f32 1.0, %v1200
    %v1202 = vmul.f32 %v1199, %v1201
    %v1203 = vadd.f32 %v1199, %v1202
    %vm1204 = vweird.f32 %v1198
    %vm1205 = vweird.f32 %v1199
    %vm1206 = vmor %vm1204, %vm1205
    %v1207 = vsel %vm1206, %v1199, %v1203
    %v1208 = vand.u32 2147483647, %v1198
    %vm1209 = vcmp.eq.f32.partialorder %v1208, 8.507059e+37
    %v1210 = vand.u32 %v1198, 2147483648
    %v1211 = vor.u32 1.1754944e-38, %v1210
    %v1212 = vsel %vm1209, %v1211, %v1207
    %v1213 = vmul.f32 1.0, %v1212
    %1214 = vrot.lane.b32.xlu0 %v1192, 64
    %v1215 = vpop.permute.xlu0 %1214
    %v1217 = vmul.f32 %v1213, %v1215
    %1219 = vrot.lane.b32.xlu0 %v1217, 64
    %v1220 = vpop.permute.xlu0 %1219
    %v1222 = vadd.f32 %v660, %v1220
    %v1223 = vtanh.pop %v1222
    %v1224 = vsub.f32 1.0, %v1213
    %1226 = vrot.lane.b32.xlu0 %v1223, 96
    %v1227 = vpop.permute.xlu0 %1226
    %v1229 = vmul.f32 %v1224, %v1227
    %v1230 = vrot.slane %v1075, 6
    %v1232 = vmul.f32 %v1213, %v1230
    %v1233 = vadd.f32 %v1229, %v1232
    %v1235 = vrot.slane %v1164, 2
    %v1236 = vsel %vm701, %v1235, 0
    %1238 = vmatpush.msra.mxu0 0.0
    %1239 = vmatpush.msra.mxu0 0.0
    %1240 = vmatpush.msra.mxu0 0.0
    %1241 = vmatpush.msra.mxu0 0.0
    %1242 = vmatpush.msra.mxu0 0.0
    %1243 = vmatpush.msra.mxu0 0.0
    %1244 = vmatpush.msra.mxu0 0.0
    %1245 = vmatpush.msra.mxu0 0.0
    %1246 = vmatpush.msra.mxu0 0.0
    %1247 = vmatpush.msra.mxu0 0.0
    %1248 = vmatpush.msra.mxu0 0.0
    %1249 = vmatpush.msra.mxu0 0.0
    %1250 = vmatpush.msra.mxu0 %v695
    %1251 = vmatpush.msra.mxu0 %v694
    %1252 = vmatpush.msra.mxu0 %v693
    %1253 = vmatpush.msra.mxu0 %v692
    %1254 = vmatmul.f32.gmra.mxu0 %v1236
    %v1255 = vpop.f32.mrf.mxu0
    %v1256 = vadd.f32 %v765, %v1255
    %1257 = vdwg.mxu0
    %1259 = vrot.lane.b32.xlu0 %v1256, 96
    %v1260 = vpop.permute.xlu0 %1259
    %v1262 = vadd.f32 %v663, %v1260
    %v1263 = vxor.u32 %v1262, 2147483648
    %v1264 = vmul.f32 %v1263, 1.442695
    %v1265 = vpow.pop %v1264
    %v1266 = vadd.f32 %v1265, 1.0
    %v1267 = vrcp.pop %v1266
    %v1268 = vmul.f32 %v1266, %v1267
    %v1269 = vsub.f32 1.0, %v1268
    %v1270 = vmul.f32 %v1267, %v1269
    %v1271 = vadd.f32 %v1267, %v1270
    %vm1272 = vweird.f32 %v1266
    %vm1273 = vweird.f32 %v1267
    %vm1274 = vmor %vm1272, %vm1273
    %v1275 = vsel %vm1274, %v1267, %v1271
    %v1276 = vand.u32 2147483647, %v1266
    %vm1277 = vcmp.eq.f32.partialorder %v1276, 8.507059e+37
    %v1278 = vand.u32 %v1266, 2147483648
    %v1279 = vor.u32 1.1754944e-38, %v1278
    %v1280 = vsel %vm1277, %v1279, %v1275
    %v1281 = vmul.f32 1.0, %v1280
    %v1282 = vadd.f32 %v686, %v1260
    %v1283 = vxor.u32 %v1282, 2147483648
    %v1284 = vmul.f32 %v1283, 1.442695
    %v1285 = vpow.pop %v1284
    %v1286 = vadd.f32 %v1285, 1.0
    %v1287 = vrcp.pop %v1286
    %v1288 = vmul.f32 %v1286, %v1287
    %v1289 = vsub.f32 1.0, %v1288
    %v1290 = vmul.f32 %v1287, %v1289
    %v1291 = vadd.f32 %v1287, %v1290
    %vm1292 = vweird.f32 %v1286
    %vm1293 = vweird.f32 %v1287
    %vm1294 = vmor %vm1292, %vm1293
    %v1295 = vsel %vm1294, %v1287, %v1291
    %v1296 = vand.u32 2147483647, %v1286
    %vm1297 = vcmp.eq.f32.partialorder %v1296, 8.507059e+37
    %v1298 = vand.u32 %v1286, 2147483648
    %v1299 = vor.u32 1.1754944e-38, %v1298
    %v1300 = vsel %vm1297, %v1299, %v1295
    %v1301 = vmul.f32 1.0, %v1300
    %1302 = vrot.lane.b32.xlu0 %v1256, 32
    %v1303 = vpop.permute.xlu0 %1302
    %v1305 = vmul.f32 %v1281, %v1303
    %1307 = vrot.lane.b32.xlu0 %v1305, 64
    %v1308 = vpop.permute.xlu0 %1307
    %v1310 = vadd.f32 %v686, %v1308
    %v1311 = vtanh.pop %v1310
    %v1312 = vsub.f32 1.0, %v1301
    %1314 = vrot.lane.b32.xlu0 %v1311, 96
    %v1315 = vpop.permute.xlu0 %1314
    %v1317 = vmul.f32 %v1312, %v1315
    %v1319 = vmul.f32 %v1301, %v1235
    %v1320 = vadd.f32 %v1317, %v1319
    %v1322 = vrot.slane %v1233, 6
    %1323 = vrot.lane.b32.xlu0 %v1322, 96
    %v1324 = vpop.permute.xlu0 %1323
    %v1325 = vsel %vm701, %v1324, 0
    %1327 = vmatpush.msra.mxu0 0.0
    %1328 = vmatpush.msra.mxu0 0.0
    %1329 = vmatpush.msra.mxu0 0.0
    %1330 = vmatpush.msra.mxu0 0.0
    %1331 = vmatpush.msra.mxu0 0.0
    %1332 = vmatpush.msra.mxu0 0.0
    %1333 = vmatpush.msra.mxu0 0.0
    %1334 = vmatpush.msra.mxu0 0.0
    %1335 = vmatpush.msra.mxu0 0.0
    %1336 = vmatpush.msra.mxu0 0.0
    %1337 = vmatpush.msra.mxu0 0.0
    %1338 = vmatpush.msra.mxu0 0.0
    %1339 = vmatpush.msra.mxu0 %v691
    %1340 = vmatpush.msra.mxu0 %v690
    %1341 = vmatpush.msra.mxu0 %v689
    %1342 = vmatpush.msra.mxu0 %v688
    %1343 = vmatmul.f32.gmra.mxu0 %v1325
    %v1344 = vpop.f32.mrf.mxu0
    %v1345 = vadd.f32 %v699, %v1344
    %1346 = vdwg.mxu0
    %v1347 = vadd.f32 %v663, %v1345
    %v1348 = vxor.u32 %v1347, 2147483648
    %v1349 = vmul.f32 %v1348, 1.442695
    %v1350 = vpow.pop %v1349
    %v1351 = vadd.f32 %v1350, 1.0
    %v1352 = vrcp.pop %v1351
    %v1353 = vmul.f32 %v1351, %v1352
    %v1354 = vsub.f32 1.0, %v1353
    %v1355 = vmul.f32 %v1352, %v1354
    %v1356 = vadd.f32 %v1352, %v1355
    %vm1357 = vweird.f32 %v1351
    %vm1358 = vweird.f32 %v1352
    %vm1359 = vmor %vm1357, %vm1358
    %v1360 = vsel %vm1359, %v1352, %v1356
    %v1361 = vand.u32 2147483647, %v1351
    %vm1362 = vcmp.eq.f32.partialorder %v1361, 8.507059e+37
    %v1363 = vand.u32 %v1351, 2147483648
    %v1364 = vor.u32 1.1754944e-38, %v1363
    %v1365 = vsel %vm1362, %v1364, %v1360
    %v1366 = vmul.f32 1.0, %v1365
    %1368 = vrot.lane.b32.xlu0 %v1345, 64
    %v1369 = vpop.permute.xlu0 %1368
    %v1371 = vmul.f32 %v1366, %v1369
    %1373 = vrot.lane.b32.xlu0 %v1371, 64
    %v1374 = vpop.permute.xlu0 %1373
    %v1376 = vadd.f32 %v663, %v1374
    %v1377 = vtanh.pop %v1376
    %v1378 = vsub.f32 1.0, %v1366
    %1380 = vrot.lane.b32.xlu0 %v1377, 96
    %v1381 = vpop.permute.xlu0 %1380
    %v1383 = vmul.f32 %v1378, %v1381
    %v1385 = vmul.f32 %v1366, %v1322
    %v1386 = vadd.f32 %v1383, %v1385
    %v1388 = vsel %vm701, %v1320, 0
    %1390 = vmatpush.msra.mxu0 0.0
    %1391 = vmatpush.msra.mxu0 0.0
    %1392 = vmatpush.msra.mxu0 0.0
    %1393 = vmatpush.msra.mxu0 0.0
    %1394 = vmatpush.msra.mxu0 0.0
    %1395 = vmatpush.msra.mxu0 0.0
    %1396 = vmatpush.msra.mxu0 0.0
    %1397 = vmatpush.msra.mxu0 0.0
    %1398 = vmatpush.msra.mxu0 0.0
    %1399 = vmatpush.msra.mxu0 0.0
    %1400 = vmatpush.msra.mxu0 0.0
    %1401 = vmatpush.msra.mxu0 0.0
    %1402 = vmatpush.msra.mxu0 %v695
    %1403 = vmatpush.msra.mxu0 %v694
    %1404 = vmatpush.msra.mxu0 %v693
    %1405 = vmatpush.msra.mxu0 %v692
    %1406 = vmatmul.f32.gmra.mxu0 %v1388
    %v1407 = vpop.f32.mrf.mxu0
    %v1408 = vadd.f32 %v765, %v1407
    %1409 = vdwg.mxu0
    %v1411 = vrot.slane %v1408, 2
    %1412 = vrot.lane.b32.xlu0 %v1411, 96
    %v1413 = vpop.permute.xlu0 %1412
    %v1415 = vadd.f32 %v660, %v1413
    %v1416 = vxor.u32 %v1415, 2147483648
    %v1417 = vmul.f32 %v1416, 1.442695
    %v1418 = vpow.pop %v1417
    %v1419 = vadd.f32 %v1418, 1.0
    %v1420 = vrcp.pop %v1419
    %v1421 = vmul.f32 %v1419, %v1420
    %v1422 = vsub.f32 1.0, %v1421
    %v1423 = vmul.f32 %v1420, %v1422
    %v1424 = vadd.f32 %v1420, %v1423
    %vm1425 = vweird.f32 %v1419
    %vm1426 = vweird.f32 %v1420
    %vm1427 = vmor %vm1425, %vm1426
    %v1428 = vsel %vm1427, %v1420, %v1424
    %v1429 = vand.u32 2147483647, %v1419
    %vm1430 = vcmp.eq.f32.partialorder %v1429, 8.507059e+37
    %v1431 = vand.u32 %v1419, 2147483648
    %v1432 = vor.u32 1.1754944e-38, %v1431
    %v1433 = vsel %vm1430, %v1432, %v1428
    %v1434 = vmul.f32 1.0, %v1433
    %v1435 = vadd.f32 %v683, %v1413
    %v1436 = vxor.u32 %v1435, 2147483648
    %v1437 = vmul.f32 %v1436, 1.442695
    %v1438 = vpow.pop %v1437
    %v1439 = vadd.f32 %v1438, 1.0
    %v1440 = vrcp.pop %v1439
    %v1441 = vmul.f32 %v1439, %v1440
    %v1442 = vsub.f32 1.0, %v1441
    %v1443 = vmul.f32 %v1440, %v1442
    %v1444 = vadd.f32 %v1440, %v1443
    %vm1445 = vweird.f32 %v1439
    %vm1446 = vweird.f32 %v1440
    %vm1447 = vmor %vm1445, %vm1446
    %v1448 = vsel %vm1447, %v1440, %v1444
    %v1449 = vand.u32 2147483647, %v1439
    %vm1450 = vcmp.eq.f32.partialorder %v1449, 8.507059e+37
    %v1451 = vand.u32 %v1439, 2147483648
    %v1452 = vor.u32 1.1754944e-38, %v1451
    %v1453 = vsel %vm1450, %v1452, %v1448
    %v1454 = vmul.f32 1.0, %v1453
    %1455 = vrot.lane.b32.xlu0 %v1411, 32
    %v1456 = vpop.permute.xlu0 %1455
    %v1458 = vmul.f32 %v1434, %v1456
    %1460 = vrot.lane.b32.xlu0 %v1458, 64
    %v1461 = vpop.permute.xlu0 %1460
    %v1463 = vadd.f32 %v683, %v1461
    %v1464 = vtanh.pop %v1463
    %v1465 = vsub.f32 1.0, %v1454
    %1467 = vrot.lane.b32.xlu0 %v1464, 96
    %v1468 = vpop.permute.xlu0 %1467
    %v1470 = vmul.f32 %v1465, %v1468
    %v1471 = vrot.slane %v1320, 2
    %v1473 = vmul.f32 %v1454, %v1471
    %v1474 = vadd.f32 %v1470, %v1473
    %1476 = vrot.lane.b32.xlu0 %v1386, 96
    %v1477 = vpop.permute.xlu0 %1476
    %v1478 = vsel %vm701, %v1477, 0
    %1480 = vmatpush.msra.mxu0 0.0
    %1481 = vmatpush.msra.mxu0 0.0
    %1482 = vmatpush.msra.mxu0 0.0
    %1483 = vmatpush.msra.mxu0 0.0
    %1484 = vmatpush.msra.mxu0 0.0
    %1485 = vmatpush.msra.mxu0 0.0
    %1486 = vmatpush.msra.mxu0 0.0
    %1487 = vmatpush.msra.mxu0 0.0
    %1488 = vmatpush.msra.mxu0 0.0
    %1489 = vmatpush.msra.mxu0 0.0
    %1490 = vmatpush.msra.mxu0 0.0
    %1491 = vmatpush.msra.mxu0 0.0
    %1492 = vmatpush.msra.mxu0 %v691
    %1493 = vmatpush.msra.mxu0 %v690
    %1494 = vmatpush.msra.mxu0 %v689
    %1495 = vmatpush.msra.mxu0 %v688
    %1496 = vmatmul.f32.gmra.mxu0 %v1478
    %v1497 = vpop.f32.mrf.mxu0
    %v1498 = vadd.f32 %v699, %v1497
    %1499 = vdwg.mxu0
    %v1501 = vrot.slane %v1498, 6
    %v1503 = vadd.f32 %v663, %v1501
    %v1504 = vxor.u32 %v1503, 2147483648
    %v1505 = vmul.f32 %v1504, 1.442695
    %v1506 = vpow.pop %v1505
    %v1507 = vadd.f32 %v1506, 1.0
    %v1508 = vrcp.pop %v1507
    %v1509 = vmul.f32 %v1507, %v1508
    %v1510 = vsub.f32 1.0, %v1509
    %v1511 = vmul.f32 %v1508, %v1510
    %v1512 = vadd.f32 %v1508, %v1511
    %vm1513 = vweird.f32 %v1507
    %vm1514 = vweird.f32 %v1508
    %vm1515 = vmor %vm1513, %vm1514
    %v1516 = vsel %vm1515, %v1508, %v1512
    %v1517 = vand.u32 2147483647, %v1507
    %vm1518 = vcmp.eq.f32.partialorder %v1517, 8.507059e+37
    %v1519 = vand.u32 %v1507, 2147483648
    %v1520 = vor.u32 1.1754944e-38, %v1519
    %v1521 = vsel %vm1518, %v1520, %v1516
    %v1522 = vmul.f32 1.0, %v1521
    %1523 = vrot.lane.b32.xlu0 %v1501, 64
    %v1524 = vpop.permute.xlu0 %1523
    %v1526 = vmul.f32 %v1522, %v1524
    %1528 = vrot.lane.b32.xlu0 %v1526, 64
    %v1529 = vpop.permute.xlu0 %1528
    %v1531 = vadd.f32 %v663, %v1529
    %v1532 = vtanh.pop %v1531
    %v1533 = vsub.f32 1.0, %v1522
    %1535 = vrot.lane.b32.xlu0 %v1532, 96
    %v1536 = vpop.permute.xlu0 %1535
    %v1538 = vmul.f32 %v1533, %v1536
    %v1539 = vrot.slane %v1386, 6
    %v1541 = vmul.f32 %v1522, %v1539
    %v1542 = vadd.f32 %v1538, %v1541
    %v1544 = vrot.slane %v1474, 6
    %v1545 = vsel %vm701, %v1544, 0
    %1547 = vmatpush.msra.mxu0 0.0
    %1548 = vmatpush.msra.mxu0 0.0
    %1549 = vmatpush.msra.mxu0 0.0
    %1550 = vmatpush.msra.mxu0 0.0
    %1551 = vmatpush.msra.mxu0 0.0
    %1552 = vmatpush.msra.mxu0 0.0
    %1553 = vmatpush.msra.mxu0 0.0
    %1554 = vmatpush.msra.mxu0 0.0
    %1555 = vmatpush.msra.mxu0 0.0
    %1556 = vmatpush.msra.mxu0 0.0
    %1557 = vmatpush.msra.mxu0 0.0
    %1558 = vmatpush.msra.mxu0 0.0
    %1559 = vmatpush.msra.mxu0 %v695
    %1560 = vmatpush.msra.mxu0 %v694
    %1561 = vmatpush.msra.mxu0 %v693
    %1562 = vmatpush.msra.mxu0 %v692
    %1563 = vmatmul.f32.gmra.mxu0 %v1545
    %v1564 = vpop.f32.mrf.mxu0
    %v1565 = vadd.f32 %v765, %v1564
    %1566 = vdwg.mxu0
    %v1568 = vrot.slane %v1565, 4
    %1569 = vrot.lane.b32.xlu0 %v1568, 96
    %v1570 = vpop.permute.xlu0 %1569
    %v1572 = vadd.f32 %v660, %v1570
    %v1573 = vxor.u32 %v1572, 2147483648
    %v1574 = vmul.f32 %v1573, 1.442695
    %v1575 = vpow.pop %v1574
    %v1576 = vadd.f32 %v1575, 1.0
    %v1577 = vrcp.pop %v1576
    %v1578 = vmul.f32 %v1576, %v1577
    %v1579 = vsub.f32 1.0, %v1578
    %v1580 = vmul.f32 %v1577, %v1579
    %v1581 = vadd.f32 %v1577, %v1580
    %vm1582 = vweird.f32 %v1576
    %vm1583 = vweird.f32 %v1577
    %vm1584 = vmor %vm1582, %vm1583
    %v1585 = vsel %vm1584, %v1577, %v1581
    %v1586 = vand.u32 2147483647, %v1576
    %vm1587 = vcmp.eq.f32.partialorder %v1586, 8.507059e+37
    %v1588 = vand.u32 %v1576, 2147483648
    %v1589 = vor.u32 1.1754944e-38, %v1588
    %v1590 = vsel %vm1587, %v1589, %v1585
    %v1591 = vmul.f32 1.0, %v1590
    %v1592 = vadd.f32 %v683, %v1570
    %v1593 = vxor.u32 %v1592, 2147483648
    %v1594 = vmul.f32 %v1593, 1.442695
    %v1595 = vpow.pop %v1594
    %v1596 = vadd.f32 %v1595, 1.0
    %v1597 = vrcp.pop %v1596
    %v1598 = vmul.f32 %v1596, %v1597
    %v1599 = vsub.f32 1.0, %v1598
    %v1600 = vmul.f32 %v1597, %v1599
    %v1601 = vadd.f32 %v1597, %v1600
    %vm1602 = vweird.f32 %v1596
    %vm1603 = vweird.f32 %v1597
    %vm1604 = vmor %vm1602, %vm1603
    %v1605 = vsel %vm1604, %v1597, %v1601
    %v1606 = vand.u32 2147483647, %v1596
    %vm1607 = vcmp.eq.f32.partialorder %v1606, 8.507059e+37
    %v1608 = vand.u32 %v1596, 2147483648
    %v1609 = vor.u32 1.1754944e-38, %v1608
    %v1610 = vsel %vm1607, %v1609, %v1605
    %v1611 = vmul.f32 1.0, %v1610
    %1612 = vrot.lane.b32.xlu0 %v1568, 32
    %v1613 = vpop.permute.xlu0 %1612
    %v1615 = vmul.f32 %v1591, %v1613
    %1617 = vrot.lane.b32.xlu0 %v1615, 64
    %v1618 = vpop.permute.xlu0 %1617
    %v1620 = vadd.f32 %v683, %v1618
    %v1621 = vtanh.pop %v1620
    %v1622 = vsub.f32 1.0, %v1611
    %1624 = vrot.lane.b32.xlu0 %v1621, 96
    %v1625 = vpop.permute.xlu0 %1624
    %v1627 = vmul.f32 %v1622, %v1625
    %v1628 = vrot.slane %v1474, 2
    %v1630 = vmul.f32 %v1611, %v1628
    %v1631 = vadd.f32 %v1627, %v1630
    %v1633 = vrot.slane %v1542, 2
    %1634 = vrot.lane.b32.xlu0 %v1633, 96
    %v1635 = vpop.permute.xlu0 %1634
    %v1636 = vsel %vm701, %v1635, 0
    %1638 = vmatpush.msra.mxu0 0.0
    %1639 = vmatpush.msra.mxu0 0.0
    %1640 = vmatpush.msra.mxu0 0.0
    %1641 = vmatpush.msra.mxu0 0.0
    %1642 = vmatpush.msra.mxu0 0.0
    %1643 = vmatpush.msra.mxu0 0.0
    %1644 = vmatpush.msra.mxu0 0.0
    %1645 = vmatpush.msra.mxu0 0.0
    %1646 = vmatpush.msra.mxu0 0.0
    %1647 = vmatpush.msra.mxu0 0.0
    %1648 = vmatpush.msra.mxu0 0.0
    %1649 = vmatpush.msra.mxu0 0.0
    %1650 = vmatpush.msra.mxu0 %v691
    %1651 = vmatpush.msra.mxu0 %v690
    %1652 = vmatpush.msra.mxu0 %v689
    %1653 = vmatpush.msra.mxu0 %v688
    %1654 = vmatmul.f32.gmra.mxu0 %v1636
    %v1655 = vpop.f32.mrf.mxu0
    %v1656 = vadd.f32 %v699, %v1655
    %1657 = vdwg.mxu0
    %v1659 = vrot.slane %v1656, 4
    %v1661 = vadd.f32 %v663, %v1659
    %v1662 = vxor.u32 %v1661, 2147483648
    %v1663 = vmul.f32 %v1662, 1.442695
    %v1664 = vpow.pop %v1663
    %v1665 = vadd.f32 %v1664, 1.0
    %v1666 = vrcp.pop %v1665
    %v1667 = vmul.f32 %v1665, %v1666
    %v1668 = vsub.f32 1.0, %v1667
    %v1669 = vmul.f32 %v1666, %v1668
    %v1670 = vadd.f32 %v1666, %v1669
    %vm1671 = vweird.f32 %v1665
    %vm1672 = vweird.f32 %v1666
    %vm1673 = vmor %vm1671, %vm1672
    %v1674 = vsel %vm1673, %v1666, %v1670
    %v1675 = vand.u32 2147483647, %v1665
    %vm1676 = vcmp.eq.f32.partialorder %v1675, 8.507059e+37
    %v1677 = vand.u32 %v1665, 2147483648
    %v1678 = vor.u32 1.1754944e-38, %v1677
    %v1679 = vsel %vm1676, %v1678, %v1674
    %v1680 = vmul.f32 1.0, %v1679
    %1681 = vrot.lane.b32.xlu0 %v1659, 64
    %v1682 = vpop.permute.xlu0 %1681
    %v1684 = vmul.f32 %v1680, %v1682
    %1686 = vrot.lane.b32.xlu0 %v1684, 64
    %v1687 = vpop.permute.xlu0 %1686
    %v1689 = vadd.f32 %v663, %v1687
    %v1690 = vtanh.pop %v1689
    %v1691 = vsub.f32 1.0, %v1680
    %1693 = vrot.lane.b32.xlu0 %v1690, 96
    %v1694 = vpop.permute.xlu0 %1693
    %v1696 = vmul.f32 %v1691, %v1694
    %v1697 = vrot.slane %v1542, 6
    %v1699 = vmul.f32 %v1680, %v1697
    %v1700 = vadd.f32 %v1696, %v1699
    %v1702 = vrot.slane %v1631, 4
    %v1703 = vsel %vm701, %v1702, 0
    %1705 = vmatpush.msra.mxu0 0.0
    %1706 = vmatpush.msra.mxu0 0.0
    %1707 = vmatpush.msra.mxu0 0.0
    %1708 = vmatpush.msra.mxu0 0.0
    %1709 = vmatpush.msra.mxu0 0.0
    %1710 = vmatpush.msra.mxu0 0.0
    %1711 = vmatpush.msra.mxu0 0.0
    %1712 = vmatpush.msra.mxu0 0.0
    %1713 = vmatpush.msra.mxu0 0.0
    %1714 = vmatpush.msra.mxu0 0.0
    %1715 = vmatpush.msra.mxu0 0.0
    %1716 = vmatpush.msra.mxu0 0.0
    %1717 = vmatpush.msra.mxu0 %v695
    %1718 = vmatpush.msra.mxu0 %v694
    %1719 = vmatpush.msra.mxu0 %v693
    %1720 = vmatpush.msra.mxu0 %v692
    %1721 = vmatmul.f32.gmra.mxu0 %v1703
    %v1722 = vpop.f32.mrf.mxu0
    %v1723 = vadd.f32 %v765, %v1722
    %1724 = vdwg.mxu0
    %v1726 = vrot.slane %v1723, 6
    %1727 = vrot.lane.b32.xlu0 %v1726, 96
    %v1728 = vpop.permute.xlu0 %1727
    %v1730 = vadd.f32 %v660, %v1728
    %v1731 = vxor.u32 %v1730, 2147483648
    %v1732 = vmul.f32 %v1731, 1.442695
    %v1733 = vpow.pop %v1732
    %v1734 = vadd.f32 %v1733, 1.0
    %v1735 = vrcp.pop %v1734
    %v1736 = vmul.f32 %v1734, %v1735
    %v1737 = vsub.f32 1.0, %v1736
    %v1738 = vmul.f32 %v1735, %v1737
    %v1739 = vadd.f32 %v1735, %v1738
    %vm1740 = vweird.f32 %v1734
    %vm1741 = vweird.f32 %v1735
    %vm1742 = vmor %vm1740, %vm1741
    %v1743 = vsel %vm1742, %v1735, %v1739
    %v1744 = vand.u32 2147483647, %v1734
    %vm1745 = vcmp.eq.f32.partialorder %v1744, 8.507059e+37
    %v1746 = vand.u32 %v1734, 2147483648
    %v1747 = vor.u32 1.1754944e-38, %v1746
    %v1748 = vsel %vm1745, %v1747, %v1743
    %v1749 = vmul.f32 1.0, %v1748
    %v1750 = vadd.f32 %v683, %v1728
    %v1751 = vxor.u32 %v1750, 2147483648
    %v1752 = vmul.f32 %v1751, 1.442695
    %v1753 = vpow.pop %v1752
    %v1754 = vadd.f32 %v1753, 1.0
    %v1755 = vrcp.pop %v1754
    %v1756 = vmul.f32 %v1754, %v1755
    %v1757 = vsub.f32 1.0, %v1756
    %v1758 = vmul.f32 %v1755, %v1757
    %v1759 = vadd.f32 %v1755, %v1758
    %vm1760 = vweird.f32 %v1754
    %vm1761 = vweird.f32 %v1755
    %vm1762 = vmor %vm1760, %vm1761
    %v1763 = vsel %vm1762, %v1755, %v1759
    %v1764 = vand.u32 2147483647, %v1754
    %vm1765 = vcmp.eq.f32.partialorder %v1764, 8.507059e+37
    %v1766 = vand.u32 %v1754, 2147483648
    %v1767 = vor.u32 1.1754944e-38, %v1766
    %v1768 = vsel %vm1765, %v1767, %v1763
    %v1769 = vmul.f32 1.0, %v1768
    %1770 = vrot.lane.b32.xlu0 %v1726, 32
    %v1771 = vpop.permute.xlu0 %1770
    %v1773 = vmul.f32 %v1749, %v1771
    %1775 = vrot.lane.b32.xlu0 %v1773, 64
    %v1776 = vpop.permute.xlu0 %1775
    %v1778 = vadd.f32 %v683, %v1776
    %v1779 = vtanh.pop %v1778
    %v1780 = vsub.f32 1.0, %v1769
    %1782 = vrot.lane.b32.xlu0 %v1779, 96
    %v1783 = vpop.permute.xlu0 %1782
    %v1785 = vmul.f32 %v1780, %v1783
    %v1786 = vrot.slane %v1631, 2
    %v1788 = vmul.f32 %v1769, %v1786
    %v1789 = vadd.f32 %v1785, %v1788
    %v1791 = vrot.slane %v1700, 4
    %1792 = vrot.lane.b32.xlu0 %v1791, 96
    %v1793 = vpop.permute.xlu0 %1792
    %v1794 = vsel %vm701, %v1793, 0
    %1796 = vmatpush.msra.mxu0 0.0
    %1797 = vmatpush.msra.mxu0 0.0
    %1798 = vmatpush.msra.mxu0 0.0
    %1799 = vmatpush.msra.mxu0 0.0
    %1800 = vmatpush.msra.mxu0 0.0
    %1801 = vmatpush.msra.mxu0 0.0
    %1802 = vmatpush.msra.mxu0 0.0
    %1803 = vmatpush.msra.mxu0 0.0
    %1804 = vmatpush.msra.mxu0 0.0
    %1805 = vmatpush.msra.mxu0 0.0
    %1806 = vmatpush.msra.mxu0 0.0
    %1807 = vmatpush.msra.mxu0 0.0
    %1808 = vmatpush.msra.mxu0 %v691
    %1809 = vmatpush.msra.mxu0 %v690
    %1810 = vmatpush.msra.mxu0 %v689
    %1811 = vmatpush.msra.mxu0 %v688
    %1812 = vmatmul.f32.gmra.mxu0 %v1794
    %v1813 = vpop.f32.mrf.mxu0
    %v1814 = vadd.f32 %v699, %v1813
    %1815 = vdwg.mxu0
    %v1817 = vrot.slane %v1814, 2
    %v1819 = vadd.f32 %v663, %v1817
    %v1820 = vxor.u32 %v1819, 2147483648
    %v1821 = vmul.f32 %v1820, 1.442695
    %v1822 = vpow.pop %v1821
    %v1823 = vadd.f32 %v1822, 1.0
    %v1824 = vrcp.pop %v1823
    %v1825 = vmul.f32 %v1823, %v1824
    %v1826 = vsub.f32 1.0, %v1825
    %v1827 = vmul.f32 %v1824, %v1826
    %v1828 = vadd.f32 %v1824, %v1827
    %vm1829 = vweird.f32 %v1823
    %vm1830 = vweird.f32 %v1824
    %vm1831 = vmor %vm1829, %vm1830
    %v1832 = vsel %vm1831, %v1824, %v1828
    %v1833 = vand.u32 2147483647, %v1823
    %vm1834 = vcmp.eq.f32.partialorder %v1833, 8.507059e+37
    %v1835 = vand.u32 %v1823, 2147483648
    %v1836 = vor.u32 1.1754944e-38, %v1835
    %v1837 = vsel %vm1834, %v1836, %v1832
    %v1838 = vmul.f32 1.0, %v1837
    %1839 = vrot.lane.b32.xlu0 %v1817, 64
    %v1840 = vpop.permute.xlu0 %1839
    %v1842 = vmul.f32 %v1838, %v1840
    %1844 = vrot.lane.b32.xlu0 %v1842, 64
    %v1845 = vpop.permute.xlu0 %1844
    %v1847 = vadd.f32 %v663, %v1845
    %v1848 = vtanh.pop %v1847
    %v1849 = vsub.f32 1.0, %v1838
    %1851 = vrot.lane.b32.xlu0 %v1848, 96
    %v1852 = vpop.permute.xlu0 %1851
    %v1854 = vmul.f32 %v1849, %v1852
    %v1855 = vrot.slane %v1700, 6
    %v1857 = vmul.f32 %v1838, %v1855
    %v1858 = vadd.f32 %v1854, %v1857
    %v1860 = vrot.slane %v1789, 2
    %v1861 = vsel %vm701, %v1860, 0
    %1863 = vmatpush.msra.mxu0 0.0
    %1864 = vmatpush.msra.mxu0 0.0
    %1865 = vmatpush.msra.mxu0 0.0
    %1866 = vmatpush.msra.mxu0 0.0
    %1867 = vmatpush.msra.mxu0 0.0
    %1868 = vmatpush.msra.mxu0 0.0
    %1869 = vmatpush.msra.mxu0 0.0
    %1870 = vmatpush.msra.mxu0 0.0
    %1871 = vmatpush.msra.mxu0 0.0
    %1872 = vmatpush.msra.mxu0 0.0
    %1873 = vmatpush.msra.mxu0 0.0
    %1874 = vmatpush.msra.mxu0 0.0
    %1875 = vmatpush.msra.mxu0 %v695
    %1876 = vmatpush.msra.mxu0 %v694
    %1877 = vmatpush.msra.mxu0 %v693
    %1878 = vmatpush.msra.mxu0 %v692
    %1879 = vmatmul.f32.gmra.mxu0 %v1861
    %v1880 = vpop.f32.mrf.mxu0
    %v1881 = vadd.f32 %v765, %v1880
    %1882 = vdwg.mxu0
    %1884 = vrot.lane.b32.xlu0 %v1881, 96
    %v1885 = vpop.permute.xlu0 %1884
    %v1887 = vadd.f32 %v660, %v1885
    %v1888 = vxor.u32 %v1887, 2147483648
    %v1889 = vmul.f32 %v1888, 1.442695
    %v1890 = vpow.pop %v1889
    %v1891 = vadd.f32 %v1890, 1.0
    %v1892 = vrcp.pop %v1891
    %v1893 = vmul.f32 %v1891, %v1892
    %v1894 = vsub.f32 1.0, %v1893
    %v1895 = vmul.f32 %v1892, %v1894
    %v1896 = vadd.f32 %v1892, %v1895
    %vm1897 = vweird.f32 %v1891
    %vm1898 = vweird.f32 %v1892
    %vm1899 = vmor %vm1897, %vm1898
    %v1900 = vsel %vm1899, %v1892, %v1896
    %v1901 = vand.u32 2147483647, %v1891
    %vm1902 = vcmp.eq.f32.partialorder %v1901, 8.507059e+37
    %v1903 = vand.u32 %v1891, 2147483648
    %v1904 = vor.u32 1.1754944e-38, %v1903
    %v1905 = vsel %vm1902, %v1904, %v1900
    %v1906 = vmul.f32 1.0, %v1905
    %v1907 = vadd.f32 %v683, %v1885
    %v1908 = vxor.u32 %v1907, 2147483648
    %v1909 = vmul.f32 %v1908, 1.442695
    %v1910 = vpow.pop %v1909
    %v1911 = vadd.f32 %v1910, 1.0
    %v1912 = vrcp.pop %v1911
    %v1913 = vmul.f32 %v1911, %v1912
    %v1914 = vsub.f32 1.0, %v1913
    %v1915 = vmul.f32 %v1912, %v1914
    %v1916 = vadd.f32 %v1912, %v1915
    %vm1917 = vweird.f32 %v1911
    %vm1918 = vweird.f32 %v1912
    %vm1919 = vmor %vm1917, %vm1918
    %v1920 = vsel %vm1919, %v1912, %v1916
    %v1921 = vand.u32 2147483647, %v1911
    %vm1922 = vcmp.eq.f32.partialorder %v1921, 8.507059e+37
    %v1923 = vand.u32 %v1911, 2147483648
    %v1924 = vor.u32 1.1754944e-38, %v1923
    %v1925 = vsel %vm1922, %v1924, %v1920
    %v1926 = vmul.f32 1.0, %v1925
    %1927 = vrot.lane.b32.xlu0 %v1881, 32
    %v1928 = vpop.permute.xlu0 %1927
    %v1930 = vmul.f32 %v1906, %v1928
    %1932 = vrot.lane.b32.xlu0 %v1930, 64
    %v1933 = vpop.permute.xlu0 %1932
    %v1935 = vadd.f32 %v683, %v1933
    %v1936 = vtanh.pop %v1935
    %v1937 = vsub.f32 1.0, %v1926
    %1939 = vrot.lane.b32.xlu0 %v1936, 96
    %v1940 = vpop.permute.xlu0 %1939
    %v1942 = vmul.f32 %v1937, %v1940
    %v1944 = vmul.f32 %v1926, %v1860
    %v1945 = vadd.f32 %v1942, %v1944
    %1948 = vrot.lane.b32.xlu0 %v1945, 32
    %v1949 = vpop.permute.xlu0 %1948
    %v1951 = vsel %vm701, %v852, %v1949
    %1952 = vrot.lane.b32.xlu0 %v917, 96
    %v1953 = vpop.permute.xlu0 %1952
    %1955 = vrot.lane.b32.xlu0 %v1789, 32
    %v1956 = vpop.permute.xlu0 %1955
    %v1958 = vsel %vm701, %v1953, %v1956
    %1959 = vrot.lane.b32.xlu0 %v1075, 96
    %v1960 = vpop.permute.xlu0 %1959
    %1962 = vrot.lane.b32.xlu0 %v1631, 32
    %v1963 = vpop.permute.xlu0 %1962
    %v1965 = vsel %vm701, %v1960, %v1963
    %1966 = vrot.lane.b32.xlu0 %v1233, 96
    %v1967 = vpop.permute.xlu0 %1966
    %1969 = vrot.lane.b32.xlu0 %v1474, 32
    %v1970 = vpop.permute.xlu0 %1969
    %v1972 = vsel %vm701, %v1967, %v1970
    %1974 = vrot.lane.b32.xlu0 %v1320, 32
    %v1975 = vpop.permute.xlu0 %1974
    %v1977 = vsel %vm701, %v1477, %v1975
    %1978 = vrot.lane.b32.xlu0 %v1542, 96
    %v1979 = vpop.permute.xlu0 %1978
    %1981 = vrot.lane.b32.xlu0 %v1164, 32
    %v1982 = vpop.permute.xlu0 %1981
    %v1984 = vsel %vm701, %v1979, %v1982
    %1985 = vrot.lane.b32.xlu0 %v1700, 96
    %v1986 = vpop.permute.xlu0 %1985
    %1988 = vrot.lane.b32.xlu0 %v1006, 32
    %v1989 = vpop.permute.xlu0 %1988
    %v1991 = vsel %vm701, %v1986, %v1989
    %1993 = vrot.lane.b32.xlu0 %v1858, 96
    %v1994 = vpop.permute.xlu0 %1993
    %1996 = vrot.lane.b32.xlu0 %v849, 32
    %v1997 = vpop.permute.xlu0 %1996
    %v1999 = vsel %vm701, %v1994, %v1997
    %vm2000 = vcmask 1041408
    %v2001 = vsel %vm2000, %v1951, %v1958
    %vm2002 = vcmask 1043456
    %v2003 = vsel %vm2002, %v2001, %v1965
    %vm2004 = vcmask 1045504
    %v2005 = vsel %vm2004, %v2003, %v1972
    %v2006 = vsel %vm2000, %v1977, %v1984
    %v2007 = vsel %vm2002, %v2006, %v1991
    %v2008 = vsel %vm2004, %v2007, %v1999
    %v2009 = vld [vmem:[#allocation8] sm:$0xff]
    %v2010 = vld [vmem:[#allocation8 + $0x8] sm:$0xff]
    %v2011 = vld [vmem:[#allocation8 + $0x10] sm:$0xff]
    %v2012 = vld [vmem:[#allocation8 + $0x18] sm:$0xff]
    %v2013 = vld [vmem:[#allocation8 + $0x20] sm:$0xff]
    %v2014 = vld [vmem:[#allocation8 + $0x28] sm:$0xff]
    %v2015 = vld [vmem:[#allocation8 + $0x30] sm:$0xff]
    %v2016 = vld [vmem:[#allocation8 + $0x38] sm:$0xff]
    %v2017 = vld [vmem:[#allocation8 + $0x40] sm:$0xff]
    %v2018 = vld [vmem:[#allocation8 + $0x48] sm:$0xff]
    %v2019 = vld [vmem:[#allocation8 + $0x50] sm:$0xff]
    %v2020 = vld [vmem:[#allocation8 + $0x58] sm:$0xff]
    %v2021 = vld [vmem:[#allocation8 + $0x60] sm:$0xff]
    %v2022 = vld [vmem:[#allocation8 + $0x68] sm:$0xff]
    %v2023 = vld [vmem:[#allocation8 + $0x70] sm:$0xff]
    %v2024 = vld [vmem:[#allocation8 + $0x78] sm:$0xff]
    %v2025 = vld [vmem:[#allocation10] sm:$0x3]
    %v2027 = vperm.slane %v2025, 0
    %v2028 = vperm.slane %v2025, 1
    %vm2031 = vcmask 523264
    %v2033 = vsel %vm2031, %v2005, 0
    %v2036 = vsel %vm2031, %v2008, 0
    %2038 = vmatpush.msra.mxu0 0.0
    %2039 = vmatpush.msra.mxu0 0.0
    %2040 = vmatpush.msra.mxu0 0.0
    %2041 = vmatpush.msra.mxu0 0.0
    %2042 = vmatpush.msra.mxu0 0.0
    %2043 = vmatpush.msra.mxu0 0.0
    %2044 = vmatpush.msra.mxu0 0.0
    %2045 = vmatpush.msra.mxu0 0.0
    %2046 = vmatpush.msra.mxu0 %v2023
    %2047 = vmatpush.msra.mxu0 %v2021
    %2048 = vmatpush.msra.mxu0 %v2019
    %2049 = vmatpush.msra.mxu0 %v2017
    %2050 = vmatpush.msra.mxu0 %v2015
    %2051 = vmatpush.msra.mxu0 %v2013
    %2052 = vmatpush.msra.mxu0 %v2011
    %2053 = vmatpush.msra.mxu0 %v2009
    %2054 = vmatmul.f32.gmra.mxu0 %v2033
    %v2055 = vpop.f32.mrf.mxu0
    %v2056 = vadd.f32 %v2027, %v2055
    %2057 = vmatmul.f32.gmra.mxu0 %v2036
    %v2058 = vpop.f32.mrf.mxu0
    %v2059 = vadd.f32 %v2027, %v2058
    %2060 = vdwg.mxu0
    %2061 = vmatpush.msra.mxu0 0.0
    %2062 = vmatpush.msra.mxu0 0.0
    %2063 = vmatpush.msra.mxu0 0.0
    %2064 = vmatpush.msra.mxu0 0.0
    %2065 = vmatpush.msra.mxu0 0.0
    %2066 = vmatpush.msra.mxu0 0.0
    %2067 = vmatpush.msra.mxu0 0.0
    %2068 = vmatpush.msra.mxu0 0.0
    %2069 = vmatpush.msra.mxu0 %v2024
    %2070 = vmatpush.msra.mxu0 %v2022
    %2071 = vmatpush.msra.mxu0 %v2020
    %2072 = vmatpush.msra.mxu0 %v2018
    %2073 = vmatpush.msra.mxu0 %v2016
    %2074 = vmatpush.msra.mxu0 %v2014
    %2075 = vmatpush.msra.mxu0 %v2012
    %2076 = vmatpush.msra.mxu0 %v2010
    %2077 = vmatmul.f32.gmra.mxu0 %v2033
    %v2078 = vpop.f32.mrf.mxu0
    %v2079 = vadd.f32 %v2028, %v2078
    %2080 = vmatmul.f32.gmra.mxu0 %v2036
    %v2081 = vpop.f32.mrf.mxu0
    %v2082 = vadd.f32 %v2028, %v2081
    %2083 = vdwg.mxu0
    %v2084 = vld [vmem:[#allocation11] sm:$0xff]
    %v2085 = vld [vmem:[#allocation11 + $0x8] sm:$0xff]
    %v2086 = vld [vmem:[#allocation11 + $0x10] sm:$0xff]
    %v2087 = vld [vmem:[#allocation11 + $0x18] sm:$0xff]
    %v2088 = vld [vmem:[#allocation13] sm:$0xff]
    %v2089 = vld [vmem:[#allocation13 + $0x8] sm:$0xff]
    %v2090 = vld [vmem:[#allocation13 + $0x10] sm:$0xff]
    %v2091 = vld [vmem:[#allocation13 + $0x18] sm:$0xff]
    %v2092 = vld [vmem:[#allocation14] sm:$0x1]
    %v2093 = vld [vmem:[#allocation16] sm:$0x1]
    %v2095 = vperm.slane %v2092, 0
    %2097 = vmatpush.msra.mxu0 0.0
    %2098 = vmatpush.msra.mxu0 0.0
    %2099 = vmatpush.msra.mxu0 0.0
    %2100 = vmatpush.msra.mxu0 0.0
    %2101 = vmatpush.msra.mxu0 0.0
    %2102 = vmatpush.msra.mxu0 0.0
    %2103 = vmatpush.msra.mxu0 0.0
    %2104 = vmatpush.msra.mxu0 0.0
    %2105 = vmatpush.msra.mxu0 0.0
    %2106 = vmatpush.msra.mxu0 0.0
    %2107 = vmatpush.msra.mxu0 0.0
    %2108 = vmatpush.msra.mxu0 0.0
    %2109 = vmatpush.msra.mxu0 %v2087
    %2110 = vmatpush.msra.mxu0 %v2086
    %2111 = vmatpush.msra.mxu0 %v2085
    %2112 = vmatpush.msra.mxu0 %v2084
    %2113 = vmatmul.f32.gmra.mxu0 %v703
    %v2114 = vpop.f32.mrf.mxu0
    %v2115 = vadd.f32 %v2095, %v2114
    %2116 = vdwg.mxu0
    %v2117 = vadd.f32 %v2056, %v2115
    %v2118 = vxor.u32 %v2117, 2147483648
    %v2119 = vmul.f32 %v2118, 1.442695
    %v2120 = vpow.pop %v2119
    %v2121 = vadd.f32 %v2120, 1.0
    %v2122 = vrcp.pop %v2121
    %v2123 = vmul.f32 %v2121, %v2122
    %v2124 = vsub.f32 1.0, %v2123
    %v2125 = vmul.f32 %v2122, %v2124
    %v2126 = vadd.f32 %v2122, %v2125
    %vm2127 = vweird.f32 %v2121
    %vm2128 = vweird.f32 %v2122
    %vm2129 = vmor %vm2127, %vm2128
    %v2130 = vsel %vm2129, %v2122, %v2126
    %v2131 = vand.u32 2147483647, %v2121
    %vm2132 = vcmp.eq.f32.partialorder %v2131, 8.507059e+37
    %v2133 = vand.u32 %v2121, 2147483648
    %v2134 = vor.u32 1.1754944e-38, %v2133
    %v2135 = vsel %vm2132, %v2134, %v2130
    %v2136 = vmul.f32 1.0, %v2135
    %2138 = vrot.lane.b32.xlu0 %v2115, 64
    %v2139 = vpop.permute.xlu0 %2138
    %v2141 = vmul.f32 %v2136, %v2139
    %2143 = vrot.lane.b32.xlu0 %v2141, 64
    %v2144 = vpop.permute.xlu0 %2143
    %v2146 = vadd.f32 %v2056, %v2144
    %v2147 = vtanh.pop %v2146
    %v2148 = vsub.f32 1.0, %v2136
    %2150 = vrot.lane.b32.xlu0 %v2147, 96
    %v2151 = vpop.permute.xlu0 %2150
    %v2153 = vmul.f32 %v2148, %v2151
    %v2154 = vmul.f32 %v2136, 0.0
    %v2155 = vadd.f32 %v2153, %v2154
    %v2157 = vperm.slane %v2093, 0
    %2159 = vmatpush.msra.mxu0 0.0
    %2160 = vmatpush.msra.mxu0 0.0
    %2161 = vmatpush.msra.mxu0 0.0
    %2162 = vmatpush.msra.mxu0 0.0
    %2163 = vmatpush.msra.mxu0 0.0
    %2164 = vmatpush.msra.mxu0 0.0
    %2165 = vmatpush.msra.mxu0 0.0
    %2166 = vmatpush.msra.mxu0 0.0
    %2167 = vmatpush.msra.mxu0 0.0
    %2168 = vmatpush.msra.mxu0 0.0
    %2169 = vmatpush.msra.mxu0 0.0
    %2170 = vmatpush.msra.mxu0 0.0
    %2171 = vmatpush.msra.mxu0 %v2091
    %2172 = vmatpush.msra.mxu0 %v2090
    %2173 = vmatpush.msra.mxu0 %v2089
    %2174 = vmatpush.msra.mxu0 %v2088
    %2175 = vmatmul.f32.gmra.mxu0 %v703
    %v2176 = vpop.f32.mrf.mxu0
    %v2177 = vadd.f32 %v2157, %v2176
    %2178 = vdwg.mxu0
    %v2180 = vrot.slane %v2177, 2
    %2181 = vrot.lane.b32.xlu0 %v2180, 96
    %v2182 = vpop.permute.xlu0 %2181
    %v2184 = vadd.f32 %v2059, %v2182
    %v2185 = vxor.u32 %v2184, 2147483648
    %v2186 = vmul.f32 %v2185, 1.442695
    %v2187 = vpow.pop %v2186
    %v2188 = vadd.f32 %v2187, 1.0
    %v2189 = vrcp.pop %v2188
    %v2190 = vmul.f32 %v2188, %v2189
    %v2191 = vsub.f32 1.0, %v2190
    %v2192 = vmul.f32 %v2189, %v2191
    %v2193 = vadd.f32 %v2189, %v2192
    %vm2194 = vweird.f32 %v2188
    %vm2195 = vweird.f32 %v2189
    %vm2196 = vmor %vm2194, %vm2195
    %v2197 = vsel %vm2196, %v2189, %v2193
    %v2198 = vand.u32 2147483647, %v2188
    %vm2199 = vcmp.eq.f32.partialorder %v2198, 8.507059e+37
    %v2200 = vand.u32 %v2188, 2147483648
    %v2201 = vor.u32 1.1754944e-38, %v2200
    %v2202 = vsel %vm2199, %v2201, %v2197
    %v2203 = vmul.f32 1.0, %v2202
    %v2204 = vadd.f32 %v2082, %v2182
    %v2205 = vxor.u32 %v2204, 2147483648
    %v2206 = vmul.f32 %v2205, 1.442695
    %v2207 = vpow.pop %v2206
    %v2208 = vadd.f32 %v2207, 1.0
    %v2209 = vrcp.pop %v2208
    %v2210 = vmul.f32 %v2208, %v2209
    %v2211 = vsub.f32 1.0, %v2210
    %v2212 = vmul.f32 %v2209, %v2211
    %v2213 = vadd.f32 %v2209, %v2212
    %vm2214 = vweird.f32 %v2208
    %vm2215 = vweird.f32 %v2209
    %vm2216 = vmor %vm2214, %vm2215
    %v2217 = vsel %vm2216, %v2209, %v2213
    %v2218 = vand.u32 2147483647, %v2208
    %vm2219 = vcmp.eq.f32.partialorder %v2218, 8.507059e+37
    %v2220 = vand.u32 %v2208, 2147483648
    %v2221 = vor.u32 1.1754944e-38, %v2220
    %v2222 = vsel %vm2219, %v2221, %v2217
    %v2223 = vmul.f32 1.0, %v2222
    %2224 = vrot.lane.b32.xlu0 %v2180, 32
    %v2225 = vpop.permute.xlu0 %2224
    %v2227 = vmul.f32 %v2203, %v2225
    %2229 = vrot.lane.b32.xlu0 %v2227, 64
    %v2230 = vpop.permute.xlu0 %2229
    %v2232 = vadd.f32 %v2082, %v2230
    %v2233 = vtanh.pop %v2232
    %v2234 = vsub.f32 1.0, %v2223
    %2236 = vrot.lane.b32.xlu0 %v2233, 96
    %v2237 = vpop.permute.xlu0 %2236
    %v2239 = vmul.f32 %v2234, %v2237
    %v2240 = vmul.f32 %v2223, 0.0
    %v2241 = vadd.f32 %v2239, %v2240
    %2243 = vrot.lane.b32.xlu0 %v2155, 96
    %v2244 = vpop.permute.xlu0 %2243
    %v2245 = vsel %vm701, %v2244, 0
    %2247 = vmatpush.msra.mxu0 0.0
    %2248 = vmatpush.msra.mxu0 0.0
    %2249 = vmatpush.msra.mxu0 0.0
    %2250 = vmatpush.msra.mxu0 0.0
    %2251 = vmatpush.msra.mxu0 0.0
    %2252 = vmatpush.msra.mxu0 0.0
    %2253 = vmatpush.msra.mxu0 0.0
    %2254 = vmatpush.msra.mxu0 0.0
    %2255 = vmatpush.msra.mxu0 0.0
    %2256 = vmatpush.msra.mxu0 0.0
    %2257 = vmatpush.msra.mxu0 0.0
    %2258 = vmatpush.msra.mxu0 0.0
    %2259 = vmatpush.msra.mxu0 %v2087
    %2260 = vmatpush.msra.mxu0 %v2086
    %2261 = vmatpush.msra.mxu0 %v2085
    %2262 = vmatpush.msra.mxu0 %v2084
    %2263 = vmatmul.f32.gmra.mxu0 %v2245
    %v2264 = vpop.f32.mrf.mxu0
    %v2265 = vadd.f32 %v2095, %v2264
    %2266 = vdwg.mxu0
    %v2268 = vrot.slane %v2265, 6
    %v2270 = vadd.f32 %v2056, %v2268
    %v2271 = vxor.u32 %v2270, 2147483648
    %v2272 = vmul.f32 %v2271, 1.442695
    %v2273 = vpow.pop %v2272
    %v2274 = vadd.f32 %v2273, 1.0
    %v2275 = vrcp.pop %v2274
    %v2276 = vmul.f32 %v2274, %v2275
    %v2277 = vsub.f32 1.0, %v2276
    %v2278 = vmul.f32 %v2275, %v2277
    %v2279 = vadd.f32 %v2275, %v2278
    %vm2280 = vweird.f32 %v2274
    %vm2281 = vweird.f32 %v2275
    %vm2282 = vmor %vm2280, %vm2281
    %v2283 = vsel %vm2282, %v2275, %v2279
    %v2284 = vand.u32 2147483647, %v2274
    %vm2285 = vcmp.eq.f32.partialorder %v2284, 8.507059e+37
    %v2286 = vand.u32 %v2274, 2147483648
    %v2287 = vor.u32 1.1754944e-38, %v2286
    %v2288 = vsel %vm2285, %v2287, %v2283
    %v2289 = vmul.f32 1.0, %v2288
    %2290 = vrot.lane.b32.xlu0 %v2268, 64
    %v2291 = vpop.permute.xlu0 %2290
    %v2293 = vmul.f32 %v2289, %v2291
    %2295 = vrot.lane.b32.xlu0 %v2293, 64
    %v2296 = vpop.permute.xlu0 %2295
    %v2298 = vadd.f32 %v2056, %v2296
    %v2299 = vtanh.pop %v2298
    %v2300 = vsub.f32 1.0, %v2289
    %2302 = vrot.lane.b32.xlu0 %v2299, 96
    %v2303 = vpop.permute.xlu0 %2302
    %v2305 = vmul.f32 %v2300, %v2303
    %v2306 = vrot.slane %v2155, 6
    %v2308 = vmul.f32 %v2289, %v2306
    %v2309 = vadd.f32 %v2305, %v2308
    %v2311 = vrot.slane %v2241, 6
    %v2312 = vsel %vm701, %v2311, 0
    %2314 = vmatpush.msra.mxu0 0.0
    %2315 = vmatpush.msra.mxu0 0.0
    %2316 = vmatpush.msra.mxu0 0.0
    %2317 = vmatpush.msra.mxu0 0.0
    %2318 = vmatpush.msra.mxu0 0.0
    %2319 = vmatpush.msra.mxu0 0.0
    %2320 = vmatpush.msra.mxu0 0.0
    %2321 = vmatpush.msra.mxu0 0.0
    %2322 = vmatpush.msra.mxu0 0.0
    %2323 = vmatpush.msra.mxu0 0.0
    %2324 = vmatpush.msra.mxu0 0.0
    %2325 = vmatpush.msra.mxu0 0.0
    %2326 = vmatpush.msra.mxu0 %v2091
    %2327 = vmatpush.msra.mxu0 %v2090
    %2328 = vmatpush.msra.mxu0 %v2089
    %2329 = vmatpush.msra.mxu0 %v2088
    %2330 = vmatmul.f32.gmra.mxu0 %v2312
    %v2331 = vpop.f32.mrf.mxu0
    %v2332 = vadd.f32 %v2157, %v2331
    %2333 = vdwg.mxu0
    %v2335 = vrot.slane %v2332, 4
    %2336 = vrot.lane.b32.xlu0 %v2335, 96
    %v2337 = vpop.permute.xlu0 %2336
    %v2339 = vadd.f32 %v2059, %v2337
    %v2340 = vxor.u32 %v2339, 2147483648
    %v2341 = vmul.f32 %v2340, 1.442695
    %v2342 = vpow.pop %v2341
    %v2343 = vadd.f32 %v2342, 1.0
    %v2344 = vrcp.pop %v2343
    %v2345 = vmul.f32 %v2343, %v2344
    %v2346 = vsub.f32 1.0, %v2345
    %v2347 = vmul.f32 %v2344, %v2346
    %v2348 = vadd.f32 %v2344, %v2347
    %vm2349 = vweird.f32 %v2343
    %vm2350 = vweird.f32 %v2344
    %vm2351 = vmor %vm2349, %vm2350
    %v2352 = vsel %vm2351, %v2344, %v2348
    %v2353 = vand.u32 2147483647, %v2343
    %vm2354 = vcmp.eq.f32.partialorder %v2353, 8.507059e+37
    %v2355 = vand.u32 %v2343, 2147483648
    %v2356 = vor.u32 1.1754944e-38, %v2355
    %v2357 = vsel %vm2354, %v2356, %v2352
    %v2358 = vmul.f32 1.0, %v2357
    %v2359 = vadd.f32 %v2082, %v2337
    %v2360 = vxor.u32 %v2359, 2147483648
    %v2361 = vmul.f32 %v2360, 1.442695
    %v2362 = vpow.pop %v2361
    %v2363 = vadd.f32 %v2362, 1.0
    %v2364 = vrcp.pop %v2363
    %v2365 = vmul.f32 %v2363, %v2364
    %v2366 = vsub.f32 1.0, %v2365
    %v2367 = vmul.f32 %v2364, %v2366
    %v2368 = vadd.f32 %v2364, %v2367
    %vm2369 = vweird.f32 %v2363
    %vm2370 = vweird.f32 %v2364
    %vm2371 = vmor %vm2369, %vm2370
    %v2372 = vsel %vm2371, %v2364, %v2368
    %v2373 = vand.u32 2147483647, %v2363
    %vm2374 = vcmp.eq.f32.partialorder %v2373, 8.507059e+37
    %v2375 = vand.u32 %v2363, 2147483648
    %v2376 = vor.u32 1.1754944e-38, %v2375
    %v2377 = vsel %vm2374, %v2376, %v2372
    %v2378 = vmul.f32 1.0, %v2377
    %2379 = vrot.lane.b32.xlu0 %v2335, 32
    %v2380 = vpop.permute.xlu0 %2379
    %v2382 = vmul.f32 %v2358, %v2380
    %2384 = vrot.lane.b32.xlu0 %v2382, 64
    %v2385 = vpop.permute.xlu0 %2384
    %v2387 = vadd.f32 %v2082, %v2385
    %v2388 = vtanh.pop %v2387
    %v2389 = vsub.f32 1.0, %v2378
    %2391 = vrot.lane.b32.xlu0 %v2388, 96
    %v2392 = vpop.permute.xlu0 %2391
    %v2394 = vmul.f32 %v2389, %v2392
    %v2395 = vrot.slane %v2241, 2
    %v2397 = vmul.f32 %v2378, %v2395
    %v2398 = vadd.f32 %v2394, %v2397
    %v2400 = vrot.slane %v2309, 2
    %2401 = vrot.lane.b32.xlu0 %v2400, 96
    %v2402 = vpop.permute.xlu0 %2401
    %v2403 = vsel %vm701, %v2402, 0
    %2405 = vmatpush.msra.mxu0 0.0
    %2406 = vmatpush.msra.mxu0 0.0
    %2407 = vmatpush.msra.mxu0 0.0
    %2408 = vmatpush.msra.mxu0 0.0
    %2409 = vmatpush.msra.mxu0 0.0
    %2410 = vmatpush.msra.mxu0 0.0
    %2411 = vmatpush.msra.mxu0 0.0
    %2412 = vmatpush.msra.mxu0 0.0
    %2413 = vmatpush.msra.mxu0 0.0
    %2414 = vmatpush.msra.mxu0 0.0
    %2415 = vmatpush.msra.mxu0 0.0
    %2416 = vmatpush.msra.mxu0 0.0
    %2417 = vmatpush.msra.mxu0 %v2087
    %2418 = vmatpush.msra.mxu0 %v2086
    %2419 = vmatpush.msra.mxu0 %v2085
    %2420 = vmatpush.msra.mxu0 %v2084
    %2421 = vmatmul.f32.gmra.mxu0 %v2403
    %v2422 = vpop.f32.mrf.mxu0
    %v2423 = vadd.f32 %v2095, %v2422
    %2424 = vdwg.mxu0
    %v2426 = vrot.slane %v2423, 4
    %v2428 = vadd.f32 %v2056, %v2426
    %v2429 = vxor.u32 %v2428, 2147483648
    %v2430 = vmul.f32 %v2429, 1.442695
    %v2431 = vpow.pop %v2430
    %v2432 = vadd.f32 %v2431, 1.0
    %v2433 = vrcp.pop %v2432
    %v2434 = vmul.f32 %v2432, %v2433
    %v2435 = vsub.f32 1.0, %v2434
    %v2436 = vmul.f32 %v2433, %v2435
    %v2437 = vadd.f32 %v2433, %v2436
    %vm2438 = vweird.f32 %v2432
    %vm2439 = vweird.f32 %v2433
    %vm2440 = vmor %vm2438, %vm2439
    %v2441 = vsel %vm2440, %v2433, %v2437
    %v2442 = vand.u32 2147483647, %v2432
    %vm2443 = vcmp.eq.f32.partialorder %v2442, 8.507059e+37
    %v2444 = vand.u32 %v2432, 2147483648
    %v2445 = vor.u32 1.1754944e-38, %v2444
    %v2446 = vsel %vm2443, %v2445, %v2441
    %v2447 = vmul.f32 1.0, %v2446
    %2448 = vrot.lane.b32.xlu0 %v2426, 64
    %v2449 = vpop.permute.xlu0 %2448
    %v2451 = vmul.f32 %v2447, %v2449
    %2453 = vrot.lane.b32.xlu0 %v2451, 64
    %v2454 = vpop.permute.xlu0 %2453
    %v2456 = vadd.f32 %v2056, %v2454
    %v2457 = vtanh.pop %v2456
    %v2458 = vsub.f32 1.0, %v2447
    %2460 = vrot.lane.b32.xlu0 %v2457, 96
    %v2461 = vpop.permute.xlu0 %2460
    %v2463 = vmul.f32 %v2458, %v2461
    %v2464 = vrot.slane %v2309, 6
    %v2466 = vmul.f32 %v2447, %v2464
    %v2467 = vadd.f32 %v2463, %v2466
    %v2469 = vrot.slane %v2398, 4
    %v2470 = vsel %vm701, %v2469, 0
    %2472 = vmatpush.msra.mxu0 0.0
    %2473 = vmatpush.msra.mxu0 0.0
    %2474 = vmatpush.msra.mxu0 0.0
    %2475 = vmatpush.msra.mxu0 0.0
    %2476 = vmatpush.msra.mxu0 0.0
    %2477 = vmatpush.msra.mxu0 0.0
    %2478 = vmatpush.msra.mxu0 0.0
    %2479 = vmatpush.msra.mxu0 0.0
    %2480 = vmatpush.msra.mxu0 0.0
    %2481 = vmatpush.msra.mxu0 0.0
    %2482 = vmatpush.msra.mxu0 0.0
    %2483 = vmatpush.msra.mxu0 0.0
    %2484 = vmatpush.msra.mxu0 %v2091
    %2485 = vmatpush.msra.mxu0 %v2090
    %2486 = vmatpush.msra.mxu0 %v2089
    %2487 = vmatpush.msra.mxu0 %v2088
    %2488 = vmatmul.f32.gmra.mxu0 %v2470
    %v2489 = vpop.f32.mrf.mxu0
    %v2490 = vadd.f32 %v2157, %v2489
    %2491 = vdwg.mxu0
    %v2493 = vrot.slane %v2490, 6
    %2494 = vrot.lane.b32.xlu0 %v2493, 96
    %v2495 = vpop.permute.xlu0 %2494
    %v2497 = vadd.f32 %v2059, %v2495
    %v2498 = vxor.u32 %v2497, 2147483648
    %v2499 = vmul.f32 %v2498, 1.442695
    %v2500 = vpow.pop %v2499
    %v2501 = vadd.f32 %v2500, 1.0
    %v2502 = vrcp.pop %v2501
    %v2503 = vmul.f32 %v2501, %v2502
    %v2504 = vsub.f32 1.0, %v2503
    %v2505 = vmul.f32 %v2502, %v2504
    %v2506 = vadd.f32 %v2502, %v2505
    %vm2507 = vweird.f32 %v2501
    %vm2508 = vweird.f32 %v2502
    %vm2509 = vmor %vm2507, %vm2508
    %v2510 = vsel %vm2509, %v2502, %v2506
    %v2511 = vand.u32 2147483647, %v2501
    %vm2512 = vcmp.eq.f32.partialorder %v2511, 8.507059e+37
    %v2513 = vand.u32 %v2501, 2147483648
    %v2514 = vor.u32 1.1754944e-38, %v2513
    %v2515 = vsel %vm2512, %v2514, %v2510
    %v2516 = vmul.f32 1.0, %v2515
    %v2517 = vadd.f32 %v2082, %v2495
    %v2518 = vxor.u32 %v2517, 2147483648
    %v2519 = vmul.f32 %v2518, 1.442695
    %v2520 = vpow.pop %v2519
    %v2521 = vadd.f32 %v2520, 1.0
    %v2522 = vrcp.pop %v2521
    %v2523 = vmul.f32 %v2521, %v2522
    %v2524 = vsub.f32 1.0, %v2523
    %v2525 = vmul.f32 %v2522, %v2524
    %v2526 = vadd.f32 %v2522, %v2525
    %vm2527 = vweird.f32 %v2521
    %vm2528 = vweird.f32 %v2522
    %vm2529 = vmor %vm2527, %vm2528
    %v2530 = vsel %vm2529, %v2522, %v2526
    %v2531 = vand.u32 2147483647, %v2521
    %vm2532 = vcmp.eq.f32.partialorder %v2531, 8.507059e+37
    %v2533 = vand.u32 %v2521, 2147483648
    %v2534 = vor.u32 1.1754944e-38, %v2533
    %v2535 = vsel %vm2532, %v2534, %v2530
    %v2536 = vmul.f32 1.0, %v2535
    %2537 = vrot.lane.b32.xlu0 %v2493, 32
    %v2538 = vpop.permute.xlu0 %2537
    %v2540 = vmul.f32 %v2516, %v2538
    %2542 = vrot.lane.b32.xlu0 %v2540, 64
    %v2543 = vpop.permute.xlu0 %2542
    %v2545 = vadd.f32 %v2082, %v2543
    %v2546 = vtanh.pop %v2545
    %v2547 = vsub.f32 1.0, %v2536
    %2549 = vrot.lane.b32.xlu0 %v2546, 96
    %v2550 = vpop.permute.xlu0 %2549
    %v2552 = vmul.f32 %v2547, %v2550
    %v2553 = vrot.slane %v2398, 2
    %v2555 = vmul.f32 %v2536, %v2553
    %v2556 = vadd.f32 %v2552, %v2555
    %v2558 = vrot.slane %v2467, 4
    %2559 = vrot.lane.b32.xlu0 %v2558, 96
    %v2560 = vpop.permute.xlu0 %2559
    %v2561 = vsel %vm701, %v2560, 0
    %2563 = vmatpush.msra.mxu0 0.0
    %2564 = vmatpush.msra.mxu0 0.0
    %2565 = vmatpush.msra.mxu0 0.0
    %2566 = vmatpush.msra.mxu0 0.0
    %2567 = vmatpush.msra.mxu0 0.0
    %2568 = vmatpush.msra.mxu0 0.0
    %2569 = vmatpush.msra.mxu0 0.0
    %2570 = vmatpush.msra.mxu0 0.0
    %2571 = vmatpush.msra.mxu0 0.0
    %2572 = vmatpush.msra.mxu0 0.0
    %2573 = vmatpush.msra.mxu0 0.0
    %2574 = vmatpush.msra.mxu0 0.0
    %2575 = vmatpush.msra.mxu0 %v2087
    %2576 = vmatpush.msra.mxu0 %v2086
    %2577 = vmatpush.msra.mxu0 %v2085
    %2578 = vmatpush.msra.mxu0 %v2084
    %2579 = vmatmul.f32.gmra.mxu0 %v2561
    %v2580 = vpop.f32.mrf.mxu0
    %v2581 = vadd.f32 %v2095, %v2580
    %2582 = vdwg.mxu0
    %v2584 = vrot.slane %v2581, 2
    %v2586 = vadd.f32 %v2056, %v2584
    %v2587 = vxor.u32 %v2586, 2147483648
    %v2588 = vmul.f32 %v2587, 1.442695
    %v2589 = vpow.pop %v2588
    %v2590 = vadd.f32 %v2589, 1.0
    %v2591 = vrcp.pop %v2590
    %v2592 = vmul.f32 %v2590, %v2591
    %v2593 = vsub.f32 1.0, %v2592
    %v2594 = vmul.f32 %v2591, %v2593
    %v2595 = vadd.f32 %v2591, %v2594
    %vm2596 = vweird.f32 %v2590
    %vm2597 = vweird.f32 %v2591
    %vm2598 = vmor %vm2596, %vm2597
    %v2599 = vsel %vm2598, %v2591, %v2595
    %v2600 = vand.u32 2147483647, %v2590
    %vm2601 = vcmp.eq.f32.partialorder %v2600, 8.507059e+37
    %v2602 = vand.u32 %v2590, 2147483648
    %v2603 = vor.u32 1.1754944e-38, %v2602
    %v2604 = vsel %vm2601, %v2603, %v2599
    %v2605 = vmul.f32 1.0, %v2604
    %2606 = vrot.lane.b32.xlu0 %v2584, 64
    %v2607 = vpop.permute.xlu0 %2606
    %v2609 = vmul.f32 %v2605, %v2607
    %2611 = vrot.lane.b32.xlu0 %v2609, 64
    %v2612 = vpop.permute.xlu0 %2611
    %v2614 = vadd.f32 %v2056, %v2612
    %v2615 = vtanh.pop %v2614
    %v2616 = vsub.f32 1.0, %v2605
    %2618 = vrot.lane.b32.xlu0 %v2615, 96
    %v2619 = vpop.permute.xlu0 %2618
    %v2621 = vmul.f32 %v2616, %v2619
    %v2622 = vrot.slane %v2467, 6
    %v2624 = vmul.f32 %v2605, %v2622
    %v2625 = vadd.f32 %v2621, %v2624
    %v2627 = vrot.slane %v2556, 2
    %v2628 = vsel %vm701, %v2627, 0
    %2630 = vmatpush.msra.mxu0 0.0
    %2631 = vmatpush.msra.mxu0 0.0
    %2632 = vmatpush.msra.mxu0 0.0
    %2633 = vmatpush.msra.mxu0 0.0
    %2634 = vmatpush.msra.mxu0 0.0
    %2635 = vmatpush.msra.mxu0 0.0
    %2636 = vmatpush.msra.mxu0 0.0
    %2637 = vmatpush.msra.mxu0 0.0
    %2638 = vmatpush.msra.mxu0 0.0
    %2639 = vmatpush.msra.mxu0 0.0
    %2640 = vmatpush.msra.mxu0 0.0
    %2641 = vmatpush.msra.mxu0 0.0
    %2642 = vmatpush.msra.mxu0 %v2091
    %2643 = vmatpush.msra.mxu0 %v2090
    %2644 = vmatpush.msra.mxu0 %v2089
    %2645 = vmatpush.msra.mxu0 %v2088
    %2646 = vmatmul.f32.gmra.mxu0 %v2628
    %v2647 = vpop.f32.mrf.mxu0
    %v2648 = vadd.f32 %v2157, %v2647
    %2649 = vdwg.mxu0
    %2651 = vrot.lane.b32.xlu0 %v2648, 96
    %v2652 = vpop.permute.xlu0 %2651
    %v2654 = vadd.f32 %v2059, %v2652
    %v2655 = vxor.u32 %v2654, 2147483648
    %v2656 = vmul.f32 %v2655, 1.442695
    %v2657 = vpow.pop %v2656
    %v2658 = vadd.f32 %v2657, 1.0
    %v2659 = vrcp.pop %v2658
    %v2660 = vmul.f32 %v2658, %v2659
    %v2661 = vsub.f32 1.0, %v2660
    %v2662 = vmul.f32 %v2659, %v2661
    %v2663 = vadd.f32 %v2659, %v2662
    %vm2664 = vweird.f32 %v2658
    %vm2665 = vweird.f32 %v2659
    %vm2666 = vmor %vm2664, %vm2665
    %v2667 = vsel %vm2666, %v2659, %v2663
    %v2668 = vand.u32 2147483647, %v2658
    %vm2669 = vcmp.eq.f32.partialorder %v2668, 8.507059e+37
    %v2670 = vand.u32 %v2658, 2147483648
    %v2671 = vor.u32 1.1754944e-38, %v2670
    %v2672 = vsel %vm2669, %v2671, %v2667
    %v2673 = vmul.f32 1.0, %v2672
    %v2674 = vadd.f32 %v2082, %v2652
    %v2675 = vxor.u32 %v2674, 2147483648
    %v2676 = vmul.f32 %v2675, 1.442695
    %v2677 = vpow.pop %v2676
    %v2678 = vadd.f32 %v2677, 1.0
    %v2679 = vrcp.pop %v2678
    %v2680 = vmul.f32 %v2678, %v2679
    %v2681 = vsub.f32 1.0, %v2680
    %v2682 = vmul.f32 %v2679, %v2681
    %v2683 = vadd.f32 %v2679, %v2682
    %vm2684 = vweird.f32 %v2678
    %vm2685 = vweird.f32 %v2679
    %vm2686 = vmor %vm2684, %vm2685
    %v2687 = vsel %vm2686, %v2679, %v2683
    %v2688 = vand.u32 2147483647, %v2678
    %vm2689 = vcmp.eq.f32.partialorder %v2688, 8.507059e+37
    %v2690 = vand.u32 %v2678, 2147483648
    %v2691 = vor.u32 1.1754944e-38, %v2690
    %v2692 = vsel %vm2689, %v2691, %v2687
    %v2693 = vmul.f32 1.0, %v2692
    %2694 = vrot.lane.b32.xlu0 %v2648, 32
    %v2695 = vpop.permute.xlu0 %2694
    %v2697 = vmul.f32 %v2673, %v2695
    %2699 = vrot.lane.b32.xlu0 %v2697, 64
    %v2700 = vpop.permute.xlu0 %2699
    %v2702 = vadd.f32 %v2082, %v2700
    %v2703 = vtanh.pop %v2702
    %v2704 = vsub.f32 1.0, %v2693
    %2706 = vrot.lane.b32.xlu0 %v2703, 96
    %v2707 = vpop.permute.xlu0 %2706
    %v2709 = vmul.f32 %v2704, %v2707
    %v2711 = vmul.f32 %v2693, %v2627
    %v2712 = vadd.f32 %v2709, %v2711
    %v2714 = vrot.slane %v2625, 6
    %2715 = vrot.lane.b32.xlu0 %v2714, 96
    %v2716 = vpop.permute.xlu0 %2715
    %v2717 = vsel %vm701, %v2716, 0
    %2719 = vmatpush.msra.mxu0 0.0
    %2720 = vmatpush.msra.mxu0 0.0
    %2721 = vmatpush.msra.mxu0 0.0
    %2722 = vmatpush.msra.mxu0 0.0
    %2723 = vmatpush.msra.mxu0 0.0
    %2724 = vmatpush.msra.mxu0 0.0
    %2725 = vmatpush.msra.mxu0 0.0
    %2726 = vmatpush.msra.mxu0 0.0
    %2727 = vmatpush.msra.mxu0 0.0
    %2728 = vmatpush.msra.mxu0 0.0
    %2729 = vmatpush.msra.mxu0 0.0
    %2730 = vmatpush.msra.mxu0 0.0
    %2731 = vmatpush.msra.mxu0 %v2087
    %2732 = vmatpush.msra.mxu0 %v2086
    %2733 = vmatpush.msra.mxu0 %v2085
    %2734 = vmatpush.msra.mxu0 %v2084
    %2735 = vmatmul.f32.gmra.mxu0 %v2717
    %v2736 = vpop.f32.mrf.mxu0
    %v2737 = vadd.f32 %v2095, %v2736
    %2738 = vdwg.mxu0
    %v2739 = vadd.f32 %v2059, %v2737
    %v2740 = vxor.u32 %v2739, 2147483648
    %v2741 = vmul.f32 %v2740, 1.442695
    %v2742 = vpow.pop %v2741
    %v2743 = vadd.f32 %v2742, 1.0
    %v2744 = vrcp.pop %v2743
    %v2745 = vmul.f32 %v2743, %v2744
    %v2746 = vsub.f32 1.0, %v2745
    %v2747 = vmul.f32 %v2744, %v2746
    %v2748 = vadd.f32 %v2744, %v2747
    %vm2749 = vweird.f32 %v2743
    %vm2750 = vweird.f32 %v2744
    %vm2751 = vmor %vm2749, %vm2750
    %v2752 = vsel %vm2751, %v2744, %v2748
    %v2753 = vand.u32 2147483647, %v2743
    %vm2754 = vcmp.eq.f32.partialorder %v2753, 8.507059e+37
    %v2755 = vand.u32 %v2743, 2147483648
    %v2756 = vor.u32 1.1754944e-38, %v2755
    %v2757 = vsel %vm2754, %v2756, %v2752
    %v2758 = vmul.f32 1.0, %v2757
    %2760 = vrot.lane.b32.xlu0 %v2737, 64
    %v2761 = vpop.permute.xlu0 %2760
    %v2763 = vmul.f32 %v2758, %v2761
    %2765 = vrot.lane.b32.xlu0 %v2763, 64
    %v2766 = vpop.permute.xlu0 %2765
    %v2768 = vadd.f32 %v2059, %v2766
    %v2769 = vtanh.pop %v2768
    %v2770 = vsub.f32 1.0, %v2758
    %2772 = vrot.lane.b32.xlu0 %v2769, 96
    %v2773 = vpop.permute.xlu0 %2772
    %v2775 = vmul.f32 %v2770, %v2773
    %v2777 = vmul.f32 %v2758, %v2714
    %v2778 = vadd.f32 %v2775, %v2777
    %v2780 = vsel %vm701, %v2712, 0
    %2782 = vmatpush.msra.mxu0 0.0
    %2783 = vmatpush.msra.mxu0 0.0
    %2784 = vmatpush.msra.mxu0 0.0
    %2785 = vmatpush.msra.mxu0 0.0
    %2786 = vmatpush.msra.mxu0 0.0
    %2787 = vmatpush.msra.mxu0 0.0
    %2788 = vmatpush.msra.mxu0 0.0
    %2789 = vmatpush.msra.mxu0 0.0
    %2790 = vmatpush.msra.mxu0 0.0
    %2791 = vmatpush.msra.mxu0 0.0
    %2792 = vmatpush.msra.mxu0 0.0
    %2793 = vmatpush.msra.mxu0 0.0
    %2794 = vmatpush.msra.mxu0 %v2091
    %2795 = vmatpush.msra.mxu0 %v2090
    %2796 = vmatpush.msra.mxu0 %v2089
    %2797 = vmatpush.msra.mxu0 %v2088
    %2798 = vmatmul.f32.gmra.mxu0 %v2780
    %v2799 = vpop.f32.mrf.mxu0
    %v2800 = vadd.f32 %v2157, %v2799
    %2801 = vdwg.mxu0
    %v2803 = vrot.slane %v2800, 2
    %2804 = vrot.lane.b32.xlu0 %v2803, 96
    %v2805 = vpop.permute.xlu0 %2804
    %v2807 = vadd.f32 %v2056, %v2805
    %v2808 = vxor.u32 %v2807, 2147483648
    %v2809 = vmul.f32 %v2808, 1.442695
    %v2810 = vpow.pop %v2809
    %v2811 = vadd.f32 %v2810, 1.0
    %v2812 = vrcp.pop %v2811
    %v2813 = vmul.f32 %v2811, %v2812
    %v2814 = vsub.f32 1.0, %v2813
    %v2815 = vmul.f32 %v2812, %v2814
    %v2816 = vadd.f32 %v2812, %v2815
    %vm2817 = vweird.f32 %v2811
    %vm2818 = vweird.f32 %v2812
    %vm2819 = vmor %vm2817, %vm2818
    %v2820 = vsel %vm2819, %v2812, %v2816
    %v2821 = vand.u32 2147483647, %v2811
    %vm2822 = vcmp.eq.f32.partialorder %v2821, 8.507059e+37
    %v2823 = vand.u32 %v2811, 2147483648
    %v2824 = vor.u32 1.1754944e-38, %v2823
    %v2825 = vsel %vm2822, %v2824, %v2820
    %v2826 = vmul.f32 1.0, %v2825
    %v2827 = vadd.f32 %v2079, %v2805
    %v2828 = vxor.u32 %v2827, 2147483648
    %v2829 = vmul.f32 %v2828, 1.442695
    %v2830 = vpow.pop %v2829
    %v2831 = vadd.f32 %v2830, 1.0
    %v2832 = vrcp.pop %v2831
    %v2833 = vmul.f32 %v2831, %v2832
    %v2834 = vsub.f32 1.0, %v2833
    %v2835 = vmul.f32 %v2832, %v2834
    %v2836 = vadd.f32 %v2832, %v2835
    %vm2837 = vweird.f32 %v2831
    %vm2838 = vweird.f32 %v2832
    %vm2839 = vmor %vm2837, %vm2838
    %v2840 = vsel %vm2839, %v2832, %v2836
    %v2841 = vand.u32 2147483647, %v2831
    %vm2842 = vcmp.eq.f32.partialorder %v2841, 8.507059e+37
    %v2843 = vand.u32 %v2831, 2147483648
    %v2844 = vor.u32 1.1754944e-38, %v2843
    %v2845 = vsel %vm2842, %v2844, %v2840
    %v2846 = vmul.f32 1.0, %v2845
    %2847 = vrot.lane.b32.xlu0 %v2803, 32
    %v2848 = vpop.permute.xlu0 %2847
    %v2850 = vmul.f32 %v2826, %v2848
    %2852 = vrot.lane.b32.xlu0 %v2850, 64
    %v2853 = vpop.permute.xlu0 %2852
    %v2855 = vadd.f32 %v2079, %v2853
    %v2856 = vtanh.pop %v2855
    %v2857 = vsub.f32 1.0, %v2846
    %2859 = vrot.lane.b32.xlu0 %v2856, 96
    %v2860 = vpop.permute.xlu0 %2859
    %v2862 = vmul.f32 %v2857, %v2860
    %v2863 = vrot.slane %v2712, 2
    %v2865 = vmul.f32 %v2846, %v2863
    %v2866 = vadd.f32 %v2862, %v2865
    %2868 = vrot.lane.b32.xlu0 %v2778, 96
    %v2869 = vpop.permute.xlu0 %2868
    %v2870 = vsel %vm701, %v2869, 0
    %2872 = vmatpush.msra.mxu0 0.0
    %2873 = vmatpush.msra.mxu0 0.0
    %2874 = vmatpush.msra.mxu0 0.0
    %2875 = vmatpush.msra.mxu0 0.0
    %2876 = vmatpush.msra.mxu0 0.0
    %2877 = vmatpush.msra.mxu0 0.0
    %2878 = vmatpush.msra.mxu0 0.0
    %2879 = vmatpush.msra.mxu0 0.0
    %2880 = vmatpush.msra.mxu0 0.0
    %2881 = vmatpush.msra.mxu0 0.0
    %2882 = vmatpush.msra.mxu0 0.0
    %2883 = vmatpush.msra.mxu0 0.0
    %2884 = vmatpush.msra.mxu0 %v2087
    %2885 = vmatpush.msra.mxu0 %v2086
    %2886 = vmatpush.msra.mxu0 %v2085
    %2887 = vmatpush.msra.mxu0 %v2084
    %2888 = vmatmul.f32.gmra.mxu0 %v2870
    %v2889 = vpop.f32.mrf.mxu0
    %v2890 = vadd.f32 %v2095, %v2889
    %2891 = vdwg.mxu0
    %v2893 = vrot.slane %v2890, 6
    %v2895 = vadd.f32 %v2059, %v2893
    %v2896 = vxor.u32 %v2895, 2147483648
    %v2897 = vmul.f32 %v2896, 1.442695
    %v2898 = vpow.pop %v2897
    %v2899 = vadd.f32 %v2898, 1.0
    %v2900 = vrcp.pop %v2899
    %v2901 = vmul.f32 %v2899, %v2900
    %v2902 = vsub.f32 1.0, %v2901
    %v2903 = vmul.f32 %v2900, %v2902
    %v2904 = vadd.f32 %v2900, %v2903
    %vm2905 = vweird.f32 %v2899
    %vm2906 = vweird.f32 %v2900
    %vm2907 = vmor %vm2905, %vm2906
    %v2908 = vsel %vm2907, %v2900, %v2904
    %v2909 = vand.u32 2147483647, %v2899
    %vm2910 = vcmp.eq.f32.partialorder %v2909, 8.507059e+37
    %v2911 = vand.u32 %v2899, 2147483648
    %v2912 = vor.u32 1.1754944e-38, %v2911
    %v2913 = vsel %vm2910, %v2912, %v2908
    %v2914 = vmul.f32 1.0, %v2913
    %2915 = vrot.lane.b32.xlu0 %v2893, 64
    %v2916 = vpop.permute.xlu0 %2915
    %v2918 = vmul.f32 %v2914, %v2916
    %2920 = vrot.lane.b32.xlu0 %v2918, 64
    %v2921 = vpop.permute.xlu0 %2920
    %v2923 = vadd.f32 %v2059, %v2921
    %v2924 = vtanh.pop %v2923
    %v2925 = vsub.f32 1.0, %v2914
    %2927 = vrot.lane.b32.xlu0 %v2924, 96
    %v2928 = vpop.permute.xlu0 %2927
    %v2930 = vmul.f32 %v2925, %v2928
    %v2931 = vrot.slane %v2778, 6
    %v2933 = vmul.f32 %v2914, %v2931
    %v2934 = vadd.f32 %v2930, %v2933
    %v2936 = vrot.slane %v2866, 6
    %v2937 = vsel %vm701, %v2936, 0
    %2939 = vmatpush.msra.mxu0 0.0
    %2940 = vmatpush.msra.mxu0 0.0
    %2941 = vmatpush.msra.mxu0 0.0
    %2942 = vmatpush.msra.mxu0 0.0
    %2943 = vmatpush.msra.mxu0 0.0
    %2944 = vmatpush.msra.mxu0 0.0
    %2945 = vmatpush.msra.mxu0 0.0
    %2946 = vmatpush.msra.mxu0 0.0
    %2947 = vmatpush.msra.mxu0 0.0
    %2948 = vmatpush.msra.mxu0 0.0
    %2949 = vmatpush.msra.mxu0 0.0
    %2950 = vmatpush.msra.mxu0 0.0
    %2951 = vmatpush.msra.mxu0 %v2091
    %2952 = vmatpush.msra.mxu0 %v2090
    %2953 = vmatpush.msra.mxu0 %v2089
    %2954 = vmatpush.msra.mxu0 %v2088
    %2955 = vmatmul.f32.gmra.mxu0 %v2937
    %v2956 = vpop.f32.mrf.mxu0
    %v2957 = vadd.f32 %v2157, %v2956
    %2958 = vdwg.mxu0
    %v2960 = vrot.slane %v2957, 4
    %2961 = vrot.lane.b32.xlu0 %v2960, 96
    %v2962 = vpop.permute.xlu0 %2961
    %v2964 = vadd.f32 %v2056, %v2962
    %v2965 = vxor.u32 %v2964, 2147483648
    %v2966 = vmul.f32 %v2965, 1.442695
    %v2967 = vpow.pop %v2966
    %v2968 = vadd.f32 %v2967, 1.0
    %v2969 = vrcp.pop %v2968
    %v2970 = vmul.f32 %v2968, %v2969
    %v2971 = vsub.f32 1.0, %v2970
    %v2972 = vmul.f32 %v2969, %v2971
    %v2973 = vadd.f32 %v2969, %v2972
    %vm2974 = vweird.f32 %v2968
    %vm2975 = vweird.f32 %v2969
    %vm2976 = vmor %vm2974, %vm2975
    %v2977 = vsel %vm2976, %v2969, %v2973
    %v2978 = vand.u32 2147483647, %v2968
    %vm2979 = vcmp.eq.f32.partialorder %v2978, 8.507059e+37
    %v2980 = vand.u32 %v2968, 2147483648
    %v2981 = vor.u32 1.1754944e-38, %v2980
    %v2982 = vsel %vm2979, %v2981, %v2977
    %v2983 = vmul.f32 1.0, %v2982
    %v2984 = vadd.f32 %v2079, %v2962
    %v2985 = vxor.u32 %v2984, 2147483648
    %v2986 = vmul.f32 %v2985, 1.442695
    %v2987 = vpow.pop %v2986
    %v2988 = vadd.f32 %v2987, 1.0
    %v2989 = vrcp.pop %v2988
    %v2990 = vmul.f32 %v2988, %v2989
    %v2991 = vsub.f32 1.0, %v2990
    %v2992 = vmul.f32 %v2989, %v2991
    %v2993 = vadd.f32 %v2989, %v2992
    %vm2994 = vweird.f32 %v2988
    %vm2995 = vweird.f32 %v2989
    %vm2996 = vmor %vm2994, %vm2995
    %v2997 = vsel %vm2996, %v2989, %v2993
    %v2998 = vand.u32 2147483647, %v2988
    %vm2999 = vcmp.eq.f32.partialorder %v2998, 8.507059e+37
    %v3000 = vand.u32 %v2988, 2147483648
    %v3001 = vor.u32 1.1754944e-38, %v3000
    %v3002 = vsel %vm2999, %v3001, %v2997
    %v3003 = vmul.f32 1.0, %v3002
    %3004 = vrot.lane.b32.xlu0 %v2960, 32
    %v3005 = vpop.permute.xlu0 %3004
    %v3007 = vmul.f32 %v2983, %v3005
    %3009 = vrot.lane.b32.xlu0 %v3007, 64
    %v3010 = vpop.permute.xlu0 %3009
    %v3012 = vadd.f32 %v2079, %v3010
    %v3013 = vtanh.pop %v3012
    %v3014 = vsub.f32 1.0, %v3003
    %3016 = vrot.lane.b32.xlu0 %v3013, 96
    %v3017 = vpop.permute.xlu0 %3016
    %v3019 = vmul.f32 %v3014, %v3017
    %v3020 = vrot.slane %v2866, 2
    %v3022 = vmul.f32 %v3003, %v3020
    %v3023 = vadd.f32 %v3019, %v3022
    %v3025 = vrot.slane %v2934, 2
    %3026 = vrot.lane.b32.xlu0 %v3025, 96
    %v3027 = vpop.permute.xlu0 %3026
    %v3028 = vsel %vm701, %v3027, 0
    %3030 = vmatpush.msra.mxu0 0.0
    %3031 = vmatpush.msra.mxu0 0.0
    %3032 = vmatpush.msra.mxu0 0.0
    %3033 = vmatpush.msra.mxu0 0.0
    %3034 = vmatpush.msra.mxu0 0.0
    %3035 = vmatpush.msra.mxu0 0.0
    %3036 = vmatpush.msra.mxu0 0.0
    %3037 = vmatpush.msra.mxu0 0.0
    %3038 = vmatpush.msra.mxu0 0.0
    %3039 = vmatpush.msra.mxu0 0.0
    %3040 = vmatpush.msra.mxu0 0.0
    %3041 = vmatpush.msra.mxu0 0.0
    %3042 = vmatpush.msra.mxu0 %v2087
    %3043 = vmatpush.msra.mxu0 %v2086
    %3044 = vmatpush.msra.mxu0 %v2085
    %3045 = vmatpush.msra.mxu0 %v2084
    %3046 = vmatmul.f32.gmra.mxu0 %v3028
    %v3047 = vpop.f32.mrf.mxu0
    %v3048 = vadd.f32 %v2095, %v3047
    %3049 = vdwg.mxu0
    %v3051 = vrot.slane %v3048, 4
    %v3053 = vadd.f32 %v2059, %v3051
    %v3054 = vxor.u32 %v3053, 2147483648
    %v3055 = vmul.f32 %v3054, 1.442695
    %v3056 = vpow.pop %v3055
    %v3057 = vadd.f32 %v3056, 1.0
    %v3058 = vrcp.pop %v3057
    %v3059 = vmul.f32 %v3057, %v3058
    %v3060 = vsub.f32 1.0, %v3059
    %v3061 = vmul.f32 %v3058, %v3060
    %v3062 = vadd.f32 %v3058, %v3061
    %vm3063 = vweird.f32 %v3057
    %vm3064 = vweird.f32 %v3058
    %vm3065 = vmor %vm3063, %vm3064
    %v3066 = vsel %vm3065, %v3058, %v3062
    %v3067 = vand.u32 2147483647, %v3057
    %vm3068 = vcmp.eq.f32.partialorder %v3067, 8.507059e+37
    %v3069 = vand.u32 %v3057, 2147483648
    %v3070 = vor.u32 1.1754944e-38, %v3069
    %v3071 = vsel %vm3068, %v3070, %v3066
    %v3072 = vmul.f32 1.0, %v3071
    %3073 = vrot.lane.b32.xlu0 %v3051, 64
    %v3074 = vpop.permute.xlu0 %3073
    %v3076 = vmul.f32 %v3072, %v3074
    %3078 = vrot.lane.b32.xlu0 %v3076, 64
    %v3079 = vpop.permute.xlu0 %3078
    %v3081 = vadd.f32 %v2059, %v3079
    %v3082 = vtanh.pop %v3081
    %v3083 = vsub.f32 1.0, %v3072
    %3085 = vrot.lane.b32.xlu0 %v3082, 96
    %v3086 = vpop.permute.xlu0 %3085
    %v3088 = vmul.f32 %v3083, %v3086
    %v3089 = vrot.slane %v2934, 6
    %v3091 = vmul.f32 %v3072, %v3089
    %v3092 = vadd.f32 %v3088, %v3091
    %v3094 = vrot.slane %v3023, 4
    %v3095 = vsel %vm701, %v3094, 0
    %3097 = vmatpush.msra.mxu0 0.0
    %3098 = vmatpush.msra.mxu0 0.0
    %3099 = vmatpush.msra.mxu0 0.0
    %3100 = vmatpush.msra.mxu0 0.0
    %3101 = vmatpush.msra.mxu0 0.0
    %3102 = vmatpush.msra.mxu0 0.0
    %3103 = vmatpush.msra.mxu0 0.0
    %3104 = vmatpush.msra.mxu0 0.0
    %3105 = vmatpush.msra.mxu0 0.0
    %3106 = vmatpush.msra.mxu0 0.0
    %3107 = vmatpush.msra.mxu0 0.0
    %3108 = vmatpush.msra.mxu0 0.0
    %3109 = vmatpush.msra.mxu0 %v2091
    %3110 = vmatpush.msra.mxu0 %v2090
    %3111 = vmatpush.msra.mxu0 %v2089
    %3112 = vmatpush.msra.mxu0 %v2088
    %3113 = vmatmul.f32.gmra.mxu0 %v3095
    %v3114 = vpop.f32.mrf.mxu0
    %v3115 = vadd.f32 %v2157, %v3114
    %3116 = vdwg.mxu0
    %v3118 = vrot.slane %v3115, 6
    %3119 = vrot.lane.b32.xlu0 %v3118, 96
    %v3120 = vpop.permute.xlu0 %3119
    %v3122 = vadd.f32 %v2056, %v3120
    %v3123 = vxor.u32 %v3122, 2147483648
    %v3124 = vmul.f32 %v3123, 1.442695
    %v3125 = vpow.pop %v3124
    %v3126 = vadd.f32 %v3125, 1.0
    %v3127 = vrcp.pop %v3126
    %v3128 = vmul.f32 %v3126, %v3127
    %v3129 = vsub.f32 1.0, %v3128
    %v3130 = vmul.f32 %v3127, %v3129
    %v3131 = vadd.f32 %v3127, %v3130
    %vm3132 = vweird.f32 %v3126
    %vm3133 = vweird.f32 %v3127
    %vm3134 = vmor %vm3132, %vm3133
    %v3135 = vsel %vm3134, %v3127, %v3131
    %v3136 = vand.u32 2147483647, %v3126
    %vm3137 = vcmp.eq.f32.partialorder %v3136, 8.507059e+37
    %v3138 = vand.u32 %v3126, 2147483648
    %v3139 = vor.u32 1.1754944e-38, %v3138
    %v3140 = vsel %vm3137, %v3139, %v3135
    %v3141 = vmul.f32 1.0, %v3140
    %v3142 = vadd.f32 %v2079, %v3120
    %v3143 = vxor.u32 %v3142, 2147483648
    %v3144 = vmul.f32 %v3143, 1.442695
    %v3145 = vpow.pop %v3144
    %v3146 = vadd.f32 %v3145, 1.0
    %v3147 = vrcp.pop %v3146
    %v3148 = vmul.f32 %v3146, %v3147
    %v3149 = vsub.f32 1.0, %v3148
    %v3150 = vmul.f32 %v3147, %v3149
    %v3151 = vadd.f32 %v3147, %v3150
    %vm3152 = vweird.f32 %v3146
    %vm3153 = vweird.f32 %v3147
    %vm3154 = vmor %vm3152, %vm3153
    %v3155 = vsel %vm3154, %v3147, %v3151
    %v3156 = vand.u32 2147483647, %v3146
    %vm3157 = vcmp.eq.f32.partialorder %v3156, 8.507059e+37
    %v3158 = vand.u32 %v3146, 2147483648
    %v3159 = vor.u32 1.1754944e-38, %v3158
    %v3160 = vsel %vm3157, %v3159, %v3155
    %v3161 = vmul.f32 1.0, %v3160
    %3162 = vrot.lane.b32.xlu0 %v3118, 32
    %v3163 = vpop.permute.xlu0 %3162
    %v3165 = vmul.f32 %v3141, %v3163
    %3167 = vrot.lane.b32.xlu0 %v3165, 64
    %v3168 = vpop.permute.xlu0 %3167
    %v3170 = vadd.f32 %v2079, %v3168
    %v3171 = vtanh.pop %v3170
    %v3172 = vsub.f32 1.0, %v3161
    %3174 = vrot.lane.b32.xlu0 %v3171, 96
    %v3175 = vpop.permute.xlu0 %3174
    %v3177 = vmul.f32 %v3172, %v3175
    %v3178 = vrot.slane %v3023, 2
    %v3180 = vmul.f32 %v3161, %v3178
    %v3181 = vadd.f32 %v3177, %v3180
    %v3183 = vrot.slane %v3092, 4
    %3184 = vrot.lane.b32.xlu0 %v3183, 96
    %v3185 = vpop.permute.xlu0 %3184
    %v3186 = vsel %vm701, %v3185, 0
    %3188 = vmatpush.msra.mxu0 0.0
    %3189 = vmatpush.msra.mxu0 0.0
    %3190 = vmatpush.msra.mxu0 0.0
    %3191 = vmatpush.msra.mxu0 0.0
    %3192 = vmatpush.msra.mxu0 0.0
    %3193 = vmatpush.msra.mxu0 0.0
    %3194 = vmatpush.msra.mxu0 0.0
    %3195 = vmatpush.msra.mxu0 0.0
    %3196 = vmatpush.msra.mxu0 0.0
    %3197 = vmatpush.msra.mxu0 0.0
    %3198 = vmatpush.msra.mxu0 0.0
    %3199 = vmatpush.msra.mxu0 0.0
    %3200 = vmatpush.msra.mxu0 %v2087
    %3201 = vmatpush.msra.mxu0 %v2086
    %3202 = vmatpush.msra.mxu0 %v2085
    %3203 = vmatpush.msra.mxu0 %v2084
    %3204 = vmatmul.f32.gmra.mxu0 %v3186
    %v3205 = vpop.f32.mrf.mxu0
    %v3206 = vadd.f32 %v2095, %v3205
    %3207 = vdwg.mxu0
    %v3209 = vrot.slane %v3206, 2
    %v3211 = vadd.f32 %v2059, %v3209
    %v3212 = vxor.u32 %v3211, 2147483648
    %v3213 = vmul.f32 %v3212, 1.442695
    %v3214 = vpow.pop %v3213
    %v3215 = vadd.f32 %v3214, 1.0
    %v3216 = vrcp.pop %v3215
    %v3217 = vmul.f32 %v3215, %v3216
    %v3218 = vsub.f32 1.0, %v3217
    %v3219 = vmul.f32 %v3216, %v3218
    %v3220 = vadd.f32 %v3216, %v3219
    %vm3221 = vweird.f32 %v3215
    %vm3222 = vweird.f32 %v3216
    %vm3223 = vmor %vm3221, %vm3222
    %v3224 = vsel %vm3223, %v3216, %v3220
    %v3225 = vand.u32 2147483647, %v3215
    %vm3226 = vcmp.eq.f32.partialorder %v3225, 8.507059e+37
    %v3227 = vand.u32 %v3215, 2147483648
    %v3228 = vor.u32 1.1754944e-38, %v3227
    %v3229 = vsel %vm3226, %v3228, %v3224
    %v3230 = vmul.f32 1.0, %v3229
    %3231 = vrot.lane.b32.xlu0 %v3209, 64
    %v3232 = vpop.permute.xlu0 %3231
    %v3234 = vmul.f32 %v3230, %v3232
    %3236 = vrot.lane.b32.xlu0 %v3234, 64
    %v3237 = vpop.permute.xlu0 %3236
    %v3239 = vadd.f32 %v2059, %v3237
    %v3240 = vtanh.pop %v3239
    %v3241 = vsub.f32 1.0, %v3230
    %3243 = vrot.lane.b32.xlu0 %v3240, 96
    %v3244 = vpop.permute.xlu0 %3243
    %v3246 = vmul.f32 %v3241, %v3244
    %v3247 = vrot.slane %v3092, 6
    %v3249 = vmul.f32 %v3230, %v3247
    %v3250 = vadd.f32 %v3246, %v3249
    %v3252 = vrot.slane %v3181, 2
    %v3253 = vsel %vm701, %v3252, 0
    %3255 = vmatpush.msra.mxu0 0.0
    %3256 = vmatpush.msra.mxu0 0.0
    %3257 = vmatpush.msra.mxu0 0.0
    %3258 = vmatpush.msra.mxu0 0.0
    %3259 = vmatpush.msra.mxu0 0.0
    %3260 = vmatpush.msra.mxu0 0.0
    %3261 = vmatpush.msra.mxu0 0.0
    %3262 = vmatpush.msra.mxu0 0.0
    %3263 = vmatpush.msra.mxu0 0.0
    %3264 = vmatpush.msra.mxu0 0.0
    %3265 = vmatpush.msra.mxu0 0.0
    %3266 = vmatpush.msra.mxu0 0.0
    %3267 = vmatpush.msra.mxu0 %v2091
    %3268 = vmatpush.msra.mxu0 %v2090
    %3269 = vmatpush.msra.mxu0 %v2089
    %3270 = vmatpush.msra.mxu0 %v2088
    %3271 = vmatmul.f32.gmra.mxu0 %v3253
    %v3272 = vpop.f32.mrf.mxu0
    %v3273 = vadd.f32 %v2157, %v3272
    %3274 = vdwg.mxu0
    %3276 = vrot.lane.b32.xlu0 %v3273, 96
    %v3277 = vpop.permute.xlu0 %3276
    %v3279 = vadd.f32 %v2056, %v3277
    %v3280 = vxor.u32 %v3279, 2147483648
    %v3281 = vmul.f32 %v3280, 1.442695
    %v3282 = vpow.pop %v3281
    %v3283 = vadd.f32 %v3282, 1.0
    %v3284 = vrcp.pop %v3283
    %v3285 = vmul.f32 %v3283, %v3284
    %v3286 = vsub.f32 1.0, %v3285
    %v3287 = vmul.f32 %v3284, %v3286
    %v3288 = vadd.f32 %v3284, %v3287
    %vm3289 = vweird.f32 %v3283
    %vm3290 = vweird.f32 %v3284
    %vm3291 = vmor %vm3289, %vm3290
    %v3292 = vsel %vm3291, %v3284, %v3288
    %v3293 = vand.u32 2147483647, %v3283
    %vm3294 = vcmp.eq.f32.partialorder %v3293, 8.507059e+37
    %v3295 = vand.u32 %v3283, 2147483648
    %v3296 = vor.u32 1.1754944e-38, %v3295
    %v3297 = vsel %vm3294, %v3296, %v3292
    %v3298 = vmul.f32 1.0, %v3297
    %v3299 = vadd.f32 %v2079, %v3277
    %v3300 = vxor.u32 %v3299, 2147483648
    %v3301 = vmul.f32 %v3300, 1.442695
    %v3302 = vpow.pop %v3301
    %v3303 = vadd.f32 %v3302, 1.0
    %v3304 = vrcp.pop %v3303
    %v3305 = vmul.f32 %v3303, %v3304
    %v3306 = vsub.f32 1.0, %v3305
    %v3307 = vmul.f32 %v3304, %v3306
    %v3308 = vadd.f32 %v3304, %v3307
    %vm3309 = vweird.f32 %v3303
    %vm3310 = vweird.f32 %v3304
    %vm3311 = vmor %vm3309, %vm3310
    %v3312 = vsel %vm3311, %v3304, %v3308
    %v3313 = vand.u32 2147483647, %v3303
    %vm3314 = vcmp.eq.f32.partialorder %v3313, 8.507059e+37
    %v3315 = vand.u32 %v3303, 2147483648
    %v3316 = vor.u32 1.1754944e-38, %v3315
    %v3317 = vsel %vm3314, %v3316, %v3312
    %v3318 = vmul.f32 1.0, %v3317
    %3319 = vrot.lane.b32.xlu0 %v3273, 32
    %v3320 = vpop.permute.xlu0 %3319
    %v3322 = vmul.f32 %v3298, %v3320
    %3324 = vrot.lane.b32.xlu0 %v3322, 64
    %v3325 = vpop.permute.xlu0 %3324
    %v3327 = vadd.f32 %v2079, %v3325
    %v3328 = vtanh.pop %v3327
    %v3329 = vsub.f32 1.0, %v3318
    %3331 = vrot.lane.b32.xlu0 %v3328, 96
    %v3332 = vpop.permute.xlu0 %3331
    %v3334 = vmul.f32 %v3329, %v3332
    %v3336 = vmul.f32 %v3318, %v3252
    %v3337 = vadd.f32 %v3334, %v3336
    %3340 = vrot.lane.b32.xlu0 %v3337, 32
    %v3341 = vpop.permute.xlu0 %3340
    %v3343 = vsel %vm701, %v2244, %v3341
    %3344 = vrot.lane.b32.xlu0 %v2309, 96
    %v3345 = vpop.permute.xlu0 %3344
    %3347 = vrot.lane.b32.xlu0 %v3181, 32
    %v3348 = vpop.permute.xlu0 %3347
    %v3350 = vsel %vm701, %v3345, %v3348
    %3351 = vrot.lane.b32.xlu0 %v2467, 96
    %v3352 = vpop.permute.xlu0 %3351
    %3354 = vrot.lane.b32.xlu0 %v3023, 32
    %v3355 = vpop.permute.xlu0 %3354
    %v3357 = vsel %vm701, %v3352, %v3355
    %3358 = vrot.lane.b32.xlu0 %v2625, 96
    %v3359 = vpop.permute.xlu0 %3358
    %3361 = vrot.lane.b32.xlu0 %v2866, 32
    %v3362 = vpop.permute.xlu0 %3361
    %v3364 = vsel %vm701, %v3359, %v3362
    %3366 = vrot.lane.b32.xlu0 %v2712, 32
    %v3367 = vpop.permute.xlu0 %3366
    %v3369 = vsel %vm701, %v2869, %v3367
    %3370 = vrot.lane.b32.xlu0 %v2934, 96
    %v3371 = vpop.permute.xlu0 %3370
    %3373 = vrot.lane.b32.xlu0 %v2556, 32
    %v3374 = vpop.permute.xlu0 %3373
    %v3376 = vsel %vm701, %v3371, %v3374
    %3377 = vrot.lane.b32.xlu0 %v3092, 96
    %v3378 = vpop.permute.xlu0 %3377
    %3380 = vrot.lane.b32.xlu0 %v2398, 32
    %v3381 = vpop.permute.xlu0 %3380
    %v3383 = vsel %vm701, %v3378, %v3381
    %3385 = vrot.lane.b32.xlu0 %v3250, 96
    %v3386 = vpop.permute.xlu0 %3385
    %3388 = vrot.lane.b32.xlu0 %v2241, 32
    %v3389 = vpop.permute.xlu0 %3388
    %v3391 = vsel %vm701, %v3386, %v3389
    %v3392 = vsel %vm2000, %v3343, %v3350
    %v3393 = vsel %vm2002, %v3392, %v3357
    %v3394 = vsel %vm2004, %v3393, %v3364
    %v3395 = vsel %vm2000, %v3369, %v3376
    %v3396 = vsel %vm2002, %v3395, %v3383
    %v3397 = vsel %vm2004, %v3396, %v3391
    %v3398 = vld [vmem:[#allocation32] sm:$0x1]
    %v3399 = vld [vmem:[#allocation34] sm:$0x1]
    %v3400 = vsel %vm2031, %v3394, 0.0
    %3401 = vadd.xlane.f32.xlu0 %v3400
    %v3402 = vpop.xlane.xlu0 %3401
    %v3403 = vsel %vm2031, %v3397, 0.0
    %3404 = vadd.xlane.f32.xlu0 %v3403
    %v3405 = vpop.xlane.xlu0 %3404
    %v3406 = vrcp.pop 64.0
    %v3407 = vmul.f32 64.0, %v3406
    %v3408 = vsub.f32 1.0, %v3407
    %v3409 = vmul.f32 %v3406, %v3408
    %v3410 = vadd.f32 %v3406, %v3409
    %vm3411 = vweird.f32 %v3406
    %v3412 = vsel %vm3411, %v3406, %v3410
    %v3413 = vmul.f32 %v3402, %v3412
    %v3414 = vmul.f32 %v3405, %v3412
    %v3415 = vsub.f32 %v3394, %v3413
    %v3416 = vsub.f32 %v3397, %v3414
    %v3417 = vmul.f32 %v3415, %v3415
    %v3418 = vmul.f32 %v3416, %v3416
    %v3419 = vsel %vm2031, %v3417, 0.0
    %3420 = vadd.xlane.f32.xlu0 %v3419
    %v3421 = vpop.xlane.xlu0 %3420
    %v3422 = vsel %vm2031, %v3418, 0.0
    %3423 = vadd.xlane.f32.xlu0 %v3422
    %v3424 = vpop.xlane.xlu0 %3423
    %v3425 = vmul.f32 %v3421, %v3412
    %v3426 = vmul.f32 %v3424, %v3412
    %v3427 = vadd.f32 %v3425, 1e-05
    %v3428 = vadd.f32 %v3426, 1e-05
    %v3429 = vrsqrt.pop %v3427
    %v3430 = vmul.f32 %v3429, %v3427
    %v3431 = vmul.f32 %v3430, %v3429
    %v3432 = vmul.f32 0.5, %v3431
    %v3433 = vsub.f32 1.5, %v3432
    %v3434 = vmul.f32 %v3429, %v3433
    %vm3435 = vweird.f32 %v3427
    %vm3436 = vweird.f32 %v3429
    %vm3437 = vmor %vm3435, %vm3436
    %v3438 = vsel %vm3437, %v3429, %v3434
    %v3439 = vrsqrt.pop %v3428
    %v3440 = vmul.f32 %v3439, %v3428
    %v3441 = vmul.f32 %v3440, %v3439
    %v3442 = vmul.f32 0.5, %v3441
    %v3443 = vsub.f32 1.5, %v3442
    %v3444 = vmul.f32 %v3439, %v3443
    %vm3445 = vweird.f32 %v3428
    %vm3446 = vweird.f32 %v3439
    %vm3447 = vmor %vm3445, %vm3446
    %v3448 = vsel %vm3447, %v3439, %v3444
    %v3449 = vmul.f32 %v3415, %v3438
    %v3450 = vmul.f32 %v3416, %v3448
    %v3452 = vperm.slane %v3398, 0
    %v3454 = vmul.f32 %v3449, %v3452
    %v3455 = vmul.f32 %v3450, %v3452
    %v3457 = vperm.slane %v3399, 0
    %v3459 = vadd.f32 %v3454, %v3457
    %v3460 = vadd.f32 %v3455, %v3457
    %v3461 = vld [vmem:[%s3] sm:$0xff]
    %v3462 = vld [vmem:[%s3 + $0x8] sm:$0xff]
    %v3463 = vld [vmem:[#allocation35] sm:$0xff]
    %v3464 = vld [vmem:[#allocation35 + $0x8] sm:$0xff]
    %v3465 = vld [vmem:[#allocation35 + $0x10] sm:$0xff]
    %v3466 = vld [vmem:[#allocation35 + $0x18] sm:$0xff]
    %v3467 = vld [vmem:[#allocation35 + $0x20] sm:$0xff]
    %v3468 = vld [vmem:[#allocation35 + $0x28] sm:$0xff]
    %v3469 = vld [vmem:[#allocation35 + $0x30] sm:$0xff]
    %v3470 = vld [vmem:[#allocation35 + $0x38] sm:$0xff]
    %v3471 = vld [vmem:[#allocation35 + $0x40] sm:$0xff]
    %v3472 = vld [vmem:[#allocation35 + $0x48] sm:$0xff]
    %v3473 = vld [vmem:[#allocation35 + $0x50] sm:$0xff]
    %v3474 = vld [vmem:[#allocation35 + $0x58] sm:$0xff]
    %v3475 = vld [vmem:[#allocation35 + $0x60] sm:$0xff]
    %v3476 = vld [vmem:[#allocation35 + $0x68] sm:$0xff]
    %v3477 = vld [vmem:[#allocation35 + $0x70] sm:$0xff]
    %v3478 = vld [vmem:[#allocation35 + $0x78] sm:$0xff]
    %v3479 = vld [vmem:[#allocation37] sm:$0x3]
    %v3481 = vperm.slane %v3479, 0
    %v3482 = vperm.slane %v3479, 1
    %v3486 = vsel %vm2031, %v3459, 0
    %v3489 = vsel %vm2031, %v3460, 0
    %3491 = vmatpush.msra.mxu0 0.0
    %3492 = vmatpush.msra.mxu0 0.0
    %3493 = vmatpush.msra.mxu0 0.0
    %3494 = vmatpush.msra.mxu0 0.0
    %3495 = vmatpush.msra.mxu0 0.0
    %3496 = vmatpush.msra.mxu0 0.0
    %3497 = vmatpush.msra.mxu0 0.0
    %3498 = vmatpush.msra.mxu0 0.0
    %3499 = vmatpush.msra.mxu0 %v3477
    %3500 = vmatpush.msra.mxu0 %v3475
    %3501 = vmatpush.msra.mxu0 %v3473
    %3502 = vmatpush.msra.mxu0 %v3471
    %3503 = vmatpush.msra.mxu0 %v3469
    %3504 = vmatpush.msra.mxu0 %v3467
    %3505 = vmatpush.msra.mxu0 %v3465
    %3506 = vmatpush.msra.mxu0 %v3463
    %3507 = vmatmul.f32.gmra.mxu0 %v3486
    %v3508 = vpop.f32.mrf.mxu0
    %v3509 = vadd.f32 %v3481, %v3508
    %3510 = vmatmul.f32.gmra.mxu0 %v3489
    %v3511 = vpop.f32.mrf.mxu0
    %v3512 = vadd.f32 %v3481, %v3511
    %3513 = vdwg.mxu0
    %3514 = vmatpush.msra.mxu0 0.0
    %3515 = vmatpush.msra.mxu0 0.0
    %3516 = vmatpush.msra.mxu0 0.0
    %3517 = vmatpush.msra.mxu0 0.0
    %3518 = vmatpush.msra.mxu0 0.0
    %3519 = vmatpush.msra.mxu0 0.0
    %3520 = vmatpush.msra.mxu0 0.0
    %3521 = vmatpush.msra.mxu0 0.0
    %3522 = vmatpush.msra.mxu0 %v3478
    %3523 = vmatpush.msra.mxu0 %v3476
    %3524 = vmatpush.msra.mxu0 %v3474
    %3525 = vmatpush.msra.mxu0 %v3472
    %3526 = vmatpush.msra.mxu0 %v3470
    %3527 = vmatpush.msra.mxu0 %v3468
    %3528 = vmatpush.msra.mxu0 %v3466
    %3529 = vmatpush.msra.mxu0 %v3464
    %3530 = vmatmul.f32.gmra.mxu0 %v3486
    %v3531 = vpop.f32.mrf.mxu0
    %v3532 = vadd.f32 %v3482, %v3531
    %3533 = vmatmul.f32.gmra.mxu0 %v3489
    %v3534 = vpop.f32.mrf.mxu0
    %v3535 = vadd.f32 %v3482, %v3534
    %3536 = vdwg.mxu0
    %3539 = vrot.lane.b32.xlu0 %v3509, 64
    %v3540 = vpop.permute.xlu0 %3539
    %3541 = vrot.lane.b32.xlu0 %v3512, 64
    %v3542 = vpop.permute.xlu0 %3541
    %vm3543 = vcmask 64512
    %v3544 = vsel %vm3543, %v3509, 0
    %v3546 = vsel %vm3543, %v3512, 0
    %v3548 = vsel %vm3543, %v3540, 0
    %v3550 = vsel %vm3543, %v3542, 0
    %3552 = vmatpush.xpose.msra.mxu0 0.0
    %3553 = vmatpush.xpose.msra.mxu0 0.0
    %3554 = vmatpush.xpose.msra.mxu0 0.0
    %3555 = vmatpush.xpose.msra.mxu0 0.0
    %3556 = vmatpush.xpose.msra.mxu0 0.0
    %3557 = vmatpush.xpose.msra.mxu0 0.0
    %3558 = vmatpush.xpose.msra.mxu0 0.0
    %3559 = vmatpush.xpose.msra.mxu0 0.0
    %3560 = vmatpush.xpose.msra.mxu0 0.0
    %3561 = vmatpush.xpose.msra.mxu0 0.0
    %3562 = vmatpush.xpose.msra.mxu0 0.0
    %3563 = vmatpush.xpose.msra.mxu0 0.0
    %3564 = vmatpush.xpose.msra.mxu0 0.0
    %3565 = vmatpush.xpose.msra.mxu0 0.0
    %3566 = vmatpush.xpose.msra.mxu0 %v3550
    %3567 = vmatpush.xpose.msra.mxu0 %v3548
    %3568 = vmatmul.f32.gmra.mxu0 %v3544
    %v3569 = vpop.f32.mrf.mxu0
    %v3570 = vadd.f32 0.0, %v3569
    %3571 = vmatmul.f32.gmra.mxu0 %v3546
    %v3572 = vpop.f32.mrf.mxu0
    %v3573 = vadd.f32 0.0, %v3572
    %3574 = vdwg.mxu0
    %v3575 = vmul.f32 %v3570, 0.35355338
    %v3576 = vmul.f32 %v3573, 0.35355338
    %v3577 = vadd.f32 %v3575, %v3461
    %v3578 = vadd.f32 %v3576, %v3462
    %v3579 = vsel %vm635, %v3577, -inf
    %3580 = vmax.xlane.f32.xlu0 %v3579
    %v3581 = vpop.xlane.xlu0 %3580
    %v3582 = vsel %vm635, %v3578, -inf
    %3583 = vmax.xlane.f32.xlu0 %v3582
    %v3584 = vpop.xlane.xlu0 %3583
    %v3585 = vsub.f32 %v3577, %v3581
    %v3586 = vsub.f32 %v3578, %v3584
    %v3587 = vmul.f32 %v3585, 1.442695
    %v3588 = vpow.pop %v3587
    %v3589 = vmul.f32 %v3586, 1.442695
    %v3590 = vpow.pop %v3589
    %v3591 = vsel %vm635, %v3588, 0.0
    %3592 = vadd.xlane.f32.xlu0 %v3591
    %v3593 = vpop.xlane.xlu0 %3592
    %v3594 = vsel %vm635, %v3590, 0.0
    %3595 = vadd.xlane.f32.xlu0 %v3594
    %v3596 = vpop.xlane.xlu0 %3595
    %v3597 = vrcp.pop %v3593
    %v3598 = vmul.f32 %v3593, %v3597
    %v3599 = vsub.f32 1.0, %v3598
    %v3600 = vmul.f32 %v3597, %v3599
    %v3601 = vadd.f32 %v3597, %v3600
    %vm3602 = vweird.f32 %v3593
    %vm3603 = vweird.f32 %v3597
    %vm3604 = vmor %vm3602, %vm3603
    %v3605 = vsel %vm3604, %v3597, %v3601
    %v3606 = vand.u32 2147483647, %v3593
    %vm3607 = vcmp.eq.f32.partialorder %v3606, 8.507059e+37
    %v3608 = vand.u32 %v3593, 2147483648
    %v3609 = vor.u32 1.1754944e-38, %v3608
    %v3610 = vsel %vm3607, %v3609, %v3605
    %v3611 = vmul.f32 %v3588, %v3610
    %v3612 = vrcp.pop %v3596
    %v3613 = vmul.f32 %v3596, %v3612
    %v3614 = vsub.f32 1.0, %v3613
    %v3615 = vmul.f32 %v3612, %v3614
    %v3616 = vadd.f32 %v3612, %v3615
    %vm3617 = vweird.f32 %v3596
    %vm3618 = vweird.f32 %v3612
    %vm3619 = vmor %vm3617, %vm3618
    %v3620 = vsel %vm3619, %v3612, %v3616
    %v3621 = vand.u32 2147483647, %v3596
    %vm3622 = vcmp.eq.f32.partialorder %v3621, 8.507059e+37
    %v3623 = vand.u32 %v3596, 2147483648
    %v3624 = vor.u32 1.1754944e-38, %v3623
    %v3625 = vsel %vm3622, %v3624, %v3620
    %v3626 = vmul.f32 %v3590, %v3625
    %v3628 = vsel %vm635, %v3611, 0
    %v3631 = vsel %vm635, %v3626, 0
    %3633 = vmatpush.msra.mxu0 0.0
    %3634 = vmatpush.msra.mxu0 0.0
    %3635 = vmatpush.msra.mxu0 0.0
    %3636 = vmatpush.msra.mxu0 0.0
    %3637 = vmatpush.msra.mxu0 0.0
    %3638 = vmatpush.msra.mxu0 0.0
    %3639 = vmatpush.msra.mxu0 0.0
    %3640 = vmatpush.msra.mxu0 0.0
    %3641 = vmatpush.msra.mxu0 0.0
    %3642 = vmatpush.msra.mxu0 0.0
    %3643 = vmatpush.msra.mxu0 0.0
    %3644 = vmatpush.msra.mxu0 0.0
    %3645 = vmatpush.msra.mxu0 0.0
    %3646 = vmatpush.msra.mxu0 0.0
    %3647 = vmatpush.msra.mxu0 %v3535
    %3648 = vmatpush.msra.mxu0 %v3532
    %3649 = vmatmul.f32.gmra.mxu0 %v3628
    %v3650 = vpop.f32.mrf.mxu0
    %v3651 = vadd.f32 0.0, %v3650
    %3652 = vmatmul.f32.gmra.mxu0 %v3631
    %v3653 = vpop.f32.mrf.mxu0
    %v3654 = vadd.f32 0.0, %v3653
    %3655 = vdwg.mxu0
    %3656 = vrot.lane.b32.xlu0 %v3509, 120
    %v3657 = vpop.permute.xlu0 %3656
    %3658 = vrot.lane.b32.xlu0 %v3512, 120
    %v3659 = vpop.permute.xlu0 %3658
    %3660 = vrot.lane.b32.xlu0 %v3509, 56
    %v3661 = vpop.permute.xlu0 %3660
    %3662 = vrot.lane.b32.xlu0 %v3512, 56
    %v3663 = vpop.permute.xlu0 %3662
    %v3664 = vsel %vm3543, %v3657, 0
    %v3666 = vsel %vm3543, %v3659, 0
    %v3668 = vsel %vm3543, %v3661, 0
    %v3670 = vsel %vm3543, %v3663, 0
    %3672 = vmatpush.xpose.msra.mxu0 0.0
    %3673 = vmatpush.xpose.msra.mxu0 0.0
    %3674 = vmatpush.xpose.msra.mxu0 0.0
    %3675 = vmatpush.xpose.msra.mxu0 0.0
    %3676 = vmatpush.xpose.msra.mxu0 0.0
    %3677 = vmatpush.xpose.msra.mxu0 0.0
    %3678 = vmatpush.xpose.msra.mxu0 0.0
    %3679 = vmatpush.xpose.msra.mxu0 0.0
    %3680 = vmatpush.xpose.msra.mxu0 0.0
    %3681 = vmatpush.xpose.msra.mxu0 0.0
    %3682 = vmatpush.xpose.msra.mxu0 0.0
    %3683 = vmatpush.xpose.msra.mxu0 0.0
    %3684 = vmatpush.xpose.msra.mxu0 0.0
    %3685 = vmatpush.xpose.msra.mxu0 0.0
    %3686 = vmatpush.xpose.msra.mxu0 %v3670
    %3687 = vmatpush.xpose.msra.mxu0 %v3668
    %3688 = vmatmul.f32.gmra.mxu0 %v3664
    %v3689 = vpop.f32.mrf.mxu0
    %v3690 = vadd.f32 0.0, %v3689
    %3691 = vmatmul.f32.gmra.mxu0 %v3666
    %v3692 = vpop.f32.mrf.mxu0
    %v3693 = vadd.f32 0.0, %v3692
    %3694 = vdwg.mxu0
    %v3695 = vmul.f32 %v3690, 0.35355338
    %v3696 = vmul.f32 %v3693, 0.35355338
    %v3697 = vadd.f32 %v3695, %v3461
    %v3698 = vadd.f32 %v3696, %v3462
    %v3699 = vsel %vm635, %v3697, -inf
    %3700 = vmax.xlane.f32.xlu0 %v3699
    %v3701 = vpop.xlane.xlu0 %3700
    %v3702 = vsel %vm635, %v3698, -inf
    %3703 = vmax.xlane.f32.xlu0 %v3702
    %v3704 = vpop.xlane.xlu0 %3703
    %v3705 = vsub.f32 %v3697, %v3701
    %v3706 = vsub.f32 %v3698, %v3704
    %v3707 = vmul.f32 %v3705, 1.442695
    %v3708 = vpow.pop %v3707
    %v3709 = vmul.f32 %v3706, 1.442695
    %v3710 = vpow.pop %v3709
    %v3711 = vsel %vm635, %v3708, 0.0
    %3712 = vadd.xlane.f32.xlu0 %v3711
    %v3713 = vpop.xlane.xlu0 %3712
    %v3714 = vsel %vm635, %v3710, 0.0
    %3715 = vadd.xlane.f32.xlu0 %v3714
    %v3716 = vpop.xlane.xlu0 %3715
    %v3717 = vrcp.pop %v3713
    %v3718 = vmul.f32 %v3713, %v3717
    %v3719 = vsub.f32 1.0, %v3718
    %v3720 = vmul.f32 %v3717, %v3719
    %v3721 = vadd.f32 %v3717, %v3720
    %vm3722 = vweird.f32 %v3713
    %vm3723 = vweird.f32 %v3717
    %vm3724 = vmor %vm3722, %vm3723
    %v3725 = vsel %vm3724, %v3717, %v3721
    %v3726 = vand.u32 2147483647, %v3713
    %vm3727 = vcmp.eq.f32.partialorder %v3726, 8.507059e+37
    %v3728 = vand.u32 %v3713, 2147483648
    %v3729 = vor.u32 1.1754944e-38, %v3728
    %v3730 = vsel %vm3727, %v3729, %v3725
    %v3731 = vmul.f32 %v3708, %v3730
    %v3732 = vrcp.pop %v3716
    %v3733 = vmul.f32 %v3716, %v3732
    %v3734 = vsub.f32 1.0, %v3733
    %v3735 = vmul.f32 %v3732, %v3734
    %v3736 = vadd.f32 %v3732, %v3735
    %vm3737 = vweird.f32 %v3716
    %vm3738 = vweird.f32 %v3732
    %vm3739 = vmor %vm3737, %vm3738
    %v3740 = vsel %vm3739, %v3732, %v3736
    %v3741 = vand.u32 2147483647, %v3716
    %vm3742 = vcmp.eq.f32.partialorder %v3741, 8.507059e+37
    %v3743 = vand.u32 %v3716, 2147483648
    %v3744 = vor.u32 1.1754944e-38, %v3743
    %v3745 = vsel %vm3742, %v3744, %v3740
    %v3746 = vmul.f32 %v3710, %v3745
    %3749 = vrot.lane.b32.xlu0 %v3532, 120
    %v3750 = vpop.permute.xlu0 %3749
    %3751 = vrot.lane.b32.xlu0 %v3535, 120
    %v3752 = vpop.permute.xlu0 %3751
    %v3756 = vsel %vm635, %v3731, 0
    %v3759 = vsel %vm635, %v3746, 0
    %3761 = vmatpush.msra.mxu0 0.0
    %3762 = vmatpush.msra.mxu0 0.0
    %3763 = vmatpush.msra.mxu0 0.0
    %3764 = vmatpush.msra.mxu0 0.0
    %3765 = vmatpush.msra.mxu0 0.0
    %3766 = vmatpush.msra.mxu0 0.0
    %3767 = vmatpush.msra.mxu0 0.0
    %3768 = vmatpush.msra.mxu0 0.0
    %3769 = vmatpush.msra.mxu0 0.0
    %3770 = vmatpush.msra.mxu0 0.0
    %3771 = vmatpush.msra.mxu0 0.0
    %3772 = vmatpush.msra.mxu0 0.0
    %3773 = vmatpush.msra.mxu0 0.0
    %3774 = vmatpush.msra.mxu0 0.0
    %3775 = vmatpush.msra.mxu0 %v3752
    %3776 = vmatpush.msra.mxu0 %v3750
    %3777 = vmatmul.f32.gmra.mxu0 %v3756
    %v3778 = vpop.f32.mrf.mxu0
    %v3779 = vadd.f32 0.0, %v3778
    %3780 = vmatmul.f32.gmra.mxu0 %v3759
    %v3781 = vpop.f32.mrf.mxu0
    %v3782 = vadd.f32 0.0, %v3781
    %3783 = vdwg.mxu0
    %3784 = vrot.lane.b32.xlu0 %v3509, 112
    %v3785 = vpop.permute.xlu0 %3784
    %3786 = vrot.lane.b32.xlu0 %v3512, 112
    %v3787 = vpop.permute.xlu0 %3786
    %3788 = vrot.lane.b32.xlu0 %v3509, 48
    %v3789 = vpop.permute.xlu0 %3788
    %3790 = vrot.lane.b32.xlu0 %v3512, 48
    %v3791 = vpop.permute.xlu0 %3790
    %v3792 = vsel %vm3543, %v3785, 0
    %v3794 = vsel %vm3543, %v3787, 0
    %v3796 = vsel %vm3543, %v3789, 0
    %v3798 = vsel %vm3543, %v3791, 0
    %3800 = vmatpush.xpose.msra.mxu0 0.0
    %3801 = vmatpush.xpose.msra.mxu0 0.0
    %3802 = vmatpush.xpose.msra.mxu0 0.0
    %3803 = vmatpush.xpose.msra.mxu0 0.0
    %3804 = vmatpush.xpose.msra.mxu0 0.0
    %3805 = vmatpush.xpose.msra.mxu0 0.0
    %3806 = vmatpush.xpose.msra.mxu0 0.0
    %3807 = vmatpush.xpose.msra.mxu0 0.0
    %3808 = vmatpush.xpose.msra.mxu0 0.0
    %3809 = vmatpush.xpose.msra.mxu0 0.0
    %3810 = vmatpush.xpose.msra.mxu0 0.0
    %3811 = vmatpush.xpose.msra.mxu0 0.0
    %3812 = vmatpush.xpose.msra.mxu0 0.0
    %3813 = vmatpush.xpose.msra.mxu0 0.0
    %3814 = vmatpush.xpose.msra.mxu0 %v3798
    %3815 = vmatpush.xpose.msra.mxu0 %v3796
    %3816 = vmatmul.f32.gmra.mxu0 %v3792
    %v3817 = vpop.f32.mrf.mxu0
    %v3818 = vadd.f32 0.0, %v3817
    %3819 = vmatmul.f32.gmra.mxu0 %v3794
    %v3820 = vpop.f32.mrf.mxu0
    %v3821 = vadd.f32 0.0, %v3820
    %3822 = vdwg.mxu0
    %v3823 = vmul.f32 %v3818, 0.35355338
    %v3824 = vmul.f32 %v3821, 0.35355338
    %v3825 = vadd.f32 %v3823, %v3461
    %v3826 = vadd.f32 %v3824, %v3462
    %v3827 = vsel %vm635, %v3825, -inf
    %3828 = vmax.xlane.f32.xlu0 %v3827
    %v3829 = vpop.xlane.xlu0 %3828
    %v3830 = vsel %vm635, %v3826, -inf
    %3831 = vmax.xlane.f32.xlu0 %v3830
    %v3832 = vpop.xlane.xlu0 %3831
    %v3833 = vsub.f32 %v3825, %v3829
    %v3834 = vsub.f32 %v3826, %v3832
    %v3835 = vmul.f32 %v3833, 1.442695
    %v3836 = vpow.pop %v3835
    %v3837 = vmul.f32 %v3834, 1.442695
    %v3838 = vpow.pop %v3837
    %v3839 = vsel %vm635, %v3836, 0.0
    %3840 = vadd.xlane.f32.xlu0 %v3839
    %v3841 = vpop.xlane.xlu0 %3840
    %v3842 = vsel %vm635, %v3838, 0.0
    %3843 = vadd.xlane.f32.xlu0 %v3842
    %v3844 = vpop.xlane.xlu0 %3843
    %v3845 = vrcp.pop %v3841
    %v3846 = vmul.f32 %v3841, %v3845
    %v3847 = vsub.f32 1.0, %v3846
    %v3848 = vmul.f32 %v3845, %v3847
    %v3849 = vadd.f32 %v3845, %v3848
    %vm3850 = vweird.f32 %v3841
    %vm3851 = vweird.f32 %v3845
    %vm3852 = vmor %vm3850, %vm3851
    %v3853 = vsel %vm3852, %v3845, %v3849
    %v3854 = vand.u32 2147483647, %v3841
    %vm3855 = vcmp.eq.f32.partialorder %v3854, 8.507059e+37
    %v3856 = vand.u32 %v3841, 2147483648
    %v3857 = vor.u32 1.1754944e-38, %v3856
    %v3858 = vsel %vm3855, %v3857, %v3853
    %v3859 = vmul.f32 %v3836, %v3858
    %v3860 = vrcp.pop %v3844
    %v3861 = vmul.f32 %v3844, %v3860
    %v3862 = vsub.f32 1.0, %v3861
    %v3863 = vmul.f32 %v3860, %v3862
    %v3864 = vadd.f32 %v3860, %v3863
    %vm3865 = vweird.f32 %v3844
    %vm3866 = vweird.f32 %v3860
    %vm3867 = vmor %vm3865, %vm3866
    %v3868 = vsel %vm3867, %v3860, %v3864
    %v3869 = vand.u32 2147483647, %v3844
    %vm3870 = vcmp.eq.f32.partialorder %v3869, 8.507059e+37
    %v3871 = vand.u32 %v3844, 2147483648
    %v3872 = vor.u32 1.1754944e-38, %v3871
    %v3873 = vsel %vm3870, %v3872, %v3868
    %v3874 = vmul.f32 %v3838, %v3873
    %3875 = vrot.lane.b32.xlu0 %v3532, 112
    %v3876 = vpop.permute.xlu0 %3875
    %3877 = vrot.lane.b32.xlu0 %v3535, 112
    %v3878 = vpop.permute.xlu0 %3877
    %v3882 = vsel %vm635, %v3859, 0
    %v3885 = vsel %vm635, %v3874, 0
    %3887 = vmatpush.msra.mxu0 0.0
    %3888 = vmatpush.msra.mxu0 0.0
    %3889 = vmatpush.msra.mxu0 0.0
    %3890 = vmatpush.msra.mxu0 0.0
    %3891 = vmatpush.msra.mxu0 0.0
    %3892 = vmatpush.msra.mxu0 0.0
    %3893 = vmatpush.msra.mxu0 0.0
    %3894 = vmatpush.msra.mxu0 0.0
    %3895 = vmatpush.msra.mxu0 0.0
    %3896 = vmatpush.msra.mxu0 0.0
    %3897 = vmatpush.msra.mxu0 0.0
    %3898 = vmatpush.msra.mxu0 0.0
    %3899 = vmatpush.msra.mxu0 0.0
    %3900 = vmatpush.msra.mxu0 0.0
    %3901 = vmatpush.msra.mxu0 %v3878
    %3902 = vmatpush.msra.mxu0 %v3876
    %3903 = vmatmul.f32.gmra.mxu0 %v3882
    %v3904 = vpop.f32.mrf.mxu0
    %v3905 = vadd.f32 0.0, %v3904
    %3906 = vmatmul.f32.gmra.mxu0 %v3885
    %v3907 = vpop.f32.mrf.mxu0
    %v3908 = vadd.f32 0.0, %v3907
    %3909 = vdwg.mxu0
    %3910 = vrot.lane.b32.xlu0 %v3509, 104
    %v3911 = vpop.permute.xlu0 %3910
    %3912 = vrot.lane.b32.xlu0 %v3512, 104
    %v3913 = vpop.permute.xlu0 %3912
    %3914 = vrot.lane.b32.xlu0 %v3509, 40
    %v3915 = vpop.permute.xlu0 %3914
    %3916 = vrot.lane.b32.xlu0 %v3512, 40
    %v3917 = vpop.permute.xlu0 %3916
    %v3918 = vsel %vm3543, %v3911, 0
    %v3920 = vsel %vm3543, %v3913, 0
    %v3922 = vsel %vm3543, %v3915, 0
    %v3924 = vsel %vm3543, %v3917, 0
    %3926 = vmatpush.xpose.msra.mxu0 0.0
    %3927 = vmatpush.xpose.msra.mxu0 0.0
    %3928 = vmatpush.xpose.msra.mxu0 0.0
    %3929 = vmatpush.xpose.msra.mxu0 0.0
    %3930 = vmatpush.xpose.msra.mxu0 0.0
    %3931 = vmatpush.xpose.msra.mxu0 0.0
    %3932 = vmatpush.xpose.msra.mxu0 0.0
    %3933 = vmatpush.xpose.msra.mxu0 0.0
    %3934 = vmatpush.xpose.msra.mxu0 0.0
    %3935 = vmatpush.xpose.msra.mxu0 0.0
    %3936 = vmatpush.xpose.msra.mxu0 0.0
    %3937 = vmatpush.xpose.msra.mxu0 0.0
    %3938 = vmatpush.xpose.msra.mxu0 0.0
    %3939 = vmatpush.xpose.msra.mxu0 0.0
    %3940 = vmatpush.xpose.msra.mxu0 %v3924
    %3941 = vmatpush.xpose.msra.mxu0 %v3922
    %3942 = vmatmul.f32.gmra.mxu0 %v3918
    %v3943 = vpop.f32.mrf.mxu0
    %v3944 = vadd.f32 0.0, %v3943
    %3945 = vmatmul.f32.gmra.mxu0 %v3920
    %v3946 = vpop.f32.mrf.mxu0
    %v3947 = vadd.f32 0.0, %v3946
    %3948 = vdwg.mxu0
    %v3949 = vmul.f32 %v3944, 0.35355338
    %v3950 = vmul.f32 %v3947, 0.35355338
    %v3951 = vadd.f32 %v3949, %v3461
    %v3952 = vadd.f32 %v3950, %v3462
    %v3953 = vsel %vm635, %v3951, -inf
    %3954 = vmax.xlane.f32.xlu0 %v3953
    %v3955 = vpop.xlane.xlu0 %3954
    %v3956 = vsel %vm635, %v3952, -inf
    %3957 = vmax.xlane.f32.xlu0 %v3956
    %v3958 = vpop.xlane.xlu0 %3957
    %v3959 = vsub.f32 %v3951, %v3955
    %v3960 = vsub.f32 %v3952, %v3958
    %v3961 = vmul.f32 %v3959, 1.442695
    %v3962 = vpow.pop %v3961
    %v3963 = vmul.f32 %v3960, 1.442695
    %v3964 = vpow.pop %v3963
    %v3965 = vsel %vm635, %v3962, 0.0
    %3966 = vadd.xlane.f32.xlu0 %v3965
    %v3967 = vpop.xlane.xlu0 %3966
    %v3968 = vsel %vm635, %v3964, 0.0
    %3969 = vadd.xlane.f32.xlu0 %v3968
    %v3970 = vpop.xlane.xlu0 %3969
    %v3971 = vrcp.pop %v3967
    %v3972 = vmul.f32 %v3967, %v3971
    %v3973 = vsub.f32 1.0, %v3972
    %v3974 = vmul.f32 %v3971, %v3973
    %v3975 = vadd.f32 %v3971, %v3974
    %vm3976 = vweird.f32 %v3967
    %vm3977 = vweird.f32 %v3971
    %vm3978 = vmor %vm3976, %vm3977
    %v3979 = vsel %vm3978, %v3971, %v3975
    %v3980 = vand.u32 2147483647, %v3967
    %vm3981 = vcmp.eq.f32.partialorder %v3980, 8.507059e+37
    %v3982 = vand.u32 %v3967, 2147483648
    %v3983 = vor.u32 1.1754944e-38, %v3982
    %v3984 = vsel %vm3981, %v3983, %v3979
    %v3985 = vmul.f32 %v3962, %v3984
    %v3986 = vrcp.pop %v3970
    %v3987 = vmul.f32 %v3970, %v3986
    %v3988 = vsub.f32 1.0, %v3987
    %v3989 = vmul.f32 %v3986, %v3988
    %v3990 = vadd.f32 %v3986, %v3989
    %vm3991 = vweird.f32 %v3970
    %vm3992 = vweird.f32 %v3986
    %vm3993 = vmor %vm3991, %vm3992
    %v3994 = vsel %vm3993, %v3986, %v3990
    %v3995 = vand.u32 2147483647, %v3970
    %vm3996 = vcmp.eq.f32.partialorder %v3995, 8.507059e+37
    %v3997 = vand.u32 %v3970, 2147483648
    %v3998 = vor.u32 1.1754944e-38, %v3997
    %v3999 = vsel %vm3996, %v3998, %v3994
    %v4000 = vmul.f32 %v3964, %v3999
    %4001 = vrot.lane.b32.xlu0 %v3532, 104
    %v4002 = vpop.permute.xlu0 %4001
    %4003 = vrot.lane.b32.xlu0 %v3535, 104
    %v4004 = vpop.permute.xlu0 %4003
    %v4008 = vsel %vm635, %v3985, 0
    %v4011 = vsel %vm635, %v4000, 0
    %4013 = vmatpush.msra.mxu0 0.0
    %4014 = vmatpush.msra.mxu0 0.0
    %4015 = vmatpush.msra.mxu0 0.0
    %4016 = vmatpush.msra.mxu0 0.0
    %4017 = vmatpush.msra.mxu0 0.0
    %4018 = vmatpush.msra.mxu0 0.0
    %4019 = vmatpush.msra.mxu0 0.0
    %4020 = vmatpush.msra.mxu0 0.0
    %4021 = vmatpush.msra.mxu0 0.0
    %4022 = vmatpush.msra.mxu0 0.0
    %4023 = vmatpush.msra.mxu0 0.0
    %4024 = vmatpush.msra.mxu0 0.0
    %4025 = vmatpush.msra.mxu0 0.0
    %4026 = vmatpush.msra.mxu0 0.0
    %4027 = vmatpush.msra.mxu0 %v4004
    %4028 = vmatpush.msra.mxu0 %v4002
    %4029 = vmatmul.f32.gmra.mxu0 %v4008
    %v4030 = vpop.f32.mrf.mxu0
    %v4031 = vadd.f32 0.0, %v4030
    %4032 = vmatmul.f32.gmra.mxu0 %v4011
    %v4033 = vpop.f32.mrf.mxu0
    %v4034 = vadd.f32 0.0, %v4033
    %4035 = vdwg.mxu0
    %4036 = vrot.lane.b32.xlu0 %v3509, 96
    %v4037 = vpop.permute.xlu0 %4036
    %4038 = vrot.lane.b32.xlu0 %v3512, 96
    %v4039 = vpop.permute.xlu0 %4038
    %4040 = vrot.lane.b32.xlu0 %v3509, 32
    %v4041 = vpop.permute.xlu0 %4040
    %4042 = vrot.lane.b32.xlu0 %v3512, 32
    %v4043 = vpop.permute.xlu0 %4042
    %v4044 = vsel %vm3543, %v4037, 0
    %v4046 = vsel %vm3543, %v4039, 0
    %v4048 = vsel %vm3543, %v4041, 0
    %v4050 = vsel %vm3543, %v4043, 0
    %4052 = vmatpush.xpose.msra.mxu0 0.0
    %4053 = vmatpush.xpose.msra.mxu0 0.0
    %4054 = vmatpush.xpose.msra.mxu0 0.0
    %4055 = vmatpush.xpose.msra.mxu0 0.0
    %4056 = vmatpush.xpose.msra.mxu0 0.0
    %4057 = vmatpush.xpose.msra.mxu0 0.0
    %4058 = vmatpush.xpose.msra.mxu0 0.0
    %4059 = vmatpush.xpose.msra.mxu0 0.0
    %4060 = vmatpush.xpose.msra.mxu0 0.0
    %4061 = vmatpush.xpose.msra.mxu0 0.0
    %4062 = vmatpush.xpose.msra.mxu0 0.0
    %4063 = vmatpush.xpose.msra.mxu0 0.0
    %4064 = vmatpush.xpose.msra.mxu0 0.0
    %4065 = vmatpush.xpose.msra.mxu0 0.0
    %4066 = vmatpush.xpose.msra.mxu0 %v4050
    %4067 = vmatpush.xpose.msra.mxu0 %v4048
    %4068 = vmatmul.f32.gmra.mxu0 %v4044
    %v4069 = vpop.f32.mrf.mxu0
    %v4070 = vadd.f32 0.0, %v4069
    %4071 = vmatmul.f32.gmra.mxu0 %v4046
    %v4072 = vpop.f32.mrf.mxu0
    %v4073 = vadd.f32 0.0, %v4072
    %4074 = vdwg.mxu0
    %v4075 = vmul.f32 %v4070, 0.35355338
    %v4076 = vmul.f32 %v4073, 0.35355338
    %v4077 = vadd.f32 %v4075, %v3461
    %v4078 = vadd.f32 %v4076, %v3462
    %v4079 = vsel %vm635, %v4077, -inf
    %4080 = vmax.xlane.f32.xlu0 %v4079
    %v4081 = vpop.xlane.xlu0 %4080
    %v4082 = vsel %vm635, %v4078, -inf
    %4083 = vmax.xlane.f32.xlu0 %v4082
    %v4084 = vpop.xlane.xlu0 %4083
    %v4085 = vsub.f32 %v4077, %v4081
    %v4086 = vsub.f32 %v4078, %v4084
    %v4087 = vmul.f32 %v4085, 1.442695
    %v4088 = vpow.pop %v4087
    %v4089 = vmul.f32 %v4086, 1.442695
    %v4090 = vpow.pop %v4089
    %v4091 = vsel %vm635, %v4088, 0.0
    %4092 = vadd.xlane.f32.xlu0 %v4091
    %v4093 = vpop.xlane.xlu0 %4092
    %v4094 = vsel %vm635, %v4090, 0.0
    %4095 = vadd.xlane.f32.xlu0 %v4094
    %v4096 = vpop.xlane.xlu0 %4095
    %v4097 = vrcp.pop %v4093
    %v4098 = vmul.f32 %v4093, %v4097
    %v4099 = vsub.f32 1.0, %v4098
    %v4100 = vmul.f32 %v4097, %v4099
    %v4101 = vadd.f32 %v4097, %v4100
    %vm4102 = vweird.f32 %v4093
    %vm4103 = vweird.f32 %v4097
    %vm4104 = vmor %vm4102, %vm4103
    %v4105 = vsel %vm4104, %v4097, %v4101
    %v4106 = vand.u32 2147483647, %v4093
    %vm4107 = vcmp.eq.f32.partialorder %v4106, 8.507059e+37
    %v4108 = vand.u32 %v4093, 2147483648
    %v4109 = vor.u32 1.1754944e-38, %v4108
    %v4110 = vsel %vm4107, %v4109, %v4105
    %v4111 = vmul.f32 %v4088, %v4110
    %v4112 = vrcp.pop %v4096
    %v4113 = vmul.f32 %v4096, %v4112
    %v4114 = vsub.f32 1.0, %v4113
    %v4115 = vmul.f32 %v4112, %v4114
    %v4116 = vadd.f32 %v4112, %v4115
    %vm4117 = vweird.f32 %v4096
    %vm4118 = vweird.f32 %v4112
    %vm4119 = vmor %vm4117, %vm4118
    %v4120 = vsel %vm4119, %v4112, %v4116
    %v4121 = vand.u32 2147483647, %v4096
    %vm4122 = vcmp.eq.f32.partialorder %v4121, 8.507059e+37
    %v4123 = vand.u32 %v4096, 2147483648
    %v4124 = vor.u32 1.1754944e-38, %v4123
    %v4125 = vsel %vm4122, %v4124, %v4120
    %v4126 = vmul.f32 %v4090, %v4125
    %4127 = vrot.lane.b32.xlu0 %v3532, 96
    %v4128 = vpop.permute.xlu0 %4127
    %4129 = vrot.lane.b32.xlu0 %v3535, 96
    %v4130 = vpop.permute.xlu0 %4129
    %v4134 = vsel %vm635, %v4111, 0
    %v4137 = vsel %vm635, %v4126, 0
    %4139 = vmatpush.msra.mxu0 0.0
    %4140 = vmatpush.msra.mxu0 0.0
    %4141 = vmatpush.msra.mxu0 0.0
    %4142 = vmatpush.msra.mxu0 0.0
    %4143 = vmatpush.msra.mxu0 0.0
    %4144 = vmatpush.msra.mxu0 0.0
    %4145 = vmatpush.msra.mxu0 0.0
    %4146 = vmatpush.msra.mxu0 0.0
    %4147 = vmatpush.msra.mxu0 0.0
    %4148 = vmatpush.msra.mxu0 0.0
    %4149 = vmatpush.msra.mxu0 0.0
    %4150 = vmatpush.msra.mxu0 0.0
    %4151 = vmatpush.msra.mxu0 0.0
    %4152 = vmatpush.msra.mxu0 0.0
    %4153 = vmatpush.msra.mxu0 %v4130
    %4154 = vmatpush.msra.mxu0 %v4128
    %4155 = vmatmul.f32.gmra.mxu0 %v4134
    %v4156 = vpop.f32.mrf.mxu0
    %v4157 = vadd.f32 0.0, %v4156
    %4158 = vmatmul.f32.gmra.mxu0 %v4137
    %v4159 = vpop.f32.mrf.mxu0
    %v4160 = vadd.f32 0.0, %v4159
    %4161 = vdwg.mxu0
    %4162 = vrot.lane.b32.xlu0 %v3509, 88
    %v4163 = vpop.permute.xlu0 %4162
    %4164 = vrot.lane.b32.xlu0 %v3512, 88
    %v4165 = vpop.permute.xlu0 %4164
    %4166 = vrot.lane.b32.xlu0 %v3509, 24
    %v4167 = vpop.permute.xlu0 %4166
    %4168 = vrot.lane.b32.xlu0 %v3512, 24
    %v4169 = vpop.permute.xlu0 %4168
    %v4170 = vsel %vm3543, %v4163, 0
    %v4172 = vsel %vm3543, %v4165, 0
    %v4174 = vsel %vm3543, %v4167, 0
    %v4176 = vsel %vm3543, %v4169, 0
    %4178 = vmatpush.xpose.msra.mxu0 0.0
    %4179 = vmatpush.xpose.msra.mxu0 0.0
    %4180 = vmatpush.xpose.msra.mxu0 0.0
    %4181 = vmatpush.xpose.msra.mxu0 0.0
    %4182 = vmatpush.xpose.msra.mxu0 0.0
    %4183 = vmatpush.xpose.msra.mxu0 0.0
    %4184 = vmatpush.xpose.msra.mxu0 0.0
    %4185 = vmatpush.xpose.msra.mxu0 0.0
    %4186 = vmatpush.xpose.msra.mxu0 0.0
    %4187 = vmatpush.xpose.msra.mxu0 0.0
    %4188 = vmatpush.xpose.msra.mxu0 0.0
    %4189 = vmatpush.xpose.msra.mxu0 0.0
    %4190 = vmatpush.xpose.msra.mxu0 0.0
    %4191 = vmatpush.xpose.msra.mxu0 0.0
    %4192 = vmatpush.xpose.msra.mxu0 %v4176
    %4193 = vmatpush.xpose.msra.mxu0 %v4174
    %4194 = vmatmul.f32.gmra.mxu0 %v4170
    %v4195 = vpop.f32.mrf.mxu0
    %v4196 = vadd.f32 0.0, %v4195
    %4197 = vmatmul.f32.gmra.mxu0 %v4172
    %v4198 = vpop.f32.mrf.mxu0
    %v4199 = vadd.f32 0.0, %v4198
    %4200 = vdwg.mxu0
    %v4201 = vmul.f32 %v4196, 0.35355338
    %v4202 = vmul.f32 %v4199, 0.35355338
    %v4203 = vadd.f32 %v4201, %v3461
    %v4204 = vadd.f32 %v4202, %v3462
    %v4205 = vsel %vm635, %v4203, -inf
    %4206 = vmax.xlane.f32.xlu0 %v4205
    %v4207 = vpop.xlane.xlu0 %4206
    %v4208 = vsel %vm635, %v4204, -inf
    %4209 = vmax.xlane.f32.xlu0 %v4208
    %v4210 = vpop.xlane.xlu0 %4209
    %v4211 = vsub.f32 %v4203, %v4207
    %v4212 = vsub.f32 %v4204, %v4210
    %v4213 = vmul.f32 %v4211, 1.442695
    %v4214 = vpow.pop %v4213
    %v4215 = vmul.f32 %v4212, 1.442695
    %v4216 = vpow.pop %v4215
    %v4217 = vsel %vm635, %v4214, 0.0
    %4218 = vadd.xlane.f32.xlu0 %v4217
    %v4219 = vpop.xlane.xlu0 %4218
    %v4220 = vsel %vm635, %v4216, 0.0
    %4221 = vadd.xlane.f32.xlu0 %v4220
    %v4222 = vpop.xlane.xlu0 %4221
    %v4223 = vrcp.pop %v4219
    %v4224 = vmul.f32 %v4219, %v4223
    %v4225 = vsub.f32 1.0, %v4224
    %v4226 = vmul.f32 %v4223, %v4225
    %v4227 = vadd.f32 %v4223, %v4226
    %vm4228 = vweird.f32 %v4219
    %vm4229 = vweird.f32 %v4223
    %vm4230 = vmor %vm4228, %vm4229
    %v4231 = vsel %vm4230, %v4223, %v4227
    %v4232 = vand.u32 2147483647, %v4219
    %vm4233 = vcmp.eq.f32.partialorder %v4232, 8.507059e+37
    %v4234 = vand.u32 %v4219, 2147483648
    %v4235 = vor.u32 1.1754944e-38, %v4234
    %v4236 = vsel %vm4233, %v4235, %v4231
    %v4237 = vmul.f32 %v4214, %v4236
    %v4238 = vrcp.pop %v4222
    %v4239 = vmul.f32 %v4222, %v4238
    %v4240 = vsub.f32 1.0, %v4239
    %v4241 = vmul.f32 %v4238, %v4240
    %v4242 = vadd.f32 %v4238, %v4241
    %vm4243 = vweird.f32 %v4222
    %vm4244 = vweird.f32 %v4238
    %vm4245 = vmor %vm4243, %vm4244
    %v4246 = vsel %vm4245, %v4238, %v4242
    %v4247 = vand.u32 2147483647, %v4222
    %vm4248 = vcmp.eq.f32.partialorder %v4247, 8.507059e+37
    %v4249 = vand.u32 %v4222, 2147483648
    %v4250 = vor.u32 1.1754944e-38, %v4249
    %v4251 = vsel %vm4248, %v4250, %v4246
    %v4252 = vmul.f32 %v4216, %v4251
    %4253 = vrot.lane.b32.xlu0 %v3532, 88
    %v4254 = vpop.permute.xlu0 %4253
    %4255 = vrot.lane.b32.xlu0 %v3535, 88
    %v4256 = vpop.permute.xlu0 %4255
    %v4260 = vsel %vm635, %v4237, 0
    %v4263 = vsel %vm635, %v4252, 0
    %4265 = vmatpush.msra.mxu0 0.0
    %4266 = vmatpush.msra.mxu0 0.0
    %4267 = vmatpush.msra.mxu0 0.0
    %4268 = vmatpush.msra.mxu0 0.0
    %4269 = vmatpush.msra.mxu0 0.0
    %4270 = vmatpush.msra.mxu0 0.0
    %4271 = vmatpush.msra.mxu0 0.0
    %4272 = vmatpush.msra.mxu0 0.0
    %4273 = vmatpush.msra.mxu0 0.0
    %4274 = vmatpush.msra.mxu0 0.0
    %4275 = vmatpush.msra.mxu0 0.0
    %4276 = vmatpush.msra.mxu0 0.0
    %4277 = vmatpush.msra.mxu0 0.0
    %4278 = vmatpush.msra.mxu0 0.0
    %4279 = vmatpush.msra.mxu0 %v4256
    %4280 = vmatpush.msra.mxu0 %v4254
    %4281 = vmatmul.f32.gmra.mxu0 %v4260
    %v4282 = vpop.f32.mrf.mxu0
    %v4283 = vadd.f32 0.0, %v4282
    %4284 = vmatmul.f32.gmra.mxu0 %v4263
    %v4285 = vpop.f32.mrf.mxu0
    %v4286 = vadd.f32 0.0, %v4285
    %4287 = vdwg.mxu0
    %4288 = vrot.lane.b32.xlu0 %v3509, 80
    %v4289 = vpop.permute.xlu0 %4288
    %4290 = vrot.lane.b32.xlu0 %v3512, 80
    %v4291 = vpop.permute.xlu0 %4290
    %4292 = vrot.lane.b32.xlu0 %v3509, 16
    %v4293 = vpop.permute.xlu0 %4292
    %4294 = vrot.lane.b32.xlu0 %v3512, 16
    %v4295 = vpop.permute.xlu0 %4294
    %v4296 = vsel %vm3543, %v4289, 0
    %v4298 = vsel %vm3543, %v4291, 0
    %v4300 = vsel %vm3543, %v4293, 0
    %v4302 = vsel %vm3543, %v4295, 0
    %4304 = vmatpush.xpose.msra.mxu0 0.0
    %4305 = vmatpush.xpose.msra.mxu0 0.0
    %4306 = vmatpush.xpose.msra.mxu0 0.0
    %4307 = vmatpush.xpose.msra.mxu0 0.0
    %4308 = vmatpush.xpose.msra.mxu0 0.0
    %4309 = vmatpush.xpose.msra.mxu0 0.0
    %4310 = vmatpush.xpose.msra.mxu0 0.0
    %4311 = vmatpush.xpose.msra.mxu0 0.0
    %4312 = vmatpush.xpose.msra.mxu0 0.0
    %4313 = vmatpush.xpose.msra.mxu0 0.0
    %4314 = vmatpush.xpose.msra.mxu0 0.0
    %4315 = vmatpush.xpose.msra.mxu0 0.0
    %4316 = vmatpush.xpose.msra.mxu0 0.0
    %4317 = vmatpush.xpose.msra.mxu0 0.0
    %4318 = vmatpush.xpose.msra.mxu0 %v4302
    %4319 = vmatpush.xpose.msra.mxu0 %v4300
    %4320 = vmatmul.f32.gmra.mxu0 %v4296
    %v4321 = vpop.f32.mrf.mxu0
    %v4322 = vadd.f32 0.0, %v4321
    %4323 = vmatmul.f32.gmra.mxu0 %v4298
    %v4324 = vpop.f32.mrf.mxu0
    %v4325 = vadd.f32 0.0, %v4324
    %4326 = vdwg.mxu0
    %v4327 = vmul.f32 %v4322, 0.35355338
    %v4328 = vmul.f32 %v4325, 0.35355338
    %v4329 = vadd.f32 %v4327, %v3461
    %v4330 = vadd.f32 %v4328, %v3462
    %v4331 = vsel %vm635, %v4329, -inf
    %4332 = vmax.xlane.f32.xlu0 %v4331
    %v4333 = vpop.xlane.xlu0 %4332
    %v4334 = vsel %vm635, %v4330, -inf
    %4335 = vmax.xlane.f32.xlu0 %v4334
    %v4336 = vpop.xlane.xlu0 %4335
    %v4337 = vsub.f32 %v4329, %v4333
    %v4338 = vsub.f32 %v4330, %v4336
    %v4339 = vmul.f32 %v4337, 1.442695
    %v4340 = vpow.pop %v4339
    %v4341 = vmul.f32 %v4338, 1.442695
    %v4342 = vpow.pop %v4341
    %v4343 = vsel %vm635, %v4340, 0.0
    %4344 = vadd.xlane.f32.xlu0 %v4343
    %v4345 = vpop.xlane.xlu0 %4344
    %v4346 = vsel %vm635, %v4342, 0.0
    %4347 = vadd.xlane.f32.xlu0 %v4346
    %v4348 = vpop.xlane.xlu0 %4347
    %v4349 = vrcp.pop %v4345
    %v4350 = vmul.f32 %v4345, %v4349
    %v4351 = vsub.f32 1.0, %v4350
    %v4352 = vmul.f32 %v4349, %v4351
    %v4353 = vadd.f32 %v4349, %v4352
    %vm4354 = vweird.f32 %v4345
    %vm4355 = vweird.f32 %v4349
    %vm4356 = vmor %vm4354, %vm4355
    %v4357 = vsel %vm4356, %v4349, %v4353
    %v4358 = vand.u32 2147483647, %v4345
    %vm4359 = vcmp.eq.f32.partialorder %v4358, 8.507059e+37
    %v4360 = vand.u32 %v4345, 2147483648
    %v4361 = vor.u32 1.1754944e-38, %v4360
    %v4362 = vsel %vm4359, %v4361, %v4357
    %v4363 = vmul.f32 %v4340, %v4362
    %v4364 = vrcp.pop %v4348
    %v4365 = vmul.f32 %v4348, %v4364
    %v4366 = vsub.f32 1.0, %v4365
    %v4367 = vmul.f32 %v4364, %v4366
    %v4368 = vadd.f32 %v4364, %v4367
    %vm4369 = vweird.f32 %v4348
    %vm4370 = vweird.f32 %v4364
    %vm4371 = vmor %vm4369, %vm4370
    %v4372 = vsel %vm4371, %v4364, %v4368
    %v4373 = vand.u32 2147483647, %v4348
    %vm4374 = vcmp.eq.f32.partialorder %v4373, 8.507059e+37
    %v4375 = vand.u32 %v4348, 2147483648
    %v4376 = vor.u32 1.1754944e-38, %v4375
    %v4377 = vsel %vm4374, %v4376, %v4372
    %v4378 = vmul.f32 %v4342, %v4377
    %4379 = vrot.lane.b32.xlu0 %v3532, 80
    %v4380 = vpop.permute.xlu0 %4379
    %4381 = vrot.lane.b32.xlu0 %v3535, 80
    %v4382 = vpop.permute.xlu0 %4381
    %v4386 = vsel %vm635, %v4363, 0
    %v4389 = vsel %vm635, %v4378, 0
    %4391 = vmatpush.msra.mxu0 0.0
    %4392 = vmatpush.msra.mxu0 0.0
    %4393 = vmatpush.msra.mxu0 0.0
    %4394 = vmatpush.msra.mxu0 0.0
    %4395 = vmatpush.msra.mxu0 0.0
    %4396 = vmatpush.msra.mxu0 0.0
    %4397 = vmatpush.msra.mxu0 0.0
    %4398 = vmatpush.msra.mxu0 0.0
    %4399 = vmatpush.msra.mxu0 0.0
    %4400 = vmatpush.msra.mxu0 0.0
    %4401 = vmatpush.msra.mxu0 0.0
    %4402 = vmatpush.msra.mxu0 0.0
    %4403 = vmatpush.msra.mxu0 0.0
    %4404 = vmatpush.msra.mxu0 0.0
    %4405 = vmatpush.msra.mxu0 %v4382
    %4406 = vmatpush.msra.mxu0 %v4380
    %4407 = vmatmul.f32.gmra.mxu0 %v4386
    %v4408 = vpop.f32.mrf.mxu0
    %v4409 = vadd.f32 0.0, %v4408
    %4410 = vmatmul.f32.gmra.mxu0 %v4389
    %v4411 = vpop.f32.mrf.mxu0
    %v4412 = vadd.f32 0.0, %v4411
    %4413 = vdwg.mxu0
    %4414 = vrot.lane.b32.xlu0 %v3509, 72
    %v4415 = vpop.permute.xlu0 %4414
    %4416 = vrot.lane.b32.xlu0 %v3512, 72
    %v4417 = vpop.permute.xlu0 %4416
    %4418 = vrot.lane.b32.xlu0 %v3509, 8
    %v4419 = vpop.permute.xlu0 %4418
    %4420 = vrot.lane.b32.xlu0 %v3512, 8
    %v4421 = vpop.permute.xlu0 %4420
    %v4422 = vsel %vm3543, %v4415, 0
    %v4424 = vsel %vm3543, %v4417, 0
    %v4426 = vsel %vm3543, %v4419, 0
    %v4428 = vsel %vm3543, %v4421, 0
    %4430 = vmatpush.xpose.msra.mxu0 0.0
    %4431 = vmatpush.xpose.msra.mxu0 0.0
    %4432 = vmatpush.xpose.msra.mxu0 0.0
    %4433 = vmatpush.xpose.msra.mxu0 0.0
    %4434 = vmatpush.xpose.msra.mxu0 0.0
    %4435 = vmatpush.xpose.msra.mxu0 0.0
    %4436 = vmatpush.xpose.msra.mxu0 0.0
    %4437 = vmatpush.xpose.msra.mxu0 0.0
    %4438 = vmatpush.xpose.msra.mxu0 0.0
    %4439 = vmatpush.xpose.msra.mxu0 0.0
    %4440 = vmatpush.xpose.msra.mxu0 0.0
    %4441 = vmatpush.xpose.msra.mxu0 0.0
    %4442 = vmatpush.xpose.msra.mxu0 0.0
    %4443 = vmatpush.xpose.msra.mxu0 0.0
    %4444 = vmatpush.xpose.msra.mxu0 %v4428
    %4445 = vmatpush.xpose.msra.mxu0 %v4426
    %4446 = vmatmul.f32.gmra.mxu0 %v4422
    %v4447 = vpop.f32.mrf.mxu0
    %v4448 = vadd.f32 0.0, %v4447
    %4449 = vmatmul.f32.gmra.mxu0 %v4424
    %v4450 = vpop.f32.mrf.mxu0
    %v4451 = vadd.f32 0.0, %v4450
    %4452 = vdwg.mxu0
    %v4453 = vmul.f32 %v4448, 0.35355338
    %v4454 = vmul.f32 %v4451, 0.35355338
    %v4455 = vadd.f32 %v4453, %v3461
    %v4456 = vadd.f32 %v4454, %v3462
    %v4457 = vsel %vm635, %v4455, -inf
    %4458 = vmax.xlane.f32.xlu0 %v4457
    %v4459 = vpop.xlane.xlu0 %4458
    %v4460 = vsel %vm635, %v4456, -inf
    %4461 = vmax.xlane.f32.xlu0 %v4460
    %v4462 = vpop.xlane.xlu0 %4461
    %v4463 = vsub.f32 %v4455, %v4459
    %v4464 = vsub.f32 %v4456, %v4462
    %v4465 = vmul.f32 %v4463, 1.442695
    %v4466 = vpow.pop %v4465
    %v4467 = vmul.f32 %v4464, 1.442695
    %v4468 = vpow.pop %v4467
    %v4469 = vsel %vm635, %v4466, 0.0
    %4470 = vadd.xlane.f32.xlu0 %v4469
    %v4471 = vpop.xlane.xlu0 %4470
    %v4472 = vsel %vm635, %v4468, 0.0
    %4473 = vadd.xlane.f32.xlu0 %v4472
    %v4474 = vpop.xlane.xlu0 %4473
    %v4475 = vrcp.pop %v4471
    %v4476 = vmul.f32 %v4471, %v4475
    %v4477 = vsub.f32 1.0, %v4476
    %v4478 = vmul.f32 %v4475, %v4477
    %v4479 = vadd.f32 %v4475, %v4478
    %vm4480 = vweird.f32 %v4471
    %vm4481 = vweird.f32 %v4475
    %vm4482 = vmor %vm4480, %vm4481
    %v4483 = vsel %vm4482, %v4475, %v4479
    %v4484 = vand.u32 2147483647, %v4471
    %vm4485 = vcmp.eq.f32.partialorder %v4484, 8.507059e+37
    %v4486 = vand.u32 %v4471, 2147483648
    %v4487 = vor.u32 1.1754944e-38, %v4486
    %v4488 = vsel %vm4485, %v4487, %v4483
    %v4489 = vmul.f32 %v4466, %v4488
    %v4490 = vrcp.pop %v4474
    %v4491 = vmul.f32 %v4474, %v4490
    %v4492 = vsub.f32 1.0, %v4491
    %v4493 = vmul.f32 %v4490, %v4492
    %v4494 = vadd.f32 %v4490, %v4493
    %vm4495 = vweird.f32 %v4474
    %vm4496 = vweird.f32 %v4490
    %vm4497 = vmor %vm4495, %vm4496
    %v4498 = vsel %vm4497, %v4490, %v4494
    %v4499 = vand.u32 2147483647, %v4474
    %vm4500 = vcmp.eq.f32.partialorder %v4499, 8.507059e+37
    %v4501 = vand.u32 %v4474, 2147483648
    %v4502 = vor.u32 1.1754944e-38, %v4501
    %v4503 = vsel %vm4500, %v4502, %v4498
    %v4504 = vmul.f32 %v4468, %v4503
    %4505 = vrot.lane.b32.xlu0 %v3532, 72
    %v4506 = vpop.permute.xlu0 %4505
    %4507 = vrot.lane.b32.xlu0 %v3535, 72
    %v4508 = vpop.permute.xlu0 %4507
    %v4512 = vsel %vm635, %v4489, 0
    %v4515 = vsel %vm635, %v4504, 0
    %4517 = vmatpush.msra.mxu0 0.0
    %4518 = vmatpush.msra.mxu0 0.0
    %4519 = vmatpush.msra.mxu0 0.0
    %4520 = vmatpush.msra.mxu0 0.0
    %4521 = vmatpush.msra.mxu0 0.0
    %4522 = vmatpush.msra.mxu0 0.0
    %4523 = vmatpush.msra.mxu0 0.0
    %4524 = vmatpush.msra.mxu0 0.0
    %4525 = vmatpush.msra.mxu0 0.0
    %4526 = vmatpush.msra.mxu0 0.0
    %4527 = vmatpush.msra.mxu0 0.0
    %4528 = vmatpush.msra.mxu0 0.0
    %4529 = vmatpush.msra.mxu0 0.0
    %4530 = vmatpush.msra.mxu0 0.0
    %4531 = vmatpush.msra.mxu0 %v4508
    %4532 = vmatpush.msra.mxu0 %v4506
    %4533 = vmatmul.f32.gmra.mxu0 %v4512
    %v4534 = vpop.f32.mrf.mxu0
    %v4535 = vadd.f32 0.0, %v4534
    %4536 = vmatmul.f32.gmra.mxu0 %v4515
    %v4537 = vpop.f32.mrf.mxu0
    %v4538 = vadd.f32 0.0, %v4537
    %4539 = vdwg.mxu0
    %4542 = vrot.lane.b32.xlu0 %v3779, 8
    %v4543 = vpop.permute.xlu0 %4542
    %4544 = vrot.lane.b32.xlu0 %v3782, 8
    %v4545 = vpop.permute.xlu0 %4544
    %4550 = vrot.lane.b32.xlu0 %v3905, 16
    %v4551 = vpop.permute.xlu0 %4550
    %4552 = vrot.lane.b32.xlu0 %v3908, 16
    %v4553 = vpop.permute.xlu0 %4552
    %4558 = vrot.lane.b32.xlu0 %v4031, 24
    %v4559 = vpop.permute.xlu0 %4558
    %4560 = vrot.lane.b32.xlu0 %v4034, 24
    %v4561 = vpop.permute.xlu0 %4560
    %4566 = vrot.lane.b32.xlu0 %v4157, 32
    %v4567 = vpop.permute.xlu0 %4566
    %4568 = vrot.lane.b32.xlu0 %v4160, 32
    %v4569 = vpop.permute.xlu0 %4568
    %4574 = vrot.lane.b32.xlu0 %v4283, 40
    %v4575 = vpop.permute.xlu0 %4574
    %4576 = vrot.lane.b32.xlu0 %v4286, 40
    %v4577 = vpop.permute.xlu0 %4576
    %4582 = vrot.lane.b32.xlu0 %v4409, 48
    %v4583 = vpop.permute.xlu0 %4582
    %4584 = vrot.lane.b32.xlu0 %v4412, 48
    %v4585 = vpop.permute.xlu0 %4584
    %4590 = vrot.lane.b32.xlu0 %v4535, 56
    %v4591 = vpop.permute.xlu0 %4590
    %4592 = vrot.lane.b32.xlu0 %v4538, 56
    %v4593 = vpop.permute.xlu0 %4592
    %v4596 = vsel %vm3543, %v3651, %v4543
    %v4597 = vsel %vm3543, %v3654, %v4545
    %v4598 = vsel %vm635, %v4596, %v4551
    %v4599 = vsel %vm635, %v4597, %v4553
    %vm4600 = vcmask 195584
    %v4601 = vsel %vm4600, %v4598, %v4559
    %v4602 = vsel %vm4600, %v4599, %v4561
    %v4603 = vsel %vm701, %v4601, %v4567
    %v4604 = vsel %vm701, %v4602, %v4569
    %vm4605 = vcmask 326656
    %v4606 = vsel %vm4605, %v4603, %v4575
    %v4607 = vsel %vm4605, %v4604, %v4577
    %vm4608 = vcmask 392192
    %v4609 = vsel %vm4608, %v4606, %v4583
    %v4610 = vsel %vm4608, %v4607, %v4585
    %vm4611 = vcmask 457728
    %v4612 = vsel %vm4611, %v4609, %v4591
    %v4613 = vsel %vm4611, %v4610, %v4593
    %v4614 = vld [vmem:[#allocation38] sm:$0xff]
    %v4615 = vld [vmem:[#allocation38 + $0x8] sm:$0xff]
    %v4616 = vld [vmem:[#allocation38 + $0x10] sm:$0xff]
    %v4617 = vld [vmem:[#allocation38 + $0x18] sm:$0xff]
    %v4618 = vld [vmem:[#allocation38 + $0x20] sm:$0xff]
    %v4619 = vld [vmem:[#allocation38 + $0x28] sm:$0xff]
    %v4620 = vld [vmem:[#allocation38 + $0x30] sm:$0xff]
    %v4621 = vld [vmem:[#allocation38 + $0x38] sm:$0xff]
    %v4622 = vld [vmem:[#allocation40] sm:$0x1]
    %v4624 = vperm.slane %v4622, 0
    %v4627 = vsel %vm2031, %v4612, 0
    %v4630 = vsel %vm2031, %v4613, 0
    %4632 = vmatpush.msra.mxu0 0.0
    %4633 = vmatpush.msra.mxu0 0.0
    %4634 = vmatpush.msra.mxu0 0.0
    %4635 = vmatpush.msra.mxu0 0.0
    %4636 = vmatpush.msra.mxu0 0.0
    %4637 = vmatpush.msra.mxu0 0.0
    %4638 = vmatpush.msra.mxu0 0.0
    %4639 = vmatpush.msra.mxu0 0.0
    %4640 = vmatpush.msra.mxu0 %v4621
    %4641 = vmatpush.msra.mxu0 %v4620
    %4642 = vmatpush.msra.mxu0 %v4619
    %4643 = vmatpush.msra.mxu0 %v4618
    %4644 = vmatpush.msra.mxu0 %v4617
    %4645 = vmatpush.msra.mxu0 %v4616
    %4646 = vmatpush.msra.mxu0 %v4615
    %4647 = vmatpush.msra.mxu0 %v4614
    %4648 = vmatmul.f32.gmra.mxu0 %v4627
    %v4649 = vpop.f32.mrf.mxu0
    %v4650 = vadd.f32 %v4624, %v4649
    %4651 = vmatmul.f32.gmra.mxu0 %v4630
    %v4652 = vpop.f32.mrf.mxu0
    %v4653 = vadd.f32 %v4624, %v4652
    %4654 = vdwg.mxu0
    %v4655 = vld [vmem:[%s29] sm:$0xff]
    %v4656 = vld [vmem:[%s29 + $0x8] sm:$0xff]
    %v4657 = vld [vmem:[%s29 + $0x10] sm:$0xff]
    %v4658 = vld [vmem:[%s29 + $0x18] sm:$0xff]
    %v4659 = vld [vmem:[%s29 + $0x20] sm:$0xff]
    %v4660 = vld [vmem:[%s29 + $0x28] sm:$0xff]
    %v4661 = vld [vmem:[%s29 + $0x30] sm:$0xff]
    %v4662 = vld [vmem:[%s29 + $0x38] sm:$0xff]
    %v4663 = vld [vmem:[#allocation17] sm:$0x1]
    %v4665 = vperm.slane %v4663, 0
    %v4668 = vsel %vm2031, %v4650, 0
    %v4671 = vsel %vm2031, %v4653, 0
    %4673 = vmatpush.msra.mxu0 0.0
    %4674 = vmatpush.msra.mxu0 0.0
    %4675 = vmatpush.msra.mxu0 0.0
    %4676 = vmatpush.msra.mxu0 0.0
    %4677 = vmatpush.msra.mxu0 0.0
    %4678 = vmatpush.msra.mxu0 0.0
    %4679 = vmatpush.msra.mxu0 0.0
    %4680 = vmatpush.msra.mxu0 0.0
    %4681 = vmatpush.msra.mxu0 %v4662
    %4682 = vmatpush.msra.mxu0 %v4661
    %4683 = vmatpush.msra.mxu0 %v4660
    %4684 = vmatpush.msra.mxu0 %v4659
    %4685 = vmatpush.msra.mxu0 %v4658
    %4686 = vmatpush.msra.mxu0 %v4657
    %4687 = vmatpush.msra.mxu0 %v4656
    %4688 = vmatpush.msra.mxu0 %v4655
    %4689 = vmatmul.f32.gmra.mxu0 %v4668
    %v4690 = vpop.f32.mrf.mxu0
    %v4691 = vadd.f32 %v4665, %v4690
    %4692 = vmatmul.f32.gmra.mxu0 %v4671
    %v4693 = vpop.f32.mrf.mxu0
    %v4694 = vadd.f32 %v4665, %v4693
    %4695 = vdwg.mxu0
    %v4696 = vld [vmem:[%s33] sm:$0xff]
    %v4697 = vld [vmem:[%s33 + $0x8] sm:$0xff]
    %v4698 = vld [vmem:[#allocation19] sm:$0xff]
    %v4699 = vld [vmem:[#allocation19 + $0x8] sm:$0xff]
    %v4700 = vld [vmem:[#allocation20] sm:$0x1]
    %v4701 = vld [vmem:[#allocation22] sm:$0x1]
    %v4703 = vperm.slane %v4700, 0
    %v4705 = vsel %vm635, 0.0, 0
    %4707 = vmatpush.msra.mxu0 0.0
    %4708 = vmatpush.msra.mxu0 0.0
    %4709 = vmatpush.msra.mxu0 0.0
    %4710 = vmatpush.msra.mxu0 0.0
    %4711 = vmatpush.msra.mxu0 0.0
    %4712 = vmatpush.msra.mxu0 0.0
    %4713 = vmatpush.msra.mxu0 0.0
    %4714 = vmatpush.msra.mxu0 0.0
    %4715 = vmatpush.msra.mxu0 0.0
    %4716 = vmatpush.msra.mxu0 0.0
    %4717 = vmatpush.msra.mxu0 0.0
    %4718 = vmatpush.msra.mxu0 0.0
    %4719 = vmatpush.msra.mxu0 0.0
    %4720 = vmatpush.msra.mxu0 0.0
    %4721 = vmatpush.msra.mxu0 %v4697
    %4722 = vmatpush.msra.mxu0 %v4696
    %4723 = vmatmul.f32.gmra.mxu0 %v4705
    %v4724 = vpop.f32.mrf.mxu0
    %v4725 = vadd.f32 %v4703, %v4724
    %4726 = vdwg.mxu0
    %v4727 = vadd.f32 %v4691, %v4725
    %v4728 = vxor.u32 %v4727, 2147483648
    %v4729 = vmul.f32 %v4728, 1.442695
    %v4730 = vpow.pop %v4729
    %v4731 = vadd.f32 %v4730, 1.0
    %v4732 = vrcp.pop %v4731
    %v4733 = vmul.f32 %v4731, %v4732
    %v4734 = vsub.f32 1.0, %v4733
    %v4735 = vmul.f32 %v4732, %v4734
    %v4736 = vadd.f32 %v4732, %v4735
    %vm4737 = vweird.f32 %v4731
    %vm4738 = vweird.f32 %v4732
    %vm4739 = vmor %vm4737, %vm4738
    %v4740 = vsel %vm4739, %v4732, %v4736
    %v4741 = vand.u32 2147483647, %v4731
    %vm4742 = vcmp.eq.f32.partialorder %v4741, 8.507059e+37
    %v4743 = vand.u32 %v4731, 2147483648
    %v4744 = vor.u32 1.1754944e-38, %v4743
    %v4745 = vsel %vm4742, %v4744, %v4740
    %v4746 = vmul.f32 1.0, %v4745
    %4748 = vrot.lane.b32.xlu0 %v4725, 96
    %v4749 = vpop.permute.xlu0 %4748
    %v4751 = vmul.f32 %v4746, %v4749
    %4753 = vrot.lane.b32.xlu0 %v4751, 32
    %v4754 = vpop.permute.xlu0 %4753
    %v4756 = vadd.f32 %v4691, %v4754
    %v4757 = vtanh.pop %v4756
    %v4758 = vsub.f32 1.0, %v4746
    %4760 = vrot.lane.b32.xlu0 %v4757, 112
    %v4761 = vpop.permute.xlu0 %4760
    %v4763 = vmul.f32 %v4758, %v4761
    %v4764 = vmul.f32 %v4746, 0.0
    %v4765 = vadd.f32 %v4763, %v4764
    %v4767 = vperm.slane %v4701, 0
    %4769 = vmatpush.msra.mxu0 0.0
    %4770 = vmatpush.msra.mxu0 0.0
    %4771 = vmatpush.msra.mxu0 0.0
    %4772 = vmatpush.msra.mxu0 0.0
    %4773 = vmatpush.msra.mxu0 0.0
    %4774 = vmatpush.msra.mxu0 0.0
    %4775 = vmatpush.msra.mxu0 0.0
    %4776 = vmatpush.msra.mxu0 0.0
    %4777 = vmatpush.msra.mxu0 0.0
    %4778 = vmatpush.msra.mxu0 0.0
    %4779 = vmatpush.msra.mxu0 0.0
    %4780 = vmatpush.msra.mxu0 0.0
    %4781 = vmatpush.msra.mxu0 0.0
    %4782 = vmatpush.msra.mxu0 0.0
    %4783 = vmatpush.msra.mxu0 %v4699
    %4784 = vmatpush.msra.mxu0 %v4698
    %4785 = vmatmul.f32.gmra.mxu0 %v4705
    %v4786 = vpop.f32.mrf.mxu0
    %v4787 = vadd.f32 %v4767, %v4786
    %4788 = vdwg.mxu0
    %v4790 = vrot.slane %v4787, 2
    %4791 = vrot.lane.b32.xlu0 %v4790, 48
    %v4792 = vpop.permute.xlu0 %4791
    %v4794 = vadd.f32 %v4694, %v4792
    %v4795 = vxor.u32 %v4794, 2147483648
    %v4796 = vmul.f32 %v4795, 1.442695
    %v4797 = vpow.pop %v4796
    %v4798 = vadd.f32 %v4797, 1.0
    %v4799 = vrcp.pop %v4798
    %v4800 = vmul.f32 %v4798, %v4799
    %v4801 = vsub.f32 1.0, %v4800
    %v4802 = vmul.f32 %v4799, %v4801
    %v4803 = vadd.f32 %v4799, %v4802
    %vm4804 = vweird.f32 %v4798
    %vm4805 = vweird.f32 %v4799
    %vm4806 = vmor %vm4804, %vm4805
    %v4807 = vsel %vm4806, %v4799, %v4803
    %v4808 = vand.u32 2147483647, %v4798
    %vm4809 = vcmp.eq.f32.partialorder %v4808, 8.507059e+37
    %v4810 = vand.u32 %v4798, 2147483648
    %v4811 = vor.u32 1.1754944e-38, %v4810
    %v4812 = vsel %vm4809, %v4811, %v4807
    %v4813 = vmul.f32 1.0, %v4812
    %4814 = vrot.lane.b32.xlu0 %v4790, 16
    %v4815 = vpop.permute.xlu0 %4814
    %v4817 = vmul.f32 %v4813, %v4815
    %4819 = vrot.lane.b32.xlu0 %v4817, 32
    %v4820 = vpop.permute.xlu0 %4819
    %v4822 = vadd.f32 %v4694, %v4820
    %v4823 = vtanh.pop %v4822
    %v4824 = vsub.f32 1.0, %v4813
    %4826 = vrot.lane.b32.xlu0 %v4823, 112
    %v4827 = vpop.permute.xlu0 %4826
    %v4829 = vmul.f32 %v4824, %v4827
    %v4830 = vmul.f32 %v4813, 0.0
    %v4831 = vadd.f32 %v4829, %v4830
    %4833 = vrot.lane.b32.xlu0 %v4765, 112
    %v4834 = vpop.permute.xlu0 %4833
    %v4835 = vsel %vm635, %v4834, 0
    %4837 = vmatpush.msra.mxu0 0.0
    %4838 = vmatpush.msra.mxu0 0.0
    %4839 = vmatpush.msra.mxu0 0.0
    %4840 = vmatpush.msra.mxu0 0.0
    %4841 = vmatpush.msra.mxu0 0.0
    %4842 = vmatpush.msra.mxu0 0.0
    %4843 = vmatpush.msra.mxu0 0.0
    %4844 = vmatpush.msra.mxu0 0.0
    %4845 = vmatpush.msra.mxu0 0.0
    %4846 = vmatpush.msra.mxu0 0.0
    %4847 = vmatpush.msra.mxu0 0.0
    %4848 = vmatpush.msra.mxu0 0.0
    %4849 = vmatpush.msra.mxu0 0.0
    %4850 = vmatpush.msra.mxu0 0.0
    %4851 = vmatpush.msra.mxu0 %v4697
    %4852 = vmatpush.msra.mxu0 %v4696
    %4853 = vmatmul.f32.gmra.mxu0 %v4835
    %v4854 = vpop.f32.mrf.mxu0
    %v4855 = vadd.f32 %v4703, %v4854
    %4856 = vdwg.mxu0
    %v4858 = vrot.slane %v4855, 6
    %v4860 = vadd.f32 %v4691, %v4858
    %v4861 = vxor.u32 %v4860, 2147483648
    %v4862 = vmul.f32 %v4861, 1.442695
    %v4863 = vpow.pop %v4862
    %v4864 = vadd.f32 %v4863, 1.0
    %v4865 = vrcp.pop %v4864
    %v4866 = vmul.f32 %v4864, %v4865
    %v4867 = vsub.f32 1.0, %v4866
    %v4868 = vmul.f32 %v4865, %v4867
    %v4869 = vadd.f32 %v4865, %v4868
    %vm4870 = vweird.f32 %v4864
    %vm4871 = vweird.f32 %v4865
    %vm4872 = vmor %vm4870, %vm4871
    %v4873 = vsel %vm4872, %v4865, %v4869
    %v4874 = vand.u32 2147483647, %v4864
    %vm4875 = vcmp.eq.f32.partialorder %v4874, 8.507059e+37
    %v4876 = vand.u32 %v4864, 2147483648
    %v4877 = vor.u32 1.1754944e-38, %v4876
    %v4878 = vsel %vm4875, %v4877, %v4873
    %v4879 = vmul.f32 1.0, %v4878
    %4880 = vrot.lane.b32.xlu0 %v4858, 96
    %v4881 = vpop.permute.xlu0 %4880
    %v4883 = vmul.f32 %v4879, %v4881
    %4885 = vrot.lane.b32.xlu0 %v4883, 32
    %v4886 = vpop.permute.xlu0 %4885
    %v4888 = vadd.f32 %v4691, %v4886
    %v4889 = vtanh.pop %v4888
    %v4890 = vsub.f32 1.0, %v4879
    %4892 = vrot.lane.b32.xlu0 %v4889, 112
    %v4893 = vpop.permute.xlu0 %4892
    %v4895 = vmul.f32 %v4890, %v4893
    %v4896 = vrot.slane %v4765, 6
    %v4898 = vmul.f32 %v4879, %v4896
    %v4899 = vadd.f32 %v4895, %v4898
    %v4901 = vrot.slane %v4831, 6
    %4902 = vrot.lane.b32.xlu0 %v4901, 64
    %v4903 = vpop.permute.xlu0 %4902
    %v4904 = vsel %vm635, %v4903, 0
    %4906 = vmatpush.msra.mxu0 0.0
    %4907 = vmatpush.msra.mxu0 0.0
    %4908 = vmatpush.msra.mxu0 0.0
    %4909 = vmatpush.msra.mxu0 0.0
    %4910 = vmatpush.msra.mxu0 0.0
    %4911 = vmatpush.msra.mxu0 0.0
    %4912 = vmatpush.msra.mxu0 0.0
    %4913 = vmatpush.msra.mxu0 0.0
    %4914 = vmatpush.msra.mxu0 0.0
    %4915 = vmatpush.msra.mxu0 0.0
    %4916 = vmatpush.msra.mxu0 0.0
    %4917 = vmatpush.msra.mxu0 0.0
    %4918 = vmatpush.msra.mxu0 0.0
    %4919 = vmatpush.msra.mxu0 0.0
    %4920 = vmatpush.msra.mxu0 %v4699
    %4921 = vmatpush.msra.mxu0 %v4698
    %4922 = vmatmul.f32.gmra.mxu0 %v4904
    %v4923 = vpop.f32.mrf.mxu0
    %v4924 = vadd.f32 %v4767, %v4923
    %4925 = vdwg.mxu0
    %v4927 = vrot.slane %v4924, 4
    %4928 = vrot.lane.b32.xlu0 %v4927, 48
    %v4929 = vpop.permute.xlu0 %4928
    %v4931 = vadd.f32 %v4694, %v4929
    %v4932 = vxor.u32 %v4931, 2147483648
    %v4933 = vmul.f32 %v4932, 1.442695
    %v4934 = vpow.pop %v4933
    %v4935 = vadd.f32 %v4934, 1.0
    %v4936 = vrcp.pop %v4935
    %v4937 = vmul.f32 %v4935, %v4936
    %v4938 = vsub.f32 1.0, %v4937
    %v4939 = vmul.f32 %v4936, %v4938
    %v4940 = vadd.f32 %v4936, %v4939
    %vm4941 = vweird.f32 %v4935
    %vm4942 = vweird.f32 %v4936
    %vm4943 = vmor %vm4941, %vm4942
    %v4944 = vsel %vm4943, %v4936, %v4940
    %v4945 = vand.u32 2147483647, %v4935
    %vm4946 = vcmp.eq.f32.partialorder %v4945, 8.507059e+37
    %v4947 = vand.u32 %v4935, 2147483648
    %v4948 = vor.u32 1.1754944e-38, %v4947
    %v4949 = vsel %vm4946, %v4948, %v4944
    %v4950 = vmul.f32 1.0, %v4949
    %4951 = vrot.lane.b32.xlu0 %v4927, 16
    %v4952 = vpop.permute.xlu0 %4951
    %v4954 = vmul.f32 %v4950, %v4952
    %4956 = vrot.lane.b32.xlu0 %v4954, 32
    %v4957 = vpop.permute.xlu0 %4956
    %v4959 = vadd.f32 %v4694, %v4957
    %v4960 = vtanh.pop %v4959
    %v4961 = vsub.f32 1.0, %v4950
    %4963 = vrot.lane.b32.xlu0 %v4960, 112
    %v4964 = vpop.permute.xlu0 %4963
    %v4966 = vmul.f32 %v4961, %v4964
    %v4967 = vrot.slane %v4831, 2
    %v4969 = vmul.f32 %v4950, %v4967
    %v4970 = vadd.f32 %v4966, %v4969
    %v4972 = vrot.slane %v4899, 2
    %4973 = vrot.lane.b32.xlu0 %v4972, 112
    %v4974 = vpop.permute.xlu0 %4973
    %v4975 = vsel %vm635, %v4974, 0
    %4977 = vmatpush.msra.mxu0 0.0
    %4978 = vmatpush.msra.mxu0 0.0
    %4979 = vmatpush.msra.mxu0 0.0
    %4980 = vmatpush.msra.mxu0 0.0
    %4981 = vmatpush.msra.mxu0 0.0
    %4982 = vmatpush.msra.mxu0 0.0
    %4983 = vmatpush.msra.mxu0 0.0
    %4984 = vmatpush.msra.mxu0 0.0
    %4985 = vmatpush.msra.mxu0 0.0
    %4986 = vmatpush.msra.mxu0 0.0
    %4987 = vmatpush.msra.mxu0 0.0
    %4988 = vmatpush.msra.mxu0 0.0
    %4989 = vmatpush.msra.mxu0 0.0
    %4990 = vmatpush.msra.mxu0 0.0
    %4991 = vmatpush.msra.mxu0 %v4697
    %4992 = vmatpush.msra.mxu0 %v4696
    %4993 = vmatmul.f32.gmra.mxu0 %v4975
    %v4994 = vpop.f32.mrf.mxu0
    %v4995 = vadd.f32 %v4703, %v4994
    %4996 = vdwg.mxu0
    %v4998 = vrot.slane %v4995, 4
    %v5000 = vadd.f32 %v4691, %v4998
    %v5001 = vxor.u32 %v5000, 2147483648
    %v5002 = vmul.f32 %v5001, 1.442695
    %v5003 = vpow.pop %v5002
    %v5004 = vadd.f32 %v5003, 1.0
    %v5005 = vrcp.pop %v5004
    %v5006 = vmul.f32 %v5004, %v5005
    %v5007 = vsub.f32 1.0, %v5006
    %v5008 = vmul.f32 %v5005, %v5007
    %v5009 = vadd.f32 %v5005, %v5008
    %vm5010 = vweird.f32 %v5004
    %vm5011 = vweird.f32 %v5005
    %vm5012 = vmor %vm5010, %vm5011
    %v5013 = vsel %vm5012, %v5005, %v5009
    %v5014 = vand.u32 2147483647, %v5004
    %vm5015 = vcmp.eq.f32.partialorder %v5014, 8.507059e+37
    %v5016 = vand.u32 %v5004, 2147483648
    %v5017 = vor.u32 1.1754944e-38, %v5016
    %v5018 = vsel %vm5015, %v5017, %v5013
    %v5019 = vmul.f32 1.0, %v5018
    %5020 = vrot.lane.b32.xlu0 %v4998, 96
    %v5021 = vpop.permute.xlu0 %5020
    %v5023 = vmul.f32 %v5019, %v5021
    %5025 = vrot.lane.b32.xlu0 %v5023, 32
    %v5026 = vpop.permute.xlu0 %5025
    %v5028 = vadd.f32 %v4691, %v5026
    %v5029 = vtanh.pop %v5028
    %v5030 = vsub.f32 1.0, %v5019
    %5032 = vrot.lane.b32.xlu0 %v5029, 112
    %v5033 = vpop.permute.xlu0 %5032
    %v5035 = vmul.f32 %v5030, %v5033
    %v5036 = vrot.slane %v4899, 6
    %v5038 = vmul.f32 %v5019, %v5036
    %v5039 = vadd.f32 %v5035, %v5038
    %v5041 = vrot.slane %v4970, 4
    %5042 = vrot.lane.b32.xlu0 %v5041, 64
    %v5043 = vpop.permute.xlu0 %5042
    %v5044 = vsel %vm635, %v5043, 0
    %5046 = vmatpush.msra.mxu0 0.0
    %5047 = vmatpush.msra.mxu0 0.0
    %5048 = vmatpush.msra.mxu0 0.0
    %5049 = vmatpush.msra.mxu0 0.0
    %5050 = vmatpush.msra.mxu0 0.0
    %5051 = vmatpush.msra.mxu0 0.0
    %5052 = vmatpush.msra.mxu0 0.0
    %5053 = vmatpush.msra.mxu0 0.0
    %5054 = vmatpush.msra.mxu0 0.0
    %5055 = vmatpush.msra.mxu0 0.0
    %5056 = vmatpush.msra.mxu0 0.0
    %5057 = vmatpush.msra.mxu0 0.0
    %5058 = vmatpush.msra.mxu0 0.0
    %5059 = vmatpush.msra.mxu0 0.0
    %5060 = vmatpush.msra.mxu0 %v4699
    %5061 = vmatpush.msra.mxu0 %v4698
    %5062 = vmatmul.f32.gmra.mxu0 %v5044
    %v5063 = vpop.f32.mrf.mxu0
    %v5064 = vadd.f32 %v4767, %v5063
    %5065 = vdwg.mxu0
    %v5067 = vrot.slane %v5064, 6
    %5068 = vrot.lane.b32.xlu0 %v5067, 48
    %v5069 = vpop.permute.xlu0 %5068
    %v5071 = vadd.f32 %v4694, %v5069
    %v5072 = vxor.u32 %v5071, 2147483648
    %v5073 = vmul.f32 %v5072, 1.442695
    %v5074 = vpow.pop %v5073
    %v5075 = vadd.f32 %v5074, 1.0
    %v5076 = vrcp.pop %v5075
    %v5077 = vmul.f32 %v5075, %v5076
    %v5078 = vsub.f32 1.0, %v5077
    %v5079 = vmul.f32 %v5076, %v5078
    %v5080 = vadd.f32 %v5076, %v5079
    %vm5081 = vweird.f32 %v5075
    %vm5082 = vweird.f32 %v5076
    %vm5083 = vmor %vm5081, %vm5082
    %v5084 = vsel %vm5083, %v5076, %v5080
    %v5085 = vand.u32 2147483647, %v5075
    %vm5086 = vcmp.eq.f32.partialorder %v5085, 8.507059e+37
    %v5087 = vand.u32 %v5075, 2147483648
    %v5088 = vor.u32 1.1754944e-38, %v5087
    %v5089 = vsel %vm5086, %v5088, %v5084
    %v5090 = vmul.f32 1.0, %v5089
    %5091 = vrot.lane.b32.xlu0 %v5067, 16
    %v5092 = vpop.permute.xlu0 %5091
    %v5094 = vmul.f32 %v5090, %v5092
    %5096 = vrot.lane.b32.xlu0 %v5094, 32
    %v5097 = vpop.permute.xlu0 %5096
    %v5099 = vadd.f32 %v4694, %v5097
    %v5100 = vtanh.pop %v5099
    %v5101 = vsub.f32 1.0, %v5090
    %5103 = vrot.lane.b32.xlu0 %v5100, 112
    %v5104 = vpop.permute.xlu0 %5103
    %v5106 = vmul.f32 %v5101, %v5104
    %v5107 = vrot.slane %v4970, 2
    %v5109 = vmul.f32 %v5090, %v5107
    %v5110 = vadd.f32 %v5106, %v5109
    %v5112 = vrot.slane %v5039, 4
    %5113 = vrot.lane.b32.xlu0 %v5112, 112
    %v5114 = vpop.permute.xlu0 %5113
    %v5115 = vsel %vm635, %v5114, 0
    %5117 = vmatpush.msra.mxu0 0.0
    %5118 = vmatpush.msra.mxu0 0.0
    %5119 = vmatpush.msra.mxu0 0.0
    %5120 = vmatpush.msra.mxu0 0.0
    %5121 = vmatpush.msra.mxu0 0.0
    %5122 = vmatpush.msra.mxu0 0.0
    %5123 = vmatpush.msra.mxu0 0.0
    %5124 = vmatpush.msra.mxu0 0.0
    %5125 = vmatpush.msra.mxu0 0.0
    %5126 = vmatpush.msra.mxu0 0.0
    %5127 = vmatpush.msra.mxu0 0.0
    %5128 = vmatpush.msra.mxu0 0.0
    %5129 = vmatpush.msra.mxu0 0.0
    %5130 = vmatpush.msra.mxu0 0.0
    %5131 = vmatpush.msra.mxu0 %v4697
    %5132 = vmatpush.msra.mxu0 %v4696
    %5133 = vmatmul.f32.gmra.mxu0 %v5115
    %v5134 = vpop.f32.mrf.mxu0
    %v5135 = vadd.f32 %v4703, %v5134
    %5136 = vdwg.mxu0
    %v5138 = vrot.slane %v5135, 2
    %v5140 = vadd.f32 %v4691, %v5138
    %v5141 = vxor.u32 %v5140, 2147483648
    %v5142 = vmul.f32 %v5141, 1.442695
    %v5143 = vpow.pop %v5142
    %v5144 = vadd.f32 %v5143, 1.0
    %v5145 = vrcp.pop %v5144
    %v5146 = vmul.f32 %v5144, %v5145
    %v5147 = vsub.f32 1.0, %v5146
    %v5148 = vmul.f32 %v5145, %v5147
    %v5149 = vadd.f32 %v5145, %v5148
    %vm5150 = vweird.f32 %v5144
    %vm5151 = vweird.f32 %v5145
    %vm5152 = vmor %vm5150, %vm5151
    %v5153 = vsel %vm5152, %v5145, %v5149
    %v5154 = vand.u32 2147483647, %v5144
    %vm5155 = vcmp.eq.f32.partialorder %v5154, 8.507059e+37
    %v5156 = vand.u32 %v5144, 2147483648
    %v5157 = vor.u32 1.1754944e-38, %v5156
    %v5158 = vsel %vm5155, %v5157, %v5153
    %v5159 = vmul.f32 1.0, %v5158
    %5160 = vrot.lane.b32.xlu0 %v5138, 96
    %v5161 = vpop.permute.xlu0 %5160
    %v5163 = vmul.f32 %v5159, %v5161
    %5165 = vrot.lane.b32.xlu0 %v5163, 32
    %v5166 = vpop.permute.xlu0 %5165
    %v5168 = vadd.f32 %v4691, %v5166
    %v5169 = vtanh.pop %v5168
    %v5170 = vsub.f32 1.0, %v5159
    %5172 = vrot.lane.b32.xlu0 %v5169, 112
    %v5173 = vpop.permute.xlu0 %5172
    %v5175 = vmul.f32 %v5170, %v5173
    %v5176 = vrot.slane %v5039, 6
    %v5178 = vmul.f32 %v5159, %v5176
    %v5179 = vadd.f32 %v5175, %v5178
    %v5181 = vrot.slane %v5110, 2
    %5182 = vrot.lane.b32.xlu0 %v5181, 64
    %v5183 = vpop.permute.xlu0 %5182
    %v5184 = vsel %vm635, %v5183, 0
    %5186 = vmatpush.msra.mxu0 0.0
    %5187 = vmatpush.msra.mxu0 0.0
    %5188 = vmatpush.msra.mxu0 0.0
    %5189 = vmatpush.msra.mxu0 0.0
    %5190 = vmatpush.msra.mxu0 0.0
    %5191 = vmatpush.msra.mxu0 0.0
    %5192 = vmatpush.msra.mxu0 0.0
    %5193 = vmatpush.msra.mxu0 0.0
    %5194 = vmatpush.msra.mxu0 0.0
    %5195 = vmatpush.msra.mxu0 0.0
    %5196 = vmatpush.msra.mxu0 0.0
    %5197 = vmatpush.msra.mxu0 0.0
    %5198 = vmatpush.msra.mxu0 0.0
    %5199 = vmatpush.msra.mxu0 0.0
    %5200 = vmatpush.msra.mxu0 %v4699
    %5201 = vmatpush.msra.mxu0 %v4698
    %5202 = vmatmul.f32.gmra.mxu0 %v5184
    %v5203 = vpop.f32.mrf.mxu0
    %v5204 = vadd.f32 %v4767, %v5203
    %5205 = vdwg.mxu0
    %5207 = vrot.lane.b32.xlu0 %v5204, 48
    %v5208 = vpop.permute.xlu0 %5207
    %v5210 = vadd.f32 %v4694, %v5208
    %v5211 = vxor.u32 %v5210, 2147483648
    %v5212 = vmul.f32 %v5211, 1.442695
    %v5213 = vpow.pop %v5212
    %v5214 = vadd.f32 %v5213, 1.0
    %v5215 = vrcp.pop %v5214
    %v5216 = vmul.f32 %v5214, %v5215
    %v5217 = vsub.f32 1.0, %v5216
    %v5218 = vmul.f32 %v5215, %v5217
    %v5219 = vadd.f32 %v5215, %v5218
    %vm5220 = vweird.f32 %v5214
    %vm5221 = vweird.f32 %v5215
    %vm5222 = vmor %vm5220, %vm5221
    %v5223 = vsel %vm5222, %v5215, %v5219
    %v5224 = vand.u32 2147483647, %v5214
    %vm5225 = vcmp.eq.f32.partialorder %v5224, 8.507059e+37
    %v5226 = vand.u32 %v5214, 2147483648
    %v5227 = vor.u32 1.1754944e-38, %v5226
    %v5228 = vsel %vm5225, %v5227, %v5223
    %v5229 = vmul.f32 1.0, %v5228
    %5230 = vrot.lane.b32.xlu0 %v5204, 16
    %v5231 = vpop.permute.xlu0 %5230
    %v5233 = vmul.f32 %v5229, %v5231
    %5235 = vrot.lane.b32.xlu0 %v5233, 32
    %v5236 = vpop.permute.xlu0 %5235
    %v5238 = vadd.f32 %v4694, %v5236
    %v5239 = vtanh.pop %v5238
    %v5240 = vsub.f32 1.0, %v5229
    %5242 = vrot.lane.b32.xlu0 %v5239, 112
    %v5243 = vpop.permute.xlu0 %5242
    %v5245 = vmul.f32 %v5240, %v5243
    %v5247 = vmul.f32 %v5229, %v5181
    %v5248 = vadd.f32 %v5245, %v5247
    %v5250 = vrot.slane %v5179, 6
    %5251 = vrot.lane.b32.xlu0 %v5250, 112
    %v5252 = vpop.permute.xlu0 %5251
    %v5253 = vsel %vm635, %v5252, 0
    %5255 = vmatpush.msra.mxu0 0.0
    %5256 = vmatpush.msra.mxu0 0.0
    %5257 = vmatpush.msra.mxu0 0.0
    %5258 = vmatpush.msra.mxu0 0.0
    %5259 = vmatpush.msra.mxu0 0.0
    %5260 = vmatpush.msra.mxu0 0.0
    %5261 = vmatpush.msra.mxu0 0.0
    %5262 = vmatpush.msra.mxu0 0.0
    %5263 = vmatpush.msra.mxu0 0.0
    %5264 = vmatpush.msra.mxu0 0.0
    %5265 = vmatpush.msra.mxu0 0.0
    %5266 = vmatpush.msra.mxu0 0.0
    %5267 = vmatpush.msra.mxu0 0.0
    %5268 = vmatpush.msra.mxu0 0.0
    %5269 = vmatpush.msra.mxu0 %v4697
    %5270 = vmatpush.msra.mxu0 %v4696
    %5271 = vmatmul.f32.gmra.mxu0 %v5253
    %v5272 = vpop.f32.mrf.mxu0
    %v5273 = vadd.f32 %v4703, %v5272
    %5274 = vdwg.mxu0
    %v5275 = vadd.f32 %v4694, %v5273
    %v5276 = vxor.u32 %v5275, 2147483648
    %v5277 = vmul.f32 %v5276, 1.442695
    %v5278 = vpow.pop %v5277
    %v5279 = vadd.f32 %v5278, 1.0
    %v5280 = vrcp.pop %v5279
    %v5281 = vmul.f32 %v5279, %v5280
    %v5282 = vsub.f32 1.0, %v5281
    %v5283 = vmul.f32 %v5280, %v5282
    %v5284 = vadd.f32 %v5280, %v5283
    %vm5285 = vweird.f32 %v5279
    %vm5286 = vweird.f32 %v5280
    %vm5287 = vmor %vm5285, %vm5286
    %v5288 = vsel %vm5287, %v5280, %v5284
    %v5289 = vand.u32 2147483647, %v5279
    %vm5290 = vcmp.eq.f32.partialorder %v5289, 8.507059e+37
    %v5291 = vand.u32 %v5279, 2147483648
    %v5292 = vor.u32 1.1754944e-38, %v5291
    %v5293 = vsel %vm5290, %v5292, %v5288
    %v5294 = vmul.f32 1.0, %v5293
    %5296 = vrot.lane.b32.xlu0 %v5273, 96
    %v5297 = vpop.permute.xlu0 %5296
    %v5299 = vmul.f32 %v5294, %v5297
    %5301 = vrot.lane.b32.xlu0 %v5299, 32
    %v5302 = vpop.permute.xlu0 %5301
    %v5304 = vadd.f32 %v4694, %v5302
    %v5305 = vtanh.pop %v5304
    %v5306 = vsub.f32 1.0, %v5294
    %5308 = vrot.lane.b32.xlu0 %v5305, 112
    %v5309 = vpop.permute.xlu0 %5308
    %v5311 = vmul.f32 %v5306, %v5309
    %v5313 = vmul.f32 %v5294, %v5250
    %v5314 = vadd.f32 %v5311, %v5313
    %5316 = vrot.lane.b32.xlu0 %v5248, 64
    %v5317 = vpop.permute.xlu0 %5316
    %v5318 = vsel %vm635, %v5317, 0
    %5320 = vmatpush.msra.mxu0 0.0
    %5321 = vmatpush.msra.mxu0 0.0
    %5322 = vmatpush.msra.mxu0 0.0
    %5323 = vmatpush.msra.mxu0 0.0
    %5324 = vmatpush.msra.mxu0 0.0
    %5325 = vmatpush.msra.mxu0 0.0
    %5326 = vmatpush.msra.mxu0 0.0
    %5327 = vmatpush.msra.mxu0 0.0
    %5328 = vmatpush.msra.mxu0 0.0
    %5329 = vmatpush.msra.mxu0 0.0
    %5330 = vmatpush.msra.mxu0 0.0
    %5331 = vmatpush.msra.mxu0 0.0
    %5332 = vmatpush.msra.mxu0 0.0
    %5333 = vmatpush.msra.mxu0 0.0
    %5334 = vmatpush.msra.mxu0 %v4699
    %5335 = vmatpush.msra.mxu0 %v4698
    %5336 = vmatmul.f32.gmra.mxu0 %v5318
    %v5337 = vpop.f32.mrf.mxu0
    %v5338 = vadd.f32 %v4767, %v5337
    %5339 = vdwg.mxu0
    %v5341 = vrot.slane %v5338, 2
    %5342 = vrot.lane.b32.xlu0 %v5341, 48
    %v5343 = vpop.permute.xlu0 %5342
    %v5345 = vadd.f32 %v4691, %v5343
    %v5346 = vxor.u32 %v5345, 2147483648
    %v5347 = vmul.f32 %v5346, 1.442695
    %v5348 = vpow.pop %v5347
    %v5349 = vadd.f32 %v5348, 1.0
    %v5350 = vrcp.pop %v5349
    %v5351 = vmul.f32 %v5349, %v5350
    %v5352 = vsub.f32 1.0, %v5351
    %v5353 = vmul.f32 %v5350, %v5352
    %v5354 = vadd.f32 %v5350, %v5353
    %vm5355 = vweird.f32 %v5349
    %vm5356 = vweird.f32 %v5350
    %vm5357 = vmor %vm5355, %vm5356
    %v5358 = vsel %vm5357, %v5350, %v5354
    %v5359 = vand.u32 2147483647, %v5349
    %vm5360 = vcmp.eq.f32.partialorder %v5359, 8.507059e+37
    %v5361 = vand.u32 %v5349, 2147483648
    %v5362 = vor.u32 1.1754944e-38, %v5361
    %v5363 = vsel %vm5360, %v5362, %v5358
    %v5364 = vmul.f32 1.0, %v5363
    %5365 = vrot.lane.b32.xlu0 %v5341, 16
    %v5366 = vpop.permute.xlu0 %5365
    %v5368 = vmul.f32 %v5364, %v5366
    %5370 = vrot.lane.b32.xlu0 %v5368, 32
    %v5371 = vpop.permute.xlu0 %5370
    %v5373 = vadd.f32 %v4691, %v5371
    %v5374 = vtanh.pop %v5373
    %v5375 = vsub.f32 1.0, %v5364
    %5377 = vrot.lane.b32.xlu0 %v5374, 112
    %v5378 = vpop.permute.xlu0 %5377
    %v5380 = vmul.f32 %v5375, %v5378
    %v5381 = vrot.slane %v5248, 2
    %v5383 = vmul.f32 %v5364, %v5381
    %v5384 = vadd.f32 %v5380, %v5383
    %5386 = vrot.lane.b32.xlu0 %v5314, 112
    %v5387 = vpop.permute.xlu0 %5386
    %v5388 = vsel %vm635, %v5387, 0
    %5390 = vmatpush.msra.mxu0 0.0
    %5391 = vmatpush.msra.mxu0 0.0
    %5392 = vmatpush.msra.mxu0 0.0
    %5393 = vmatpush.msra.mxu0 0.0
    %5394 = vmatpush.msra.mxu0 0.0
    %5395 = vmatpush.msra.mxu0 0.0
    %5396 = vmatpush.msra.mxu0 0.0
    %5397 = vmatpush.msra.mxu0 0.0
    %5398 = vmatpush.msra.mxu0 0.0
    %5399 = vmatpush.msra.mxu0 0.0
    %5400 = vmatpush.msra.mxu0 0.0
    %5401 = vmatpush.msra.mxu0 0.0
    %5402 = vmatpush.msra.mxu0 0.0
    %5403 = vmatpush.msra.mxu0 0.0
    %5404 = vmatpush.msra.mxu0 %v4697
    %5405 = vmatpush.msra.mxu0 %v4696
    %5406 = vmatmul.f32.gmra.mxu0 %v5388
    %v5407 = vpop.f32.mrf.mxu0
    %v5408 = vadd.f32 %v4703, %v5407
    %5409 = vdwg.mxu0
    %v5411 = vrot.slane %v5408, 6
    %v5413 = vadd.f32 %v4694, %v5411
    %v5414 = vxor.u32 %v5413, 2147483648
    %v5415 = vmul.f32 %v5414, 1.442695
    %v5416 = vpow.pop %v5415
    %v5417 = vadd.f32 %v5416, 1.0
    %v5418 = vrcp.pop %v5417
    %v5419 = vmul.f32 %v5417, %v5418
    %v5420 = vsub.f32 1.0, %v5419
    %v5421 = vmul.f32 %v5418, %v5420
    %v5422 = vadd.f32 %v5418, %v5421
    %vm5423 = vweird.f32 %v5417
    %vm5424 = vweird.f32 %v5418
    %vm5425 = vmor %vm5423, %vm5424
    %v5426 = vsel %vm5425, %v5418, %v5422
    %v5427 = vand.u32 2147483647, %v5417
    %vm5428 = vcmp.eq.f32.partialorder %v5427, 8.507059e+37
    %v5429 = vand.u32 %v5417, 2147483648
    %v5430 = vor.u32 1.1754944e-38, %v5429
    %v5431 = vsel %vm5428, %v5430, %v5426
    %v5432 = vmul.f32 1.0, %v5431
    %5433 = vrot.lane.b32.xlu0 %v5411, 96
    %v5434 = vpop.permute.xlu0 %5433
    %v5436 = vmul.f32 %v5432, %v5434
    %5438 = vrot.lane.b32.xlu0 %v5436, 32
    %v5439 = vpop.permute.xlu0 %5438
    %v5441 = vadd.f32 %v4694, %v5439
    %v5442 = vtanh.pop %v5441
    %v5443 = vsub.f32 1.0, %v5432
    %5445 = vrot.lane.b32.xlu0 %v5442, 112
    %v5446 = vpop.permute.xlu0 %5445
    %v5448 = vmul.f32 %v5443, %v5446
    %v5449 = vrot.slane %v5314, 6
    %v5451 = vmul.f32 %v5432, %v5449
    %v5452 = vadd.f32 %v5448, %v5451
    %v5454 = vrot.slane %v5384, 6
    %5455 = vrot.lane.b32.xlu0 %v5454, 64
    %v5456 = vpop.permute.xlu0 %5455
    %v5457 = vsel %vm635, %v5456, 0
    %5459 = vmatpush.msra.mxu0 0.0
    %5460 = vmatpush.msra.mxu0 0.0
    %5461 = vmatpush.msra.mxu0 0.0
    %5462 = vmatpush.msra.mxu0 0.0
    %5463 = vmatpush.msra.mxu0 0.0
    %5464 = vmatpush.msra.mxu0 0.0
    %5465 = vmatpush.msra.mxu0 0.0
    %5466 = vmatpush.msra.mxu0 0.0
    %5467 = vmatpush.msra.mxu0 0.0
    %5468 = vmatpush.msra.mxu0 0.0
    %5469 = vmatpush.msra.mxu0 0.0
    %5470 = vmatpush.msra.mxu0 0.0
    %5471 = vmatpush.msra.mxu0 0.0
    %5472 = vmatpush.msra.mxu0 0.0
    %5473 = vmatpush.msra.mxu0 %v4699
    %5474 = vmatpush.msra.mxu0 %v4698
    %5475 = vmatmul.f32.gmra.mxu0 %v5457
    %v5476 = vpop.f32.mrf.mxu0
    %v5477 = vadd.f32 %v4767, %v5476
    %5478 = vdwg.mxu0
    %v5480 = vrot.slane %v5477, 4
    %5481 = vrot.lane.b32.xlu0 %v5480, 48
    %v5482 = vpop.permute.xlu0 %5481
    %v5484 = vadd.f32 %v4691, %v5482
    %v5485 = vxor.u32 %v5484, 2147483648
    %v5486 = vmul.f32 %v5485, 1.442695
    %v5487 = vpow.pop %v5486
    %v5488 = vadd.f32 %v5487, 1.0
    %v5489 = vrcp.pop %v5488
    %v5490 = vmul.f32 %v5488, %v5489
    %v5491 = vsub.f32 1.0, %v5490
    %v5492 = vmul.f32 %v5489, %v5491
    %v5493 = vadd.f32 %v5489, %v5492
    %vm5494 = vweird.f32 %v5488
    %vm5495 = vweird.f32 %v5489
    %vm5496 = vmor %vm5494, %vm5495
    %v5497 = vsel %vm5496, %v5489, %v5493
    %v5498 = vand.u32 2147483647, %v5488
    %vm5499 = vcmp.eq.f32.partialorder %v5498, 8.507059e+37
    %v5500 = vand.u32 %v5488, 2147483648
    %v5501 = vor.u32 1.1754944e-38, %v5500
    %v5502 = vsel %vm5499, %v5501, %v5497
    %v5503 = vmul.f32 1.0, %v5502
    %5504 = vrot.lane.b32.xlu0 %v5480, 16
    %v5505 = vpop.permute.xlu0 %5504
    %v5507 = vmul.f32 %v5503, %v5505
    %5509 = vrot.lane.b32.xlu0 %v5507, 32
    %v5510 = vpop.permute.xlu0 %5509
    %v5512 = vadd.f32 %v4691, %v5510
    %v5513 = vtanh.pop %v5512
    %v5514 = vsub.f32 1.0, %v5503
    %5516 = vrot.lane.b32.xlu0 %v5513, 112
    %v5517 = vpop.permute.xlu0 %5516
    %v5519 = vmul.f32 %v5514, %v5517
    %v5520 = vrot.slane %v5384, 2
    %v5522 = vmul.f32 %v5503, %v5520
    %v5523 = vadd.f32 %v5519, %v5522
    %v5525 = vrot.slane %v5452, 2
    %5526 = vrot.lane.b32.xlu0 %v5525, 112
    %v5527 = vpop.permute.xlu0 %5526
    %v5528 = vsel %vm635, %v5527, 0
    %5530 = vmatpush.msra.mxu0 0.0
    %5531 = vmatpush.msra.mxu0 0.0
    %5532 = vmatpush.msra.mxu0 0.0
    %5533 = vmatpush.msra.mxu0 0.0
    %5534 = vmatpush.msra.mxu0 0.0
    %5535 = vmatpush.msra.mxu0 0.0
    %5536 = vmatpush.msra.mxu0 0.0
    %5537 = vmatpush.msra.mxu0 0.0
    %5538 = vmatpush.msra.mxu0 0.0
    %5539 = vmatpush.msra.mxu0 0.0
    %5540 = vmatpush.msra.mxu0 0.0
    %5541 = vmatpush.msra.mxu0 0.0
    %5542 = vmatpush.msra.mxu0 0.0
    %5543 = vmatpush.msra.mxu0 0.0
    %5544 = vmatpush.msra.mxu0 %v4697
    %5545 = vmatpush.msra.mxu0 %v4696
    %5546 = vmatmul.f32.gmra.mxu0 %v5528
    %v5547 = vpop.f32.mrf.mxu0
    %v5548 = vadd.f32 %v4703, %v5547
    %5549 = vdwg.mxu0
    %v5551 = vrot.slane %v5548, 4
    %v5553 = vadd.f32 %v4694, %v5551
    %v5554 = vxor.u32 %v5553, 2147483648
    %v5555 = vmul.f32 %v5554, 1.442695
    %v5556 = vpow.pop %v5555
    %v5557 = vadd.f32 %v5556, 1.0
    %v5558 = vrcp.pop %v5557
    %v5559 = vmul.f32 %v5557, %v5558
    %v5560 = vsub.f32 1.0, %v5559
    %v5561 = vmul.f32 %v5558, %v5560
    %v5562 = vadd.f32 %v5558, %v5561
    %vm5563 = vweird.f32 %v5557
    %vm5564 = vweird.f32 %v5558
    %vm5565 = vmor %vm5563, %vm5564
    %v5566 = vsel %vm5565, %v5558, %v5562
    %v5567 = vand.u32 2147483647, %v5557
    %vm5568 = vcmp.eq.f32.partialorder %v5567, 8.507059e+37
    %v5569 = vand.u32 %v5557, 2147483648
    %v5570 = vor.u32 1.1754944e-38, %v5569
    %v5571 = vsel %vm5568, %v5570, %v5566
    %v5572 = vmul.f32 1.0, %v5571
    %5573 = vrot.lane.b32.xlu0 %v5551, 96
    %v5574 = vpop.permute.xlu0 %5573
    %v5576 = vmul.f32 %v5572, %v5574
    %5578 = vrot.lane.b32.xlu0 %v5576, 32
    %v5579 = vpop.permute.xlu0 %5578
    %v5581 = vadd.f32 %v4694, %v5579
    %v5582 = vtanh.pop %v5581
    %v5583 = vsub.f32 1.0, %v5572
    %5585 = vrot.lane.b32.xlu0 %v5582, 112
    %v5586 = vpop.permute.xlu0 %5585
    %v5588 = vmul.f32 %v5583, %v5586
    %v5589 = vrot.slane %v5452, 6
    %v5591 = vmul.f32 %v5572, %v5589
    %v5592 = vadd.f32 %v5588, %v5591
    %v5594 = vrot.slane %v5523, 4
    %5595 = vrot.lane.b32.xlu0 %v5594, 64
    %v5596 = vpop.permute.xlu0 %5595
    %v5597 = vsel %vm635, %v5596, 0
    %5599 = vmatpush.msra.mxu0 0.0
    %5600 = vmatpush.msra.mxu0 0.0
    %5601 = vmatpush.msra.mxu0 0.0
    %5602 = vmatpush.msra.mxu0 0.0
    %5603 = vmatpush.msra.mxu0 0.0
    %5604 = vmatpush.msra.mxu0 0.0
    %5605 = vmatpush.msra.mxu0 0.0
    %5606 = vmatpush.msra.mxu0 0.0
    %5607 = vmatpush.msra.mxu0 0.0
    %5608 = vmatpush.msra.mxu0 0.0
    %5609 = vmatpush.msra.mxu0 0.0
    %5610 = vmatpush.msra.mxu0 0.0
    %5611 = vmatpush.msra.mxu0 0.0
    %5612 = vmatpush.msra.mxu0 0.0
    %5613 = vmatpush.msra.mxu0 %v4699
    %5614 = vmatpush.msra.mxu0 %v4698
    %5615 = vmatmul.f32.gmra.mxu0 %v5597
    %v5616 = vpop.f32.mrf.mxu0
    %v5617 = vadd.f32 %v4767, %v5616
    %5618 = vdwg.mxu0
    %v5620 = vrot.slane %v5617, 6
    %5621 = vrot.lane.b32.xlu0 %v5620, 48
    %v5622 = vpop.permute.xlu0 %5621
    %v5624 = vadd.f32 %v4691, %v5622
    %v5625 = vxor.u32 %v5624, 2147483648
    %v5626 = vmul.f32 %v5625, 1.442695
    %v5627 = vpow.pop %v5626
    %v5628 = vadd.f32 %v5627, 1.0
    %v5629 = vrcp.pop %v5628
    %v5630 = vmul.f32 %v5628, %v5629
    %v5631 = vsub.f32 1.0, %v5630
    %v5632 = vmul.f32 %v5629, %v5631
    %v5633 = vadd.f32 %v5629, %v5632
    %vm5634 = vweird.f32 %v5628
    %vm5635 = vweird.f32 %v5629
    %vm5636 = vmor %vm5634, %vm5635
    %v5637 = vsel %vm5636, %v5629, %v5633
    %v5638 = vand.u32 2147483647, %v5628
    %vm5639 = vcmp.eq.f32.partialorder %v5638, 8.507059e+37
    %v5640 = vand.u32 %v5628, 2147483648
    %v5641 = vor.u32 1.1754944e-38, %v5640
    %v5642 = vsel %vm5639, %v5641, %v5637
    %v5643 = vmul.f32 1.0, %v5642
    %5644 = vrot.lane.b32.xlu0 %v5620, 16
    %v5645 = vpop.permute.xlu0 %5644
    %v5647 = vmul.f32 %v5643, %v5645
    %5649 = vrot.lane.b32.xlu0 %v5647, 32
    %v5650 = vpop.permute.xlu0 %5649
    %v5652 = vadd.f32 %v4691, %v5650
    %v5653 = vtanh.pop %v5652
    %v5654 = vsub.f32 1.0, %v5643
    %5656 = vrot.lane.b32.xlu0 %v5653, 112
    %v5657 = vpop.permute.xlu0 %5656
    %v5659 = vmul.f32 %v5654, %v5657
    %v5660 = vrot.slane %v5523, 2
    %v5662 = vmul.f32 %v5643, %v5660
    %v5663 = vadd.f32 %v5659, %v5662
    %v5665 = vrot.slane %v5592, 4
    %5666 = vrot.lane.b32.xlu0 %v5665, 112
    %v5667 = vpop.permute.xlu0 %5666
    %v5668 = vsel %vm635, %v5667, 0
    %5670 = vmatpush.msra.mxu0 0.0
    %5671 = vmatpush.msra.mxu0 0.0
    %5672 = vmatpush.msra.mxu0 0.0
    %5673 = vmatpush.msra.mxu0 0.0
    %5674 = vmatpush.msra.mxu0 0.0
    %5675 = vmatpush.msra.mxu0 0.0
    %5676 = vmatpush.msra.mxu0 0.0
    %5677 = vmatpush.msra.mxu0 0.0
    %5678 = vmatpush.msra.mxu0 0.0
    %5679 = vmatpush.msra.mxu0 0.0
    %5680 = vmatpush.msra.mxu0 0.0
    %5681 = vmatpush.msra.mxu0 0.0
    %5682 = vmatpush.msra.mxu0 0.0
    %5683 = vmatpush.msra.mxu0 0.0
    %5684 = vmatpush.msra.mxu0 %v4697
    %5685 = vmatpush.msra.mxu0 %v4696
    %5686 = vmatmul.f32.gmra.mxu0 %v5668
    %v5687 = vpop.f32.mrf.mxu0
    %v5688 = vadd.f32 %v4703, %v5687
    %5689 = vdwg.mxu0
    %v5691 = vrot.slane %v5688, 2
    %v5693 = vadd.f32 %v4694, %v5691
    %v5694 = vxor.u32 %v5693, 2147483648
    %v5695 = vmul.f32 %v5694, 1.442695
    %v5696 = vpow.pop %v5695
    %v5697 = vadd.f32 %v5696, 1.0
    %v5698 = vrcp.pop %v5697
    %v5699 = vmul.f32 %v5697, %v5698
    %v5700 = vsub.f32 1.0, %v5699
    %v5701 = vmul.f32 %v5698, %v5700
    %v5702 = vadd.f32 %v5698, %v5701
    %vm5703 = vweird.f32 %v5697
    %vm5704 = vweird.f32 %v5698
    %vm5705 = vmor %vm5703, %vm5704
    %v5706 = vsel %vm5705, %v5698, %v5702
    %v5707 = vand.u32 2147483647, %v5697
    %vm5708 = vcmp.eq.f32.partialorder %v5707, 8.507059e+37
    %v5709 = vand.u32 %v5697, 2147483648
    %v5710 = vor.u32 1.1754944e-38, %v5709
    %v5711 = vsel %vm5708, %v5710, %v5706
    %v5712 = vmul.f32 1.0, %v5711
    %5713 = vrot.lane.b32.xlu0 %v5691, 96
    %v5714 = vpop.permute.xlu0 %5713
    %v5716 = vmul.f32 %v5712, %v5714
    %5718 = vrot.lane.b32.xlu0 %v5716, 32
    %v5719 = vpop.permute.xlu0 %5718
    %v5721 = vadd.f32 %v4694, %v5719
    %v5722 = vtanh.pop %v5721
    %v5723 = vsub.f32 1.0, %v5712
    %5725 = vrot.lane.b32.xlu0 %v5722, 112
    %v5726 = vpop.permute.xlu0 %5725
    %v5728 = vmul.f32 %v5723, %v5726
    %v5729 = vrot.slane %v5592, 6
    %v5731 = vmul.f32 %v5712, %v5729
    %v5732 = vadd.f32 %v5728, %v5731
    %v5734 = vrot.slane %v5663, 2
    %5735 = vrot.lane.b32.xlu0 %v5734, 64
    %v5736 = vpop.permute.xlu0 %5735
    %v5737 = vsel %vm635, %v5736, 0
    %5739 = vmatpush.msra.mxu0 0.0
    %5740 = vmatpush.msra.mxu0 0.0
    %5741 = vmatpush.msra.mxu0 0.0
    %5742 = vmatpush.msra.mxu0 0.0
    %5743 = vmatpush.msra.mxu0 0.0
    %5744 = vmatpush.msra.mxu0 0.0
    %5745 = vmatpush.msra.mxu0 0.0
    %5746 = vmatpush.msra.mxu0 0.0
    %5747 = vmatpush.msra.mxu0 0.0
    %5748 = vmatpush.msra.mxu0 0.0
    %5749 = vmatpush.msra.mxu0 0.0
    %5750 = vmatpush.msra.mxu0 0.0
    %5751 = vmatpush.msra.mxu0 0.0
    %5752 = vmatpush.msra.mxu0 0.0
    %5753 = vmatpush.msra.mxu0 %v4699
    %5754 = vmatpush.msra.mxu0 %v4698
    %5755 = vmatmul.f32.gmra.mxu0 %v5737
    %v5756 = vpop.f32.mrf.mxu0
    %v5757 = vadd.f32 %v4767, %v5756
    %5758 = vdwg.mxu0
    %5760 = vrot.lane.b32.xlu0 %v5757, 48
    %v5761 = vpop.permute.xlu0 %5760
    %v5763 = vadd.f32 %v4691, %v5761
    %v5764 = vxor.u32 %v5763, 2147483648
    %v5765 = vmul.f32 %v5764, 1.442695
    %v5766 = vpow.pop %v5765
    %v5767 = vadd.f32 %v5766, 1.0
    %v5768 = vrcp.pop %v5767
    %v5769 = vmul.f32 %v5767, %v5768
    %v5770 = vsub.f32 1.0, %v5769
    %v5771 = vmul.f32 %v5768, %v5770
    %v5772 = vadd.f32 %v5768, %v5771
    %vm5773 = vweird.f32 %v5767
    %vm5774 = vweird.f32 %v5768
    %vm5775 = vmor %vm5773, %vm5774
    %v5776 = vsel %vm5775, %v5768, %v5772
    %v5777 = vand.u32 2147483647, %v5767
    %vm5778 = vcmp.eq.f32.partialorder %v5777, 8.507059e+37
    %v5779 = vand.u32 %v5767, 2147483648
    %v5780 = vor.u32 1.1754944e-38, %v5779
    %v5781 = vsel %vm5778, %v5780, %v5776
    %v5782 = vmul.f32 1.0, %v5781
    %5783 = vrot.lane.b32.xlu0 %v5757, 16
    %v5784 = vpop.permute.xlu0 %5783
    %v5786 = vmul.f32 %v5782, %v5784
    %5788 = vrot.lane.b32.xlu0 %v5786, 32
    %v5789 = vpop.permute.xlu0 %5788
    %v5791 = vadd.f32 %v4691, %v5789
    %v5792 = vtanh.pop %v5791
    %v5793 = vsub.f32 1.0, %v5782
    %5795 = vrot.lane.b32.xlu0 %v5792, 112
    %v5796 = vpop.permute.xlu0 %5795
    %v5798 = vmul.f32 %v5793, %v5796
    %v5800 = vmul.f32 %v5782, %v5734
    %v5801 = vadd.f32 %v5798, %v5800
    %5804 = vrot.lane.b32.xlu0 %v5801, 80
    %v5805 = vpop.permute.xlu0 %5804
    %v5807 = vsel %vm635, %v4834, %v5805
    %5808 = vrot.lane.b32.xlu0 %v4899, 112
    %v5809 = vpop.permute.xlu0 %5808
    %5811 = vrot.lane.b32.xlu0 %v5663, 80
    %v5812 = vpop.permute.xlu0 %5811
    %v5814 = vsel %vm635, %v5809, %v5812
    %5815 = vrot.lane.b32.xlu0 %v5039, 112
    %v5816 = vpop.permute.xlu0 %5815
    %5818 = vrot.lane.b32.xlu0 %v5523, 80
    %v5819 = vpop.permute.xlu0 %5818
    %v5821 = vsel %vm635, %v5816, %v5819
    %5822 = vrot.lane.b32.xlu0 %v5179, 112
    %v5823 = vpop.permute.xlu0 %5822
    %5825 = vrot.lane.b32.xlu0 %v5384, 80
    %v5826 = vpop.permute.xlu0 %5825
    %v5828 = vsel %vm635, %v5823, %v5826
    %5830 = vrot.lane.b32.xlu0 %v5248, 80
    %v5831 = vpop.permute.xlu0 %5830
    %v5833 = vsel %vm635, %v5387, %v5831
    %5834 = vrot.lane.b32.xlu0 %v5452, 112
    %v5835 = vpop.permute.xlu0 %5834
    %5837 = vrot.lane.b32.xlu0 %v5110, 80
    %v5838 = vpop.permute.xlu0 %5837
    %v5840 = vsel %vm635, %v5835, %v5838
    %5841 = vrot.lane.b32.xlu0 %v5592, 112
    %v5842 = vpop.permute.xlu0 %5841
    %5844 = vrot.lane.b32.xlu0 %v4970, 80
    %v5845 = vpop.permute.xlu0 %5844
    %v5847 = vsel %vm635, %v5842, %v5845
    %5849 = vrot.lane.b32.xlu0 %v5732, 112
    %v5850 = vpop.permute.xlu0 %5849
    %5852 = vrot.lane.b32.xlu0 %v4831, 80
    %v5853 = vpop.permute.xlu0 %5852
    %v5855 = vsel %vm635, %v5850, %v5853
    %v5856 = vsel %vm2000, %v5807, %v5814
    %v5857 = vsel %vm2002, %v5856, %v5821
    %v5858 = vsel %vm2004, %v5857, %v5828
    %v5859 = vsel %vm2000, %v5833, %v5840
    %v5860 = vsel %vm2002, %v5859, %v5847
    %v5861 = vsel %vm2004, %v5860, %v5855
    %v5862 = vld [vmem:[#allocation23] sm:$0xff]
    %v5863 = vld [vmem:[#allocation23 + $0x8] sm:$0xff]
    %v5864 = vld [vmem:[#allocation23 + $0x10] sm:$0xff]
    %v5865 = vld [vmem:[#allocation23 + $0x18] sm:$0xff]
    %v5866 = vld [vmem:[#allocation25] sm:$0x1]
    %v5868 = vperm.slane %v5866, 0
    %v5871 = vsel %vm701, %v5858, 0
    %v5874 = vsel %vm701, %v5861, 0
    %5876 = vmatpush.msra.mxu0 0.0
    %5877 = vmatpush.msra.mxu0 0.0
    %5878 = vmatpush.msra.mxu0 0.0
    %5879 = vmatpush.msra.mxu0 0.0
    %5880 = vmatpush.msra.mxu0 0.0
    %5881 = vmatpush.msra.mxu0 0.0
    %5882 = vmatpush.msra.mxu0 0.0
    %5883 = vmatpush.msra.mxu0 0.0
    %5884 = vmatpush.msra.mxu0 0.0
    %5885 = vmatpush.msra.mxu0 0.0
    %5886 = vmatpush.msra.mxu0 0.0
    %5887 = vmatpush.msra.mxu0 0.0
    %5888 = vmatpush.msra.mxu0 %v5865
    %5889 = vmatpush.msra.mxu0 %v5864
    %5890 = vmatpush.msra.mxu0 %v5863
    %5891 = vmatpush.msra.mxu0 %v5862
    %5892 = vmatmul.f32.gmra.mxu0 %v5871
    %v5893 = vpop.f32.mrf.mxu0
    %v5894 = vadd.f32 %v5868, %v5893
    %5895 = vmatmul.f32.gmra.mxu0 %v5874
    %v5896 = vpop.f32.mrf.mxu0
    %v5897 = vadd.f32 %v5868, %v5896
    %5898 = vdwg.mxu0
    %v5899 = vld [vmem:[#allocation26] sm:$0xff]
    %v5900 = vld [vmem:[#allocation26 + $0x8] sm:$0xff]
    %v5901 = vld [vmem:[#allocation28] sm:$0xff]
    %v5902 = vld [vmem:[#allocation28 + $0x8] sm:$0xff]
    %v5903 = vld [vmem:[#allocation29] sm:$0x1]
    %v5904 = vld [vmem:[#allocation31] sm:$0x1]
    %v5906 = vperm.slane %v5903, 0
    %5908 = vmatpush.msra.mxu0 0.0
    %5909 = vmatpush.msra.mxu0 0.0
    %5910 = vmatpush.msra.mxu0 0.0
    %5911 = vmatpush.msra.mxu0 0.0
    %5912 = vmatpush.msra.mxu0 0.0
    %5913 = vmatpush.msra.mxu0 0.0
    %5914 = vmatpush.msra.mxu0 0.0
    %5915 = vmatpush.msra.mxu0 0.0
    %5916 = vmatpush.msra.mxu0 0.0
    %5917 = vmatpush.msra.mxu0 0.0
    %5918 = vmatpush.msra.mxu0 0.0
    %5919 = vmatpush.msra.mxu0 0.0
    %5920 = vmatpush.msra.mxu0 0.0
    %5921 = vmatpush.msra.mxu0 0.0
    %5922 = vmatpush.msra.mxu0 %v5900
    %5923 = vmatpush.msra.mxu0 %v5899
    %5924 = vmatmul.f32.gmra.mxu0 %v4705
    %v5925 = vpop.f32.mrf.mxu0
    %v5926 = vadd.f32 %v5906, %v5925
    %5927 = vdwg.mxu0
    %v5928 = vadd.f32 %v5894, %v5926
    %v5929 = vxor.u32 %v5928, 2147483648
    %v5930 = vmul.f32 %v5929, 1.442695
    %v5931 = vpow.pop %v5930
    %v5932 = vadd.f32 %v5931, 1.0
    %v5933 = vrcp.pop %v5932
    %v5934 = vmul.f32 %v5932, %v5933
    %v5935 = vsub.f32 1.0, %v5934
    %v5936 = vmul.f32 %v5933, %v5935
    %v5937 = vadd.f32 %v5933, %v5936
    %vm5938 = vweird.f32 %v5932
    %vm5939 = vweird.f32 %v5933
    %vm5940 = vmor %vm5938, %vm5939
    %v5941 = vsel %vm5940, %v5933, %v5937
    %v5942 = vand.u32 2147483647, %v5932
    %vm5943 = vcmp.eq.f32.partialorder %v5942, 8.507059e+37
    %v5944 = vand.u32 %v5932, 2147483648
    %v5945 = vor.u32 1.1754944e-38, %v5944
    %v5946 = vsel %vm5943, %v5945, %v5941
    %v5947 = vmul.f32 1.0, %v5946
    %5949 = vrot.lane.b32.xlu0 %v5926, 96
    %v5950 = vpop.permute.xlu0 %5949
    %v5952 = vmul.f32 %v5947, %v5950
    %5954 = vrot.lane.b32.xlu0 %v5952, 32
    %v5955 = vpop.permute.xlu0 %5954
    %v5957 = vadd.f32 %v5894, %v5955
    %v5958 = vtanh.pop %v5957
    %v5959 = vsub.f32 1.0, %v5947
    %5961 = vrot.lane.b32.xlu0 %v5958, 112
    %v5962 = vpop.permute.xlu0 %5961
    %v5964 = vmul.f32 %v5959, %v5962
    %v5965 = vmul.f32 %v5947, 0.0
    %v5966 = vadd.f32 %v5964, %v5965
    %5968 = vrot.lane.b32.xlu0 %v5966, 112
    %v5969 = vpop.permute.xlu0 %5968
    %v5970 = vsel %vm635, %v5969, 0
    %5972 = vmatpush.msra.mxu0 0.0
    %5973 = vmatpush.msra.mxu0 0.0
    %5974 = vmatpush.msra.mxu0 0.0
    %5975 = vmatpush.msra.mxu0 0.0
    %5976 = vmatpush.msra.mxu0 0.0
    %5977 = vmatpush.msra.mxu0 0.0
    %5978 = vmatpush.msra.mxu0 0.0
    %5979 = vmatpush.msra.mxu0 0.0
    %5980 = vmatpush.msra.mxu0 0.0
    %5981 = vmatpush.msra.mxu0 0.0
    %5982 = vmatpush.msra.mxu0 0.0
    %5983 = vmatpush.msra.mxu0 0.0
    %5984 = vmatpush.msra.mxu0 0.0
    %5985 = vmatpush.msra.mxu0 0.0
    %5986 = vmatpush.msra.mxu0 %v5900
    %5987 = vmatpush.msra.mxu0 %v5899
    %5988 = vmatmul.f32.gmra.mxu0 %v5970
    %v5989 = vpop.f32.mrf.mxu0
    %v5990 = vadd.f32 %v5906, %v5989
    %5991 = vdwg.mxu0
    %v5993 = vrot.slane %v5990, 6
    %v5995 = vadd.f32 %v5894, %v5993
    %v5996 = vxor.u32 %v5995, 2147483648
    %v5997 = vmul.f32 %v5996, 1.442695
    %v5998 = vpow.pop %v5997
    %v5999 = vadd.f32 %v5998, 1.0
    %v6000 = vrcp.pop %v5999
    %v6001 = vmul.f32 %v5999, %v6000
    %v6002 = vsub.f32 1.0, %v6001
    %v6003 = vmul.f32 %v6000, %v6002
    %v6004 = vadd.f32 %v6000, %v6003
    %vm6005 = vweird.f32 %v5999
    %vm6006 = vweird.f32 %v6000
    %vm6007 = vmor %vm6005, %vm6006
    %v6008 = vsel %vm6007, %v6000, %v6004
    %v6009 = vand.u32 2147483647, %v5999
    %vm6010 = vcmp.eq.f32.partialorder %v6009, 8.507059e+37
    %v6011 = vand.u32 %v5999, 2147483648
    %v6012 = vor.u32 1.1754944e-38, %v6011
    %v6013 = vsel %vm6010, %v6012, %v6008
    %v6014 = vmul.f32 1.0, %v6013
    %6015 = vrot.lane.b32.xlu0 %v5993, 96
    %v6016 = vpop.permute.xlu0 %6015
    %v6018 = vmul.f32 %v6014, %v6016
    %6020 = vrot.lane.b32.xlu0 %v6018, 32
    %v6021 = vpop.permute.xlu0 %6020
    %v6023 = vadd.f32 %v5894, %v6021
    %v6024 = vtanh.pop %v6023
    %v6025 = vsub.f32 1.0, %v6014
    %6027 = vrot.lane.b32.xlu0 %v6024, 112
    %v6028 = vpop.permute.xlu0 %6027
    %v6030 = vmul.f32 %v6025, %v6028
    %v6031 = vrot.slane %v5966, 6
    %v6033 = vmul.f32 %v6014, %v6031
    %v6034 = vadd.f32 %v6030, %v6033
    %v6036 = vrot.slane %v6034, 2
    %6037 = vrot.lane.b32.xlu0 %v6036, 112
    %v6038 = vpop.permute.xlu0 %6037
    %v6039 = vsel %vm635, %v6038, 0
    %6041 = vmatpush.msra.mxu0 0.0
    %6042 = vmatpush.msra.mxu0 0.0
    %6043 = vmatpush.msra.mxu0 0.0
    %6044 = vmatpush.msra.mxu0 0.0
    %6045 = vmatpush.msra.mxu0 0.0
    %6046 = vmatpush.msra.mxu0 0.0
    %6047 = vmatpush.msra.mxu0 0.0
    %6048 = vmatpush.msra.mxu0 0.0
    %6049 = vmatpush.msra.mxu0 0.0
    %6050 = vmatpush.msra.mxu0 0.0
    %6051 = vmatpush.msra.mxu0 0.0
    %6052 = vmatpush.msra.mxu0 0.0
    %6053 = vmatpush.msra.mxu0 0.0
    %6054 = vmatpush.msra.mxu0 0.0
    %6055 = vmatpush.msra.mxu0 %v5900
    %6056 = vmatpush.msra.mxu0 %v5899
    %6057 = vmatmul.f32.gmra.mxu0 %v6039
    %v6058 = vpop.f32.mrf.mxu0
    %v6059 = vadd.f32 %v5906, %v6058
    %6060 = vdwg.mxu0
    %v6062 = vrot.slane %v6059, 4
    %v6064 = vadd.f32 %v5894, %v6062
    %v6065 = vxor.u32 %v6064, 2147483648
    %v6066 = vmul.f32 %v6065, 1.442695
    %v6067 = vpow.pop %v6066
    %v6068 = vadd.f32 %v6067, 1.0
    %v6069 = vrcp.pop %v6068
    %v6070 = vmul.f32 %v6068, %v6069
    %v6071 = vsub.f32 1.0, %v6070
    %v6072 = vmul.f32 %v6069, %v6071
    %v6073 = vadd.f32 %v6069, %v6072
    %vm6074 = vweird.f32 %v6068
    %vm6075 = vweird.f32 %v6069
    %vm6076 = vmor %vm6074, %vm6075
    %v6077 = vsel %vm6076, %v6069, %v6073
    %v6078 = vand.u32 2147483647, %v6068
    %vm6079 = vcmp.eq.f32.partialorder %v6078, 8.507059e+37
    %v6080 = vand.u32 %v6068, 2147483648
    %v6081 = vor.u32 1.1754944e-38, %v6080
    %v6082 = vsel %vm6079, %v6081, %v6077
    %v6083 = vmul.f32 1.0, %v6082
    %6084 = vrot.lane.b32.xlu0 %v6062, 96
    %v6085 = vpop.permute.xlu0 %6084
    %v6087 = vmul.f32 %v6083, %v6085
    %6089 = vrot.lane.b32.xlu0 %v6087, 32
    %v6090 = vpop.permute.xlu0 %6089
    %v6092 = vadd.f32 %v5894, %v6090
    %v6093 = vtanh.pop %v6092
    %v6094 = vsub.f32 1.0, %v6083
    %6096 = vrot.lane.b32.xlu0 %v6093, 112
    %v6097 = vpop.permute.xlu0 %6096
    %v6099 = vmul.f32 %v6094, %v6097
    %v6100 = vrot.slane %v6034, 6
    %v6102 = vmul.f32 %v6083, %v6100
    %v6103 = vadd.f32 %v6099, %v6102
    %v6105 = vrot.slane %v6103, 4
    %6106 = vrot.lane.b32.xlu0 %v6105, 112
    %v6107 = vpop.permute.xlu0 %6106
    %v6108 = vsel %vm635, %v6107, 0
    %6110 = vmatpush.msra.mxu0 0.0
    %6111 = vmatpush.msra.mxu0 0.0
    %6112 = vmatpush.msra.mxu0 0.0
    %6113 = vmatpush.msra.mxu0 0.0
    %6114 = vmatpush.msra.mxu0 0.0
    %6115 = vmatpush.msra.mxu0 0.0
    %6116 = vmatpush.msra.mxu0 0.0
    %6117 = vmatpush.msra.mxu0 0.0
    %6118 = vmatpush.msra.mxu0 0.0
    %6119 = vmatpush.msra.mxu0 0.0
    %6120 = vmatpush.msra.mxu0 0.0
    %6121 = vmatpush.msra.mxu0 0.0
    %6122 = vmatpush.msra.mxu0 0.0
    %6123 = vmatpush.msra.mxu0 0.0
    %6124 = vmatpush.msra.mxu0 %v5900
    %6125 = vmatpush.msra.mxu0 %v5899
    %6126 = vmatmul.f32.gmra.mxu0 %v6108
    %v6127 = vpop.f32.mrf.mxu0
    %v6128 = vadd.f32 %v5906, %v6127
    %6129 = vdwg.mxu0
    %v6131 = vrot.slane %v6128, 2
    %v6133 = vadd.f32 %v5894, %v6131
    %v6134 = vxor.u32 %v6133, 2147483648
    %v6135 = vmul.f32 %v6134, 1.442695
    %v6136 = vpow.pop %v6135
    %v6137 = vadd.f32 %v6136, 1.0
    %v6138 = vrcp.pop %v6137
    %v6139 = vmul.f32 %v6137, %v6138
    %v6140 = vsub.f32 1.0, %v6139
    %v6141 = vmul.f32 %v6138, %v6140
    %v6142 = vadd.f32 %v6138, %v6141
    %vm6143 = vweird.f32 %v6137
    %vm6144 = vweird.f32 %v6138
    %vm6145 = vmor %vm6143, %vm6144
    %v6146 = vsel %vm6145, %v6138, %v6142
    %v6147 = vand.u32 2147483647, %v6137
    %vm6148 = vcmp.eq.f32.partialorder %v6147, 8.507059e+37
    %v6149 = vand.u32 %v6137, 2147483648
    %v6150 = vor.u32 1.1754944e-38, %v6149
    %v6151 = vsel %vm6148, %v6150, %v6146
    %v6152 = vmul.f32 1.0, %v6151
    %6153 = vrot.lane.b32.xlu0 %v6131, 96
    %v6154 = vpop.permute.xlu0 %6153
    %v6156 = vmul.f32 %v6152, %v6154
    %6158 = vrot.lane.b32.xlu0 %v6156, 32
    %v6159 = vpop.permute.xlu0 %6158
    %v6161 = vadd.f32 %v5894, %v6159
    %v6162 = vtanh.pop %v6161
    %v6163 = vsub.f32 1.0, %v6152
    %6165 = vrot.lane.b32.xlu0 %v6162, 112
    %v6166 = vpop.permute.xlu0 %6165
    %v6168 = vmul.f32 %v6163, %v6166
    %v6169 = vrot.slane %v6103, 6
    %v6171 = vmul.f32 %v6152, %v6169
    %v6172 = vadd.f32 %v6168, %v6171
    %v6174 = vrot.slane %v6172, 6
    %6175 = vrot.lane.b32.xlu0 %v6174, 112
    %v6176 = vpop.permute.xlu0 %6175
    %v6177 = vsel %vm635, %v6176, 0
    %6179 = vmatpush.msra.mxu0 0.0
    %6180 = vmatpush.msra.mxu0 0.0
    %6181 = vmatpush.msra.mxu0 0.0
    %6182 = vmatpush.msra.mxu0 0.0
    %6183 = vmatpush.msra.mxu0 0.0
    %6184 = vmatpush.msra.mxu0 0.0
    %6185 = vmatpush.msra.mxu0 0.0
    %6186 = vmatpush.msra.mxu0 0.0
    %6187 = vmatpush.msra.mxu0 0.0
    %6188 = vmatpush.msra.mxu0 0.0
    %6189 = vmatpush.msra.mxu0 0.0
    %6190 = vmatpush.msra.mxu0 0.0
    %6191 = vmatpush.msra.mxu0 0.0
    %6192 = vmatpush.msra.mxu0 0.0
    %6193 = vmatpush.msra.mxu0 %v5900
    %6194 = vmatpush.msra.mxu0 %v5899
    %6195 = vmatmul.f32.gmra.mxu0 %v6177
    %v6196 = vpop.f32.mrf.mxu0
    %v6197 = vadd.f32 %v5906, %v6196
    %6198 = vdwg.mxu0
    %v6199 = vadd.f32 %v5897, %v6197
    %v6200 = vxor.u32 %v6199, 2147483648
    %v6201 = vmul.f32 %v6200, 1.442695
    %v6202 = vpow.pop %v6201
    %v6203 = vadd.f32 %v6202, 1.0
    %v6204 = vrcp.pop %v6203
    %v6205 = vmul.f32 %v6203, %v6204
    %v6206 = vsub.f32 1.0, %v6205
    %v6207 = vmul.f32 %v6204, %v6206
    %v6208 = vadd.f32 %v6204, %v6207
    %vm6209 = vweird.f32 %v6203
    %vm6210 = vweird.f32 %v6204
    %vm6211 = vmor %vm6209, %vm6210
    %v6212 = vsel %vm6211, %v6204, %v6208
    %v6213 = vand.u32 2147483647, %v6203
    %vm6214 = vcmp.eq.f32.partialorder %v6213, 8.507059e+37
    %v6215 = vand.u32 %v6203, 2147483648
    %v6216 = vor.u32 1.1754944e-38, %v6215
    %v6217 = vsel %vm6214, %v6216, %v6212
    %v6218 = vmul.f32 1.0, %v6217
    %6220 = vrot.lane.b32.xlu0 %v6197, 96
    %v6221 = vpop.permute.xlu0 %6220
    %v6223 = vmul.f32 %v6218, %v6221
    %6225 = vrot.lane.b32.xlu0 %v6223, 32
    %v6226 = vpop.permute.xlu0 %6225
    %v6228 = vadd.f32 %v5897, %v6226
    %v6229 = vtanh.pop %v6228
    %v6230 = vsub.f32 1.0, %v6218
    %6232 = vrot.lane.b32.xlu0 %v6229, 112
    %v6233 = vpop.permute.xlu0 %6232
    %v6235 = vmul.f32 %v6230, %v6233
    %v6237 = vmul.f32 %v6218, %v6174
    %v6238 = vadd.f32 %v6235, %v6237
    %6240 = vrot.lane.b32.xlu0 %v6238, 112
    %v6241 = vpop.permute.xlu0 %6240
    %v6242 = vsel %vm635, %v6241, 0
    %6244 = vmatpush.msra.mxu0 0.0
    %6245 = vmatpush.msra.mxu0 0.0
    %6246 = vmatpush.msra.mxu0 0.0
    %6247 = vmatpush.msra.mxu0 0.0
    %6248 = vmatpush.msra.mxu0 0.0
    %6249 = vmatpush.msra.mxu0 0.0
    %6250 = vmatpush.msra.mxu0 0.0
    %6251 = vmatpush.msra.mxu0 0.0
    %6252 = vmatpush.msra.mxu0 0.0
    %6253 = vmatpush.msra.mxu0 0.0
    %6254 = vmatpush.msra.mxu0 0.0
    %6255 = vmatpush.msra.mxu0 0.0
    %6256 = vmatpush.msra.mxu0 0.0
    %6257 = vmatpush.msra.mxu0 0.0
    %6258 = vmatpush.msra.mxu0 %v5900
    %6259 = vmatpush.msra.mxu0 %v5899
    %6260 = vmatmul.f32.gmra.mxu0 %v6242
    %v6261 = vpop.f32.mrf.mxu0
    %v6262 = vadd.f32 %v5906, %v6261
    %6263 = vdwg.mxu0
    %v6265 = vrot.slane %v6262, 6
    %v6267 = vadd.f32 %v5897, %v6265
    %v6268 = vxor.u32 %v6267, 2147483648
    %v6269 = vmul.f32 %v6268, 1.442695
    %v6270 = vpow.pop %v6269
    %v6271 = vadd.f32 %v6270, 1.0
    %v6272 = vrcp.pop %v6271
    %v6273 = vmul.f32 %v6271, %v6272
    %v6274 = vsub.f32 1.0, %v6273
    %v6275 = vmul.f32 %v6272, %v6274
    %v6276 = vadd.f32 %v6272, %v6275
    %vm6277 = vweird.f32 %v6271
    %vm6278 = vweird.f32 %v6272
    %vm6279 = vmor %vm6277, %vm6278
    %v6280 = vsel %vm6279, %v6272, %v6276
    %v6281 = vand.u32 2147483647, %v6271
    %vm6282 = vcmp.eq.f32.partialorder %v6281, 8.507059e+37
    %v6283 = vand.u32 %v6271, 2147483648
    %v6284 = vor.u32 1.1754944e-38, %v6283
    %v6285 = vsel %vm6282, %v6284, %v6280
    %v6286 = vmul.f32 1.0, %v6285
    %6287 = vrot.lane.b32.xlu0 %v6265, 96
    %v6288 = vpop.permute.xlu0 %6287
    %v6290 = vmul.f32 %v6286, %v6288
    %6292 = vrot.lane.b32.xlu0 %v6290, 32
    %v6293 = vpop.permute.xlu0 %6292
    %v6295 = vadd.f32 %v5897, %v6293
    %v6296 = vtanh.pop %v6295
    %v6297 = vsub.f32 1.0, %v6286
    %6299 = vrot.lane.b32.xlu0 %v6296, 112
    %v6300 = vpop.permute.xlu0 %6299
    %v6302 = vmul.f32 %v6297, %v6300
    %v6303 = vrot.slane %v6238, 6
    %v6305 = vmul.f32 %v6286, %v6303
    %v6306 = vadd.f32 %v6302, %v6305
    %v6308 = vrot.slane %v6306, 2
    %6309 = vrot.lane.b32.xlu0 %v6308, 112
    %v6310 = vpop.permute.xlu0 %6309
    %v6311 = vsel %vm635, %v6310, 0
    %6313 = vmatpush.msra.mxu0 0.0
    %6314 = vmatpush.msra.mxu0 0.0
    %6315 = vmatpush.msra.mxu0 0.0
    %6316 = vmatpush.msra.mxu0 0.0
    %6317 = vmatpush.msra.mxu0 0.0
    %6318 = vmatpush.msra.mxu0 0.0
    %6319 = vmatpush.msra.mxu0 0.0
    %6320 = vmatpush.msra.mxu0 0.0
    %6321 = vmatpush.msra.mxu0 0.0
    %6322 = vmatpush.msra.mxu0 0.0
    %6323 = vmatpush.msra.mxu0 0.0
    %6324 = vmatpush.msra.mxu0 0.0
    %6325 = vmatpush.msra.mxu0 0.0
    %6326 = vmatpush.msra.mxu0 0.0
    %6327 = vmatpush.msra.mxu0 %v5900
    %6328 = vmatpush.msra.mxu0 %v5899
    %6329 = vmatmul.f32.gmra.mxu0 %v6311
    %v6330 = vpop.f32.mrf.mxu0
    %v6331 = vadd.f32 %v5906, %v6330
    %6332 = vdwg.mxu0
    %v6334 = vrot.slane %v6331, 4
    %v6336 = vadd.f32 %v5897, %v6334
    %v6337 = vxor.u32 %v6336, 2147483648
    %v6338 = vmul.f32 %v6337, 1.442695
    %v6339 = vpow.pop %v6338
    %v6340 = vadd.f32 %v6339, 1.0
    %v6341 = vrcp.pop %v6340
    %v6342 = vmul.f32 %v6340, %v6341
    %v6343 = vsub.f32 1.0, %v6342
    %v6344 = vmul.f32 %v6341, %v6343
    %v6345 = vadd.f32 %v6341, %v6344
    %vm6346 = vweird.f32 %v6340
    %vm6347 = vweird.f32 %v6341
    %vm6348 = vmor %vm6346, %vm6347
    %v6349 = vsel %vm6348, %v6341, %v6345
    %v6350 = vand.u32 2147483647, %v6340
    %vm6351 = vcmp.eq.f32.partialorder %v6350, 8.507059e+37
    %v6352 = vand.u32 %v6340, 2147483648
    %v6353 = vor.u32 1.1754944e-38, %v6352
    %v6354 = vsel %vm6351, %v6353, %v6349
    %v6355 = vmul.f32 1.0, %v6354
    %6356 = vrot.lane.b32.xlu0 %v6334, 96
    %v6357 = vpop.permute.xlu0 %6356
    %v6359 = vmul.f32 %v6355, %v6357
    %6361 = vrot.lane.b32.xlu0 %v6359, 32
    %v6362 = vpop.permute.xlu0 %6361
    %v6364 = vadd.f32 %v5897, %v6362
    %v6365 = vtanh.pop %v6364
    %v6366 = vsub.f32 1.0, %v6355
    %6368 = vrot.lane.b32.xlu0 %v6365, 112
    %v6369 = vpop.permute.xlu0 %6368
    %v6371 = vmul.f32 %v6366, %v6369
    %v6372 = vrot.slane %v6306, 6
    %v6374 = vmul.f32 %v6355, %v6372
    %v6375 = vadd.f32 %v6371, %v6374
    %v6377 = vrot.slane %v6375, 4
    %6378 = vrot.lane.b32.xlu0 %v6377, 112
    %v6379 = vpop.permute.xlu0 %6378
    %v6380 = vsel %vm635, %v6379, 0
    %6382 = vmatpush.msra.mxu0 0.0
    %6383 = vmatpush.msra.mxu0 0.0
    %6384 = vmatpush.msra.mxu0 0.0
    %6385 = vmatpush.msra.mxu0 0.0
    %6386 = vmatpush.msra.mxu0 0.0
    %6387 = vmatpush.msra.mxu0 0.0
    %6388 = vmatpush.msra.mxu0 0.0
    %6389 = vmatpush.msra.mxu0 0.0
    %6390 = vmatpush.msra.mxu0 0.0
    %6391 = vmatpush.msra.mxu0 0.0
    %6392 = vmatpush.msra.mxu0 0.0
    %6393 = vmatpush.msra.mxu0 0.0
    %6394 = vmatpush.msra.mxu0 0.0
    %6395 = vmatpush.msra.mxu0 0.0
    %6396 = vmatpush.msra.mxu0 %v5900
    %6397 = vmatpush.msra.mxu0 %v5899
    %6398 = vmatmul.f32.gmra.mxu0 %v6380
    %v6399 = vpop.f32.mrf.mxu0
    %v6400 = vadd.f32 %v5906, %v6399
    %6401 = vdwg.mxu0
    %v6403 = vrot.slane %v6400, 2
    %v6405 = vadd.f32 %v5897, %v6403
    %v6406 = vxor.u32 %v6405, 2147483648
    %v6407 = vmul.f32 %v6406, 1.442695
    %v6408 = vpow.pop %v6407
    %v6409 = vadd.f32 %v6408, 1.0
    %v6410 = vrcp.pop %v6409
    %v6411 = vmul.f32 %v6409, %v6410
    %v6412 = vsub.f32 1.0, %v6411
    %v6413 = vmul.f32 %v6410, %v6412
    %v6414 = vadd.f32 %v6410, %v6413
    %vm6415 = vweird.f32 %v6409
    %vm6416 = vweird.f32 %v6410
    %vm6417 = vmor %vm6415, %vm6416
    %v6418 = vsel %vm6417, %v6410, %v6414
    %v6419 = vand.u32 2147483647, %v6409
    %vm6420 = vcmp.eq.f32.partialorder %v6419, 8.507059e+37
    %v6421 = vand.u32 %v6409, 2147483648
    %v6422 = vor.u32 1.1754944e-38, %v6421
    %v6423 = vsel %vm6420, %v6422, %v6418
    %v6424 = vmul.f32 1.0, %v6423
    %6425 = vrot.lane.b32.xlu0 %v6403, 96
    %v6426 = vpop.permute.xlu0 %6425
    %v6428 = vmul.f32 %v6424, %v6426
    %6430 = vrot.lane.b32.xlu0 %v6428, 32
    %v6431 = vpop.permute.xlu0 %6430
    %v6433 = vadd.f32 %v5897, %v6431
    %v6434 = vtanh.pop %v6433
    %v6435 = vsub.f32 1.0, %v6424
    %6437 = vrot.lane.b32.xlu0 %v6434, 112
    %v6438 = vpop.permute.xlu0 %6437
    %v6440 = vmul.f32 %v6435, %v6438
    %v6441 = vrot.slane %v6375, 6
    %v6443 = vmul.f32 %v6424, %v6441
    %v6444 = vadd.f32 %v6440, %v6443
    %v6446 = vperm.slane %v5904, 0
    %6448 = vmatpush.msra.mxu0 0.0
    %6449 = vmatpush.msra.mxu0 0.0
    %6450 = vmatpush.msra.mxu0 0.0
    %6451 = vmatpush.msra.mxu0 0.0
    %6452 = vmatpush.msra.mxu0 0.0
    %6453 = vmatpush.msra.mxu0 0.0
    %6454 = vmatpush.msra.mxu0 0.0
    %6455 = vmatpush.msra.mxu0 0.0
    %6456 = vmatpush.msra.mxu0 0.0
    %6457 = vmatpush.msra.mxu0 0.0
    %6458 = vmatpush.msra.mxu0 0.0
    %6459 = vmatpush.msra.mxu0 0.0
    %6460 = vmatpush.msra.mxu0 0.0
    %6461 = vmatpush.msra.mxu0 0.0
    %6462 = vmatpush.msra.mxu0 %v5902
    %6463 = vmatpush.msra.mxu0 %v5901
    %6464 = vmatmul.f32.gmra.mxu0 %v4705
    %v6465 = vpop.f32.mrf.mxu0
    %v6466 = vadd.f32 %v6446, %v6465
    %6467 = vdwg.mxu0
    %v6469 = vrot.slane %v6466, 2
    %6470 = vrot.lane.b32.xlu0 %v6469, 48
    %v6471 = vpop.permute.xlu0 %6470
    %v6473 = vadd.f32 %v5897, %v6471
    %v6474 = vxor.u32 %v6473, 2147483648
    %v6475 = vmul.f32 %v6474, 1.442695
    %v6476 = vpow.pop %v6475
    %v6477 = vadd.f32 %v6476, 1.0
    %v6478 = vrcp.pop %v6477
    %v6479 = vmul.f32 %v6477, %v6478
    %v6480 = vsub.f32 1.0, %v6479
    %v6481 = vmul.f32 %v6478, %v6480
    %v6482 = vadd.f32 %v6478, %v6481
    %vm6483 = vweird.f32 %v6477
    %vm6484 = vweird.f32 %v6478
    %vm6485 = vmor %vm6483, %vm6484
    %v6486 = vsel %vm6485, %v6478, %v6482
    %v6487 = vand.u32 2147483647, %v6477
    %vm6488 = vcmp.eq.f32.partialorder %v6487, 8.507059e+37
    %v6489 = vand.u32 %v6477, 2147483648
    %v6490 = vor.u32 1.1754944e-38, %v6489
    %v6491 = vsel %vm6488, %v6490, %v6486
    %v6492 = vmul.f32 1.0, %v6491
    %6493 = vrot.lane.b32.xlu0 %v6469, 16
    %v6494 = vpop.permute.xlu0 %6493
    %v6496 = vmul.f32 %v6492, %v6494
    %6498 = vrot.lane.b32.xlu0 %v6496, 32
    %v6499 = vpop.permute.xlu0 %6498
    %v6501 = vadd.f32 %v5897, %v6499
    %v6502 = vtanh.pop %v6501
    %v6503 = vsub.f32 1.0, %v6492
    %6505 = vrot.lane.b32.xlu0 %v6502, 112
    %v6506 = vpop.permute.xlu0 %6505
    %v6508 = vmul.f32 %v6503, %v6506
    %v6509 = vmul.f32 %v6492, 0.0
    %v6510 = vadd.f32 %v6508, %v6509
    %6512 = vrot.lane.b32.xlu0 %v6444, 112
    %v6513 = vpop.permute.xlu0 %6512
    %6516 = vrot.lane.b32.xlu0 %v6510, 80
    %v6517 = vpop.permute.xlu0 %6516
    %v6519 = vsel %vm635, %v6513, %v6517
    %v6520 = vld [vmem:[#allocation41] sm:$0x1]
    %v6521 = vld [vmem:[#allocation43] sm:$0x1]
    %vm6522 = vcmask 261126
    %v6523 = vsel %vm6522, %v6519, 0.0
    %6524 = vadd.xlane.f32.xlu0 %v6523
    %v6525 = vpop.xlane.xlu0 %6524
    %v6526 = vrcp.pop 32.0
    %v6527 = vmul.f32 32.0, %v6526
    %v6528 = vsub.f32 1.0, %v6527
    %v6529 = vmul.f32 %v6526, %v6528
    %v6530 = vadd.f32 %v6526, %v6529
    %vm6531 = vweird.f32 %v6526
    %v6532 = vsel %vm6531, %v6526, %v6530
    %v6533 = vmul.f32 %v6525, %v6532
    %v6534 = vsub.f32 %v6519, %v6533
    %v6535 = vmul.f32 %v6534, %v6534
    %v6536 = vsel %vm6522, %v6535, 0.0
    %6537 = vadd.xlane.f32.xlu0 %v6536
    %v6538 = vpop.xlane.xlu0 %6537
    %v6539 = vmul.f32 %v6538, %v6532
    %v6540 = vadd.f32 %v6539, 1e-05
    %v6541 = vrsqrt.pop %v6540
    %v6542 = vmul.f32 %v6541, %v6540
    %v6543 = vmul.f32 %v6542, %v6541
    %v6544 = vmul.f32 0.5, %v6543
    %v6545 = vsub.f32 1.5, %v6544
    %v6546 = vmul.f32 %v6541, %v6545
    %vm6547 = vweird.f32 %v6540
    %vm6548 = vweird.f32 %v6541
    %vm6549 = vmor %vm6547, %vm6548
    %v6550 = vsel %vm6549, %v6541, %v6546
    %v6551 = vmul.f32 %v6534, %v6550
    %v6553 = vperm.slane %v6520, 0
    %v6555 = vmul.f32 %v6551, %v6553
    %v6557 = vperm.slane %v6521, 0
    %v6559 = vadd.f32 %v6555, %v6557
    %v6560 = vld [vmem:[%s69] sm:$0xff]
    %v6561 = vld [vmem:[%s69 + $0x8] sm:$0xff]
    %v6562 = vld [vmem:[%s69 + $0x10] sm:$0xff]
    %v6563 = vld [vmem:[%s69 + $0x18] sm:$0xff]
    %v6564 = vld [vmem:[#allocation44] sm:$0x1]
    %v6566 = vperm.slane %v6564, 0
    %v6569 = vrot.slane %v6559, 6
    %v6570 = vsel %vm701, %v6569, 0
    %6572 = vmatpush.msra.mxu0 0.0
    %6573 = vmatpush.msra.mxu0 0.0
    %6574 = vmatpush.msra.mxu0 0.0
    %6575 = vmatpush.msra.mxu0 0.0
    %6576 = vmatpush.msra.mxu0 0.0
    %6577 = vmatpush.msra.mxu0 0.0
    %6578 = vmatpush.msra.mxu0 0.0
    %6579 = vmatpush.msra.mxu0 0.0
    %6580 = vmatpush.msra.mxu0 0.0
    %6581 = vmatpush.msra.mxu0 0.0
    %6582 = vmatpush.msra.mxu0 0.0
    %6583 = vmatpush.msra.mxu0 0.0
    %6584 = vmatpush.msra.mxu0 %v6563
    %6585 = vmatpush.msra.mxu0 %v6562
    %6586 = vmatpush.msra.mxu0 %v6561
    %6587 = vmatpush.msra.mxu0 %v6560
    %6588 = vmatmul.f32.gmra.mxu0 %v6570
    %v6589 = vpop.f32.mrf.mxu0
    %v6590 = vadd.f32 %v6566, %v6589
    %6591 = vdwg.mxu0
    %v6592 = vmax.f32 %v6590, 0.0
    %v6593 = vld [vmem:[%s73] sm:$0xff]
    %v6594 = vld [vmem:[%s73 + $0x8] sm:$0xff]
    %v6595 = vld [vmem:[#allocation46] sm:$0x1]
    %v6597 = vperm.slane %v6595, 0
    %v6600 = vsel %vm635, %v6592, 0
    %6602 = vmatpush.msra.mxu0 0.0
    %6603 = vmatpush.msra.mxu0 0.0
    %6604 = vmatpush.msra.mxu0 0.0
    %6605 = vmatpush.msra.mxu0 0.0
    %6606 = vmatpush.msra.mxu0 0.0
    %6607 = vmatpush.msra.mxu0 0.0
    %6608 = vmatpush.msra.mxu0 0.0
    %6609 = vmatpush.msra.mxu0 0.0
    %6610 = vmatpush.msra.mxu0 0.0
    %6611 = vmatpush.msra.mxu0 0.0
    %6612 = vmatpush.msra.mxu0 0.0
    %6613 = vmatpush.msra.mxu0 0.0
    %6614 = vmatpush.msra.mxu0 0.0
    %6615 = vmatpush.msra.mxu0 0.0
    %6616 = vmatpush.msra.mxu0 %v6594
    %6617 = vmatpush.msra.mxu0 %v6593
    %6618 = vmatmul.f32.gmra.mxu0 %v6600
    %v6619 = vpop.f32.mrf.mxu0
    %v6620 = vadd.f32 %v6597, %v6619
    %6621 = vdwg.mxu0
    %v6622 = vmax.f32 %v6620, 0.0
    %v6623 = vld [vmem:[%s77] sm:$0xff]
    %v6624 = vld [vmem:[#allocation47] sm:$0x1]
    %v6626 = vperm.slane %v6624, 0
    %v6629 = vsel %vm3543, %v6622, 0
    %6631 = vmatpush.msra.mxu0 0.0
    %6632 = vmatpush.msra.mxu0 0.0
    %6633 = vmatpush.msra.mxu0 0.0
    %6634 = vmatpush.msra.mxu0 0.0
    %6635 = vmatpush.msra.mxu0 0.0
    %6636 = vmatpush.msra.mxu0 0.0
    %6637 = vmatpush.msra.mxu0 0.0
    %6638 = vmatpush.msra.mxu0 0.0
    %6639 = vmatpush.msra.mxu0 0.0
    %6640 = vmatpush.msra.mxu0 0.0
    %6641 = vmatpush.msra.mxu0 0.0
    %6642 = vmatpush.msra.mxu0 0.0
    %6643 = vmatpush.msra.mxu0 0.0
    %6644 = vmatpush.msra.mxu0 0.0
    %6645 = vmatpush.msra.mxu0 0.0
    %6646 = vmatpush.msra.mxu0 %v6623
    %6647 = vmatmul.f32.gmra.mxu0 %v6629
    %v6648 = vpop.f32.mrf.mxu0
    %v6649 = vadd.f32 %v6626, %v6648
    %6650 = vdwg.mxu0
    %v6651 = vmax.f32 %v6649, 0.0
    %v6652 = vld [vmem:[%s81] sm:$0xff]
    %v6653 = vld [vmem:[%s81 + $0x8] sm:$0xff]
    %v6654 = vld [vmem:[%s81 + $0x10] sm:$0xff]
    %v6655 = vld [vmem:[%s81 + $0x18] sm:$0xff]
    %v6656 = vld [vmem:[#allocation49] sm:$0x1]
    %v6658 = vperm.slane %v6656, 0
    %v6661 = vsel %vm701, %v6651, 0
    %6663 = vmatpush.msra.mxu0 0.0
    %6664 = vmatpush.msra.mxu0 0.0
    %6665 = vmatpush.msra.mxu0 0.0
    %6666 = vmatpush.msra.mxu0 0.0
    %6667 = vmatpush.msra.mxu0 0.0
    %6668 = vmatpush.msra.mxu0 0.0
    %6669 = vmatpush.msra.mxu0 0.0
    %6670 = vmatpush.msra.mxu0 0.0
    %6671 = vmatpush.msra.mxu0 0.0
    %6672 = vmatpush.msra.mxu0 0.0
    %6673 = vmatpush.msra.mxu0 0.0
    %6674 = vmatpush.msra.mxu0 0.0
    %6675 = vmatpush.msra.mxu0 %v6655
    %6676 = vmatpush.msra.mxu0 %v6654
    %6677 = vmatpush.msra.mxu0 %v6653
    %6678 = vmatpush.msra.mxu0 %v6652
    %6679 = vmatmul.f32.gmra.mxu0 %v6661
    %v6680 = vpop.f32.mrf.mxu0
    %v6681 = vadd.f32 %v6658, %v6680
    %6682 = vdwg.mxu0
    %v6683 = vmax.f32 %v6681, 0.0
    %v6684 = vld [vmem:[%s85] sm:$0xff]
    %v6685 = vld [vmem:[%s85 + $0x8] sm:$0xff]
    %v6686 = vld [vmem:[#allocation2] sm:$0x1]
    %v6688 = vperm.slane %v6686, 0
    %v6691 = vsel %vm635, %v6683, 0
    %6693 = vmatpush.msra.mxu0 0.0
    %6694 = vmatpush.msra.mxu0 0.0
    %6695 = vmatpush.msra.mxu0 0.0
    %6696 = vmatpush.msra.mxu0 0.0
    %6697 = vmatpush.msra.mxu0 0.0
    %6698 = vmatpush.msra.mxu0 0.0
    %6699 = vmatpush.msra.mxu0 0.0
    %6700 = vmatpush.msra.mxu0 0.0
    %6701 = vmatpush.msra.mxu0 0.0
    %6702 = vmatpush.msra.mxu0 0.0
    %6703 = vmatpush.msra.mxu0 0.0
    %6704 = vmatpush.msra.mxu0 0.0
    %6705 = vmatpush.msra.mxu0 0.0
    %6706 = vmatpush.msra.mxu0 0.0
    %6707 = vmatpush.msra.mxu0 %v6685
    %6708 = vmatpush.msra.mxu0 %v6684
    %6709 = vmatmul.f32.gmra.mxu0 %v6691
    %v6710 = vpop.f32.mrf.mxu0
    %v6711 = vadd.f32 %v6688, %v6710
    %6712 = vdwg.mxu0
    %v6713 = vxor.u32 %v6711, 2147483648
    %v6714 = vmul.f32 %v6713, 1.442695
    %v6715 = vpow.pop %v6714
    %v6716 = vadd.f32 %v6715, 1.0
    %v6717 = vrcp.pop %v6716
    %v6718 = vmul.f32 %v6716, %v6717
    %v6719 = vsub.f32 1.0, %v6718
    %v6720 = vmul.f32 %v6717, %v6719
    %v6721 = vadd.f32 %v6717, %v6720
    %vm6722 = vweird.f32 %v6716
    %vm6723 = vweird.f32 %v6717
    %vm6724 = vmor %vm6722, %vm6723
    %v6725 = vsel %vm6724, %v6717, %v6721
    %v6726 = vand.u32 2147483647, %v6716
    %vm6727 = vcmp.eq.f32.partialorder %v6726, 8.507059e+37
    %v6728 = vand.u32 %v6716, 2147483648
    %v6729 = vor.u32 1.1754944e-38, %v6728
    %v6730 = vsel %vm6727, %v6729, %v6725
    %v6731 = vmul.f32 1.0, %v6730
    %vm6732 = vcmask 1024
    %6733 = vst.msk [vmem:[%s89] sm:$0x3] %vm6732, %v6731
    // Predicated region
    $region302: #{_lambda_.1} parent=1 // pred_check
      _
    $region303: #{_lambda_.1} parent=1 // pred_check_branch
      %6735 = sbr.rel (0) target = $region305
    $region304: #{_lambda_.1} parent=1 // pred_region
      _
    $region305: #{_lambda_.1} parent=1 // pred_fallthru
      _
    // Predicated region
    $region306: #{_lambda_.1} parent=1 // pred_check
      _
    $region307: #{_lambda_.1} parent=1 // pred_check_branch
      %6737 = sbr.rel (0) target = $region309
    $region308: #{_lambda_.1} parent=1 // pred_region
      _
    $region309: #{_lambda_.1} parent=1 // pred_fallthru
      _
    %6738 = vsyncpa [#allocation4], 1
    %6739 = vsyncpa [#allocation6], 1
    %6740 = vsyncpa [#allocation9], 1
    %6741 = vsyncpa [#allocation12], 1
    %6742 = vsyncpa [#allocation15], 1
    %6743 = vsyncpa [#allocation18], 1
    %6744 = vsyncpa [#allocation21], 1
    %6745 = vsyncpa [#allocation24], 1
    %6746 = vsyncpa [#allocation27], 1
    %6747 = vsyncpa [#allocation30], 1
    %6748 = vsyncpa [#allocation33], 1
    %6749 = vsyncpa [#allocation36], 1
    %6750 = vsyncpa [#allocation39], 1
    %6751 = vsyncpa [#allocation42], 1
    %6752 = vsyncpa [#allocation45], 1
    %6753 = vsyncpa [#allocation48], 1

</llo_original>
